<compile_context>
chip_gen: v6e
topology: v6e:2x2x1
jax: 0.10.0
libtpu: 0.0.40
codegen_flags: <defaults>
</compile_context>

<pallas_src>
import functools

import jax
import jax.numpy as jnp
from jax.experimental import pallas as pl
from jax.experimental.pallas import tpu as pltpu


# ----------------------------------------------------------------------------
# Pallas kernel: the whole FNO1D forward in one VMEM-resident program.
# ----------------------------------------------------------------------------
def _fno1d_kernel(B, N, W, modes, eps, *refs):
    (x_ref, srep, msel, ssum,
     w0mat, b0,
     g0, be0, g1, be1, g2, be2, g3, be3,
     fb2, gb2, mix1, mix2, mix3,
     wp1, bp1, wp2, bp2, wp3, bp3,
     fc1w, fc1b, fc2w, fc2b,
     out_ref) = refs

    R = 2 * modes                       # stacked Re/Im "mode rows"
    nrows = B * N
    inv_n = 1.0 / nrows

    def dot(a, b):
        return jnp.dot(a, b, preferred_element_type=jnp.float32)

    def batchnorm(a, gref, bref):
        # training-mode BatchNorm1d, one-pass stats (sum & sum-of-squares).
        s1 = jnp.sum(a, axis=0, keepdims=True) * inv_n
        s2 = jnp.sum(a * a, axis=0, keepdims=True) * inv_n
        var = s2 - s1 * s1
        rstd = jax.lax.rsqrt(var + eps)
        return (a - s1) * (rstd * gref[...]) + bref[...]

    fb2_v = fb2[...]                    # (R*B, B*N)  stacked [Fr;Fi], blockdiag over batch
    gb2_v = gb2[...]                    # (B*N, R*B)  stacked [GrT|GiT], blockdiag over batch
    msel_v = msel[...]                  # (B*N, N)    one-hot position selector

    def spectral(a, mix_ref):
        # (1) truncated rfft, all batches + Re/Im in ONE matmul.
        h2 = dot(fb2_v, a)                                          # (R*B, W)
        # (2) flatten modes into lanes: (R*B, W) -> (B, R*W).  W == 128 so every
        #     concat piece/offset is lane-tile aligned (pure vreg bookkeeping).
        hf = jnp.concatenate(
            [h2[r * B:(r + 1) * B, :] for r in range(R)], axis=1)   # (B, R*W)
        # (3) per-mode complex channel mixing == one dense matmul against the
        #     host-built block-diagonal [[Wr, Wi], [-Wi, Wr]] operator.
        of = dot(hf, mix_ref[...])                                  # (B, R*W)
        # (4) unflatten lanes back to mode rows (aligned lane slices).
        o2 = jnp.concatenate(
            [of[:, r * W:(r + 1) * W] for r in range(R)], axis=0)   # (R*B, W)
        # (5) truncated irfft, all batches in ONE matmul.
        return dot(gb2_v, o2)                                       # (B*N, W)

    def pointwise(a, wp_ref, bp_ref):
        # Conv1d(width, width, 1) == per-position channel matmul.
        return dot(a, wp_ref[...]) + bp_ref[...]

    # fc0: expand lane-dense x (B, N) into channels-last rows (B*N, W) using
    # one-hot selectors + matmuls (no in-kernel transpose / minor-dim reshape).
    xrep = dot(srep[...], x_ref[...]) * msel_v                      # (B*N, N)
    a = dot(xrep, w0mat[...]) + b0[...]                             # (B*N, W)
    a = batchnorm(a, g0, be0)                                                   # bn0
    a = batchnorm(spectral(a, mix1) + pointwise(a, wp1, bp1), g1, be1)          # layer 1
    a = batchnorm(spectral(a, mix2) + pointwise(a, wp2, bp2), g2, be2)          # layer 2
    a = batchnorm(spectral(a, mix3) + pointwise(a, wp3, bp3), g3, be3)          # layer 3
    h = jnp.maximum(dot(a, fc1w[...]) + fc1b[...], 0.0)                         # fc1+relu
    y = dot(h, fc2w[...]) + fc2b[...]                                           # (B*N, 1)
    # lane-dense (B, N) output: scatter y back with the same one-hot selectors.
    out_ref[...] = dot(ssum[...], y * msel_v)                                   # (B, N)


# ----------------------------------------------------------------------------
# Glue: DFT / layout operators, spectral mixing matrices, params, wrapper.
# ----------------------------------------------------------------------------
def make_operator_mats(B, N, modes):
    assert modes <= N // 2 + 1, "modes must not exceed the rfft length N//2+1"
    k = jnp.arange(modes, dtype=jnp.float32)[:, None]
    n = jnp.arange(N, dtype=jnp.float32)[None, :]
    theta = 2.0 * jnp.pi * k * n / N                       # (modes, N)
    fr = jnp.cos(theta)                                    # Re rows of rfft
    fi = -jnp.sin(theta)                                   # Im rows of rfft
    kk = jnp.arange(modes)
    single = (kk == 0)
    if N % 2 == 0:
        single = single | (kk == N // 2)                   # DC / Nyquist counted once
    c = jnp.where(single, 1.0, 2.0).astype(jnp.float32)
    grt = (fr * c[:, None] / N).T                          # (N, modes)
    git = (fi * c[:, None] / N).T                          # (N, modes)

    R = 2 * modes
    fstack = jnp.concatenate([fr, fi], axis=0)             # (R, N)
    g2 = jnp.concatenate([grt, git], axis=1)               # (N, R)
    eye_b = jnp.eye(B, dtype=jnp.float32)
    # forward: rows ordered (r, b); block-diagonal over batch.
    fb2 = jnp.einsum('rn,bc->rbcn', fstack, eye_b).reshape(R * B, B * N)
    # inverse: cols ordered (r, b); block-diagonal over batch.
    gb2 = jnp.einsum('bc,nr->bnrc', eye_b, g2).reshape(B * N, R * B)

    srep = jnp.repeat(jnp.eye(B, dtype=jnp.float32), N, axis=0)    # (B*N, B)
    msel = jnp.tile(jnp.eye(N, dtype=jnp.float32), (B, 1))         # (B*N, N)
    ssum = srep.T                                                  # (B, B*N)
    return fb2, gb2, srep, msel, ssum


def make_mix(wr, wi):
    # Dense (2*modes*W, 2*modes*W) operator: [[blockdiag(Wr), blockdiag(Wi)],
    #                                         [-blockdiag(Wi), blockdiag(Wr)]]
    m, W, _ = wr.shape
    eye_m = jnp.eye(m, dtype=wr.dtype)
    bdr = jnp.einsum('kio,kl->kilo', wr, eye_m).reshape(m * W, m * W)
    bdi = jnp.einsum('kio,kl->kilo', wi, eye_m).reshape(m * W, m * W)
    return jnp.concatenate(
        [jnp.concatenate([bdr, bdi], axis=1),
         jnp.concatenate([-bdi, bdr], axis=1)], axis=0)


def init_params(key, width, modes):
    W = width
    ks = jax.random.split(key, 16)
    normal = lambda k, shape, s: jax.random.normal(k, shape, dtype=jnp.float32) * s
    scale = 1.0 / (W * W)
    ones = lambda: jnp.ones((1, W), jnp.float32)
    zeros = lambda: jnp.zeros((1, W), jnp.float32)
    return {
        # fc0: Linear(1, width), stored transposed as (1, W) / (1, W)
        "w0": normal(ks[0], (1, W), 0.5), "b0": normal(ks[1], (1, W), 0.5),
        # BatchNorm affine params (PyTorch init: weight=1, bias=0)
        "g0": ones(), "be0": zeros(), "g1": ones(), "be1": zeros(),
        "g2": ones(), "be2": zeros(), "g3": ones(), "be3": zeros(),
        # SpectralConv1d complex weights, stored as (modes, in, out) real / imag
        "wr1": normal(ks[2], (modes, W, W), scale), "wi1": normal(ks[3], (modes, W, W), scale),
        "wr2": normal(ks[4], (modes, W, W), scale), "wi2": normal(ks[5], (modes, W, W), scale),
        "wr3": normal(ks[6], (modes, W, W), scale), "wi3": normal(ks[7], (modes, W, W), scale),
        # Conv1d(width, width, 1) weights stored as (in, out) + bias (1, out)
        "wp1": normal(ks[8], (W, W), 0.1), "bp1": normal(ks[9], (1, W), 0.1),
        "wp2": normal(ks[10], (W, W), 0.1), "bp2": normal(ks[11], (1, W), 0.1),
        "wp3": normal(ks[12], (W, W), 0.1), "bp3": normal(ks[13], (1, W), 0.1),
        # fc1 / fc2 stored as (in, out) + bias (1, out)
        "fc1w": normal(ks[14], (W, 128), 0.1), "fc1b": jnp.zeros((1, 128), jnp.float32),
        "fc2w": normal(ks[15], (128, 1), 0.1), "fc2b": jnp.zeros((1, 1), jnp.float32),
    }


def fno1d_forward(x, params, modes, eps=1e-5):
    B, N = x.shape
    W = params["w0"].shape[1]
    fb2, gb2, srep, msel, ssum = make_operator_mats(B, N, modes)
    w0mat = jnp.tile(params["w0"], (N, 1))                          # (N, W)
    mix1 = make_mix(params["wr1"], params["wi1"])
    mix2 = make_mix(params["wr2"], params["wi2"])
    mix3 = make_mix(params["wr3"], params["wi3"])
    args = [
        x.astype(jnp.float32), srep, msel, ssum,
        w0mat, params["b0"],
        params["g0"], params["be0"], params["g1"], params["be1"],
        params["g2"], params["be2"], params["g3"], params["be3"],
        fb2, gb2, mix1, mix2, mix3,
        params["wp1"], params["bp1"], params["wp2"], params["bp2"],
        params["wp3"], params["bp3"],
        params["fc1w"], params["fc1b"], params["fc2w"], params["fc2b"],
    ]
    kernel = functools.partial(_fno1d_kernel, B, N, W, modes, eps)
    out = pl.pallas_call(
        kernel,
        out_shape=jax.ShapeDtypeStruct((B, N), jnp.float32),
        in_specs=[pl.BlockSpec(memory_space=pltpu.MemorySpace.VMEM)] * len(args),
        out_specs=pl.BlockSpec(memory_space=pltpu.MemorySpace.VMEM),
        compiler_params=pltpu.CompilerParams(vmem_limit_bytes=32 * 1024 * 1024),
    )(*args)
    return out


# ----------------------------------------------------------------------------
# Pure-JAX reference mirroring the PyTorch forward (uses jnp.fft).
# ----------------------------------------------------------------------------
def fno1d_reference(x, p, modes, eps=1e-5):
    B, N = x.shape
    W = p["w0"].shape[1]
    h = x[:, :, None] * p["w0"][0][None, None, :] + p["b0"][0][None, None, :]  # (B,N,W)
    h = jnp.transpose(h, (0, 2, 1))                                            # (B,W,N)

    def bn(h, g, b):
        mean = jnp.mean(h, axis=(0, 2), keepdims=True)
        var = jnp.mean((h - mean) ** 2, axis=(0, 2), keepdims=True)
        return (h - mean) / jnp.sqrt(var + eps) * g[0][None, :, None] + b[0][None, :, None]

    def spec(h, wr, wi):
        xft = jnp.fft.rfft(h, axis=-1)
        K = xft.shape[-1]
        wc = wr + 1j * wi                                   # (modes, W, W)
        out_ft = jnp.zeros((B, W, K), dtype=xft.dtype)
        for i in range(modes):
            out_ft = out_ft.at[:, :, i].set(jnp.einsum('bi,io->bo', xft[:, :, i], wc[i]))
        return jnp.fft.irfft(out_ft, n=N, axis=-1)

    def pw(h, wp, bp):
        return jnp.einsum('bin,io->bon', h, wp) + bp[0][None, :, None]

    h = bn(h, p["g0"], p["be0"])
    h = bn(spec(h, p["wr1"], p["wi1"]) + pw(h, p["wp1"], p["bp1"]), p["g1"], p["be1"])
    h = bn(spec(h, p["wr2"], p["wi2"]) + pw(h, p["wp2"], p["bp2"]), p["g2"], p["be2"])
    h = bn(spec(h, p["wr3"], p["wi3"]) + pw(h, p["wp3"], p["bp3"]), p["g3"], p["be3"])
    h = jnp.transpose(h, (0, 2, 1))                                            # (B,N,W)
    h = jax.nn.relu(h @ p["fc1w"] + p["fc1b"][0])
    y = h @ p["fc2w"] + p["fc2b"][0]
    return y[..., 0]


if __name__ == "__main__":
    B, N = 2, 16           # batch, spatial resolution
    width, modes = 128, 4  # FNO width (multiple of 128 -> lane-dense), retained modes

    key = jax.random.PRNGKey(0)
    kx, kp = jax.random.split(key)
    x = jax.random.normal(kx, (B, N), dtype=jnp.float32)
    params = init_params(kp, width, modes)

    out = jax.block_until_ready(fno1d_forward(x, params, modes))
    ref = jax.block_until_ready(fno1d_reference(x, params, modes))

    assert out.shape == (B, N)
    assert bool(jnp.all(jnp.isfinite(out)))
    assert bool(jnp.allclose(out, ref, rtol=5e-2, atol=5e-2))
    print("KERNEL_OK")
</pallas_src>

<mosaic_0001>
module attributes {stable_mosaic.version = 11 : i64} {
  func.func @_fno1d_kernel(%arg0: memref<2x16xf32, #tpu.memory_space<vmem>>, %arg1: memref<32x2xf32, #tpu.memory_space<vmem>>, %arg2: memref<32x16xf32, #tpu.memory_space<vmem>>, %arg3: memref<2x32xf32, #tpu.memory_space<vmem>>, %arg4: memref<16x128xf32, #tpu.memory_space<vmem>>, %arg5: memref<1x128xf32, #tpu.memory_space<vmem>>, %arg6: memref<1x128xf32, #tpu.memory_space<vmem>>, %arg7: memref<1x128xf32, #tpu.memory_space<vmem>>, %arg8: memref<1x128xf32, #tpu.memory_space<vmem>>, %arg9: memref<1x128xf32, #tpu.memory_space<vmem>>, %arg10: memref<1x128xf32, #tpu.memory_space<vmem>>, %arg11: memref<1x128xf32, #tpu.memory_space<vmem>>, %arg12: memref<1x128xf32, #tpu.memory_space<vmem>>, %arg13: memref<1x128xf32, #tpu.memory_space<vmem>>, %arg14: memref<16x32xf32, #tpu.memory_space<vmem>>, %arg15: memref<32x16xf32, #tpu.memory_space<vmem>>, %arg16: memref<1024x1024xf32, #tpu.memory_space<vmem>>, %arg17: memref<1024x1024xf32, #tpu.memory_space<vmem>>, %arg18: memref<1024x1024xf32, #tpu.memory_space<vmem>>, %arg19: memref<128x128xf32, #tpu.memory_space<vmem>>, %arg20: memref<1x128xf32, #tpu.memory_space<vmem>>, %arg21: memref<128x128xf32, #tpu.memory_space<vmem>>, %arg22: memref<1x128xf32, #tpu.memory_space<vmem>>, %arg23: memref<128x128xf32, #tpu.memory_space<vmem>>, %arg24: memref<1x128xf32, #tpu.memory_space<vmem>>, %arg25: memref<128x128xf32, #tpu.memory_space<vmem>>, %arg26: memref<1x128xf32, #tpu.memory_space<vmem>>, %arg27: memref<128x1xf32, #tpu.memory_space<vmem>>, %arg28: memref<1x1xf32, #tpu.memory_space<vmem>>, %arg29: memref<2x16xf32, #tpu.memory_space<vmem>>) attributes {dimension_semantics = [], scalar_prefetch = 0 : i64, scratch_operands = 0 : i64, tpu.core_type = #tpu.core_type<tc>} {
    %c0 = arith.constant 0 : index
    %c0_0 = arith.constant 0 : index
    %0 = vector.load %arg14[%c0, %c0_0] : memref<16x32xf32, #tpu.memory_space<vmem>>, vector<16x32xf32>
    %c0_1 = arith.constant 0 : index
    %c0_2 = arith.constant 0 : index
    %1 = vector.load %arg15[%c0_1, %c0_2] : memref<32x16xf32, #tpu.memory_space<vmem>>, vector<32x16xf32>
    %c0_3 = arith.constant 0 : index
    %c0_4 = arith.constant 0 : index
    %2 = vector.load %arg2[%c0_3, %c0_4] : memref<32x16xf32, #tpu.memory_space<vmem>>, vector<32x16xf32>
    %c0_5 = arith.constant 0 : index
    %c0_6 = arith.constant 0 : index
    %3 = vector.load %arg1[%c0_5, %c0_6] : memref<32x2xf32, #tpu.memory_space<vmem>>, vector<32x2xf32>
    %c0_7 = arith.constant 0 : index
    %c0_8 = arith.constant 0 : index
    %4 = vector.load %arg0[%c0_7, %c0_8] : memref<2x16xf32, #tpu.memory_space<vmem>>, vector<2x16xf32>
    %cst = arith.constant dense<0.000000e+00> : vector<32x16xf32>
    %5 = tpu.matmul %3, %4, %cst {dimension_numbers = #tpu.dot_dimension_numbers<[1], [0], [0], [1], [0, 0, 1, 1], [], []>} : vector<32x2xf32>, vector<2x16xf32>, vector<32x16xf32> -> vector<32x16xf32>
    %6 = arith.mulf %5, %2 : vector<32x16xf32>
    %c0_9 = arith.constant 0 : index
    %c0_10 = arith.constant 0 : index
    %7 = vector.load %arg4[%c0_9, %c0_10] : memref<16x128xf32, #tpu.memory_space<vmem>>, vector<16x128xf32>
    %cst_11 = arith.constant dense<0.000000e+00> : vector<32x128xf32>
    %8 = tpu.matmul %6, %7, %cst_11 {dimension_numbers = #tpu.dot_dimension_numbers<[1], [0], [0], [1], [0, 0, 1, 1], [], []>} : vector<32x16xf32>, vector<16x128xf32>, vector<32x128xf32> -> vector<32x128xf32>
    %c0_12 = arith.constant 0 : index
    %c0_13 = arith.constant 0 : index
    %9 = vector.load %arg5[%c0_12, %c0_13] : memref<1x128xf32, #tpu.memory_space<vmem>>, vector<1x128xf32>
    %10 = vector.broadcast %9 : vector<1x128xf32> to vector<32x128xf32>
    %11 = arith.addf %8, %10 : vector<32x128xf32>
    %cst_14 = arith.constant dense<0.000000e+00> : vector<128xf32>
    %12 = vector.multi_reduction <add>, %11, %cst_14 [0] : vector<32x128xf32> to vector<128xf32>
    %13 = vector.shape_cast %12 : vector<128xf32> to vector<1x128xf32>
    %cst_15 = arith.constant 3.125000e-02 : f32
    %14 = vector.broadcast %cst_15 : f32 to vector<1x128xf32>
    %15 = arith.mulf %13, %14 : vector<1x128xf32>
    %16 = arith.mulf %11, %11 : vector<32x128xf32>
    %cst_16 = arith.constant dense<0.000000e+00> : vector<128xf32>
    %17 = vector.multi_reduction <add>, %16, %cst_16 [0] : vector<32x128xf32> to vector<128xf32>
    %18 = vector.shape_cast %17 : vector<128xf32> to vector<1x128xf32>
    %cst_17 = arith.constant 3.125000e-02 : f32
    %19 = vector.broadcast %cst_17 : f32 to vector<1x128xf32>
    %20 = arith.mulf %18, %19 : vector<1x128xf32>
    %21 = arith.mulf %15, %15 : vector<1x128xf32>
    %22 = arith.subf %20, %21 : vector<1x128xf32>
    %cst_18 = arith.constant 9.99999974E-6 : f32
    %23 = vector.broadcast %cst_18 : f32 to vector<1x128xf32>
    %24 = arith.addf %22, %23 : vector<1x128xf32>
    %25 = math.rsqrt %24 : vector<1x128xf32>
    %26 = vector.broadcast %15 : vector<1x128xf32> to vector<32x128xf32>
    %27 = arith.subf %11, %26 : vector<32x128xf32>
    %c0_19 = arith.constant 0 : index
    %c0_20 = arith.constant 0 : index
    %28 = vector.load %arg6[%c0_19, %c0_20] : memref<1x128xf32, #tpu.memory_space<vmem>>, vector<1x128xf32>
    %29 = arith.mulf %25, %28 : vector<1x128xf32>
    %30 = vector.broadcast %29 : vector<1x128xf32> to vector<32x128xf32>
    %31 = arith.mulf %27, %30 : vector<32x128xf32>
    %c0_21 = arith.constant 0 : index
    %c0_22 = arith.constant 0 : index
    %32 = vector.load %arg7[%c0_21, %c0_22] : memref<1x128xf32, #tpu.memory_space<vmem>>, vector<1x128xf32>
    %33 = vector.broadcast %32 : vector<1x128xf32> to vector<32x128xf32>
    %34 = arith.addf %31, %33 : vector<32x128xf32>
    %cst_23 = arith.constant dense<0.000000e+00> : vector<16x128xf32>
    %35 = tpu.matmul %0, %34, %cst_23 {dimension_numbers = #tpu.dot_dimension_numbers<[1], [0], [0], [1], [0, 0, 1, 1], [], []>} : vector<16x32xf32>, vector<32x128xf32>, vector<16x128xf32> -> vector<16x128xf32>
    %36 = vector.extract_strided_slice %35 {offsets = [0, 0], sizes = [2, 128], strides = [1, 1]} : vector<16x128xf32> to vector<2x128xf32>
    %37 = vector.extract_strided_slice %35 {offsets = [2, 0], sizes = [2, 128], strides = [1, 1]} : vector<16x128xf32> to vector<2x128xf32>
    %38 = vector.extract_strided_slice %35 {offsets = [4, 0], sizes = [2, 128], strides = [1, 1]} : vector<16x128xf32> to vector<2x128xf32>
    %39 = vector.extract_strided_slice %35 {offsets = [6, 0], sizes = [2, 128], strides = [1, 1]} : vector<16x128xf32> to vector<2x128xf32>
    %40 = vector.extract_strided_slice %35 {offsets = [8, 0], sizes = [2, 128], strides = [1, 1]} : vector<16x128xf32> to vector<2x128xf32>
    %41 = vector.extract_strided_slice %35 {offsets = [10, 0], sizes = [2, 128], strides = [1, 1]} : vector<16x128xf32> to vector<2x128xf32>
    %42 = vector.extract_strided_slice %35 {offsets = [12, 0], sizes = [2, 128], strides = [1, 1]} : vector<16x128xf32> to vector<2x128xf32>
    %43 = vector.extract_strided_slice %35 {offsets = [14, 0], sizes = [2, 128], strides = [1, 1]} : vector<16x128xf32> to vector<2x128xf32>
    %44 = tpu.concatenate %36, %37, %38, %39, %40, %41, %42, %43 in 1 : vector<2x128xf32>, vector<2x128xf32>, vector<2x128xf32>, vector<2x128xf32>, vector<2x128xf32>, vector<2x128xf32>, vector<2x128xf32>, vector<2x128xf32> -> vector<2x1024xf32>
    %c0_24 = arith.constant 0 : index
    %c0_25 = arith.constant 0 : index
    %45 = vector.load %arg16[%c0_24, %c0_25] : memref<1024x1024xf32, #tpu.memory_space<vmem>>, vector<1024x1024xf32>
    %cst_26 = arith.constant dense<0.000000e+00> : vector<2x1024xf32>
    %46 = tpu.matmul %44, %45, %cst_26 {dimension_numbers = #tpu.dot_dimension_numbers<[1], [0], [0], [1], [0, 0, 1, 1], [], []>} : vector<2x1024xf32>, vector<1024x1024xf32>, vector<2x1024xf32> -> vector<2x1024xf32>
    %47 = vector.extract_strided_slice %46 {offsets = [0, 0], sizes = [2, 128], strides = [1, 1]} : vector<2x1024xf32> to vector<2x128xf32>
    %48 = vector.extract_strided_slice %46 {offsets = [0, 128], sizes = [2, 128], strides = [1, 1]} : vector<2x1024xf32> to vector<2x128xf32>
    %49 = vector.extract_strided_slice %46 {offsets = [0, 256], sizes = [2, 128], strides = [1, 1]} : vector<2x1024xf32> to vector<2x128xf32>
    %50 = vector.extract_strided_slice %46 {offsets = [0, 384], sizes = [2, 128], strides = [1, 1]} : vector<2x1024xf32> to vector<2x128xf32>
    %51 = vector.extract_strided_slice %46 {offsets = [0, 512], sizes = [2, 128], strides = [1, 1]} : vector<2x1024xf32> to vector<2x128xf32>
    %52 = vector.extract_strided_slice %46 {offsets = [0, 640], sizes = [2, 128], strides = [1, 1]} : vector<2x1024xf32> to vector<2x128xf32>
    %53 = vector.extract_strided_slice %46 {offsets = [0, 768], sizes = [2, 128], strides = [1, 1]} : vector<2x1024xf32> to vector<2x128xf32>
    %54 = vector.extract_strided_slice %46 {offsets = [0, 896], sizes = [2, 128], strides = [1, 1]} : vector<2x1024xf32> to vector<2x128xf32>
    %55 = tpu.concatenate %47, %48, %49, %50, %51, %52, %53, %54 in 0 : vector<2x128xf32>, vector<2x128xf32>, vector<2x128xf32>, vector<2x128xf32>, vector<2x128xf32>, vector<2x128xf32>, vector<2x128xf32>, vector<2x128xf32> -> vector<16x128xf32>
    %cst_27 = arith.constant dense<0.000000e+00> : vector<32x128xf32>
    %56 = tpu.matmul %1, %55, %cst_27 {dimension_numbers = #tpu.dot_dimension_numbers<[1], [0], [0], [1], [0, 0, 1, 1], [], []>} : vector<32x16xf32>, vector<16x128xf32>, vector<32x128xf32> -> vector<32x128xf32>
    %c0_28 = arith.constant 0 : index
    %c0_29 = arith.constant 0 : index
    %57 = vector.load %arg19[%c0_28, %c0_29] : memref<128x128xf32, #tpu.memory_space<vmem>>, vector<128x128xf32>
    %cst_30 = arith.constant dense<0.000000e+00> : vector<32x128xf32>
    %58 = tpu.matmul %34, %57, %cst_30 {dimension_numbers = #tpu.dot_dimension_numbers<[1], [0], [0], [1], [0, 0, 1, 1], [], []>} : vector<32x128xf32>, vector<128x128xf32>, vector<32x128xf32> -> vector<32x128xf32>
    %c0_31 = arith.constant 0 : index
    %c0_32 = arith.constant 0 : index
    %59 = vector.load %arg20[%c0_31, %c0_32] : memref<1x128xf32, #tpu.memory_space<vmem>>, vector<1x128xf32>
    %60 = vector.broadcast %59 : vector<1x128xf32> to vector<32x128xf32>
    %61 = arith.addf %58, %60 : vector<32x128xf32>
    %62 = arith.addf %56, %61 : vector<32x128xf32>
    %cst_33 = arith.constant dense<0.000000e+00> : vector<128xf32>
    %63 = vector.multi_reduction <add>, %62, %cst_33 [0] : vector<32x128xf32> to vector<128xf32>
    %64 = vector.shape_cast %63 : vector<128xf32> to vector<1x128xf32>
    %cst_34 = arith.constant 3.125000e-02 : f32
    %65 = vector.broadcast %cst_34 : f32 to vector<1x128xf32>
    %66 = arith.mulf %64, %65 : vector<1x128xf32>
    %67 = arith.mulf %62, %62 : vector<32x128xf32>
    %cst_35 = arith.constant dense<0.000000e+00> : vector<128xf32>
    %68 = vector.multi_reduction <add>, %67, %cst_35 [0] : vector<32x128xf32> to vector<128xf32>
    %69 = vector.shape_cast %68 : vector<128xf32> to vector<1x128xf32>
    %cst_36 = arith.constant 3.125000e-02 : f32
    %70 = vector.broadcast %cst_36 : f32 to vector<1x128xf32>
    %71 = arith.mulf %69, %70 : vector<1x128xf32>
    %72 = arith.mulf %66, %66 : vector<1x128xf32>
    %73 = arith.subf %71, %72 : vector<1x128xf32>
    %cst_37 = arith.constant 9.99999974E-6 : f32
    %74 = vector.broadcast %cst_37 : f32 to vector<1x128xf32>
    %75 = arith.addf %73, %74 : vector<1x128xf32>
    %76 = math.rsqrt %75 : vector<1x128xf32>
    %77 = vector.broadcast %66 : vector<1x128xf32> to vector<32x128xf32>
    %78 = arith.subf %62, %77 : vector<32x128xf32>
    %c0_38 = arith.constant 0 : index
    %c0_39 = arith.constant 0 : index
    %79 = vector.load %arg8[%c0_38, %c0_39] : memref<1x128xf32, #tpu.memory_space<vmem>>, vector<1x128xf32>
    %80 = arith.mulf %76, %79 : vector<1x128xf32>
    %81 = vector.broadcast %80 : vector<1x128xf32> to vector<32x128xf32>
    %82 = arith.mulf %78, %81 : vector<32x128xf32>
    %c0_40 = arith.constant 0 : index
    %c0_41 = arith.constant 0 : index
    %83 = vector.load %arg9[%c0_40, %c0_41] : memref<1x128xf32, #tpu.memory_space<vmem>>, vector<1x128xf32>
    %84 = vector.broadcast %83 : vector<1x128xf32> to vector<32x128xf32>
    %85 = arith.addf %82, %84 : vector<32x128xf32>
    %cst_42 = arith.constant dense<0.000000e+00> : vector<16x128xf32>
    %86 = tpu.matmul %0, %85, %cst_42 {dimension_numbers = #tpu.dot_dimension_numbers<[1], [0], [0], [1], [0, 0, 1, 1], [], []>} : vector<16x32xf32>, vector<32x128xf32>, vector<16x128xf32> -> vector<16x128xf32>
    %87 = vector.extract_strided_slice %86 {offsets = [0, 0], sizes = [2, 128], strides = [1, 1]} : vector<16x128xf32> to vector<2x128xf32>
    %88 = vector.extract_strided_slice %86 {offsets = [2, 0], sizes = [2, 128], strides = [1, 1]} : vector<16x128xf32> to vector<2x128xf32>
    %89 = vector.extract_strided_slice %86 {offsets = [4, 0], sizes = [2, 128], strides = [1, 1]} : vector<16x128xf32> to vector<2x128xf32>
    %90 = vector.extract_strided_slice %86 {offsets = [6, 0], sizes = [2, 128], strides = [1, 1]} : vector<16x128xf32> to vector<2x128xf32>
    %91 = vector.extract_strided_slice %86 {offsets = [8, 0], sizes = [2, 128], strides = [1, 1]} : vector<16x128xf32> to vector<2x128xf32>
    %92 = vector.extract_strided_slice %86 {offsets = [10, 0], sizes = [2, 128], strides = [1, 1]} : vector<16x128xf32> to vector<2x128xf32>
    %93 = vector.extract_strided_slice %86 {offsets = [12, 0], sizes = [2, 128], strides = [1, 1]} : vector<16x128xf32> to vector<2x128xf32>
    %94 = vector.extract_strided_slice %86 {offsets = [14, 0], sizes = [2, 128], strides = [1, 1]} : vector<16x128xf32> to vector<2x128xf32>
    %95 = tpu.concatenate %87, %88, %89, %90, %91, %92, %93, %94 in 1 : vector<2x128xf32>, vector<2x128xf32>, vector<2x128xf32>, vector<2x128xf32>, vector<2x128xf32>, vector<2x128xf32>, vector<2x128xf32>, vector<2x128xf32> -> vector<2x1024xf32>
    %c0_43 = arith.constant 0 : index
    %c0_44 = arith.constant 0 : index
    %96 = vector.load %arg17[%c0_43, %c0_44] : memref<1024x1024xf32, #tpu.memory_space<vmem>>, vector<1024x1024xf32>
    %cst_45 = arith.constant dense<0.000000e+00> : vector<2x1024xf32>
    %97 = tpu.matmul %95, %96, %cst_45 {dimension_numbers = #tpu.dot_dimension_numbers<[1], [0], [0], [1], [0, 0, 1, 1], [], []>} : vector<2x1024xf32>, vector<1024x1024xf32>, vector<2x1024xf32> -> vector<2x1024xf32>
    %98 = vector.extract_strided_slice %97 {offsets = [0, 0], sizes = [2, 128], strides = [1, 1]} : vector<2x1024xf32> to vector<2x128xf32>
    %99 = vector.extract_strided_slice %97 {offsets = [0, 128], sizes = [2, 128], strides = [1, 1]} : vector<2x1024xf32> to vector<2x128xf32>
    %100 = vector.extract_strided_slice %97 {offsets = [0, 256], sizes = [2, 128], strides = [1, 1]} : vector<2x1024xf32> to vector<2x128xf32>
    %101 = vector.extract_strided_slice %97 {offsets = [0, 384], sizes = [2, 128], strides = [1, 1]} : vector<2x1024xf32> to vector<2x128xf32>
    %102 = vector.extract_strided_slice %97 {offsets = [0, 512], sizes = [2, 128], strides = [1, 1]} : vector<2x1024xf32> to vector<2x128xf32>
    %103 = vector.extract_strided_slice %97 {offsets = [0, 640], sizes = [2, 128], strides = [1, 1]} : vector<2x1024xf32> to vector<2x128xf32>
    %104 = vector.extract_strided_slice %97 {offsets = [0, 768], sizes = [2, 128], strides = [1, 1]} : vector<2x1024xf32> to vector<2x128xf32>
    %105 = vector.extract_strided_slice %97 {offsets = [0, 896], sizes = [2, 128], strides = [1, 1]} : vector<2x1024xf32> to vector<2x128xf32>
    %106 = tpu.concatenate %98, %99, %100, %101, %102, %103, %104, %105 in 0 : vector<2x128xf32>, vector<2x128xf32>, vector<2x128xf32>, vector<2x128xf32>, vector<2x128xf32>, vector<2x128xf32>, vector<2x128xf32>, vector<2x128xf32> -> vector<16x128xf32>
    %cst_46 = arith.constant dense<0.000000e+00> : vector<32x128xf32>
    %107 = tpu.matmul %1, %106, %cst_46 {dimension_numbers = #tpu.dot_dimension_numbers<[1], [0], [0], [1], [0, 0, 1, 1], [], []>} : vector<32x16xf32>, vector<16x128xf32>, vector<32x128xf32> -> vector<32x128xf32>
    %c0_47 = arith.constant 0 : index
    %c0_48 = arith.constant 0 : index
    %108 = vector.load %arg21[%c0_47, %c0_48] : memref<128x128xf32, #tpu.memory_space<vmem>>, vector<128x128xf32>
    %cst_49 = arith.constant dense<0.000000e+00> : vector<32x128xf32>
    %109 = tpu.matmul %85, %108, %cst_49 {dimension_numbers = #tpu.dot_dimension_numbers<[1], [0], [0], [1], [0, 0, 1, 1], [], []>} : vector<32x128xf32>, vector<128x128xf32>, vector<32x128xf32> -> vector<32x128xf32>
    %c0_50 = arith.constant 0 : index
    %c0_51 = arith.constant 0 : index
    %110 = vector.load %arg22[%c0_50, %c0_51] : memref<1x128xf32, #tpu.memory_space<vmem>>, vector<1x128xf32>
    %111 = vector.broadcast %110 : vector<1x128xf32> to vector<32x128xf32>
    %112 = arith.addf %109, %111 : vector<32x128xf32>
    %113 = arith.addf %107, %112 : vector<32x128xf32>
    %cst_52 = arith.constant dense<0.000000e+00> : vector<128xf32>
    %114 = vector.multi_reduction <add>, %113, %cst_52 [0] : vector<32x128xf32> to vector<128xf32>
    %115 = vector.shape_cast %114 : vector<128xf32> to vector<1x128xf32>
    %cst_53 = arith.constant 3.125000e-02 : f32
    %116 = vector.broadcast %cst_53 : f32 to vector<1x128xf32>
    %117 = arith.mulf %115, %116 : vector<1x128xf32>
    %118 = arith.mulf %113, %113 : vector<32x128xf32>
    %cst_54 = arith.constant dense<0.000000e+00> : vector<128xf32>
    %119 = vector.multi_reduction <add>, %118, %cst_54 [0] : vector<32x128xf32> to vector<128xf32>
    %120 = vector.shape_cast %119 : vector<128xf32> to vector<1x128xf32>
    %cst_55 = arith.constant 3.125000e-02 : f32
    %121 = vector.broadcast %cst_55 : f32 to vector<1x128xf32>
    %122 = arith.mulf %120, %121 : vector<1x128xf32>
    %123 = arith.mulf %117, %117 : vector<1x128xf32>
    %124 = arith.subf %122, %123 : vector<1x128xf32>
    %cst_56 = arith.constant 9.99999974E-6 : f32
    %125 = vector.broadcast %cst_56 : f32 to vector<1x128xf32>
    %126 = arith.addf %124, %125 : vector<1x128xf32>
    %127 = math.rsqrt %126 : vector<1x128xf32>
    %128 = vector.broadcast %117 : vector<1x128xf32> to vector<32x128xf32>
    %129 = arith.subf %113, %128 : vector<32x128xf32>
    %c0_57 = arith.constant 0 : index
    %c0_58 = arith.constant 0 : index
    %130 = vector.load %arg10[%c0_57, %c0_58] : memref<1x128xf32, #tpu.memory_space<vmem>>, vector<1x128xf32>
    %131 = arith.mulf %127, %130 : vector<1x128xf32>
    %132 = vector.broadcast %131 : vector<1x128xf32> to vector<32x128xf32>
    %133 = arith.mulf %129, %132 : vector<32x128xf32>
    %c0_59 = arith.constant 0 : index
    %c0_60 = arith.constant 0 : index
    %134 = vector.load %arg11[%c0_59, %c0_60] : memref<1x128xf32, #tpu.memory_space<vmem>>, vector<1x128xf32>
    %135 = vector.broadcast %134 : vector<1x128xf32> to vector<32x128xf32>
    %136 = arith.addf %133, %135 : vector<32x128xf32>
    %cst_61 = arith.constant dense<0.000000e+00> : vector<16x128xf32>
    %137 = tpu.matmul %0, %136, %cst_61 {dimension_numbers = #tpu.dot_dimension_numbers<[1], [0], [0], [1], [0, 0, 1, 1], [], []>} : vector<16x32xf32>, vector<32x128xf32>, vector<16x128xf32> -> vector<16x128xf32>
    %138 = vector.extract_strided_slice %137 {offsets = [0, 0], sizes = [2, 128], strides = [1, 1]} : vector<16x128xf32> to vector<2x128xf32>
    %139 = vector.extract_strided_slice %137 {offsets = [2, 0], sizes = [2, 128], strides = [1, 1]} : vector<16x128xf32> to vector<2x128xf32>
    %140 = vector.extract_strided_slice %137 {offsets = [4, 0], sizes = [2, 128], strides = [1, 1]} : vector<16x128xf32> to vector<2x128xf32>
    %141 = vector.extract_strided_slice %137 {offsets = [6, 0], sizes = [2, 128], strides = [1, 1]} : vector<16x128xf32> to vector<2x128xf32>
    %142 = vector.extract_strided_slice %137 {offsets = [8, 0], sizes = [2, 128], strides = [1, 1]} : vector<16x128xf32> to vector<2x128xf32>
    %143 = vector.extract_strided_slice %137 {offsets = [10, 0], sizes = [2, 128], strides = [1, 1]} : vector<16x128xf32> to vector<2x128xf32>
    %144 = vector.extract_strided_slice %137 {offsets = [12, 0], sizes = [2, 128], strides = [1, 1]} : vector<16x128xf32> to vector<2x128xf32>
    %145 = vector.extract_strided_slice %137 {offsets = [14, 0], sizes = [2, 128], strides = [1, 1]} : vector<16x128xf32> to vector<2x128xf32>
    %146 = tpu.concatenate %138, %139, %140, %141, %142, %143, %144, %145 in 1 : vector<2x128xf32>, vector<2x128xf32>, vector<2x128xf32>, vector<2x128xf32>, vector<2x128xf32>, vector<2x128xf32>, vector<2x128xf32>, vector<2x128xf32> -> vector<2x1024xf32>
    %c0_62 = arith.constant 0 : index
    %c0_63 = arith.constant 0 : index
    %147 = vector.load %arg18[%c0_62, %c0_63] : memref<1024x1024xf32, #tpu.memory_space<vmem>>, vector<1024x1024xf32>
    %cst_64 = arith.constant dense<0.000000e+00> : vector<2x1024xf32>
    %148 = tpu.matmul %146, %147, %cst_64 {dimension_numbers = #tpu.dot_dimension_numbers<[1], [0], [0], [1], [0, 0, 1, 1], [], []>} : vector<2x1024xf32>, vector<1024x1024xf32>, vector<2x1024xf32> -> vector<2x1024xf32>
    %149 = vector.extract_strided_slice %148 {offsets = [0, 0], sizes = [2, 128], strides = [1, 1]} : vector<2x1024xf32> to vector<2x128xf32>
    %150 = vector.extract_strided_slice %148 {offsets = [0, 128], sizes = [2, 128], strides = [1, 1]} : vector<2x1024xf32> to vector<2x128xf32>
    %151 = vector.extract_strided_slice %148 {offsets = [0, 256], sizes = [2, 128], strides = [1, 1]} : vector<2x1024xf32> to vector<2x128xf32>
    %152 = vector.extract_strided_slice %148 {offsets = [0, 384], sizes = [2, 128], strides = [1, 1]} : vector<2x1024xf32> to vector<2x128xf32>
    %153 = vector.extract_strided_slice %148 {offsets = [0, 512], sizes = [2, 128], strides = [1, 1]} : vector<2x1024xf32> to vector<2x128xf32>
    %154 = vector.extract_strided_slice %148 {offsets = [0, 640], sizes = [2, 128], strides = [1, 1]} : vector<2x1024xf32> to vector<2x128xf32>
    %155 = vector.extract_strided_slice %148 {offsets = [0, 768], sizes = [2, 128], strides = [1, 1]} : vector<2x1024xf32> to vector<2x128xf32>
    %156 = vector.extract_strided_slice %148 {offsets = [0, 896], sizes = [2, 128], strides = [1, 1]} : vector<2x1024xf32> to vector<2x128xf32>
    %157 = tpu.concatenate %149, %150, %151, %152, %153, %154, %155, %156 in 0 : vector<2x128xf32>, vector<2x128xf32>, vector<2x128xf32>, vector<2x128xf32>, vector<2x128xf32>, vector<2x128xf32>, vector<2x128xf32>, vector<2x128xf32> -> vector<16x128xf32>
    %cst_65 = arith.constant dense<0.000000e+00> : vector<32x128xf32>
    %158 = tpu.matmul %1, %157, %cst_65 {dimension_numbers = #tpu.dot_dimension_numbers<[1], [0], [0], [1], [0, 0, 1, 1], [], []>} : vector<32x16xf32>, vector<16x128xf32>, vector<32x128xf32> -> vector<32x128xf32>
    %c0_66 = arith.constant 0 : index
    %c0_67 = arith.constant 0 : index
    %159 = vector.load %arg23[%c0_66, %c0_67] : memref<128x128xf32, #tpu.memory_space<vmem>>, vector<128x128xf32>
    %cst_68 = arith.constant dense<0.000000e+00> : vector<32x128xf32>
    %160 = tpu.matmul %136, %159, %cst_68 {dimension_numbers = #tpu.dot_dimension_numbers<[1], [0], [0], [1], [0, 0, 1, 1], [], []>} : vector<32x128xf32>, vector<128x128xf32>, vector<32x128xf32> -> vector<32x128xf32>
    %c0_69 = arith.constant 0 : index
    %c0_70 = arith.constant 0 : index
    %161 = vector.load %arg24[%c0_69, %c0_70] : memref<1x128xf32, #tpu.memory_space<vmem>>, vector<1x128xf32>
    %162 = vector.broadcast %161 : vector<1x128xf32> to vector<32x128xf32>
    %163 = arith.addf %160, %162 : vector<32x128xf32>
    %164 = arith.addf %158, %163 : vector<32x128xf32>
    %cst_71 = arith.constant dense<0.000000e+00> : vector<128xf32>
    %165 = vector.multi_reduction <add>, %164, %cst_71 [0] : vector<32x128xf32> to vector<128xf32>
    %166 = vector.shape_cast %165 : vector<128xf32> to vector<1x128xf32>
    %cst_72 = arith.constant 3.125000e-02 : f32
    %167 = vector.broadcast %cst_72 : f32 to vector<1x128xf32>
    %168 = arith.mulf %166, %167 : vector<1x128xf32>
    %169 = arith.mulf %164, %164 : vector<32x128xf32>
    %cst_73 = arith.constant dense<0.000000e+00> : vector<128xf32>
    %170 = vector.multi_reduction <add>, %169, %cst_73 [0] : vector<32x128xf32> to vector<128xf32>
    %171 = vector.shape_cast %170 : vector<128xf32> to vector<1x128xf32>
    %cst_74 = arith.constant 3.125000e-02 : f32
    %172 = vector.broadcast %cst_74 : f32 to vector<1x128xf32>
    %173 = arith.mulf %171, %172 : vector<1x128xf32>
    %174 = arith.mulf %168, %168 : vector<1x128xf32>
    %175 = arith.subf %173, %174 : vector<1x128xf32>
    %cst_75 = arith.constant 9.99999974E-6 : f32
    %176 = vector.broadcast %cst_75 : f32 to vector<1x128xf32>
    %177 = arith.addf %175, %176 : vector<1x128xf32>
    %178 = math.rsqrt %177 : vector<1x128xf32>
    %179 = vector.broadcast %168 : vector<1x128xf32> to vector<32x128xf32>
    %180 = arith.subf %164, %179 : vector<32x128xf32>
    %c0_76 = arith.constant 0 : index
    %c0_77 = arith.constant 0 : index
    %181 = vector.load %arg12[%c0_76, %c0_77] : memref<1x128xf32, #tpu.memory_space<vmem>>, vector<1x128xf32>
    %182 = arith.mulf %178, %181 : vector<1x128xf32>
    %183 = vector.broadcast %182 : vector<1x128xf32> to vector<32x128xf32>
    %184 = arith.mulf %180, %183 : vector<32x128xf32>
    %c0_78 = arith.constant 0 : index
    %c0_79 = arith.constant 0 : index
    %185 = vector.load %arg13[%c0_78, %c0_79] : memref<1x128xf32, #tpu.memory_space<vmem>>, vector<1x128xf32>
    %186 = vector.broadcast %185 : vector<1x128xf32> to vector<32x128xf32>
    %187 = arith.addf %184, %186 : vector<32x128xf32>
    %c0_80 = arith.constant 0 : index
    %c0_81 = arith.constant 0 : index
    %188 = vector.load %arg25[%c0_80, %c0_81] : memref<128x128xf32, #tpu.memory_space<vmem>>, vector<128x128xf32>
    %cst_82 = arith.constant dense<0.000000e+00> : vector<32x128xf32>
    %189 = tpu.matmul %187, %188, %cst_82 {dimension_numbers = #tpu.dot_dimension_numbers<[1], [0], [0], [1], [0, 0, 1, 1], [], []>} : vector<32x128xf32>, vector<128x128xf32>, vector<32x128xf32> -> vector<32x128xf32>
    %c0_83 = arith.constant 0 : index
    %c0_84 = arith.constant 0 : index
    %190 = vector.load %arg26[%c0_83, %c0_84] : memref<1x128xf32, #tpu.memory_space<vmem>>, vector<1x128xf32>
    %191 = vector.broadcast %190 : vector<1x128xf32> to vector<32x128xf32>
    %192 = arith.addf %189, %191 : vector<32x128xf32>
    %cst_85 = arith.constant 0.000000e+00 : f32
    %193 = vector.broadcast %cst_85 : f32 to vector<32x128xf32>
    %194 = arith.maximumf %192, %193 : vector<32x128xf32>
    %c0_86 = arith.constant 0 : index
    %c0_87 = arith.constant 0 : index
    %195 = vector.load %arg27[%c0_86, %c0_87] : memref<128x1xf32, #tpu.memory_space<vmem>>, vector<128x1xf32>
    %cst_88 = arith.constant dense<0.000000e+00> : vector<32x1xf32>
    %196 = tpu.matmul %194, %195, %cst_88 {dimension_numbers = #tpu.dot_dimension_numbers<[1], [0], [0], [1], [0, 0, 1, 1], [], []>} : vector<32x128xf32>, vector<128x1xf32>, vector<32x1xf32> -> vector<32x1xf32>
    %c0_89 = arith.constant 0 : index
    %c0_90 = arith.constant 0 : index
    %197 = vector.load %arg28[%c0_89, %c0_90] : memref<1x1xf32, #tpu.memory_space<vmem>>, vector<1x1xf32>
    %198 = vector.broadcast %197 : vector<1x1xf32> to vector<32x1xf32>
    %199 = arith.addf %196, %198 : vector<32x1xf32>
    %c0_91 = arith.constant 0 : index
    %c0_92 = arith.constant 0 : index
    %200 = vector.load %arg3[%c0_91, %c0_92] : memref<2x32xf32, #tpu.memory_space<vmem>>, vector<2x32xf32>
    %201 = vector.broadcast %199 : vector<32x1xf32> to vector<32x16xf32>
    %202 = arith.mulf %201, %2 : vector<32x16xf32>
    %cst_93 = arith.constant dense<0.000000e+00> : vector<2x16xf32>
    %203 = tpu.matmul %200, %202, %cst_93 {dimension_numbers = #tpu.dot_dimension_numbers<[1], [0], [0], [1], [0, 0, 1, 1], [], []>} : vector<2x32xf32>, vector<32x16xf32>, vector<2x16xf32> -> vector<2x16xf32>
    %c0_94 = arith.constant 0 : index
    %c0_95 = arith.constant 0 : index
    %204 = vector.load %arg29[%c0_94, %c0_95] : memref<2x16xf32, #tpu.memory_space<vmem>>, vector<2x16xf32>
    tpu.vector_store %arg29[%c0_94, %c0_95], %203 {strides = array<i32>} : memref<2x16xf32, #tpu.memory_space<vmem>>, vector<2x16xf32>,
    return
  }
}

</mosaic_0001>

<llo_original>
// kernel: tpu_custom_call.1
$region0: #{tpu_custom_call.1}
  #allocation0 [shape = 'u32[]', space=smem, size = 0x4, offset = 0x4, fixed_abs, tag = 'smem constant byte address 0x4 - core index']
  #allocation1 [shape = 'u32[144,128]{1,0:T(1,128)}', space=vmem, size = 0x12000, scoped, tag = 'internal scratch']
  #allocation2 [shape = 'f32[1,1]{1,0:T(1,128)S(1)}', space=vmem, size = 0x200, scoped, tag = 'scoped memory for tpu_custom_call.1']
  %s0 = inlined_call_operand.smem [shape: u32[30], index: -1, kind: input, shape index: {}]
  %s1 = sld [smem:[%s0]]
  %s2 = scalar_lea.smem %s0, 1
  %s3 = sld [smem:[%s2]]
  %s4 = scalar_lea.smem %s0, 2
  %s5 = sld [smem:[%s4]]
  %s6 = scalar_lea.smem %s0, 3
  %s7 = sld [smem:[%s6]]
  %s8 = scalar_lea.smem %s0, 4
  %s9 = sld [smem:[%s8]]
  %s10 = scalar_lea.smem %s0, 5
  %s11 = sld [smem:[%s10]]
  %s12 = scalar_lea.smem %s0, 6
  %s13 = sld [smem:[%s12]]
  %s14 = scalar_lea.smem %s0, 7
  %s15 = sld [smem:[%s14]]
  %s16 = scalar_lea.smem %s0, 8
  %s17 = sld [smem:[%s16]]
  %s18 = scalar_lea.smem %s0, 9
  %s19 = sld [smem:[%s18]]
  %s20 = scalar_lea.smem %s0, 10
  %s21 = sld [smem:[%s20]]
  %s22 = scalar_lea.smem %s0, 11
  %s23 = sld [smem:[%s22]]
  %s24 = scalar_lea.smem %s0, 12
  %s25 = sld [smem:[%s24]]
  %s26 = scalar_lea.smem %s0, 13
  %s27 = sld [smem:[%s26]]
  %s28 = scalar_lea.smem %s0, 14
  %s29 = sld [smem:[%s28]]
  %s30 = scalar_lea.smem %s0, 15
  %s31 = sld [smem:[%s30]]
  %s32 = scalar_lea.smem %s0, 16
  %s33 = sld [smem:[%s32]]
  %s34 = scalar_lea.smem %s0, 17
  %s35 = sld [smem:[%s34]]
  %s36 = scalar_lea.smem %s0, 18
  %s37 = sld [smem:[%s36]]
  %s38 = scalar_lea.smem %s0, 19
  %s39 = sld [smem:[%s38]]
  %s40 = scalar_lea.smem %s0, 20
  %s41 = sld [smem:[%s40]]
  %s42 = scalar_lea.smem %s0, 21
  %s43 = sld [smem:[%s42]]
  %s44 = scalar_lea.smem %s0, 22
  %s45 = sld [smem:[%s44]]
  %s46 = scalar_lea.smem %s0, 23
  %s47 = sld [smem:[%s46]]
  %s48 = scalar_lea.smem %s0, 24
  %s49 = sld [smem:[%s48]]
  %s50 = scalar_lea.smem %s0, 25
  %s51 = sld [smem:[%s50]]
  %s52 = scalar_lea.smem %s0, 26
  %s53 = sld [smem:[%s52]]
  %s54 = scalar_lea.smem %s0, 27
  %s55 = sld [smem:[%s54]]
  %s56 = scalar_lea.smem %s0, 28
  %s57 = sld [smem:[%s56]]
  %s58 = scalar_lea.smem %s0, 29
  %s59 = sld [smem:[%s58]]
  %s60 = sld [smem:[#allocation0]]
  $region222: #{tpu_custom_call.1} parent=0
    _
  %s62 = ssub.s32 1, %s60
  %s63 = scalar_select 0, %s62, %s60
  %v64 = vstv %s57
  %65 = vst [vmem:[#allocation2] sm:$0x1] %v64
  $region1: #{tpu_custom_call.1} parent=0
    #allocation3 [shape = 'u8[1024]{0}', space=vmem, size = 0x400, scoped, tag = 'input window, operand 0, single buffered']
    #allocation4 [shape = 's32[1]{0}', space=sflag, size = 0x4, scoped, tag = 'scoped memory for tpu_custom_call.1']
    #allocation5 [shape = 's32[1]{0}', space=sflag, size = 0x4, scoped, tag = 'scoped memory for tpu_custom_call.1']
    #allocation6 [shape = 'u8[1024]{0}', space=vmem, size = 0x400, scoped, tag = 'input window, operand 3, single buffered']
    #allocation7 [shape = 's32[1]{0}', space=sflag, size = 0x4, scoped, tag = 'scoped memory for tpu_custom_call.1']
    #allocation8 [shape = 'u8[8192]{0}', space=vmem, size = 0x2000, scoped, tag = 'input window, operand 4, single buffered']
    #allocation9 [shape = 'u8[512]{0}', space=vmem, size = 0x400, scoped, tag = 'input window, operand 5, single buffered']
    #allocation10 [shape = 's32[1]{0}', space=sflag, size = 0x4, scoped, tag = 'scoped memory for tpu_custom_call.1']
    #allocation11 [shape = 'u8[512]{0}', space=vmem, size = 0x400, scoped, tag = 'input window, operand 6, single buffered']
    #allocation12 [shape = 'u8[512]{0}', space=vmem, size = 0x400, scoped, tag = 'input window, operand 7, single buffered']
    #allocation13 [shape = 's32[1]{0}', space=sflag, size = 0x4, scoped, tag = 'scoped memory for tpu_custom_call.1']
    #allocation14 [shape = 'u8[512]{0}', space=vmem, size = 0x400, scoped, tag = 'input window, operand 8, single buffered']
    #allocation15 [shape = 'u8[512]{0}', space=vmem, size = 0x400, scoped, tag = 'input window, operand 9, single buffered']
    #allocation16 [shape = 's32[1]{0}', space=sflag, size = 0x4, scoped, tag = 'scoped memory for tpu_custom_call.1']
    #allocation17 [shape = 'u8[512]{0}', space=vmem, size = 0x400, scoped, tag = 'input window, operand 10, single buffered']
    #allocation18 [shape = 'u8[512]{0}', space=vmem, size = 0x400, scoped, tag = 'input window, operand 11, single buffered']
    #allocation19 [shape = 's32[1]{0}', space=sflag, size = 0x4, scoped, tag = 'scoped memory for tpu_custom_call.1']
    #allocation20 [shape = 'u8[512]{0}', space=vmem, size = 0x400, scoped, tag = 'input window, operand 12, single buffered']
    #allocation21 [shape = 'u8[512]{0}', space=vmem, size = 0x400, scoped, tag = 'input window, operand 13, single buffered']
    #allocation22 [shape = 's32[1]{0}', space=sflag, size = 0x4, scoped, tag = 'scoped memory for tpu_custom_call.1']
    #allocation23 [shape = 'u8[8192]{0}', space=vmem, size = 0x2000, scoped, tag = 'input window, operand 14, single buffered']
    #allocation24 [shape = 'u8[4194304]{0}', space=vmem, size = 0x400000, scoped, tag = 'input window, operand 16, single buffered']
    #allocation25 [shape = 's32[1]{0}', space=sflag, size = 0x4, scoped, tag = 'scoped memory for tpu_custom_call.1']
    #allocation26 [shape = 'u8[4194304]{0}', space=vmem, size = 0x400000, scoped, tag = 'input window, operand 17, single buffered']
    #allocation27 [shape = 'u8[4194304]{0}', space=vmem, size = 0x400000, scoped, tag = 'input window, operand 18, single buffered']
    #allocation28 [shape = 's32[1]{0}', space=sflag, size = 0x4, scoped, tag = 'scoped memory for tpu_custom_call.1']
    #allocation29 [shape = 'u8[65536]{0}', space=vmem, size = 0x10000, scoped, tag = 'input window, operand 19, single buffered']
    #allocation30 [shape = 'u8[512]{0}', space=vmem, size = 0x400, scoped, tag = 'input window, operand 20, single buffered']
    #allocation31 [shape = 's32[1]{0}', space=sflag, size = 0x4, scoped, tag = 'scoped memory for tpu_custom_call.1']
    #allocation32 [shape = 'u8[65536]{0}', space=vmem, size = 0x10000, scoped, tag = 'input window, operand 21, single buffered']
    #allocation33 [shape = 'u8[512]{0}', space=vmem, size = 0x400, scoped, tag = 'input window, operand 22, single buffered']
    #allocation34 [shape = 's32[1]{0}', space=sflag, size = 0x4, scoped, tag = 'scoped memory for tpu_custom_call.1']
    #allocation35 [shape = 'u8[65536]{0}', space=vmem, size = 0x10000, scoped, tag = 'input window, operand 23, single buffered']
    #allocation36 [shape = 'u8[512]{0}', space=vmem, size = 0x400, scoped, tag = 'input window, operand 24, single buffered']
    #allocation37 [shape = 's32[1]{0}', space=sflag, size = 0x4, scoped, tag = 'scoped memory for tpu_custom_call.1']
    #allocation38 [shape = 'u8[65536]{0}', space=vmem, size = 0x10000, scoped, tag = 'input window, operand 25, single buffered']
    #allocation39 [shape = 'u8[512]{0}', space=vmem, size = 0x400, scoped, tag = 'input window, operand 26, single buffered']
    #allocation40 [shape = 's32[1]{0}', space=sflag, size = 0x4, scoped, tag = 'scoped memory for tpu_custom_call.1']
    #allocation41 [shape = 'u8[1024]{0}', space=vmem, size = 0x400, scoped, tag = 'output window, operand 0, single buffered']
    %66 = vsyncpa [#allocation4], 0
    %67 = vsyncpa [#allocation7], 0
    %68 = vsyncpa [#allocation10], 0
    %69 = vsyncpa [#allocation13], 0
    %70 = vsyncpa [#allocation16], 0
    %71 = vsyncpa [#allocation19], 0
    %72 = vsyncpa [#allocation22], 0
    %73 = vsyncpa [#allocation25], 0
    %74 = vsyncpa [#allocation28], 0
    %75 = vsyncpa [#allocation31], 0
    %76 = vsyncpa [#allocation34], 0
    %77 = vsyncpa [#allocation37], 0
    %78 = vsyncpa [#allocation40], 0
    %79 = vsyncpa [#allocation5], 0
    // Predicated region
    $region2: #{tpu_custom_call.1} parent=1 // pred_check
      _
    $region3: #{tpu_custom_call.1} parent=1 // pred_check_branch
      %81 = sbr.rel (0) target = $region5
    $region4: #{tpu_custom_call.1} parent=1 // pred_region
      %s83 = ssub.s32 32, 32
      %84 = vsyncadd [#allocation4], %s83
      %s86 = sshll.u32 [#allocation3], 4
      %s87 = int_to_ptr.vmem [resolvable:$true] %s86
      %89 = dma.hbm_to_vmem [thread:$0]  %s1, 32, %s87, [#allocation4]
    $region5: #{tpu_custom_call.1} parent=1 // pred_fallthru
      _
    // Predicated region
    $region6: #{tpu_custom_call.1} parent=1 // pred_check
      _
    $region7: #{tpu_custom_call.1} parent=1 // pred_check_branch
      %91 = sbr.rel (0) target = $region9
    $region8: #{tpu_custom_call.1} parent=1 // pred_region
      _
    $region9: #{tpu_custom_call.1} parent=1 // pred_fallthru
      _
    // Predicated region
    $region10: #{tpu_custom_call.1} parent=1 // pred_check
      _
    $region11: #{tpu_custom_call.1} parent=1 // pred_check_branch
      %93 = sbr.rel (0) target = $region13
    $region12: #{tpu_custom_call.1} parent=1 // pred_region
      _
    $region13: #{tpu_custom_call.1} parent=1 // pred_fallthru
      _
    // Predicated region
    $region14: #{tpu_custom_call.1} parent=1 // pred_check
      _
    $region15: #{tpu_custom_call.1} parent=1 // pred_check_branch
      %95 = sbr.rel (0) target = $region17
    $region16: #{tpu_custom_call.1} parent=1 // pred_region
      %s97 = ssub.s32 32, 32
      %98 = vsyncadd [#allocation7], %s97
      %s100 = sshll.u32 [#allocation6], 4
      %s101 = int_to_ptr.vmem [resolvable:$true] %s100
      %103 = dma.hbm_to_vmem [thread:$0]  %s7, 32, %s101, [#allocation7]
    $region17: #{tpu_custom_call.1} parent=1 // pred_fallthru
      _
    // Predicated region
    $region18: #{tpu_custom_call.1} parent=1 // pred_check
      _
    $region19: #{tpu_custom_call.1} parent=1 // pred_check_branch
      %105 = sbr.rel (0) target = $region21
    $region20: #{tpu_custom_call.1} parent=1 // pred_region
      %s107 = ssub.s32 256, 256
      %108 = vsyncadd [#allocation7], %s107
      %s109 = sshll.u32 [#allocation8], 4
      %s110 = int_to_ptr.vmem [resolvable:$true] %s109
      %115 = dma.hbm_to_vmem [thread:$0]  %s9, 256, %s110, [#allocation7], 128, 128, 8
    $region21: #{tpu_custom_call.1} parent=1 // pred_fallthru
      _
    // Predicated region
    $region22: #{tpu_custom_call.1} parent=1 // pred_check
      _
    $region23: #{tpu_custom_call.1} parent=1 // pred_check_branch
      %117 = sbr.rel (0) target = $region25
    $region24: #{tpu_custom_call.1} parent=1 // pred_region
      %s119 = ssub.s32 16, 16
      %120 = vsyncadd [#allocation10], %s119
      %s122 = sshll.u32 [#allocation9], 4
      %s123 = int_to_ptr.vmem [resolvable:$true] %s122
      %125 = dma.hbm_to_vmem [thread:$0]  %s11, 16, %s123, [#allocation10]
    $region25: #{tpu_custom_call.1} parent=1 // pred_fallthru
      _
    // Predicated region
    $region26: #{tpu_custom_call.1} parent=1 // pred_check
      _
    $region27: #{tpu_custom_call.1} parent=1 // pred_check_branch
      %127 = sbr.rel (0) target = $region29
    $region28: #{tpu_custom_call.1} parent=1 // pred_region
      %s129 = ssub.s32 16, 16
      %130 = vsyncadd [#allocation10], %s129
      %s132 = sshll.u32 [#allocation11], 4
      %s133 = int_to_ptr.vmem [resolvable:$true] %s132
      %135 = dma.hbm_to_vmem [thread:$0]  %s13, 16, %s133, [#allocation10]
    $region29: #{tpu_custom_call.1} parent=1 // pred_fallthru
      _
    // Predicated region
    $region30: #{tpu_custom_call.1} parent=1 // pred_check
      _
    $region31: #{tpu_custom_call.1} parent=1 // pred_check_branch
      %137 = sbr.rel (0) target = $region33
    $region32: #{tpu_custom_call.1} parent=1 // pred_region
      %s139 = ssub.s32 16, 16
      %140 = vsyncadd [#allocation13], %s139
      %s142 = sshll.u32 [#allocation12], 4
      %s143 = int_to_ptr.vmem [resolvable:$true] %s142
      %145 = dma.hbm_to_vmem [thread:$0]  %s15, 16, %s143, [#allocation13]
    $region33: #{tpu_custom_call.1} parent=1 // pred_fallthru
      _
    // Predicated region
    $region34: #{tpu_custom_call.1} parent=1 // pred_check
      _
    $region35: #{tpu_custom_call.1} parent=1 // pred_check_branch
      %147 = sbr.rel (0) target = $region37
    $region36: #{tpu_custom_call.1} parent=1 // pred_region
      %s149 = ssub.s32 16, 16
      %150 = vsyncadd [#allocation13], %s149
      %s152 = sshll.u32 [#allocation14], 4
      %s153 = int_to_ptr.vmem [resolvable:$true] %s152
      %155 = dma.hbm_to_vmem [thread:$0]  %s17, 16, %s153, [#allocation13]
    $region37: #{tpu_custom_call.1} parent=1 // pred_fallthru
      _
    // Predicated region
    $region38: #{tpu_custom_call.1} parent=1 // pred_check
      _
    $region39: #{tpu_custom_call.1} parent=1 // pred_check_branch
      %157 = sbr.rel (0) target = $region41
    $region40: #{tpu_custom_call.1} parent=1 // pred_region
      %s159 = ssub.s32 16, 16
      %160 = vsyncadd [#allocation16], %s159
      %s162 = sshll.u32 [#allocation15], 4
      %s163 = int_to_ptr.vmem [resolvable:$true] %s162
      %165 = dma.hbm_to_vmem [thread:$0]  %s19, 16, %s163, [#allocation16]
    $region41: #{tpu_custom_call.1} parent=1 // pred_fallthru
      _
    // Predicated region
    $region42: #{tpu_custom_call.1} parent=1 // pred_check
      _
    $region43: #{tpu_custom_call.1} parent=1 // pred_check_branch
      %167 = sbr.rel (0) target = $region45
    $region44: #{tpu_custom_call.1} parent=1 // pred_region
      %s169 = ssub.s32 16, 16
      %170 = vsyncadd [#allocation16], %s169
      %s172 = sshll.u32 [#allocation17], 4
      %s173 = int_to_ptr.vmem [resolvable:$true] %s172
      %175 = dma.hbm_to_vmem [thread:$0]  %s21, 16, %s173, [#allocation16]
    $region45: #{tpu_custom_call.1} parent=1 // pred_fallthru
      _
    // Predicated region
    $region46: #{tpu_custom_call.1} parent=1 // pred_check
      _
    $region47: #{tpu_custom_call.1} parent=1 // pred_check_branch
      %177 = sbr.rel (0) target = $region49
    $region48: #{tpu_custom_call.1} parent=1 // pred_region
      %s179 = ssub.s32 16, 16
      %180 = vsyncadd [#allocation19], %s179
      %s182 = sshll.u32 [#allocation18], 4
      %s183 = int_to_ptr.vmem [resolvable:$true] %s182
      %185 = dma.hbm_to_vmem [thread:$0]  %s23, 16, %s183, [#allocation19]
    $region49: #{tpu_custom_call.1} parent=1 // pred_fallthru
      _
    // Predicated region
    $region50: #{tpu_custom_call.1} parent=1 // pred_check
      _
    $region51: #{tpu_custom_call.1} parent=1 // pred_check_branch
      %187 = sbr.rel (0) target = $region53
    $region52: #{tpu_custom_call.1} parent=1 // pred_region
      %s189 = ssub.s32 16, 16
      %190 = vsyncadd [#allocation19], %s189
      %s192 = sshll.u32 [#allocation20], 4
      %s193 = int_to_ptr.vmem [resolvable:$true] %s192
      %195 = dma.hbm_to_vmem [thread:$0]  %s25, 16, %s193, [#allocation19]
    $region53: #{tpu_custom_call.1} parent=1 // pred_fallthru
      _
    // Predicated region
    $region54: #{tpu_custom_call.1} parent=1 // pred_check
      _
    $region55: #{tpu_custom_call.1} parent=1 // pred_check_branch
      %197 = sbr.rel (0) target = $region57
    $region56: #{tpu_custom_call.1} parent=1 // pred_region
      %s199 = ssub.s32 16, 16
      %200 = vsyncadd [#allocation22], %s199
      %s202 = sshll.u32 [#allocation21], 4
      %s203 = int_to_ptr.vmem [resolvable:$true] %s202
      %205 = dma.hbm_to_vmem [thread:$0]  %s27, 16, %s203, [#allocation22]
    $region57: #{tpu_custom_call.1} parent=1 // pred_fallthru
      _
    // Predicated region
    $region58: #{tpu_custom_call.1} parent=1 // pred_check
      _
    $region59: #{tpu_custom_call.1} parent=1 // pred_check_branch
      %207 = sbr.rel (0) target = $region61
    $region60: #{tpu_custom_call.1} parent=1 // pred_region
      %s209 = ssub.s32 256, 256
      %210 = vsyncadd [#allocation22], %s209
      %s211 = sshll.u32 [#allocation23], 4
      %s212 = int_to_ptr.vmem [resolvable:$true] %s211
      %217 = dma.hbm_to_vmem [thread:$0]  %s29, 256, %s212, [#allocation22], 128, 128, 8
    $region61: #{tpu_custom_call.1} parent=1 // pred_fallthru
      _
    // Predicated region
    $region62: #{tpu_custom_call.1} parent=1 // pred_check
      _
    $region63: #{tpu_custom_call.1} parent=1 // pred_check_branch
      %219 = sbr.rel (0) target = $region65
    $region64: #{tpu_custom_call.1} parent=1 // pred_region
      _
    $region65: #{tpu_custom_call.1} parent=1 // pred_fallthru
      _
    // Predicated region
    $region66: #{tpu_custom_call.1} parent=1 // pred_check
      _
    $region67: #{tpu_custom_call.1} parent=1 // pred_check_branch
      %221 = sbr.rel (0) target = $region69
    $region68: #{tpu_custom_call.1} parent=1 // pred_region
      %s223 = ssub.s32 131072, 131072
      %224 = vsyncadd [#allocation25], %s223
      %s225 = sshll.u32 [#allocation24], 4
      %s226 = int_to_ptr.vmem [resolvable:$true] %s225
      %231 = dma.hbm_to_vmem [thread:$0]  %s33, 131072, %s226, [#allocation25], 1024, 1024, 64
    $region69: #{tpu_custom_call.1} parent=1 // pred_fallthru
      _
    // Predicated region
    $region70: #{tpu_custom_call.1} parent=1 // pred_check
      _
    $region71: #{tpu_custom_call.1} parent=1 // pred_check_branch
      %233 = sbr.rel (0) target = $region73
    $region72: #{tpu_custom_call.1} parent=1 // pred_region
      %s235 = ssub.s32 131072, 131072
      %236 = vsyncadd [#allocation25], %s235
      %s237 = sshll.u32 [#allocation26], 4
      %s238 = int_to_ptr.vmem [resolvable:$true] %s237
      %243 = dma.hbm_to_vmem [thread:$0]  %s35, 131072, %s238, [#allocation25], 1024, 1024, 64
    $region73: #{tpu_custom_call.1} parent=1 // pred_fallthru
      _
    // Predicated region
    $region74: #{tpu_custom_call.1} parent=1 // pred_check
      _
    $region75: #{tpu_custom_call.1} parent=1 // pred_check_branch
      %245 = sbr.rel (0) target = $region77
    $region76: #{tpu_custom_call.1} parent=1 // pred_region
      %s247 = ssub.s32 131072, 131072
      %248 = vsyncadd [#allocation28], %s247
      %s249 = sshll.u32 [#allocation27], 4
      %s250 = int_to_ptr.vmem [resolvable:$true] %s249
      %255 = dma.hbm_to_vmem [thread:$0]  %s37, 131072, %s250, [#allocation28], 1024, 1024, 64
    $region77: #{tpu_custom_call.1} parent=1 // pred_fallthru
      _
    // Predicated region
    $region78: #{tpu_custom_call.1} parent=1 // pred_check
      _
    $region79: #{tpu_custom_call.1} parent=1 // pred_check_branch
      %257 = sbr.rel (0) target = $region81
    $region80: #{tpu_custom_call.1} parent=1 // pred_region
      %s259 = ssub.s32 2048, 2048
      %260 = vsyncadd [#allocation28], %s259
      %s261 = sshll.u32 [#allocation29], 4
      %s262 = int_to_ptr.vmem [resolvable:$true] %s261
      %267 = dma.hbm_to_vmem [thread:$0]  %s39, 2048, %s262, [#allocation28], 128, 128, 8
    $region81: #{tpu_custom_call.1} parent=1 // pred_fallthru
      _
    // Predicated region
    $region82: #{tpu_custom_call.1} parent=1 // pred_check
      _
    $region83: #{tpu_custom_call.1} parent=1 // pred_check_branch
      %269 = sbr.rel (0) target = $region85
    $region84: #{tpu_custom_call.1} parent=1 // pred_region
      %s271 = ssub.s32 16, 16
      %272 = vsyncadd [#allocation31], %s271
      %s274 = sshll.u32 [#allocation30], 4
      %s275 = int_to_ptr.vmem [resolvable:$true] %s274
      %277 = dma.hbm_to_vmem [thread:$0]  %s41, 16, %s275, [#allocation31]
    $region85: #{tpu_custom_call.1} parent=1 // pred_fallthru
      _
    // Predicated region
    $region86: #{tpu_custom_call.1} parent=1 // pred_check
      _
    $region87: #{tpu_custom_call.1} parent=1 // pred_check_branch
      %279 = sbr.rel (0) target = $region89
    $region88: #{tpu_custom_call.1} parent=1 // pred_region
      %s281 = ssub.s32 2048, 2048
      %282 = vsyncadd [#allocation31], %s281
      %s283 = sshll.u32 [#allocation32], 4
      %s284 = int_to_ptr.vmem [resolvable:$true] %s283
      %289 = dma.hbm_to_vmem [thread:$0]  %s43, 2048, %s284, [#allocation31], 128, 128, 8
    $region89: #{tpu_custom_call.1} parent=1 // pred_fallthru
      _
    // Predicated region
    $region90: #{tpu_custom_call.1} parent=1 // pred_check
      _
    $region91: #{tpu_custom_call.1} parent=1 // pred_check_branch
      %291 = sbr.rel (0) target = $region93
    $region92: #{tpu_custom_call.1} parent=1 // pred_region
      %s293 = ssub.s32 16, 16
      %294 = vsyncadd [#allocation34], %s293
      %s296 = sshll.u32 [#allocation33], 4
      %s297 = int_to_ptr.vmem [resolvable:$true] %s296
      %299 = dma.hbm_to_vmem [thread:$0]  %s45, 16, %s297, [#allocation34]
    $region93: #{tpu_custom_call.1} parent=1 // pred_fallthru
      _
    // Predicated region
    $region94: #{tpu_custom_call.1} parent=1 // pred_check
      _
    $region95: #{tpu_custom_call.1} parent=1 // pred_check_branch
      %301 = sbr.rel (0) target = $region97
    $region96: #{tpu_custom_call.1} parent=1 // pred_region
      %s303 = ssub.s32 2048, 2048
      %304 = vsyncadd [#allocation34], %s303
      %s305 = sshll.u32 [#allocation35], 4
      %s306 = int_to_ptr.vmem [resolvable:$true] %s305
      %311 = dma.hbm_to_vmem [thread:$0]  %s47, 2048, %s306, [#allocation34], 128, 128, 8
    $region97: #{tpu_custom_call.1} parent=1 // pred_fallthru
      _
    // Predicated region
    $region98: #{tpu_custom_call.1} parent=1 // pred_check
      _
    $region99: #{tpu_custom_call.1} parent=1 // pred_check_branch
      %313 = sbr.rel (0) target = $region101
    $region100: #{tpu_custom_call.1} parent=1 // pred_region
      %s315 = ssub.s32 16, 16
      %316 = vsyncadd [#allocation37], %s315
      %s318 = sshll.u32 [#allocation36], 4
      %s319 = int_to_ptr.vmem [resolvable:$true] %s318
      %321 = dma.hbm_to_vmem [thread:$0]  %s49, 16, %s319, [#allocation37]
    $region101: #{tpu_custom_call.1} parent=1 // pred_fallthru
      _
    // Predicated region
    $region102: #{tpu_custom_call.1} parent=1 // pred_check
      _
    $region103: #{tpu_custom_call.1} parent=1 // pred_check_branch
      %323 = sbr.rel (0) target = $region105
    $region104: #{tpu_custom_call.1} parent=1 // pred_region
      %s325 = ssub.s32 2048, 2048
      %326 = vsyncadd [#allocation37], %s325
      %s327 = sshll.u32 [#allocation38], 4
      %s328 = int_to_ptr.vmem [resolvable:$true] %s327
      %333 = dma.hbm_to_vmem [thread:$0]  %s51, 2048, %s328, [#allocation37], 128, 128, 8
    $region105: #{tpu_custom_call.1} parent=1 // pred_fallthru
      _
    // Predicated region
    $region106: #{tpu_custom_call.1} parent=1 // pred_check
      _
    $region107: #{tpu_custom_call.1} parent=1 // pred_check_branch
      %335 = sbr.rel (0) target = $region109
    $region108: #{tpu_custom_call.1} parent=1 // pred_region
      %s337 = ssub.s32 16, 16
      %338 = vsyncadd [#allocation40], %s337
      %s340 = sshll.u32 [#allocation39], 4
      %s341 = int_to_ptr.vmem [resolvable:$true] %s340
      %343 = dma.hbm_to_vmem [thread:$0]  %s53, 16, %s341, [#allocation40]
    $region109: #{tpu_custom_call.1} parent=1 // pred_fallthru
      _
    // Predicated region
    $region110: #{tpu_custom_call.1} parent=1 // pred_check
      _
    $region111: #{tpu_custom_call.1} parent=1 // pred_check_branch
      %345 = sbr.rel (0) target = $region113
    $region112: #{tpu_custom_call.1} parent=1 // pred_region
      _
    $region113: #{tpu_custom_call.1} parent=1 // pred_fallthru
      _
    // Predicated region
    $region114: #{tpu_custom_call.1} parent=1 // pred_check
      _
    $region115: #{tpu_custom_call.1} parent=1 // pred_check_branch
      %347 = sbr.rel (0) target = $region117
    $region116: #{tpu_custom_call.1} parent=1 // pred_region
      _
    $region117: #{tpu_custom_call.1} parent=1 // pred_fallthru
      _
    // Predicated region
    $region118: #{tpu_custom_call.1} parent=1 // pred_check
      _
    $region119: #{tpu_custom_call.1} parent=1 // pred_check_branch
      %349 = sbr.rel (0) target = $region121
    $region120: #{tpu_custom_call.1} parent=1 // pred_region
      %350 = dma.done [#allocation4], 32
    $region121: #{tpu_custom_call.1} parent=1 // pred_fallthru
      _
    // Predicated region
    $region122: #{tpu_custom_call.1} parent=1 // pred_check
      _
    $region123: #{tpu_custom_call.1} parent=1 // pred_check_branch
      %352 = sbr.rel (0) target = $region125
    $region124: #{tpu_custom_call.1} parent=1 // pred_region
      %353 = dma.done [#allocation7], 32
    $region125: #{tpu_custom_call.1} parent=1 // pred_fallthru
      _
    // Predicated region
    $region126: #{tpu_custom_call.1} parent=1 // pred_check
      _
    $region127: #{tpu_custom_call.1} parent=1 // pred_check_branch
      %355 = sbr.rel (0) target = $region129
    $region128: #{tpu_custom_call.1} parent=1 // pred_region
      %356 = dma.done [#allocation7], 256
    $region129: #{tpu_custom_call.1} parent=1 // pred_fallthru
      _
    // Predicated region
    $region130: #{tpu_custom_call.1} parent=1 // pred_check
      _
    $region131: #{tpu_custom_call.1} parent=1 // pred_check_branch
      %358 = sbr.rel (0) target = $region133
    $region132: #{tpu_custom_call.1} parent=1 // pred_region
      %359 = dma.done [#allocation10], 16
    $region133: #{tpu_custom_call.1} parent=1 // pred_fallthru
      _
    // Predicated region
    $region134: #{tpu_custom_call.1} parent=1 // pred_check
      _
    $region135: #{tpu_custom_call.1} parent=1 // pred_check_branch
      %361 = sbr.rel (0) target = $region137
    $region136: #{tpu_custom_call.1} parent=1 // pred_region
      %362 = dma.done [#allocation10], 16
    $region137: #{tpu_custom_call.1} parent=1 // pred_fallthru
      _
    // Predicated region
    $region138: #{tpu_custom_call.1} parent=1 // pred_check
      _
    $region139: #{tpu_custom_call.1} parent=1 // pred_check_branch
      %364 = sbr.rel (0) target = $region141
    $region140: #{tpu_custom_call.1} parent=1 // pred_region
      %365 = dma.done [#allocation13], 16
    $region141: #{tpu_custom_call.1} parent=1 // pred_fallthru
      _
    // Predicated region
    $region142: #{tpu_custom_call.1} parent=1 // pred_check
      _
    $region143: #{tpu_custom_call.1} parent=1 // pred_check_branch
      %367 = sbr.rel (0) target = $region145
    $region144: #{tpu_custom_call.1} parent=1 // pred_region
      %368 = dma.done [#allocation13], 16
    $region145: #{tpu_custom_call.1} parent=1 // pred_fallthru
      _
    // Predicated region
    $region146: #{tpu_custom_call.1} parent=1 // pred_check
      _
    $region147: #{tpu_custom_call.1} parent=1 // pred_check_branch
      %370 = sbr.rel (0) target = $region149
    $region148: #{tpu_custom_call.1} parent=1 // pred_region
      %371 = dma.done [#allocation16], 16
    $region149: #{tpu_custom_call.1} parent=1 // pred_fallthru
      _
    // Predicated region
    $region150: #{tpu_custom_call.1} parent=1 // pred_check
      _
    $region151: #{tpu_custom_call.1} parent=1 // pred_check_branch
      %373 = sbr.rel (0) target = $region153
    $region152: #{tpu_custom_call.1} parent=1 // pred_region
      %374 = dma.done [#allocation16], 16
    $region153: #{tpu_custom_call.1} parent=1 // pred_fallthru
      _
    // Predicated region
    $region154: #{tpu_custom_call.1} parent=1 // pred_check
      _
    $region155: #{tpu_custom_call.1} parent=1 // pred_check_branch
      %376 = sbr.rel (0) target = $region157
    $region156: #{tpu_custom_call.1} parent=1 // pred_region
      %377 = dma.done [#allocation19], 16
    $region157: #{tpu_custom_call.1} parent=1 // pred_fallthru
      _
    // Predicated region
    $region158: #{tpu_custom_call.1} parent=1 // pred_check
      _
    $region159: #{tpu_custom_call.1} parent=1 // pred_check_branch
      %379 = sbr.rel (0) target = $region161
    $region160: #{tpu_custom_call.1} parent=1 // pred_region
      %380 = dma.done [#allocation19], 16
    $region161: #{tpu_custom_call.1} parent=1 // pred_fallthru
      _
    // Predicated region
    $region162: #{tpu_custom_call.1} parent=1 // pred_check
      _
    $region163: #{tpu_custom_call.1} parent=1 // pred_check_branch
      %382 = sbr.rel (0) target = $region165
    $region164: #{tpu_custom_call.1} parent=1 // pred_region
      %383 = dma.done [#allocation22], 16
    $region165: #{tpu_custom_call.1} parent=1 // pred_fallthru
      _
    // Predicated region
    $region166: #{tpu_custom_call.1} parent=1 // pred_check
      _
    $region167: #{tpu_custom_call.1} parent=1 // pred_check_branch
      %385 = sbr.rel (0) target = $region169
    $region168: #{tpu_custom_call.1} parent=1 // pred_region
      %386 = dma.done [#allocation22], 256
    $region169: #{tpu_custom_call.1} parent=1 // pred_fallthru
      _
    // Predicated region
    $region170: #{tpu_custom_call.1} parent=1 // pred_check
      _
    $region171: #{tpu_custom_call.1} parent=1 // pred_check_branch
      %388 = sbr.rel (0) target = $region173
    $region172: #{tpu_custom_call.1} parent=1 // pred_region
      %389 = dma.done [#allocation25], 131072
    $region173: #{tpu_custom_call.1} parent=1 // pred_fallthru
      _
    // Predicated region
    $region174: #{tpu_custom_call.1} parent=1 // pred_check
      _
    $region175: #{tpu_custom_call.1} parent=1 // pred_check_branch
      %391 = sbr.rel (0) target = $region177
    $region176: #{tpu_custom_call.1} parent=1 // pred_region
      %392 = dma.done [#allocation25], 131072
    $region177: #{tpu_custom_call.1} parent=1 // pred_fallthru
      _
    // Predicated region
    $region178: #{tpu_custom_call.1} parent=1 // pred_check
      _
    $region179: #{tpu_custom_call.1} parent=1 // pred_check_branch
      %394 = sbr.rel (0) target = $region181
    $region180: #{tpu_custom_call.1} parent=1 // pred_region
      %395 = dma.done [#allocation28], 131072
    $region181: #{tpu_custom_call.1} parent=1 // pred_fallthru
      _
    // Predicated region
    $region182: #{tpu_custom_call.1} parent=1 // pred_check
      _
    $region183: #{tpu_custom_call.1} parent=1 // pred_check_branch
      %397 = sbr.rel (0) target = $region185
    $region184: #{tpu_custom_call.1} parent=1 // pred_region
      %398 = dma.done [#allocation28], 2048
    $region185: #{tpu_custom_call.1} parent=1 // pred_fallthru
      _
    // Predicated region
    $region186: #{tpu_custom_call.1} parent=1 // pred_check
      _
    $region187: #{tpu_custom_call.1} parent=1 // pred_check_branch
      %400 = sbr.rel (0) target = $region189
    $region188: #{tpu_custom_call.1} parent=1 // pred_region
      %401 = dma.done [#allocation31], 16
    $region189: #{tpu_custom_call.1} parent=1 // pred_fallthru
      _
    // Predicated region
    $region190: #{tpu_custom_call.1} parent=1 // pred_check
      _
    $region191: #{tpu_custom_call.1} parent=1 // pred_check_branch
      %403 = sbr.rel (0) target = $region193
    $region192: #{tpu_custom_call.1} parent=1 // pred_region
      %404 = dma.done [#allocation31], 2048
    $region193: #{tpu_custom_call.1} parent=1 // pred_fallthru
      _
    // Predicated region
    $region194: #{tpu_custom_call.1} parent=1 // pred_check
      _
    $region195: #{tpu_custom_call.1} parent=1 // pred_check_branch
      %406 = sbr.rel (0) target = $region197
    $region196: #{tpu_custom_call.1} parent=1 // pred_region
      %407 = dma.done [#allocation34], 16
    $region197: #{tpu_custom_call.1} parent=1 // pred_fallthru
      _
    // Predicated region
    $region198: #{tpu_custom_call.1} parent=1 // pred_check
      _
    $region199: #{tpu_custom_call.1} parent=1 // pred_check_branch
      %409 = sbr.rel (0) target = $region201
    $region200: #{tpu_custom_call.1} parent=1 // pred_region
      %410 = dma.done [#allocation34], 2048
    $region201: #{tpu_custom_call.1} parent=1 // pred_fallthru
      _
    // Predicated region
    $region202: #{tpu_custom_call.1} parent=1 // pred_check
      _
    $region203: #{tpu_custom_call.1} parent=1 // pred_check_branch
      %412 = sbr.rel (0) target = $region205
    $region204: #{tpu_custom_call.1} parent=1 // pred_region
      %413 = dma.done [#allocation37], 16
    $region205: #{tpu_custom_call.1} parent=1 // pred_fallthru
      _
    // Predicated region
    $region206: #{tpu_custom_call.1} parent=1 // pred_check
      _
    $region207: #{tpu_custom_call.1} parent=1 // pred_check_branch
      %415 = sbr.rel (0) target = $region209
    $region208: #{tpu_custom_call.1} parent=1 // pred_region
      %416 = dma.done [#allocation37], 2048
    $region209: #{tpu_custom_call.1} parent=1 // pred_fallthru
      _
    // Predicated region
    $region210: #{tpu_custom_call.1} parent=1 // pred_check
      _
    $region211: #{tpu_custom_call.1} parent=1 // pred_check_branch
      %418 = sbr.rel (0) target = $region213
    $region212: #{tpu_custom_call.1} parent=1 // pred_region
      %419 = dma.done [#allocation40], 16
    $region213: #{tpu_custom_call.1} parent=1 // pred_fallthru
      _
    %v420 = vld [vmem:[#allocation23] sm:$0xff]
    %v421 = vld [vmem:[#allocation23 + $0x8] sm:$0xff]
    %v422 = vld [vmem:[%s31] sm:$0xff]
    %v423 = vld [vmem:[%s31 + $0x8] sm:$0xff]
    %v424 = vld [vmem:[%s31 + $0x10] sm:$0xff]
    %v425 = vld [vmem:[%s31 + $0x18] sm:$0xff]
    %v426 = vld [vmem:[%s5] sm:$0xff]
    %v427 = vld [vmem:[%s5 + $0x8] sm:$0xff]
    %v428 = vld [vmem:[%s5 + $0x10] sm:$0xff]
    %v429 = vld [vmem:[%s5 + $0x18] sm:$0xff]
    %v430 = vld [vmem:[%s3] sm:$0xff]
    %v431 = vld [vmem:[%s3 + $0x8] sm:$0xff]
    %v432 = vld [vmem:[%s3 + $0x10] sm:$0xff]
    %v433 = vld [vmem:[%s3 + $0x18] sm:$0xff]
    %v434 = vld [vmem:[#allocation3] sm:$0x3]
    %vm435 = vcmask 15360
    %v437 = vsel %vm435, %v430, 0
    %v440 = vsel %vm435, %v431, 0
    %v443 = vsel %vm435, %v432, 0
    %v446 = vsel %vm435, %v433, 0
    %vm448 = vcmask 1041408
    %v450 = vsel %vm448, %v434, 0
    %452 = vmatprep.subr.mxu0 0.0
    %453 = vmatpush1.msra.mxu0 0.0
    %454 = vmatprep.subr.mxu0 0.0
    %455 = vmatpush1.msra.mxu0 0.0
    %456 = vmatprep.subr.mxu0 0.0
    %457 = vmatpush1.msra.mxu0 0.0
    %458 = vmatprep.subr.mxu0 0.0
    %459 = vmatpush1.msra.mxu0 0.0
    %460 = vmatprep.subr.mxu0 0.0
    %461 = vmatpush1.msra.mxu0 0.0
    %462 = vmatprep.subr.mxu0 0.0
    %463 = vmatpush1.msra.mxu0 0.0
    %464 = vmatprep.subr.mxu0 0.0
    %465 = vmatpush1.msra.mxu0 0.0
    %466 = vmatprep.subr.mxu0 0.0
    %467 = vmatpush1.msra.mxu0 0.0
    %468 = vmatprep.subr.mxu0 0.0
    %469 = vmatpush1.msra.mxu0 0.0
    %470 = vmatprep.subr.mxu0 0.0
    %471 = vmatpush1.msra.mxu0 0.0
    %472 = vmatprep.subr.mxu0 0.0
    %473 = vmatpush1.msra.mxu0 0.0
    %474 = vmatprep.subr.mxu0 0.0
    %475 = vmatpush1.msra.mxu0 0.0
    %476 = vmatprep.subr.mxu0 0.0
    %477 = vmatpush1.msra.mxu0 0.0
    %478 = vmatprep.subr.mxu0 0.0
    %479 = vmatpush1.msra.mxu0 0.0
    %480 = vmatprep.subr.mxu0 0.0
    %481 = vmatpush1.msra.mxu0 0.0
    %482 = vmatprep.subr.mxu0 0.0
    %483 = vmatpush1.msra.mxu0 %v450
    %484 = vmatprep.subr.mxu0 0.0
    %485 = vmatpush2.msra.mxu0 0.0
    %486 = vmatprep.subr.mxu0 0.0
    %487 = vmatpush2.msra.mxu0 0.0
    %488 = vmatprep.subr.mxu0 0.0
    %489 = vmatpush2.msra.mxu0 0.0
    %490 = vmatprep.subr.mxu0 0.0
    %491 = vmatpush2.msra.mxu0 0.0
    %492 = vmatprep.subr.mxu0 0.0
    %493 = vmatpush2.msra.mxu0 0.0
    %494 = vmatprep.subr.mxu0 0.0
    %495 = vmatpush2.msra.mxu0 0.0
    %496 = vmatprep.subr.mxu0 0.0
    %497 = vmatpush2.msra.mxu0 0.0
    %498 = vmatprep.subr.mxu0 0.0
    %499 = vmatpush2.msra.mxu0 0.0
    %500 = vmatprep.subr.mxu0 0.0
    %501 = vmatpush2.msra.mxu0 0.0
    %502 = vmatprep.subr.mxu0 0.0
    %503 = vmatpush2.msra.mxu0 0.0
    %504 = vmatprep.subr.mxu0 0.0
    %505 = vmatpush2.msra.mxu0 0.0
    %506 = vmatprep.subr.mxu0 0.0
    %507 = vmatpush2.msra.mxu0 0.0
    %508 = vmatprep.subr.mxu0 0.0
    %509 = vmatpush2.msra.mxu0 0.0
    %510 = vmatprep.subr.mxu0 0.0
    %511 = vmatpush2.msra.mxu0 0.0
    %512 = vmatprep.subr.mxu0 0.0
    %513 = vmatpush2.msra.mxu0 0.0
    %514 = vmatprep.subr.mxu0 0.0
    %515 = vmatpush2.msra.mxu0 0.0
    %516 = vmatprep.mubr.f32.mxu0 0.0
    %517 = vmatmul.mubr.f32.gmra.mxu0 %v437
    %v518 = vpop.f32.mrf.mxu0
    %v519 = vadd.f32 0.0, %v518
    %v520 = vpop.f32.mrf.mxu0
    %521 = vmatprep.mubr.f32.mxu0 0.0
    %522 = vmatmul.mubr.f32.gmra.mxu0 %v440
    %v523 = vpop.f32.mrf.mxu0
    %v524 = vadd.f32 0.0, %v523
    %v525 = vpop.f32.mrf.mxu0
    %526 = vmatprep.mubr.f32.mxu0 0.0
    %527 = vmatmul.mubr.f32.gmra.mxu0 %v443
    %v528 = vpop.f32.mrf.mxu0
    %v529 = vadd.f32 0.0, %v528
    %v530 = vpop.f32.mrf.mxu0
    %531 = vmatprep.mubr.f32.mxu0 0.0
    %532 = vmatmul.mubr.f32.gmra.mxu0 %v446
    %v533 = vpop.f32.mrf.mxu0
    %v534 = vadd.f32 0.0, %v533
    %v535 = vpop.f32.mrf.mxu0
    %536 = vdwg.mxu0
    %v537 = vmul.f32 %v519, %v426
    %v538 = vmul.f32 %v524, %v427
    %v539 = vmul.f32 %v529, %v428
    %v540 = vmul.f32 %v534, %v429
    %v541 = vld [vmem:[#allocation8] sm:$0xff]
    %v542 = vld [vmem:[#allocation8 + $0x8] sm:$0xff]
    %v543 = vld [vmem:[#allocation9] sm:$0x1]
    %v545 = vlaneseq
    %v546 = vshrl.u32 %v545, 7
    %v547 = vsub.s32 0, %v546
    %v548 = vrot.slane %v543, %v547
    %vm550 = vcmask 130048
    %v552 = vsel %vm550, %v537, 0
    %v555 = vsel %vm550, %v538, 0
    %v558 = vsel %vm550, %v539, 0
    %v561 = vsel %vm550, %v540, 0
    %563 = vmatprep.subr.mxu0 0.0
    %564 = vmatpush1.msra.mxu0 0.0
    %565 = vmatprep.subr.mxu0 0.0
    %566 = vmatpush1.msra.mxu0 0.0
    %567 = vmatprep.subr.mxu0 0.0
    %568 = vmatpush1.msra.mxu0 0.0
    %569 = vmatprep.subr.mxu0 0.0
    %570 = vmatpush1.msra.mxu0 0.0
    %571 = vmatprep.subr.mxu0 0.0
    %572 = vmatpush1.msra.mxu0 0.0
    %573 = vmatprep.subr.mxu0 0.0
    %574 = vmatpush1.msra.mxu0 0.0
    %575 = vmatprep.subr.mxu0 0.0
    %576 = vmatpush1.msra.mxu0 0.0
    %577 = vmatprep.subr.mxu0 0.0
    %578 = vmatpush1.msra.mxu0 0.0
    %579 = vmatprep.subr.mxu0 0.0
    %580 = vmatpush1.msra.mxu0 0.0
    %581 = vmatprep.subr.mxu0 0.0
    %582 = vmatpush1.msra.mxu0 0.0
    %583 = vmatprep.subr.mxu0 0.0
    %584 = vmatpush1.msra.mxu0 0.0
    %585 = vmatprep.subr.mxu0 0.0
    %586 = vmatpush1.msra.mxu0 0.0
    %587 = vmatprep.subr.mxu0 0.0
    %588 = vmatpush1.msra.mxu0 0.0
    %589 = vmatprep.subr.mxu0 0.0
    %590 = vmatpush1.msra.mxu0 0.0
    %591 = vmatprep.subr.mxu0 0.0
    %592 = vmatpush1.msra.mxu0 %v542
    %593 = vmatprep.subr.mxu0 0.0
    %594 = vmatpush1.msra.mxu0 %v541
    %595 = vmatprep.subr.mxu0 0.0
    %596 = vmatpush2.msra.mxu0 0.0
    %597 = vmatprep.subr.mxu0 0.0
    %598 = vmatpush2.msra.mxu0 0.0
    %599 = vmatprep.subr.mxu0 0.0
    %600 = vmatpush2.msra.mxu0 0.0
    %601 = vmatprep.subr.mxu0 0.0
    %602 = vmatpush2.msra.mxu0 0.0
    %603 = vmatprep.subr.mxu0 0.0
    %604 = vmatpush2.msra.mxu0 0.0
    %605 = vmatprep.subr.mxu0 0.0
    %606 = vmatpush2.msra.mxu0 0.0
    %607 = vmatprep.subr.mxu0 0.0
    %608 = vmatpush2.msra.mxu0 0.0
    %609 = vmatprep.subr.mxu0 0.0
    %610 = vmatpush2.msra.mxu0 0.0
    %611 = vmatprep.subr.mxu0 0.0
    %612 = vmatpush2.msra.mxu0 0.0
    %613 = vmatprep.subr.mxu0 0.0
    %614 = vmatpush2.msra.mxu0 0.0
    %615 = vmatprep.subr.mxu0 0.0
    %616 = vmatpush2.msra.mxu0 0.0
    %617 = vmatprep.subr.mxu0 0.0
    %618 = vmatpush2.msra.mxu0 0.0
    %619 = vmatprep.subr.mxu0 0.0
    %620 = vmatpush2.msra.mxu0 0.0
    %621 = vmatprep.subr.mxu0 0.0
    %622 = vmatpush2.msra.mxu0 0.0
    %623 = vmatprep.subr.mxu0 0.0
    %624 = vmatpush2.msra.mxu0 0.0
    %625 = vmatprep.subr.mxu0 0.0
    %626 = vmatpush2.msra.mxu0 0.0
    %627 = vmatprep.mubr.f32.mxu0 0.0
    %628 = vmatmul.mubr.f32.gmra.mxu0 %v552
    %v629 = vpop.f32.mrf.mxu0
    %v630 = vadd.f32 %v548, %v629
    %v631 = vpop.f32.mrf.mxu0
    %632 = vmatprep.mubr.f32.mxu0 0.0
    %633 = vmatmul.mubr.f32.gmra.mxu0 %v555
    %v634 = vpop.f32.mrf.mxu0
    %v635 = vadd.f32 %v548, %v634
    %v636 = vpop.f32.mrf.mxu0
    %637 = vmatprep.mubr.f32.mxu0 0.0
    %638 = vmatmul.mubr.f32.gmra.mxu0 %v558
    %v639 = vpop.f32.mrf.mxu0
    %v640 = vadd.f32 %v548, %v639
    %v641 = vpop.f32.mrf.mxu0
    %642 = vmatprep.mubr.f32.mxu0 0.0
    %643 = vmatmul.mubr.f32.gmra.mxu0 %v561
    %v644 = vpop.f32.mrf.mxu0
    %v645 = vadd.f32 %v548, %v644
    %v646 = vpop.f32.mrf.mxu0
    %647 = vdwg.mxu0
    %v648 = vadd.f32 %v630, %v635
    %v649 = vadd.f32 %v648, %v640
    %v650 = vadd.f32 %v649, %v645
    %v651 = vrot.slane %v650, 4
    %v652 = vadd.f32 %v650, %v651
    %v653 = vrot.slane %v652, 2
    %v654 = vadd.f32 %v652, %v653
    %v655 = vrot.slane %v654, 1
    %v656 = vadd.f32 %v654, %v655
    %v657 = vmul.f32 %v656, 0.03125
    %v658 = vmul.f32 %v630, %v630
    %v659 = vmul.f32 %v635, %v635
    %v660 = vmul.f32 %v640, %v640
    %v661 = vmul.f32 %v645, %v645
    %v662 = vadd.f32 %v658, %v659
    %v663 = vadd.f32 %v662, %v660
    %v664 = vadd.f32 %v663, %v661
    %v665 = vrot.slane %v664, 4
    %v666 = vadd.f32 %v664, %v665
    %v667 = vrot.slane %v666, 2
    %v668 = vadd.f32 %v666, %v667
    %v669 = vrot.slane %v668, 1
    %v670 = vadd.f32 %v668, %v669
    %v671 = vmul.f32 %v670, 0.03125
    %v672 = vmul.f32 %v657, %v657
    %v673 = vsub.f32 %v671, %v672
    %v674 = vadd.f32 %v673, 1e-05
    %v675 = vrsqrt.pop %v674
    %v676 = vsub.f32 %v630, %v657
    %v677 = vsub.f32 %v635, %v657
    %v678 = vsub.f32 %v640, %v657
    %v679 = vsub.f32 %v645, %v657
    %v680 = vld [vmem:[#allocation11] sm:$0x1]
    %v681 = vmul.f32 %v675, %v680
    %v682 = vlaneseq
    %v683 = vshrl.u32 %v682, 7
    %v684 = vsub.s32 0, %v683
    %v685 = vrot.slane %v681, %v684
    %v686 = vmul.f32 %v676, %v685
    %v687 = vmul.f32 %v677, %v685
    %v688 = vmul.f32 %v678, %v685
    %v689 = vmul.f32 %v679, %v685
    %v690 = vld [vmem:[#allocation12] sm:$0x1]
    %v692 = vlaneseq
    %v693 = vshrl.u32 %v692, 7
    %v694 = vsub.s32 0, %v693
    %v695 = vrot.slane %v690, %v694
    %v697 = vadd.f32 %v686, %v695
    %v698 = vadd.f32 %v687, %v695
    %v699 = vadd.f32 %v688, %v695
    %v700 = vadd.f32 %v689, %v695
    %vm701 = vcmask 261120
    %v703 = vsel %vm701, %v420, 0
    %v706 = vsel %vm701, %v421, 0
    %708 = vmatprep.subr.mxu0 0.0
    %709 = vmatpush1.msra.mxu0 0.0
    %710 = vmatprep.subr.mxu0 0.0
    %711 = vmatpush1.msra.mxu0 0.0
    %712 = vmatprep.subr.mxu0 0.0
    %713 = vmatpush1.msra.mxu0 0.0
    %714 = vmatprep.subr.mxu0 0.0
    %715 = vmatpush1.msra.mxu0 0.0
    %716 = vmatprep.subr.mxu0 0.0
    %717 = vmatpush1.msra.mxu0 0.0
    %718 = vmatprep.subr.mxu0 0.0
    %719 = vmatpush1.msra.mxu0 0.0
    %720 = vmatprep.subr.mxu0 0.0
    %721 = vmatpush1.msra.mxu0 0.0
    %722 = vmatprep.subr.mxu0 0.0
    %723 = vmatpush1.msra.mxu0 0.0
    %724 = vmatprep.subr.mxu0 0.0
    %725 = vmatpush1.msra.mxu0 0.0
    %726 = vmatprep.subr.mxu0 0.0
    %727 = vmatpush1.msra.mxu0 0.0
    %728 = vmatprep.subr.mxu0 0.0
    %729 = vmatpush1.msra.mxu0 0.0
    %730 = vmatprep.subr.mxu0 0.0
    %731 = vmatpush1.msra.mxu0 0.0
    %732 = vmatprep.subr.mxu0 0.0
    %733 = vmatpush1.msra.mxu0 %v700
    %734 = vmatprep.subr.mxu0 0.0
    %735 = vmatpush1.msra.mxu0 %v699
    %736 = vmatprep.subr.mxu0 0.0
    %737 = vmatpush1.msra.mxu0 %v698
    %738 = vmatprep.subr.mxu0 0.0
    %739 = vmatpush1.msra.mxu0 %v697
    %740 = vmatprep.subr.mxu0 0.0
    %741 = vmatpush2.msra.mxu0 0.0
    %742 = vmatprep.subr.mxu0 0.0
    %743 = vmatpush2.msra.mxu0 0.0
    %744 = vmatprep.subr.mxu0 0.0
    %745 = vmatpush2.msra.mxu0 0.0
    %746 = vmatprep.subr.mxu0 0.0
    %747 = vmatpush2.msra.mxu0 0.0
    %748 = vmatprep.subr.mxu0 0.0
    %749 = vmatpush2.msra.mxu0 0.0
    %750 = vmatprep.subr.mxu0 0.0
    %751 = vmatpush2.msra.mxu0 0.0
    %752 = vmatprep.subr.mxu0 0.0
    %753 = vmatpush2.msra.mxu0 0.0
    %754 = vmatprep.subr.mxu0 0.0
    %755 = vmatpush2.msra.mxu0 0.0
    %756 = vmatprep.subr.mxu0 0.0
    %757 = vmatpush2.msra.mxu0 0.0
    %758 = vmatprep.subr.mxu0 0.0
    %759 = vmatpush2.msra.mxu0 0.0
    %760 = vmatprep.subr.mxu0 0.0
    %761 = vmatpush2.msra.mxu0 0.0
    %762 = vmatprep.subr.mxu0 0.0
    %763 = vmatpush2.msra.mxu0 0.0
    %764 = vmatprep.subr.mxu0 0.0
    %765 = vmatpush2.msra.mxu0 0.0
    %766 = vmatprep.subr.mxu0 0.0
    %767 = vmatpush2.msra.mxu0 0.0
    %768 = vmatprep.subr.mxu0 0.0
    %769 = vmatpush2.msra.mxu0 0.0
    %770 = vmatprep.subr.mxu0 0.0
    %771 = vmatpush2.msra.mxu0 0.0
    %772 = vmatprep.mubr.f32.mxu0 0.0
    %773 = vmatmul.mubr.f32.gmra.mxu0 %v703
    %v774 = vpop.f32.mrf.mxu0
    %v775 = vadd.f32 0.0, %v774
    %v776 = vpop.f32.mrf.mxu0
    %777 = vmatprep.mubr.f32.mxu0 0.0
    %778 = vmatmul.mubr.f32.gmra.mxu0 %v706
    %v779 = vpop.f32.mrf.mxu0
    %v780 = vadd.f32 0.0, %v779
    %v781 = vpop.f32.mrf.mxu0
    %782 = vdwg.mxu0
    %v784 = vrot.slane %v775, 2
    %v786 = vrot.slane %v775, 4
    %v788 = vrot.slane %v775, 6
    %v791 = vrot.slane %v780, 2
    %v793 = vrot.slane %v780, 4
    %v795 = vrot.slane %v780, 6
    %v797 = vld [vmem:[#allocation24] sm:$0xff]
    %v798 = vld [vmem:[#allocation24 + $0x8] sm:$0xff]
    %v799 = vld [vmem:[#allocation24 + $0x10] sm:$0xff]
    %v800 = vld [vmem:[#allocation24 + $0x18] sm:$0xff]
    %v801 = vld [vmem:[#allocation24 + $0x20] sm:$0xff]
    %v802 = vld [vmem:[#allocation24 + $0x28] sm:$0xff]
    %v803 = vld [vmem:[#allocation24 + $0x30] sm:$0xff]
    %v804 = vld [vmem:[#allocation24 + $0x38] sm:$0xff]
    %v805 = vld [vmem:[#allocation24 + $0x40] sm:$0xff]
    %v806 = vld [vmem:[#allocation24 + $0x48] sm:$0xff]
    %v807 = vld [vmem:[#allocation24 + $0x50] sm:$0xff]
    %v808 = vld [vmem:[#allocation24 + $0x58] sm:$0xff]
    %v809 = vld [vmem:[#allocation24 + $0x60] sm:$0xff]
    %v810 = vld [vmem:[#allocation24 + $0x68] sm:$0xff]
    %v811 = vld [vmem:[#allocation24 + $0x70] sm:$0xff]
    %v812 = vld [vmem:[#allocation24 + $0x78] sm:$0xff]
    %v813 = vld [vmem:[#allocation24 + $0x80] sm:$0xff]
    %v814 = vld [vmem:[#allocation24 + $0x88] sm:$0xff]
    %v815 = vld [vmem:[#allocation24 + $0x90] sm:$0xff]
    %v816 = vld [vmem:[#allocation24 + $0x98] sm:$0xff]
    %v817 = vld [vmem:[#allocation24 + $0xa0] sm:$0xff]
    %v818 = vld [vmem:[#allocation24 + $0xa8] sm:$0xff]
    %v819 = vld [vmem:[#allocation24 + $0xb0] sm:$0xff]
    %v820 = vld [vmem:[#allocation24 + $0xb8] sm:$0xff]
    %v821 = vld [vmem:[#allocation24 + $0xc0] sm:$0xff]
    %v822 = vld [vmem:[#allocation24 + $0xc8] sm:$0xff]
    %v823 = vld [vmem:[#allocation24 + $0xd0] sm:$0xff]
    %v824 = vld [vmem:[#allocation24 + $0xd8] sm:$0xff]
    %v825 = vld [vmem:[#allocation24 + $0xe0] sm:$0xff]
    %v826 = vld [vmem:[#allocation24 + $0xe8] sm:$0xff]
    %v827 = vld [vmem:[#allocation24 + $0xf0] sm:$0xff]
    %v828 = vld [vmem:[#allocation24 + $0xf8] sm:$0xff]
    %v829 = vld [vmem:[#allocation24 + $0x100] sm:$0xff]
    %v830 = vld [vmem:[#allocation24 + $0x108] sm:$0xff]
    %v831 = vld [vmem:[#allocation24 + $0x110] sm:$0xff]
    %v832 = vld [vmem:[#allocation24 + $0x118] sm:$0xff]
    %v833 = vld [vmem:[#allocation24 + $0x120] sm:$0xff]
    %v834 = vld [vmem:[#allocation24 + $0x128] sm:$0xff]
    %v835 = vld [vmem:[#allocation24 + $0x130] sm:$0xff]
    %v836 = vld [vmem:[#allocation24 + $0x138] sm:$0xff]
    %v837 = vld [vmem:[#allocation24 + $0x140] sm:$0xff]
    %v838 = vld [vmem:[#allocation24 + $0x148] sm:$0xff]
    %v839 = vld [vmem:[#allocation24 + $0x150] sm:$0xff]
    %v840 = vld [vmem:[#allocation24 + $0x158] sm:$0xff]
    %v841 = vld [vmem:[#allocation24 + $0x160] sm:$0xff]
    %v842 = vld [vmem:[#allocation24 + $0x168] sm:$0xff]
    %v843 = vld [vmem:[#allocation24 + $0x170] sm:$0xff]
    %v844 = vld [vmem:[#allocation24 + $0x178] sm:$0xff]
    %v845 = vld [vmem:[#allocation24 + $0x180] sm:$0xff]
    %v846 = vld [vmem:[#allocation24 + $0x188] sm:$0xff]
    %v847 = vld [vmem:[#allocation24 + $0x190] sm:$0xff]
    %v848 = vld [vmem:[#allocation24 + $0x198] sm:$0xff]
    %v849 = vld [vmem:[#allocation24 + $0x1a0] sm:$0xff]
    %v850 = vld [vmem:[#allocation24 + $0x1a8] sm:$0xff]
    %v851 = vld [vmem:[#allocation24 + $0x1b0] sm:$0xff]
    %v852 = vld [vmem:[#allocation24 + $0x1b8] sm:$0xff]
    %v853 = vld [vmem:[#allocation24 + $0x1c0] sm:$0xff]
    %v854 = vld [vmem:[#allocation24 + $0x1c8] sm:$0xff]
    %v855 = vld [vmem:[#allocation24 + $0x1d0] sm:$0xff]
    %v856 = vld [vmem:[#allocation24 + $0x1d8] sm:$0xff]
    %v857 = vld [vmem:[#allocation24 + $0x1e0] sm:$0xff]
    %v858 = vld [vmem:[#allocation24 + $0x1e8] sm:$0xff]
    %v859 = vld [vmem:[#allocation24 + $0x1f0] sm:$0xff]
    %v860 = vld [vmem:[#allocation24 + $0x1f8] sm:$0xff]
    %v861 = vld [vmem:[#allocation24 + $0x200] sm:$0xff]
    %v862 = vld [vmem:[#allocation24 + $0x208] sm:$0xff]
    %v863 = vld [vmem:[#allocation24 + $0x210] sm:$0xff]
    %v864 = vld [vmem:[#allocation24 + $0x218] sm:$0xff]
    %v865 = vld [vmem:[#allocation24 + $0x220] sm:$0xff]
    %v866 = vld [vmem:[#allocation24 + $0x228] sm:$0xff]
    %v867 = vld [vmem:[#allocation24 + $0x230] sm:$0xff]
    %v868 = vld [vmem:[#allocation24 + $0x238] sm:$0xff]
    %v869 = vld [vmem:[#allocation24 + $0x240] sm:$0xff]
    %v870 = vld [vmem:[#allocation24 + $0x248] sm:$0xff]
    %v871 = vld [vmem:[#allocation24 + $0x250] sm:$0xff]
    %v872 = vld [vmem:[#allocation24 + $0x258] sm:$0xff]
    %v873 = vld [vmem:[#allocation24 + $0x260] sm:$0xff]
    %v874 = vld [vmem:[#allocation24 + $0x268] sm:$0xff]
    %v875 = vld [vmem:[#allocation24 + $0x270] sm:$0xff]
    %v876 = vld [vmem:[#allocation24 + $0x278] sm:$0xff]
    %v877 = vld [vmem:[#allocation24 + $0x280] sm:$0xff]
    %v878 = vld [vmem:[#allocation24 + $0x288] sm:$0xff]
    %v879 = vld [vmem:[#allocation24 + $0x290] sm:$0xff]
    %v880 = vld [vmem:[#allocation24 + $0x298] sm:$0xff]
    %v881 = vld [vmem:[#allocation24 + $0x2a0] sm:$0xff]
    %v882 = vld [vmem:[#allocation24 + $0x2a8] sm:$0xff]
    %v883 = vld [vmem:[#allocation24 + $0x2b0] sm:$0xff]
    %v884 = vld [vmem:[#allocation24 + $0x2b8] sm:$0xff]
    %v885 = vld [vmem:[#allocation24 + $0x2c0] sm:$0xff]
    %v886 = vld [vmem:[#allocation24 + $0x2c8] sm:$0xff]
    %v887 = vld [vmem:[#allocation24 + $0x2d0] sm:$0xff]
    %v888 = vld [vmem:[#allocation24 + $0x2d8] sm:$0xff]
    %v889 = vld [vmem:[#allocation24 + $0x2e0] sm:$0xff]
    %v890 = vld [vmem:[#allocation24 + $0x2e8] sm:$0xff]
    %v891 = vld [vmem:[#allocation24 + $0x2f0] sm:$0xff]
    %v892 = vld [vmem:[#allocation24 + $0x2f8] sm:$0xff]
    %v893 = vld [vmem:[#allocation24 + $0x300] sm:$0xff]
    %v894 = vld [vmem:[#allocation24 + $0x308] sm:$0xff]
    %v895 = vld [vmem:[#allocation24 + $0x310] sm:$0xff]
    %v896 = vld [vmem:[#allocation24 + $0x318] sm:$0xff]
    %v897 = vld [vmem:[#allocation24 + $0x320] sm:$0xff]
    %v898 = vld [vmem:[#allocation24 + $0x328] sm:$0xff]
    %v899 = vld [vmem:[#allocation24 + $0x330] sm:$0xff]
    %v900 = vld [vmem:[#allocation24 + $0x338] sm:$0xff]
    %v901 = vld [vmem:[#allocation24 + $0x340] sm:$0xff]
    %v902 = vld [vmem:[#allocation24 + $0x348] sm:$0xff]
    %v903 = vld [vmem:[#allocation24 + $0x350] sm:$0xff]
    %v904 = vld [vmem:[#allocation24 + $0x358] sm:$0xff]
    %v905 = vld [vmem:[#allocation24 + $0x360] sm:$0xff]
    %v906 = vld [vmem:[#allocation24 + $0x368] sm:$0xff]
    %v907 = vld [vmem:[#allocation24 + $0x370] sm:$0xff]
    %v908 = vld [vmem:[#allocation24 + $0x378] sm:$0xff]
    %v909 = vld [vmem:[#allocation24 + $0x380] sm:$0xff]
    %v910 = vld [vmem:[#allocation24 + $0x388] sm:$0xff]
    %v911 = vld [vmem:[#allocation24 + $0x390] sm:$0xff]
    %v912 = vld [vmem:[#allocation24 + $0x398] sm:$0xff]
    %v913 = vld [vmem:[#allocation24 + $0x3a0] sm:$0xff]
    %v914 = vld [vmem:[#allocation24 + $0x3a8] sm:$0xff]
    %v915 = vld [vmem:[#allocation24 + $0x3b0] sm:$0xff]
    %v916 = vld [vmem:[#allocation24 + $0x3b8] sm:$0xff]
    %v917 = vld [vmem:[#allocation24 + $0x3c0] sm:$0xff]
    %v918 = vld [vmem:[#allocation24 + $0x3c8] sm:$0xff]
    %v919 = vld [vmem:[#allocation24 + $0x3d0] sm:$0xff]
    %v920 = vld [vmem:[#allocation24 + $0x3d8] sm:$0xff]
    %v921 = vld [vmem:[#allocation24 + $0x3e0] sm:$0xff]
    %v922 = vld [vmem:[#allocation24 + $0x3e8] sm:$0xff]
    %v923 = vld [vmem:[#allocation24 + $0x3f0] sm:$0xff]
    %v924 = vld [vmem:[#allocation24 + $0x3f8] sm:$0xff]
    %v925 = vld [vmem:[#allocation24 + $0x400] sm:$0xff]
    %v926 = vld [vmem:[#allocation24 + $0x408] sm:$0xff]
    %v927 = vld [vmem:[#allocation24 + $0x410] sm:$0xff]
    %v928 = vld [vmem:[#allocation24 + $0x418] sm:$0xff]
    %v929 = vld [vmem:[#allocation24 + $0x420] sm:$0xff]
    %v930 = vld [vmem:[#allocation24 + $0x428] sm:$0xff]
    %v931 = vld [vmem:[#allocation24 + $0x430] sm:$0xff]
    %v932 = vld [vmem:[#allocation24 + $0x438] sm:$0xff]
    %v933 = vld [vmem:[#allocation24 + $0x440] sm:$0xff]
    %v934 = vld [vmem:[#allocation24 + $0x448] sm:$0xff]
    %v935 = vld [vmem:[#allocation24 + $0x450] sm:$0xff]
    %v936 = vld [vmem:[#allocation24 + $0x458] sm:$0xff]
    %v937 = vld [vmem:[#allocation24 + $0x460] sm:$0xff]
    %v938 = vld [vmem:[#allocation24 + $0x468] sm:$0xff]
    %v939 = vld [vmem:[#allocation24 + $0x470] sm:$0xff]
    %v940 = vld [vmem:[#allocation24 + $0x478] sm:$0xff]
    %v941 = vld [vmem:[#allocation24 + $0x480] sm:$0xff]
    %v942 = vld [vmem:[#allocation24 + $0x488] sm:$0xff]
    %v943 = vld [vmem:[#allocation24 + $0x490] sm:$0xff]
    %v944 = vld [vmem:[#allocation24 + $0x498] sm:$0xff]
    %v945 = vld [vmem:[#allocation24 + $0x4a0] sm:$0xff]
    %v946 = vld [vmem:[#allocation24 + $0x4a8] sm:$0xff]
    %v947 = vld [vmem:[#allocation24 + $0x4b0] sm:$0xff]
    %v948 = vld [vmem:[#allocation24 + $0x4b8] sm:$0xff]
    %v949 = vld [vmem:[#allocation24 + $0x4c0] sm:$0xff]
    %v950 = vld [vmem:[#allocation24 + $0x4c8] sm:$0xff]
    %v951 = vld [vmem:[#allocation24 + $0x4d0] sm:$0xff]
    %v952 = vld [vmem:[#allocation24 + $0x4d8] sm:$0xff]
    %v953 = vld [vmem:[#allocation24 + $0x4e0] sm:$0xff]
    %v954 = vld [vmem:[#allocation24 + $0x4e8] sm:$0xff]
    %v955 = vld [vmem:[#allocation24 + $0x4f0] sm:$0xff]
    %v956 = vld [vmem:[#allocation24 + $0x4f8] sm:$0xff]
    %v957 = vld [vmem:[#allocation24 + $0x500] sm:$0xff]
    %v958 = vld [vmem:[#allocation24 + $0x508] sm:$0xff]
    %v959 = vld [vmem:[#allocation24 + $0x510] sm:$0xff]
    %v960 = vld [vmem:[#allocation24 + $0x518] sm:$0xff]
    %v961 = vld [vmem:[#allocation24 + $0x520] sm:$0xff]
    %v962 = vld [vmem:[#allocation24 + $0x528] sm:$0xff]
    %v963 = vld [vmem:[#allocation24 + $0x530] sm:$0xff]
    %v964 = vld [vmem:[#allocation24 + $0x538] sm:$0xff]
    %v965 = vld [vmem:[#allocation24 + $0x540] sm:$0xff]
    %v966 = vld [vmem:[#allocation24 + $0x548] sm:$0xff]
    %v967 = vld [vmem:[#allocation24 + $0x550] sm:$0xff]
    %v968 = vld [vmem:[#allocation24 + $0x558] sm:$0xff]
    %v969 = vld [vmem:[#allocation24 + $0x560] sm:$0xff]
    %v970 = vld [vmem:[#allocation24 + $0x568] sm:$0xff]
    %v971 = vld [vmem:[#allocation24 + $0x570] sm:$0xff]
    %v972 = vld [vmem:[#allocation24 + $0x578] sm:$0xff]
    %v973 = vld [vmem:[#allocation24 + $0x580] sm:$0xff]
    %v974 = vld [vmem:[#allocation24 + $0x588] sm:$0xff]
    %v975 = vld [vmem:[#allocation24 + $0x590] sm:$0xff]
    %v976 = vld [vmem:[#allocation24 + $0x598] sm:$0xff]
    %v977 = vld [vmem:[#allocation24 + $0x5a0] sm:$0xff]
    %v978 = vld [vmem:[#allocation24 + $0x5a8] sm:$0xff]
    %v979 = vld [vmem:[#allocation24 + $0x5b0] sm:$0xff]
    %v980 = vld [vmem:[#allocation24 + $0x5b8] sm:$0xff]
    %v981 = vld [vmem:[#allocation24 + $0x5c0] sm:$0xff]
    %v982 = vld [vmem:[#allocation24 + $0x5c8] sm:$0xff]
    %v983 = vld [vmem:[#allocation24 + $0x5d0] sm:$0xff]
    %v984 = vld [vmem:[#allocation24 + $0x5d8] sm:$0xff]
    %v985 = vld [vmem:[#allocation24 + $0x5e0] sm:$0xff]
    %v986 = vld [vmem:[#allocation24 + $0x5e8] sm:$0xff]
    %v987 = vld [vmem:[#allocation24 + $0x5f0] sm:$0xff]
    %v988 = vld [vmem:[#allocation24 + $0x5f8] sm:$0xff]
    %v989 = vld [vmem:[#allocation24 + $0x600] sm:$0xff]
    %v990 = vld [vmem:[#allocation24 + $0x608] sm:$0xff]
    %v991 = vld [vmem:[#allocation24 + $0x610] sm:$0xff]
    %v992 = vld [vmem:[#allocation24 + $0x618] sm:$0xff]
    %v993 = vld [vmem:[#allocation24 + $0x620] sm:$0xff]
    %v994 = vld [vmem:[#allocation24 + $0x628] sm:$0xff]
    %v995 = vld [vmem:[#allocation24 + $0x630] sm:$0xff]
    %v996 = vld [vmem:[#allocation24 + $0x638] sm:$0xff]
    %v997 = vld [vmem:[#allocation24 + $0x640] sm:$0xff]
    %v998 = vld [vmem:[#allocation24 + $0x648] sm:$0xff]
    %v999 = vld [vmem:[#allocation24 + $0x650] sm:$0xff]
    %v1000 = vld [vmem:[#allocation24 + $0x658] sm:$0xff]
    %v1001 = vld [vmem:[#allocation24 + $0x660] sm:$0xff]
    %v1002 = vld [vmem:[#allocation24 + $0x668] sm:$0xff]
    %v1003 = vld [vmem:[#allocation24 + $0x670] sm:$0xff]
    %v1004 = vld [vmem:[#allocation24 + $0x678] sm:$0xff]
    %v1005 = vld [vmem:[#allocation24 + $0x680] sm:$0xff]
    %v1006 = vld [vmem:[#allocation24 + $0x688] sm:$0xff]
    %v1007 = vld [vmem:[#allocation24 + $0x690] sm:$0xff]
    %v1008 = vld [vmem:[#allocation24 + $0x698] sm:$0xff]
    %v1009 = vld [vmem:[#allocation24 + $0x6a0] sm:$0xff]
    %v1010 = vld [vmem:[#allocation24 + $0x6a8] sm:$0xff]
    %v1011 = vld [vmem:[#allocation24 + $0x6b0] sm:$0xff]
    %v1012 = vld [vmem:[#allocation24 + $0x6b8] sm:$0xff]
    %v1013 = vld [vmem:[#allocation24 + $0x6c0] sm:$0xff]
    %v1014 = vld [vmem:[#allocation24 + $0x6c8] sm:$0xff]
    %v1015 = vld [vmem:[#allocation24 + $0x6d0] sm:$0xff]
    %v1016 = vld [vmem:[#allocation24 + $0x6d8] sm:$0xff]
    %v1017 = vld [vmem:[#allocation24 + $0x6e0] sm:$0xff]
    %v1018 = vld [vmem:[#allocation24 + $0x6e8] sm:$0xff]
    %v1019 = vld [vmem:[#allocation24 + $0x6f0] sm:$0xff]
    %v1020 = vld [vmem:[#allocation24 + $0x6f8] sm:$0xff]
    %v1021 = vld [vmem:[#allocation24 + $0x700] sm:$0xff]
    %v1022 = vld [vmem:[#allocation24 + $0x708] sm:$0xff]
    %v1023 = vld [vmem:[#allocation24 + $0x710] sm:$0xff]
    %v1024 = vld [vmem:[#allocation24 + $0x718] sm:$0xff]
    %v1025 = vld [vmem:[#allocation24 + $0x720] sm:$0xff]
    %v1026 = vld [vmem:[#allocation24 + $0x728] sm:$0xff]
    %v1027 = vld [vmem:[#allocation24 + $0x730] sm:$0xff]
    %v1028 = vld [vmem:[#allocation24 + $0x738] sm:$0xff]
    %v1029 = vld [vmem:[#allocation24 + $0x740] sm:$0xff]
    %v1030 = vld [vmem:[#allocation24 + $0x748] sm:$0xff]
    %v1031 = vld [vmem:[#allocation24 + $0x750] sm:$0xff]
    %v1032 = vld [vmem:[#allocation24 + $0x758] sm:$0xff]
    %v1033 = vld [vmem:[#allocation24 + $0x760] sm:$0xff]
    %v1034 = vld [vmem:[#allocation24 + $0x768] sm:$0xff]
    %v1035 = vld [vmem:[#allocation24 + $0x770] sm:$0xff]
    %v1036 = vld [vmem:[#allocation24 + $0x778] sm:$0xff]
    %v1037 = vld [vmem:[#allocation24 + $0x780] sm:$0xff]
    %v1038 = vld [vmem:[#allocation24 + $0x788] sm:$0xff]
    %v1039 = vld [vmem:[#allocation24 + $0x790] sm:$0xff]
    %v1040 = vld [vmem:[#allocation24 + $0x798] sm:$0xff]
    %v1041 = vld [vmem:[#allocation24 + $0x7a0] sm:$0xff]
    %v1042 = vld [vmem:[#allocation24 + $0x7a8] sm:$0xff]
    %v1043 = vld [vmem:[#allocation24 + $0x7b0] sm:$0xff]
    %v1044 = vld [vmem:[#allocation24 + $0x7b8] sm:$0xff]
    %v1045 = vld [vmem:[#allocation24 + $0x7c0] sm:$0xff]
    %v1046 = vld [vmem:[#allocation24 + $0x7c8] sm:$0xff]
    %v1047 = vld [vmem:[#allocation24 + $0x7d0] sm:$0xff]
    %v1048 = vld [vmem:[#allocation24 + $0x7d8] sm:$0xff]
    %v1049 = vld [vmem:[#allocation24 + $0x7e0] sm:$0xff]
    %v1050 = vld [vmem:[#allocation24 + $0x7e8] sm:$0xff]
    %v1051 = vld [vmem:[#allocation24 + $0x7f0] sm:$0xff]
    %v1052 = vld [vmem:[#allocation24 + $0x7f8] sm:$0xff]
    %v1053 = vld [vmem:[#allocation24 + $0x800] sm:$0xff]
    %v1054 = vld [vmem:[#allocation24 + $0x808] sm:$0xff]
    %v1055 = vld [vmem:[#allocation24 + $0x810] sm:$0xff]
    %v1056 = vld [vmem:[#allocation24 + $0x818] sm:$0xff]
    %v1057 = vld [vmem:[#allocation24 + $0x820] sm:$0xff]
    %v1058 = vld [vmem:[#allocation24 + $0x828] sm:$0xff]
    %v1059 = vld [vmem:[#allocation24 + $0x830] sm:$0xff]
    %v1060 = vld [vmem:[#allocation24 + $0x838] sm:$0xff]
    %v1061 = vld [vmem:[#allocation24 + $0x840] sm:$0xff]
    %v1062 = vld [vmem:[#allocation24 + $0x848] sm:$0xff]
    %v1063 = vld [vmem:[#allocation24 + $0x850] sm:$0xff]
    %v1064 = vld [vmem:[#allocation24 + $0x858] sm:$0xff]
    %v1065 = vld [vmem:[#allocation24 + $0x860] sm:$0xff]
    %v1066 = vld [vmem:[#allocation24 + $0x868] sm:$0xff]
    %v1067 = vld [vmem:[#allocation24 + $0x870] sm:$0xff]
    %v1068 = vld [vmem:[#allocation24 + $0x878] sm:$0xff]
    %v1069 = vld [vmem:[#allocation24 + $0x880] sm:$0xff]
    %v1070 = vld [vmem:[#allocation24 + $0x888] sm:$0xff]
    %v1071 = vld [vmem:[#allocation24 + $0x890] sm:$0xff]
    %v1072 = vld [vmem:[#allocation24 + $0x898] sm:$0xff]
    %v1073 = vld [vmem:[#allocation24 + $0x8a0] sm:$0xff]
    %v1074 = vld [vmem:[#allocation24 + $0x8a8] sm:$0xff]
    %v1075 = vld [vmem:[#allocation24 + $0x8b0] sm:$0xff]
    %v1076 = vld [vmem:[#allocation24 + $0x8b8] sm:$0xff]
    %v1077 = vld [vmem:[#allocation24 + $0x8c0] sm:$0xff]
    %v1078 = vld [vmem:[#allocation24 + $0x8c8] sm:$0xff]
    %v1079 = vld [vmem:[#allocation24 + $0x8d0] sm:$0xff]
    %v1080 = vld [vmem:[#allocation24 + $0x8d8] sm:$0xff]
    %v1081 = vld [vmem:[#allocation24 + $0x8e0] sm:$0xff]
    %v1082 = vld [vmem:[#allocation24 + $0x8e8] sm:$0xff]
    %v1083 = vld [vmem:[#allocation24 + $0x8f0] sm:$0xff]
    %v1084 = vld [vmem:[#allocation24 + $0x8f8] sm:$0xff]
    %v1085 = vld [vmem:[#allocation24 + $0x900] sm:$0xff]
    %v1086 = vld [vmem:[#allocation24 + $0x908] sm:$0xff]
    %v1087 = vld [vmem:[#allocation24 + $0x910] sm:$0xff]
    %v1088 = vld [vmem:[#allocation24 + $0x918] sm:$0xff]
    %v1089 = vld [vmem:[#allocation24 + $0x920] sm:$0xff]
    %v1090 = vld [vmem:[#allocation24 + $0x928] sm:$0xff]
    %v1091 = vld [vmem:[#allocation24 + $0x930] sm:$0xff]
    %v1092 = vld [vmem:[#allocation24 + $0x938] sm:$0xff]
    %v1093 = vld [vmem:[#allocation24 + $0x940] sm:$0xff]
    %v1094 = vld [vmem:[#allocation24 + $0x948] sm:$0xff]
    %v1095 = vld [vmem:[#allocation24 + $0x950] sm:$0xff]
    %v1096 = vld [vmem:[#allocation24 + $0x958] sm:$0xff]
    %v1097 = vld [vmem:[#allocation24 + $0x960] sm:$0xff]
    %v1098 = vld [vmem:[#allocation24 + $0x968] sm:$0xff]
    %v1099 = vld [vmem:[#allocation24 + $0x970] sm:$0xff]
    %v1100 = vld [vmem:[#allocation24 + $0x978] sm:$0xff]
    %v1101 = vld [vmem:[#allocation24 + $0x980] sm:$0xff]
    %v1102 = vld [vmem:[#allocation24 + $0x988] sm:$0xff]
    %v1103 = vld [vmem:[#allocation24 + $0x990] sm:$0xff]
    %v1104 = vld [vmem:[#allocation24 + $0x998] sm:$0xff]
    %v1105 = vld [vmem:[#allocation24 + $0x9a0] sm:$0xff]
    %v1106 = vld [vmem:[#allocation24 + $0x9a8] sm:$0xff]
    %v1107 = vld [vmem:[#allocation24 + $0x9b0] sm:$0xff]
    %v1108 = vld [vmem:[#allocation24 + $0x9b8] sm:$0xff]
    %v1109 = vld [vmem:[#allocation24 + $0x9c0] sm:$0xff]
    %v1110 = vld [vmem:[#allocation24 + $0x9c8] sm:$0xff]
    %v1111 = vld [vmem:[#allocation24 + $0x9d0] sm:$0xff]
    %v1112 = vld [vmem:[#allocation24 + $0x9d8] sm:$0xff]
    %v1113 = vld [vmem:[#allocation24 + $0x9e0] sm:$0xff]
    %v1114 = vld [vmem:[#allocation24 + $0x9e8] sm:$0xff]
    %v1115 = vld [vmem:[#allocation24 + $0x9f0] sm:$0xff]
    %v1116 = vld [vmem:[#allocation24 + $0x9f8] sm:$0xff]
    %v1117 = vld [vmem:[#allocation24 + $0xa00] sm:$0xff]
    %v1118 = vld [vmem:[#allocation24 + $0xa08] sm:$0xff]
    %v1119 = vld [vmem:[#allocation24 + $0xa10] sm:$0xff]
    %v1120 = vld [vmem:[#allocation24 + $0xa18] sm:$0xff]
    %v1121 = vld [vmem:[#allocation24 + $0xa20] sm:$0xff]
    %v1122 = vld [vmem:[#allocation24 + $0xa28] sm:$0xff]
    %v1123 = vld [vmem:[#allocation24 + $0xa30] sm:$0xff]
    %v1124 = vld [vmem:[#allocation24 + $0xa38] sm:$0xff]
    %v1125 = vld [vmem:[#allocation24 + $0xa40] sm:$0xff]
    %v1126 = vld [vmem:[#allocation24 + $0xa48] sm:$0xff]
    %v1127 = vld [vmem:[#allocation24 + $0xa50] sm:$0xff]
    %v1128 = vld [vmem:[#allocation24 + $0xa58] sm:$0xff]
    %v1129 = vld [vmem:[#allocation24 + $0xa60] sm:$0xff]
    %v1130 = vld [vmem:[#allocation24 + $0xa68] sm:$0xff]
    %v1131 = vld [vmem:[#allocation24 + $0xa70] sm:$0xff]
    %v1132 = vld [vmem:[#allocation24 + $0xa78] sm:$0xff]
    %v1133 = vld [vmem:[#allocation24 + $0xa80] sm:$0xff]
    %v1134 = vld [vmem:[#allocation24 + $0xa88] sm:$0xff]
    %v1135 = vld [vmem:[#allocation24 + $0xa90] sm:$0xff]
    %v1136 = vld [vmem:[#allocation24 + $0xa98] sm:$0xff]
    %v1137 = vld [vmem:[#allocation24 + $0xaa0] sm:$0xff]
    %v1138 = vld [vmem:[#allocation24 + $0xaa8] sm:$0xff]
    %v1139 = vld [vmem:[#allocation24 + $0xab0] sm:$0xff]
    %v1140 = vld [vmem:[#allocation24 + $0xab8] sm:$0xff]
    %v1141 = vld [vmem:[#allocation24 + $0xac0] sm:$0xff]
    %v1142 = vld [vmem:[#allocation24 + $0xac8] sm:$0xff]
    %v1143 = vld [vmem:[#allocation24 + $0xad0] sm:$0xff]
    %v1144 = vld [vmem:[#allocation24 + $0xad8] sm:$0xff]
    %v1145 = vld [vmem:[#allocation24 + $0xae0] sm:$0xff]
    %v1146 = vld [vmem:[#allocation24 + $0xae8] sm:$0xff]
    %v1147 = vld [vmem:[#allocation24 + $0xaf0] sm:$0xff]
    %v1148 = vld [vmem:[#allocation24 + $0xaf8] sm:$0xff]
    %v1149 = vld [vmem:[#allocation24 + $0xb00] sm:$0xff]
    %v1150 = vld [vmem:[#allocation24 + $0xb08] sm:$0xff]
    %v1151 = vld [vmem:[#allocation24 + $0xb10] sm:$0xff]
    %v1152 = vld [vmem:[#allocation24 + $0xb18] sm:$0xff]
    %v1153 = vld [vmem:[#allocation24 + $0xb20] sm:$0xff]
    %v1154 = vld [vmem:[#allocation24 + $0xb28] sm:$0xff]
    %v1155 = vld [vmem:[#allocation24 + $0xb30] sm:$0xff]
    %v1156 = vld [vmem:[#allocation24 + $0xb38] sm:$0xff]
    %v1157 = vld [vmem:[#allocation24 + $0xb40] sm:$0xff]
    %v1158 = vld [vmem:[#allocation24 + $0xb48] sm:$0xff]
    %v1159 = vld [vmem:[#allocation24 + $0xb50] sm:$0xff]
    %v1160 = vld [vmem:[#allocation24 + $0xb58] sm:$0xff]
    %v1161 = vld [vmem:[#allocation24 + $0xb60] sm:$0xff]
    %v1162 = vld [vmem:[#allocation24 + $0xb68] sm:$0xff]
    %v1163 = vld [vmem:[#allocation24 + $0xb70] sm:$0xff]
    %v1164 = vld [vmem:[#allocation24 + $0xb78] sm:$0xff]
    %v1165 = vld [vmem:[#allocation24 + $0xb80] sm:$0xff]
    %v1166 = vld [vmem:[#allocation24 + $0xb88] sm:$0xff]
    %v1167 = vld [vmem:[#allocation24 + $0xb90] sm:$0xff]
    %v1168 = vld [vmem:[#allocation24 + $0xb98] sm:$0xff]
    %v1169 = vld [vmem:[#allocation24 + $0xba0] sm:$0xff]
    %v1170 = vld [vmem:[#allocation24 + $0xba8] sm:$0xff]
    %v1171 = vld [vmem:[#allocation24 + $0xbb0] sm:$0xff]
    %v1172 = vld [vmem:[#allocation24 + $0xbb8] sm:$0xff]
    %v1173 = vld [vmem:[#allocation24 + $0xbc0] sm:$0xff]
    %v1174 = vld [vmem:[#allocation24 + $0xbc8] sm:$0xff]
    %v1175 = vld [vmem:[#allocation24 + $0xbd0] sm:$0xff]
    %v1176 = vld [vmem:[#allocation24 + $0xbd8] sm:$0xff]
    %v1177 = vld [vmem:[#allocation24 + $0xbe0] sm:$0xff]
    %v1178 = vld [vmem:[#allocation24 + $0xbe8] sm:$0xff]
    %v1179 = vld [vmem:[#allocation24 + $0xbf0] sm:$0xff]
    %v1180 = vld [vmem:[#allocation24 + $0xbf8] sm:$0xff]
    %v1181 = vld [vmem:[#allocation24 + $0xc00] sm:$0xff]
    %v1182 = vld [vmem:[#allocation24 + $0xc08] sm:$0xff]
    %v1183 = vld [vmem:[#allocation24 + $0xc10] sm:$0xff]
    %v1184 = vld [vmem:[#allocation24 + $0xc18] sm:$0xff]
    %v1185 = vld [vmem:[#allocation24 + $0xc20] sm:$0xff]
    %v1186 = vld [vmem:[#allocation24 + $0xc28] sm:$0xff]
    %v1187 = vld [vmem:[#allocation24 + $0xc30] sm:$0xff]
    %v1188 = vld [vmem:[#allocation24 + $0xc38] sm:$0xff]
    %v1189 = vld [vmem:[#allocation24 + $0xc40] sm:$0xff]
    %v1190 = vld [vmem:[#allocation24 + $0xc48] sm:$0xff]
    %v1191 = vld [vmem:[#allocation24 + $0xc50] sm:$0xff]
    %v1192 = vld [vmem:[#allocation24 + $0xc58] sm:$0xff]
    %v1193 = vld [vmem:[#allocation24 + $0xc60] sm:$0xff]
    %v1194 = vld [vmem:[#allocation24 + $0xc68] sm:$0xff]
    %v1195 = vld [vmem:[#allocation24 + $0xc70] sm:$0xff]
    %v1196 = vld [vmem:[#allocation24 + $0xc78] sm:$0xff]
    %v1197 = vld [vmem:[#allocation24 + $0xc80] sm:$0xff]
    %v1198 = vld [vmem:[#allocation24 + $0xc88] sm:$0xff]
    %v1199 = vld [vmem:[#allocation24 + $0xc90] sm:$0xff]
    %v1200 = vld [vmem:[#allocation24 + $0xc98] sm:$0xff]
    %v1201 = vld [vmem:[#allocation24 + $0xca0] sm:$0xff]
    %v1202 = vld [vmem:[#allocation24 + $0xca8] sm:$0xff]
    %v1203 = vld [vmem:[#allocation24 + $0xcb0] sm:$0xff]
    %v1204 = vld [vmem:[#allocation24 + $0xcb8] sm:$0xff]
    %v1205 = vld [vmem:[#allocation24 + $0xcc0] sm:$0xff]
    %v1206 = vld [vmem:[#allocation24 + $0xcc8] sm:$0xff]
    %v1207 = vld [vmem:[#allocation24 + $0xcd0] sm:$0xff]
    %v1208 = vld [vmem:[#allocation24 + $0xcd8] sm:$0xff]
    %v1209 = vld [vmem:[#allocation24 + $0xce0] sm:$0xff]
    %v1210 = vld [vmem:[#allocation24 + $0xce8] sm:$0xff]
    %v1211 = vld [vmem:[#allocation24 + $0xcf0] sm:$0xff]
    %v1212 = vld [vmem:[#allocation24 + $0xcf8] sm:$0xff]
    %v1213 = vld [vmem:[#allocation24 + $0xd00] sm:$0xff]
    %v1214 = vld [vmem:[#allocation24 + $0xd08] sm:$0xff]
    %v1215 = vld [vmem:[#allocation24 + $0xd10] sm:$0xff]
    %v1216 = vld [vmem:[#allocation24 + $0xd18] sm:$0xff]
    %v1217 = vld [vmem:[#allocation24 + $0xd20] sm:$0xff]
    %v1218 = vld [vmem:[#allocation24 + $0xd28] sm:$0xff]
    %v1219 = vld [vmem:[#allocation24 + $0xd30] sm:$0xff]
    %v1220 = vld [vmem:[#allocation24 + $0xd38] sm:$0xff]
    %v1221 = vld [vmem:[#allocation24 + $0xd40] sm:$0xff]
    %v1222 = vld [vmem:[#allocation24 + $0xd48] sm:$0xff]
    %v1223 = vld [vmem:[#allocation24 + $0xd50] sm:$0xff]
    %v1224 = vld [vmem:[#allocation24 + $0xd58] sm:$0xff]
    %v1225 = vld [vmem:[#allocation24 + $0xd60] sm:$0xff]
    %v1226 = vld [vmem:[#allocation24 + $0xd68] sm:$0xff]
    %v1227 = vld [vmem:[#allocation24 + $0xd70] sm:$0xff]
    %v1228 = vld [vmem:[#allocation24 + $0xd78] sm:$0xff]
    %v1229 = vld [vmem:[#allocation24 + $0xd80] sm:$0xff]
    %v1230 = vld [vmem:[#allocation24 + $0xd88] sm:$0xff]
    %v1231 = vld [vmem:[#allocation24 + $0xd90] sm:$0xff]
    %v1232 = vld [vmem:[#allocation24 + $0xd98] sm:$0xff]
    %v1233 = vld [vmem:[#allocation24 + $0xda0] sm:$0xff]
    %v1234 = vld [vmem:[#allocation24 + $0xda8] sm:$0xff]
    %v1235 = vld [vmem:[#allocation24 + $0xdb0] sm:$0xff]
    %v1236 = vld [vmem:[#allocation24 + $0xdb8] sm:$0xff]
    %v1237 = vld [vmem:[#allocation24 + $0xdc0] sm:$0xff]
    %v1238 = vld [vmem:[#allocation24 + $0xdc8] sm:$0xff]
    %v1239 = vld [vmem:[#allocation24 + $0xdd0] sm:$0xff]
    %v1240 = vld [vmem:[#allocation24 + $0xdd8] sm:$0xff]
    %v1241 = vld [vmem:[#allocation24 + $0xde0] sm:$0xff]
    %v1242 = vld [vmem:[#allocation24 + $0xde8] sm:$0xff]
    %v1243 = vld [vmem:[#allocation24 + $0xdf0] sm:$0xff]
    %v1244 = vld [vmem:[#allocation24 + $0xdf8] sm:$0xff]
    %v1245 = vld [vmem:[#allocation24 + $0xe00] sm:$0xff]
    %v1246 = vld [vmem:[#allocation24 + $0xe08] sm:$0xff]
    %v1247 = vld [vmem:[#allocation24 + $0xe10] sm:$0xff]
    %v1248 = vld [vmem:[#allocation24 + $0xe18] sm:$0xff]
    %v1249 = vld [vmem:[#allocation24 + $0xe20] sm:$0xff]
    %v1250 = vld [vmem:[#allocation24 + $0xe28] sm:$0xff]
    %v1251 = vld [vmem:[#allocation24 + $0xe30] sm:$0xff]
    %v1252 = vld [vmem:[#allocation24 + $0xe38] sm:$0xff]
    %v1253 = vld [vmem:[#allocation24 + $0xe40] sm:$0xff]
    %v1254 = vld [vmem:[#allocation24 + $0xe48] sm:$0xff]
    %v1255 = vld [vmem:[#allocation24 + $0xe50] sm:$0xff]
    %v1256 = vld [vmem:[#allocation24 + $0xe58] sm:$0xff]
    %v1257 = vld [vmem:[#allocation24 + $0xe60] sm:$0xff]
    %v1258 = vld [vmem:[#allocation24 + $0xe68] sm:$0xff]
    %v1259 = vld [vmem:[#allocation24 + $0xe70] sm:$0xff]
    %v1260 = vld [vmem:[#allocation24 + $0xe78] sm:$0xff]
    %v1261 = vld [vmem:[#allocation24 + $0xe80] sm:$0xff]
    %v1262 = vld [vmem:[#allocation24 + $0xe88] sm:$0xff]
    %v1263 = vld [vmem:[#allocation24 + $0xe90] sm:$0xff]
    %v1264 = vld [vmem:[#allocation24 + $0xe98] sm:$0xff]
    %v1265 = vld [vmem:[#allocation24 + $0xea0] sm:$0xff]
    %v1266 = vld [vmem:[#allocation24 + $0xea8] sm:$0xff]
    %v1267 = vld [vmem:[#allocation24 + $0xeb0] sm:$0xff]
    %v1268 = vld [vmem:[#allocation24 + $0xeb8] sm:$0xff]
    %v1269 = vld [vmem:[#allocation24 + $0xec0] sm:$0xff]
    %v1270 = vld [vmem:[#allocation24 + $0xec8] sm:$0xff]
    %v1271 = vld [vmem:[#allocation24 + $0xed0] sm:$0xff]
    %v1272 = vld [vmem:[#allocation24 + $0xed8] sm:$0xff]
    %v1273 = vld [vmem:[#allocation24 + $0xee0] sm:$0xff]
    %v1274 = vld [vmem:[#allocation24 + $0xee8] sm:$0xff]
    %v1275 = vld [vmem:[#allocation24 + $0xef0] sm:$0xff]
    %v1276 = vld [vmem:[#allocation24 + $0xef8] sm:$0xff]
    %v1277 = vld [vmem:[#allocation24 + $0xf00] sm:$0xff]
    %v1278 = vld [vmem:[#allocation24 + $0xf08] sm:$0xff]
    %v1279 = vld [vmem:[#allocation24 + $0xf10] sm:$0xff]
    %v1280 = vld [vmem:[#allocation24 + $0xf18] sm:$0xff]
    %v1281 = vld [vmem:[#allocation24 + $0xf20] sm:$0xff]
    %v1282 = vld [vmem:[#allocation24 + $0xf28] sm:$0xff]
    %v1283 = vld [vmem:[#allocation24 + $0xf30] sm:$0xff]
    %v1284 = vld [vmem:[#allocation24 + $0xf38] sm:$0xff]
    %v1285 = vld [vmem:[#allocation24 + $0xf40] sm:$0xff]
    %v1286 = vld [vmem:[#allocation24 + $0xf48] sm:$0xff]
    %v1287 = vld [vmem:[#allocation24 + $0xf50] sm:$0xff]
    %v1288 = vld [vmem:[#allocation24 + $0xf58] sm:$0xff]
    %v1289 = vld [vmem:[#allocation24 + $0xf60] sm:$0xff]
    %v1290 = vld [vmem:[#allocation24 + $0xf68] sm:$0xff]
    %v1291 = vld [vmem:[#allocation24 + $0xf70] sm:$0xff]
    %v1292 = vld [vmem:[#allocation24 + $0xf78] sm:$0xff]
    %v1293 = vld [vmem:[#allocation24 + $0xf80] sm:$0xff]
    %v1294 = vld [vmem:[#allocation24 + $0xf88] sm:$0xff]
    %v1295 = vld [vmem:[#allocation24 + $0xf90] sm:$0xff]
    %v1296 = vld [vmem:[#allocation24 + $0xf98] sm:$0xff]
    %v1297 = vld [vmem:[#allocation24 + $0xfa0] sm:$0xff]
    %v1298 = vld [vmem:[#allocation24 + $0xfa8] sm:$0xff]
    %v1299 = vld [vmem:[#allocation24 + $0xfb0] sm:$0xff]
    %v1300 = vld [vmem:[#allocation24 + $0xfb8] sm:$0xff]
    %v1301 = vld [vmem:[#allocation24 + $0xfc0] sm:$0xff]
    %v1302 = vld [vmem:[#allocation24 + $0xfc8] sm:$0xff]
    %v1303 = vld [vmem:[#allocation24 + $0xfd0] sm:$0xff]
    %v1304 = vld [vmem:[#allocation24 + $0xfd8] sm:$0xff]
    %v1305 = vld [vmem:[#allocation24 + $0xfe0] sm:$0xff]
    %v1306 = vld [vmem:[#allocation24 + $0xfe8] sm:$0xff]
    %v1307 = vld [vmem:[#allocation24 + $0xff0] sm:$0xff]
    %v1308 = vld [vmem:[#allocation24 + $0xff8] sm:$0xff]
    %v1309 = vld [vmem:[#allocation24 + $0x1000] sm:$0xff]
    %v1310 = vld [vmem:[#allocation24 + $0x1008] sm:$0xff]
    %v1311 = vld [vmem:[#allocation24 + $0x1010] sm:$0xff]
    %v1312 = vld [vmem:[#allocation24 + $0x1018] sm:$0xff]
    %v1313 = vld [vmem:[#allocation24 + $0x1020] sm:$0xff]
    %v1314 = vld [vmem:[#allocation24 + $0x1028] sm:$0xff]
    %v1315 = vld [vmem:[#allocation24 + $0x1030] sm:$0xff]
    %v1316 = vld [vmem:[#allocation24 + $0x1038] sm:$0xff]
    %v1317 = vld [vmem:[#allocation24 + $0x1040] sm:$0xff]
    %v1318 = vld [vmem:[#allocation24 + $0x1048] sm:$0xff]
    %v1319 = vld [vmem:[#allocation24 + $0x1050] sm:$0xff]
    %v1320 = vld [vmem:[#allocation24 + $0x1058] sm:$0xff]
    %v1321 = vld [vmem:[#allocation24 + $0x1060] sm:$0xff]
    %v1322 = vld [vmem:[#allocation24 + $0x1068] sm:$0xff]
    %v1323 = vld [vmem:[#allocation24 + $0x1070] sm:$0xff]
    %v1324 = vld [vmem:[#allocation24 + $0x1078] sm:$0xff]
    %v1325 = vld [vmem:[#allocation24 + $0x1080] sm:$0xff]
    %v1326 = vld [vmem:[#allocation24 + $0x1088] sm:$0xff]
    %v1327 = vld [vmem:[#allocation24 + $0x1090] sm:$0xff]
    %v1328 = vld [vmem:[#allocation24 + $0x1098] sm:$0xff]
    %v1329 = vld [vmem:[#allocation24 + $0x10a0] sm:$0xff]
    %v1330 = vld [vmem:[#allocation24 + $0x10a8] sm:$0xff]
    %v1331 = vld [vmem:[#allocation24 + $0x10b0] sm:$0xff]
    %v1332 = vld [vmem:[#allocation24 + $0x10b8] sm:$0xff]
    %v1333 = vld [vmem:[#allocation24 + $0x10c0] sm:$0xff]
    %v1334 = vld [vmem:[#allocation24 + $0x10c8] sm:$0xff]
    %v1335 = vld [vmem:[#allocation24 + $0x10d0] sm:$0xff]
    %v1336 = vld [vmem:[#allocation24 + $0x10d8] sm:$0xff]
    %v1337 = vld [vmem:[#allocation24 + $0x10e0] sm:$0xff]
    %v1338 = vld [vmem:[#allocation24 + $0x10e8] sm:$0xff]
    %v1339 = vld [vmem:[#allocation24 + $0x10f0] sm:$0xff]
    %v1340 = vld [vmem:[#allocation24 + $0x10f8] sm:$0xff]
    %v1341 = vld [vmem:[#allocation24 + $0x1100] sm:$0xff]
    %v1342 = vld [vmem:[#allocation24 + $0x1108] sm:$0xff]
    %v1343 = vld [vmem:[#allocation24 + $0x1110] sm:$0xff]
    %v1344 = vld [vmem:[#allocation24 + $0x1118] sm:$0xff]
    %v1345 = vld [vmem:[#allocation24 + $0x1120] sm:$0xff]
    %v1346 = vld [vmem:[#allocation24 + $0x1128] sm:$0xff]
    %v1347 = vld [vmem:[#allocation24 + $0x1130] sm:$0xff]
    %v1348 = vld [vmem:[#allocation24 + $0x1138] sm:$0xff]
    %v1349 = vld [vmem:[#allocation24 + $0x1140] sm:$0xff]
    %v1350 = vld [vmem:[#allocation24 + $0x1148] sm:$0xff]
    %v1351 = vld [vmem:[#allocation24 + $0x1150] sm:$0xff]
    %v1352 = vld [vmem:[#allocation24 + $0x1158] sm:$0xff]
    %v1353 = vld [vmem:[#allocation24 + $0x1160] sm:$0xff]
    %v1354 = vld [vmem:[#allocation24 + $0x1168] sm:$0xff]
    %v1355 = vld [vmem:[#allocation24 + $0x1170] sm:$0xff]
    %v1356 = vld [vmem:[#allocation24 + $0x1178] sm:$0xff]
    %v1357 = vld [vmem:[#allocation24 + $0x1180] sm:$0xff]
    %v1358 = vld [vmem:[#allocation24 + $0x1188] sm:$0xff]
    %v1359 = vld [vmem:[#allocation24 + $0x1190] sm:$0xff]
    %v1360 = vld [vmem:[#allocation24 + $0x1198] sm:$0xff]
    %v1361 = vld [vmem:[#allocation24 + $0x11a0] sm:$0xff]
    %v1362 = vld [vmem:[#allocation24 + $0x11a8] sm:$0xff]
    %v1363 = vld [vmem:[#allocation24 + $0x11b0] sm:$0xff]
    %v1364 = vld [vmem:[#allocation24 + $0x11b8] sm:$0xff]
    %v1365 = vld [vmem:[#allocation24 + $0x11c0] sm:$0xff]
    %v1366 = vld [vmem:[#allocation24 + $0x11c8] sm:$0xff]
    %v1367 = vld [vmem:[#allocation24 + $0x11d0] sm:$0xff]
    %v1368 = vld [vmem:[#allocation24 + $0x11d8] sm:$0xff]
    %v1369 = vld [vmem:[#allocation24 + $0x11e0] sm:$0xff]
    %v1370 = vld [vmem:[#allocation24 + $0x11e8] sm:$0xff]
    %v1371 = vld [vmem:[#allocation24 + $0x11f0] sm:$0xff]
    %v1372 = vld [vmem:[#allocation24 + $0x11f8] sm:$0xff]
    %v1373 = vld [vmem:[#allocation24 + $0x1200] sm:$0xff]
    %v1374 = vld [vmem:[#allocation24 + $0x1208] sm:$0xff]
    %v1375 = vld [vmem:[#allocation24 + $0x1210] sm:$0xff]
    %v1376 = vld [vmem:[#allocation24 + $0x1218] sm:$0xff]
    %v1377 = vld [vmem:[#allocation24 + $0x1220] sm:$0xff]
    %v1378 = vld [vmem:[#allocation24 + $0x1228] sm:$0xff]
    %v1379 = vld [vmem:[#allocation24 + $0x1230] sm:$0xff]
    %v1380 = vld [vmem:[#allocation24 + $0x1238] sm:$0xff]
    %v1381 = vld [vmem:[#allocation24 + $0x1240] sm:$0xff]
    %v1382 = vld [vmem:[#allocation24 + $0x1248] sm:$0xff]
    %v1383 = vld [vmem:[#allocation24 + $0x1250] sm:$0xff]
    %v1384 = vld [vmem:[#allocation24 + $0x1258] sm:$0xff]
    %v1385 = vld [vmem:[#allocation24 + $0x1260] sm:$0xff]
    %v1386 = vld [vmem:[#allocation24 + $0x1268] sm:$0xff]
    %v1387 = vld [vmem:[#allocation24 + $0x1270] sm:$0xff]
    %v1388 = vld [vmem:[#allocation24 + $0x1278] sm:$0xff]
    %v1389 = vld [vmem:[#allocation24 + $0x1280] sm:$0xff]
    %v1390 = vld [vmem:[#allocation24 + $0x1288] sm:$0xff]
    %v1391 = vld [vmem:[#allocation24 + $0x1290] sm:$0xff]
    %v1392 = vld [vmem:[#allocation24 + $0x1298] sm:$0xff]
    %v1393 = vld [vmem:[#allocation24 + $0x12a0] sm:$0xff]
    %v1394 = vld [vmem:[#allocation24 + $0x12a8] sm:$0xff]
    %v1395 = vld [vmem:[#allocation24 + $0x12b0] sm:$0xff]
    %v1396 = vld [vmem:[#allocation24 + $0x12b8] sm:$0xff]
    %v1397 = vld [vmem:[#allocation24 + $0x12c0] sm:$0xff]
    %v1398 = vld [vmem:[#allocation24 + $0x12c8] sm:$0xff]
    %v1399 = vld [vmem:[#allocation24 + $0x12d0] sm:$0xff]
    %v1400 = vld [vmem:[#allocation24 + $0x12d8] sm:$0xff]
    %v1401 = vld [vmem:[#allocation24 + $0x12e0] sm:$0xff]
    %v1402 = vld [vmem:[#allocation24 + $0x12e8] sm:$0xff]
    %v1403 = vld [vmem:[#allocation24 + $0x12f0] sm:$0xff]
    %v1404 = vld [vmem:[#allocation24 + $0x12f8] sm:$0xff]
    %v1405 = vld [vmem:[#allocation24 + $0x1300] sm:$0xff]
    %v1406 = vld [vmem:[#allocation24 + $0x1308] sm:$0xff]
    %v1407 = vld [vmem:[#allocation24 + $0x1310] sm:$0xff]
    %v1408 = vld [vmem:[#allocation24 + $0x1318] sm:$0xff]
    %v1409 = vld [vmem:[#allocation24 + $0x1320] sm:$0xff]
    %v1410 = vld [vmem:[#allocation24 + $0x1328] sm:$0xff]
    %v1411 = vld [vmem:[#allocation24 + $0x1330] sm:$0xff]
    %v1412 = vld [vmem:[#allocation24 + $0x1338] sm:$0xff]
    %v1413 = vld [vmem:[#allocation24 + $0x1340] sm:$0xff]
    %v1414 = vld [vmem:[#allocation24 + $0x1348] sm:$0xff]
    %v1415 = vld [vmem:[#allocation24 + $0x1350] sm:$0xff]
    %v1416 = vld [vmem:[#allocation24 + $0x1358] sm:$0xff]
    %v1417 = vld [vmem:[#allocation24 + $0x1360] sm:$0xff]
    %v1418 = vld [vmem:[#allocation24 + $0x1368] sm:$0xff]
    %v1419 = vld [vmem:[#allocation24 + $0x1370] sm:$0xff]
    %v1420 = vld [vmem:[#allocation24 + $0x1378] sm:$0xff]
    %v1421 = vld [vmem:[#allocation24 + $0x1380] sm:$0xff]
    %v1422 = vld [vmem:[#allocation24 + $0x1388] sm:$0xff]
    %v1423 = vld [vmem:[#allocation24 + $0x1390] sm:$0xff]
    %v1424 = vld [vmem:[#allocation24 + $0x1398] sm:$0xff]
    %v1425 = vld [vmem:[#allocation24 + $0x13a0] sm:$0xff]
    %v1426 = vld [vmem:[#allocation24 + $0x13a8] sm:$0xff]
    %v1427 = vld [vmem:[#allocation24 + $0x13b0] sm:$0xff]
    %v1428 = vld [vmem:[#allocation24 + $0x13b8] sm:$0xff]
    %v1429 = vld [vmem:[#allocation24 + $0x13c0] sm:$0xff]
    %v1430 = vld [vmem:[#allocation24 + $0x13c8] sm:$0xff]
    %v1431 = vld [vmem:[#allocation24 + $0x13d0] sm:$0xff]
    %v1432 = vld [vmem:[#allocation24 + $0x13d8] sm:$0xff]
    %v1433 = vld [vmem:[#allocation24 + $0x13e0] sm:$0xff]
    %v1434 = vld [vmem:[#allocation24 + $0x13e8] sm:$0xff]
    %v1435 = vld [vmem:[#allocation24 + $0x13f0] sm:$0xff]
    %v1436 = vld [vmem:[#allocation24 + $0x13f8] sm:$0xff]
    %v1437 = vld [vmem:[#allocation24 + $0x1400] sm:$0xff]
    %v1438 = vld [vmem:[#allocation24 + $0x1408] sm:$0xff]
    %v1439 = vld [vmem:[#allocation24 + $0x1410] sm:$0xff]
    %v1440 = vld [vmem:[#allocation24 + $0x1418] sm:$0xff]
    %v1441 = vld [vmem:[#allocation24 + $0x1420] sm:$0xff]
    %v1442 = vld [vmem:[#allocation24 + $0x1428] sm:$0xff]
    %v1443 = vld [vmem:[#allocation24 + $0x1430] sm:$0xff]
    %v1444 = vld [vmem:[#allocation24 + $0x1438] sm:$0xff]
    %v1445 = vld [vmem:[#allocation24 + $0x1440] sm:$0xff]
    %v1446 = vld [vmem:[#allocation24 + $0x1448] sm:$0xff]
    %v1447 = vld [vmem:[#allocation24 + $0x1450] sm:$0xff]
    %v1448 = vld [vmem:[#allocation24 + $0x1458] sm:$0xff]
    %v1449 = vld [vmem:[#allocation24 + $0x1460] sm:$0xff]
    %v1450 = vld [vmem:[#allocation24 + $0x1468] sm:$0xff]
    %v1451 = vld [vmem:[#allocation24 + $0x1470] sm:$0xff]
    %v1452 = vld [vmem:[#allocation24 + $0x1478] sm:$0xff]
    %v1453 = vld [vmem:[#allocation24 + $0x1480] sm:$0xff]
    %v1454 = vld [vmem:[#allocation24 + $0x1488] sm:$0xff]
    %v1455 = vld [vmem:[#allocation24 + $0x1490] sm:$0xff]
    %v1456 = vld [vmem:[#allocation24 + $0x1498] sm:$0xff]
    %v1457 = vld [vmem:[#allocation24 + $0x14a0] sm:$0xff]
    %v1458 = vld [vmem:[#allocation24 + $0x14a8] sm:$0xff]
    %v1459 = vld [vmem:[#allocation24 + $0x14b0] sm:$0xff]
    %v1460 = vld [vmem:[#allocation24 + $0x14b8] sm:$0xff]
    %v1461 = vld [vmem:[#allocation24 + $0x14c0] sm:$0xff]
    %v1462 = vld [vmem:[#allocation24 + $0x14c8] sm:$0xff]
    %v1463 = vld [vmem:[#allocation24 + $0x14d0] sm:$0xff]
    %v1464 = vld [vmem:[#allocation24 + $0x14d8] sm:$0xff]
    %v1465 = vld [vmem:[#allocation24 + $0x14e0] sm:$0xff]
    %v1466 = vld [vmem:[#allocation24 + $0x14e8] sm:$0xff]
    %v1467 = vld [vmem:[#allocation24 + $0x14f0] sm:$0xff]
    %v1468 = vld [vmem:[#allocation24 + $0x14f8] sm:$0xff]
    %v1469 = vld [vmem:[#allocation24 + $0x1500] sm:$0xff]
    %v1470 = vld [vmem:[#allocation24 + $0x1508] sm:$0xff]
    %v1471 = vld [vmem:[#allocation24 + $0x1510] sm:$0xff]
    %v1472 = vld [vmem:[#allocation24 + $0x1518] sm:$0xff]
    %v1473 = vld [vmem:[#allocation24 + $0x1520] sm:$0xff]
    %v1474 = vld [vmem:[#allocation24 + $0x1528] sm:$0xff]
    %v1475 = vld [vmem:[#allocation24 + $0x1530] sm:$0xff]
    %v1476 = vld [vmem:[#allocation24 + $0x1538] sm:$0xff]
    %v1477 = vld [vmem:[#allocation24 + $0x1540] sm:$0xff]
    %v1478 = vld [vmem:[#allocation24 + $0x1548] sm:$0xff]
    %v1479 = vld [vmem:[#allocation24 + $0x1550] sm:$0xff]
    %v1480 = vld [vmem:[#allocation24 + $0x1558] sm:$0xff]
    %v1481 = vld [vmem:[#allocation24 + $0x1560] sm:$0xff]
    %v1482 = vld [vmem:[#allocation24 + $0x1568] sm:$0xff]
    %v1483 = vld [vmem:[#allocation24 + $0x1570] sm:$0xff]
    %v1484 = vld [vmem:[#allocation24 + $0x1578] sm:$0xff]
    %v1485 = vld [vmem:[#allocation24 + $0x1580] sm:$0xff]
    %v1486 = vld [vmem:[#allocation24 + $0x1588] sm:$0xff]
    %v1487 = vld [vmem:[#allocation24 + $0x1590] sm:$0xff]
    %v1488 = vld [vmem:[#allocation24 + $0x1598] sm:$0xff]
    %v1489 = vld [vmem:[#allocation24 + $0x15a0] sm:$0xff]
    %v1490 = vld [vmem:[#allocation24 + $0x15a8] sm:$0xff]
    %v1491 = vld [vmem:[#allocation24 + $0x15b0] sm:$0xff]
    %v1492 = vld [vmem:[#allocation24 + $0x15b8] sm:$0xff]
    %v1493 = vld [vmem:[#allocation24 + $0x15c0] sm:$0xff]
    %v1494 = vld [vmem:[#allocation24 + $0x15c8] sm:$0xff]
    %v1495 = vld [vmem:[#allocation24 + $0x15d0] sm:$0xff]
    %v1496 = vld [vmem:[#allocation24 + $0x15d8] sm:$0xff]
    %v1497 = vld [vmem:[#allocation24 + $0x15e0] sm:$0xff]
    %v1498 = vld [vmem:[#allocation24 + $0x15e8] sm:$0xff]
    %v1499 = vld [vmem:[#allocation24 + $0x15f0] sm:$0xff]
    %v1500 = vld [vmem:[#allocation24 + $0x15f8] sm:$0xff]
    %v1501 = vld [vmem:[#allocation24 + $0x1600] sm:$0xff]
    %v1502 = vld [vmem:[#allocation24 + $0x1608] sm:$0xff]
    %v1503 = vld [vmem:[#allocation24 + $0x1610] sm:$0xff]
    %v1504 = vld [vmem:[#allocation24 + $0x1618] sm:$0xff]
    %v1505 = vld [vmem:[#allocation24 + $0x1620] sm:$0xff]
    %v1506 = vld [vmem:[#allocation24 + $0x1628] sm:$0xff]
    %v1507 = vld [vmem:[#allocation24 + $0x1630] sm:$0xff]
    %v1508 = vld [vmem:[#allocation24 + $0x1638] sm:$0xff]
    %v1509 = vld [vmem:[#allocation24 + $0x1640] sm:$0xff]
    %v1510 = vld [vmem:[#allocation24 + $0x1648] sm:$0xff]
    %v1511 = vld [vmem:[#allocation24 + $0x1650] sm:$0xff]
    %v1512 = vld [vmem:[#allocation24 + $0x1658] sm:$0xff]
    %v1513 = vld [vmem:[#allocation24 + $0x1660] sm:$0xff]
    %v1514 = vld [vmem:[#allocation24 + $0x1668] sm:$0xff]
    %v1515 = vld [vmem:[#allocation24 + $0x1670] sm:$0xff]
    %v1516 = vld [vmem:[#allocation24 + $0x1678] sm:$0xff]
    %v1517 = vld [vmem:[#allocation24 + $0x1680] sm:$0xff]
    %v1518 = vld [vmem:[#allocation24 + $0x1688] sm:$0xff]
    %v1519 = vld [vmem:[#allocation24 + $0x1690] sm:$0xff]
    %v1520 = vld [vmem:[#allocation24 + $0x1698] sm:$0xff]
    %v1521 = vld [vmem:[#allocation24 + $0x16a0] sm:$0xff]
    %v1522 = vld [vmem:[#allocation24 + $0x16a8] sm:$0xff]
    %v1523 = vld [vmem:[#allocation24 + $0x16b0] sm:$0xff]
    %v1524 = vld [vmem:[#allocation24 + $0x16b8] sm:$0xff]
    %v1525 = vld [vmem:[#allocation24 + $0x16c0] sm:$0xff]
    %v1526 = vld [vmem:[#allocation24 + $0x16c8] sm:$0xff]
    %v1527 = vld [vmem:[#allocation24 + $0x16d0] sm:$0xff]
    %v1528 = vld [vmem:[#allocation24 + $0x16d8] sm:$0xff]
    %v1529 = vld [vmem:[#allocation24 + $0x16e0] sm:$0xff]
    %v1530 = vld [vmem:[#allocation24 + $0x16e8] sm:$0xff]
    %v1531 = vld [vmem:[#allocation24 + $0x16f0] sm:$0xff]
    %v1532 = vld [vmem:[#allocation24 + $0x16f8] sm:$0xff]
    %v1533 = vld [vmem:[#allocation24 + $0x1700] sm:$0xff]
    %v1534 = vld [vmem:[#allocation24 + $0x1708] sm:$0xff]
    %v1535 = vld [vmem:[#allocation24 + $0x1710] sm:$0xff]
    %v1536 = vld [vmem:[#allocation24 + $0x1718] sm:$0xff]
    %v1537 = vld [vmem:[#allocation24 + $0x1720] sm:$0xff]
    %v1538 = vld [vmem:[#allocation24 + $0x1728] sm:$0xff]
    %v1539 = vld [vmem:[#allocation24 + $0x1730] sm:$0xff]
    %v1540 = vld [vmem:[#allocation24 + $0x1738] sm:$0xff]
    %v1541 = vld [vmem:[#allocation24 + $0x1740] sm:$0xff]
    %v1542 = vld [vmem:[#allocation24 + $0x1748] sm:$0xff]
    %v1543 = vld [vmem:[#allocation24 + $0x1750] sm:$0xff]
    %v1544 = vld [vmem:[#allocation24 + $0x1758] sm:$0xff]
    %v1545 = vld [vmem:[#allocation24 + $0x1760] sm:$0xff]
    %v1546 = vld [vmem:[#allocation24 + $0x1768] sm:$0xff]
    %v1547 = vld [vmem:[#allocation24 + $0x1770] sm:$0xff]
    %v1548 = vld [vmem:[#allocation24 + $0x1778] sm:$0xff]
    %v1549 = vld [vmem:[#allocation24 + $0x1780] sm:$0xff]
    %v1550 = vld [vmem:[#allocation24 + $0x1788] sm:$0xff]
    %v1551 = vld [vmem:[#allocation24 + $0x1790] sm:$0xff]
    %v1552 = vld [vmem:[#allocation24 + $0x1798] sm:$0xff]
    %v1553 = vld [vmem:[#allocation24 + $0x17a0] sm:$0xff]
    %v1554 = vld [vmem:[#allocation24 + $0x17a8] sm:$0xff]
    %v1555 = vld [vmem:[#allocation24 + $0x17b0] sm:$0xff]
    %v1556 = vld [vmem:[#allocation24 + $0x17b8] sm:$0xff]
    %v1557 = vld [vmem:[#allocation24 + $0x17c0] sm:$0xff]
    %v1558 = vld [vmem:[#allocation24 + $0x17c8] sm:$0xff]
    %v1559 = vld [vmem:[#allocation24 + $0x17d0] sm:$0xff]
    %v1560 = vld [vmem:[#allocation24 + $0x17d8] sm:$0xff]
    %v1561 = vld [vmem:[#allocation24 + $0x17e0] sm:$0xff]
    %v1562 = vld [vmem:[#allocation24 + $0x17e8] sm:$0xff]
    %v1563 = vld [vmem:[#allocation24 + $0x17f0] sm:$0xff]
    %v1564 = vld [vmem:[#allocation24 + $0x17f8] sm:$0xff]
    %v1565 = vld [vmem:[#allocation24 + $0x1800] sm:$0xff]
    %v1566 = vld [vmem:[#allocation24 + $0x1808] sm:$0xff]
    %v1567 = vld [vmem:[#allocation24 + $0x1810] sm:$0xff]
    %v1568 = vld [vmem:[#allocation24 + $0x1818] sm:$0xff]
    %v1569 = vld [vmem:[#allocation24 + $0x1820] sm:$0xff]
    %v1570 = vld [vmem:[#allocation24 + $0x1828] sm:$0xff]
    %v1571 = vld [vmem:[#allocation24 + $0x1830] sm:$0xff]
    %v1572 = vld [vmem:[#allocation24 + $0x1838] sm:$0xff]
    %v1573 = vld [vmem:[#allocation24 + $0x1840] sm:$0xff]
    %v1574 = vld [vmem:[#allocation24 + $0x1848] sm:$0xff]
    %v1575 = vld [vmem:[#allocation24 + $0x1850] sm:$0xff]
    %v1576 = vld [vmem:[#allocation24 + $0x1858] sm:$0xff]
    %v1577 = vld [vmem:[#allocation24 + $0x1860] sm:$0xff]
    %v1578 = vld [vmem:[#allocation24 + $0x1868] sm:$0xff]
    %v1579 = vld [vmem:[#allocation24 + $0x1870] sm:$0xff]
    %v1580 = vld [vmem:[#allocation24 + $0x1878] sm:$0xff]
    %v1581 = vld [vmem:[#allocation24 + $0x1880] sm:$0xff]
    %v1582 = vld [vmem:[#allocation24 + $0x1888] sm:$0xff]
    %v1583 = vld [vmem:[#allocation24 + $0x1890] sm:$0xff]
    %v1584 = vld [vmem:[#allocation24 + $0x1898] sm:$0xff]
    %v1585 = vld [vmem:[#allocation24 + $0x18a0] sm:$0xff]
    %v1586 = vld [vmem:[#allocation24 + $0x18a8] sm:$0xff]
    %v1587 = vld [vmem:[#allocation24 + $0x18b0] sm:$0xff]
    %v1588 = vld [vmem:[#allocation24 + $0x18b8] sm:$0xff]
    %v1589 = vld [vmem:[#allocation24 + $0x18c0] sm:$0xff]
    %v1590 = vld [vmem:[#allocation24 + $0x18c8] sm:$0xff]
    %v1591 = vld [vmem:[#allocation24 + $0x18d0] sm:$0xff]
    %v1592 = vld [vmem:[#allocation24 + $0x18d8] sm:$0xff]
    %v1593 = vld [vmem:[#allocation24 + $0x18e0] sm:$0xff]
    %v1594 = vld [vmem:[#allocation24 + $0x18e8] sm:$0xff]
    %v1595 = vld [vmem:[#allocation24 + $0x18f0] sm:$0xff]
    %v1596 = vld [vmem:[#allocation24 + $0x18f8] sm:$0xff]
    %v1597 = vld [vmem:[#allocation24 + $0x1900] sm:$0xff]
    %v1598 = vld [vmem:[#allocation24 + $0x1908] sm:$0xff]
    %v1599 = vld [vmem:[#allocation24 + $0x1910] sm:$0xff]
    %v1600 = vld [vmem:[#allocation24 + $0x1918] sm:$0xff]
    %v1601 = vld [vmem:[#allocation24 + $0x1920] sm:$0xff]
    %v1602 = vld [vmem:[#allocation24 + $0x1928] sm:$0xff]
    %v1603 = vld [vmem:[#allocation24 + $0x1930] sm:$0xff]
    %v1604 = vld [vmem:[#allocation24 + $0x1938] sm:$0xff]
    %v1605 = vld [vmem:[#allocation24 + $0x1940] sm:$0xff]
    %v1606 = vld [vmem:[#allocation24 + $0x1948] sm:$0xff]
    %v1607 = vld [vmem:[#allocation24 + $0x1950] sm:$0xff]
    %v1608 = vld [vmem:[#allocation24 + $0x1958] sm:$0xff]
    %v1609 = vld [vmem:[#allocation24 + $0x1960] sm:$0xff]
    %v1610 = vld [vmem:[#allocation24 + $0x1968] sm:$0xff]
    %v1611 = vld [vmem:[#allocation24 + $0x1970] sm:$0xff]
    %v1612 = vld [vmem:[#allocation24 + $0x1978] sm:$0xff]
    %v1613 = vld [vmem:[#allocation24 + $0x1980] sm:$0xff]
    %v1614 = vld [vmem:[#allocation24 + $0x1988] sm:$0xff]
    %v1615 = vld [vmem:[#allocation24 + $0x1990] sm:$0xff]
    %v1616 = vld [vmem:[#allocation24 + $0x1998] sm:$0xff]
    %v1617 = vld [vmem:[#allocation24 + $0x19a0] sm:$0xff]
    %v1618 = vld [vmem:[#allocation24 + $0x19a8] sm:$0xff]
    %v1619 = vld [vmem:[#allocation24 + $0x19b0] sm:$0xff]
    %v1620 = vld [vmem:[#allocation24 + $0x19b8] sm:$0xff]
    %v1621 = vld [vmem:[#allocation24 + $0x19c0] sm:$0xff]
    %v1622 = vld [vmem:[#allocation24 + $0x19c8] sm:$0xff]
    %v1623 = vld [vmem:[#allocation24 + $0x19d0] sm:$0xff]
    %v1624 = vld [vmem:[#allocation24 + $0x19d8] sm:$0xff]
    %v1625 = vld [vmem:[#allocation24 + $0x19e0] sm:$0xff]
    %v1626 = vld [vmem:[#allocation24 + $0x19e8] sm:$0xff]
    %v1627 = vld [vmem:[#allocation24 + $0x19f0] sm:$0xff]
    %v1628 = vld [vmem:[#allocation24 + $0x19f8] sm:$0xff]
    %v1629 = vld [vmem:[#allocation24 + $0x1a00] sm:$0xff]
    %v1630 = vld [vmem:[#allocation24 + $0x1a08] sm:$0xff]
    %v1631 = vld [vmem:[#allocation24 + $0x1a10] sm:$0xff]
    %v1632 = vld [vmem:[#allocation24 + $0x1a18] sm:$0xff]
    %v1633 = vld [vmem:[#allocation24 + $0x1a20] sm:$0xff]
    %v1634 = vld [vmem:[#allocation24 + $0x1a28] sm:$0xff]
    %v1635 = vld [vmem:[#allocation24 + $0x1a30] sm:$0xff]
    %v1636 = vld [vmem:[#allocation24 + $0x1a38] sm:$0xff]
    %v1637 = vld [vmem:[#allocation24 + $0x1a40] sm:$0xff]
    %v1638 = vld [vmem:[#allocation24 + $0x1a48] sm:$0xff]
    %v1639 = vld [vmem:[#allocation24 + $0x1a50] sm:$0xff]
    %v1640 = vld [vmem:[#allocation24 + $0x1a58] sm:$0xff]
    %v1641 = vld [vmem:[#allocation24 + $0x1a60] sm:$0xff]
    %v1642 = vld [vmem:[#allocation24 + $0x1a68] sm:$0xff]
    %v1643 = vld [vmem:[#allocation24 + $0x1a70] sm:$0xff]
    %v1644 = vld [vmem:[#allocation24 + $0x1a78] sm:$0xff]
    %v1645 = vld [vmem:[#allocation24 + $0x1a80] sm:$0xff]
    %v1646 = vld [vmem:[#allocation24 + $0x1a88] sm:$0xff]
    %v1647 = vld [vmem:[#allocation24 + $0x1a90] sm:$0xff]
    %v1648 = vld [vmem:[#allocation24 + $0x1a98] sm:$0xff]
    %v1649 = vld [vmem:[#allocation24 + $0x1aa0] sm:$0xff]
    %v1650 = vld [vmem:[#allocation24 + $0x1aa8] sm:$0xff]
    %v1651 = vld [vmem:[#allocation24 + $0x1ab0] sm:$0xff]
    %v1652 = vld [vmem:[#allocation24 + $0x1ab8] sm:$0xff]
    %v1653 = vld [vmem:[#allocation24 + $0x1ac0] sm:$0xff]
    %v1654 = vld [vmem:[#allocation24 + $0x1ac8] sm:$0xff]
    %v1655 = vld [vmem:[#allocation24 + $0x1ad0] sm:$0xff]
    %v1656 = vld [vmem:[#allocation24 + $0x1ad8] sm:$0xff]
    %v1657 = vld [vmem:[#allocation24 + $0x1ae0] sm:$0xff]
    %v1658 = vld [vmem:[#allocation24 + $0x1ae8] sm:$0xff]
    %v1659 = vld [vmem:[#allocation24 + $0x1af0] sm:$0xff]
    %v1660 = vld [vmem:[#allocation24 + $0x1af8] sm:$0xff]
    %v1661 = vld [vmem:[#allocation24 + $0x1b00] sm:$0xff]
    %v1662 = vld [vmem:[#allocation24 + $0x1b08] sm:$0xff]
    %v1663 = vld [vmem:[#allocation24 + $0x1b10] sm:$0xff]
    %v1664 = vld [vmem:[#allocation24 + $0x1b18] sm:$0xff]
    %v1665 = vld [vmem:[#allocation24 + $0x1b20] sm:$0xff]
    %v1666 = vld [vmem:[#allocation24 + $0x1b28] sm:$0xff]
    %v1667 = vld [vmem:[#allocation24 + $0x1b30] sm:$0xff]
    %v1668 = vld [vmem:[#allocation24 + $0x1b38] sm:$0xff]
    %v1669 = vld [vmem:[#allocation24 + $0x1b40] sm:$0xff]
    %v1670 = vld [vmem:[#allocation24 + $0x1b48] sm:$0xff]
    %v1671 = vld [vmem:[#allocation24 + $0x1b50] sm:$0xff]
    %v1672 = vld [vmem:[#allocation24 + $0x1b58] sm:$0xff]
    %v1673 = vld [vmem:[#allocation24 + $0x1b60] sm:$0xff]
    %v1674 = vld [vmem:[#allocation24 + $0x1b68] sm:$0xff]
    %v1675 = vld [vmem:[#allocation24 + $0x1b70] sm:$0xff]
    %v1676 = vld [vmem:[#allocation24 + $0x1b78] sm:$0xff]
    %v1677 = vld [vmem:[#allocation24 + $0x1b80] sm:$0xff]
    %v1678 = vld [vmem:[#allocation24 + $0x1b88] sm:$0xff]
    %v1679 = vld [vmem:[#allocation24 + $0x1b90] sm:$0xff]
    %v1680 = vld [vmem:[#allocation24 + $0x1b98] sm:$0xff]
    %v1681 = vld [vmem:[#allocation24 + $0x1ba0] sm:$0xff]
    %v1682 = vld [vmem:[#allocation24 + $0x1ba8] sm:$0xff]
    %v1683 = vld [vmem:[#allocation24 + $0x1bb0] sm:$0xff]
    %v1684 = vld [vmem:[#allocation24 + $0x1bb8] sm:$0xff]
    %v1685 = vld [vmem:[#allocation24 + $0x1bc0] sm:$0xff]
    %v1686 = vld [vmem:[#allocation24 + $0x1bc8] sm:$0xff]
    %v1687 = vld [vmem:[#allocation24 + $0x1bd0] sm:$0xff]
    %v1688 = vld [vmem:[#allocation24 + $0x1bd8] sm:$0xff]
    %v1689 = vld [vmem:[#allocation24 + $0x1be0] sm:$0xff]
    %v1690 = vld [vmem:[#allocation24 + $0x1be8] sm:$0xff]
    %v1691 = vld [vmem:[#allocation24 + $0x1bf0] sm:$0xff]
    %v1692 = vld [vmem:[#allocation24 + $0x1bf8] sm:$0xff]
    %v1693 = vld [vmem:[#allocation24 + $0x1c00] sm:$0xff]
    %v1694 = vld [vmem:[#allocation24 + $0x1c08] sm:$0xff]
    %v1695 = vld [vmem:[#allocation24 + $0x1c10] sm:$0xff]
    %v1696 = vld [vmem:[#allocation24 + $0x1c18] sm:$0xff]
    %v1697 = vld [vmem:[#allocation24 + $0x1c20] sm:$0xff]
    %v1698 = vld [vmem:[#allocation24 + $0x1c28] sm:$0xff]
    %v1699 = vld [vmem:[#allocation24 + $0x1c30] sm:$0xff]
    %v1700 = vld [vmem:[#allocation24 + $0x1c38] sm:$0xff]
    %v1701 = vld [vmem:[#allocation24 + $0x1c40] sm:$0xff]
    %v1702 = vld [vmem:[#allocation24 + $0x1c48] sm:$0xff]
    %v1703 = vld [vmem:[#allocation24 + $0x1c50] sm:$0xff]
    %v1704 = vld [vmem:[#allocation24 + $0x1c58] sm:$0xff]
    %v1705 = vld [vmem:[#allocation24 + $0x1c60] sm:$0xff]
    %v1706 = vld [vmem:[#allocation24 + $0x1c68] sm:$0xff]
    %v1707 = vld [vmem:[#allocation24 + $0x1c70] sm:$0xff]
    %v1708 = vld [vmem:[#allocation24 + $0x1c78] sm:$0xff]
    %v1709 = vld [vmem:[#allocation24 + $0x1c80] sm:$0xff]
    %v1710 = vld [vmem:[#allocation24 + $0x1c88] sm:$0xff]
    %v1711 = vld [vmem:[#allocation24 + $0x1c90] sm:$0xff]
    %v1712 = vld [vmem:[#allocation24 + $0x1c98] sm:$0xff]
    %v1713 = vld [vmem:[#allocation24 + $0x1ca0] sm:$0xff]
    %v1714 = vld [vmem:[#allocation24 + $0x1ca8] sm:$0xff]
    %v1715 = vld [vmem:[#allocation24 + $0x1cb0] sm:$0xff]
    %v1716 = vld [vmem:[#allocation24 + $0x1cb8] sm:$0xff]
    %v1717 = vld [vmem:[#allocation24 + $0x1cc0] sm:$0xff]
    %v1718 = vld [vmem:[#allocation24 + $0x1cc8] sm:$0xff]
    %v1719 = vld [vmem:[#allocation24 + $0x1cd0] sm:$0xff]
    %v1720 = vld [vmem:[#allocation24 + $0x1cd8] sm:$0xff]
    %v1721 = vld [vmem:[#allocation24 + $0x1ce0] sm:$0xff]
    %v1722 = vld [vmem:[#allocation24 + $0x1ce8] sm:$0xff]
    %v1723 = vld [vmem:[#allocation24 + $0x1cf0] sm:$0xff]
    %v1724 = vld [vmem:[#allocation24 + $0x1cf8] sm:$0xff]
    %v1725 = vld [vmem:[#allocation24 + $0x1d00] sm:$0xff]
    %v1726 = vld [vmem:[#allocation24 + $0x1d08] sm:$0xff]
    %v1727 = vld [vmem:[#allocation24 + $0x1d10] sm:$0xff]
    %v1728 = vld [vmem:[#allocation24 + $0x1d18] sm:$0xff]
    %v1729 = vld [vmem:[#allocation24 + $0x1d20] sm:$0xff]
    %v1730 = vld [vmem:[#allocation24 + $0x1d28] sm:$0xff]
    %v1731 = vld [vmem:[#allocation24 + $0x1d30] sm:$0xff]
    %v1732 = vld [vmem:[#allocation24 + $0x1d38] sm:$0xff]
    %v1733 = vld [vmem:[#allocation24 + $0x1d40] sm:$0xff]
    %v1734 = vld [vmem:[#allocation24 + $0x1d48] sm:$0xff]
    %v1735 = vld [vmem:[#allocation24 + $0x1d50] sm:$0xff]
    %v1736 = vld [vmem:[#allocation24 + $0x1d58] sm:$0xff]
    %v1737 = vld [vmem:[#allocation24 + $0x1d60] sm:$0xff]
    %v1738 = vld [vmem:[#allocation24 + $0x1d68] sm:$0xff]
    %v1739 = vld [vmem:[#allocation24 + $0x1d70] sm:$0xff]
    %v1740 = vld [vmem:[#allocation24 + $0x1d78] sm:$0xff]
    %v1741 = vld [vmem:[#allocation24 + $0x1d80] sm:$0xff]
    %v1742 = vld [vmem:[#allocation24 + $0x1d88] sm:$0xff]
    %v1743 = vld [vmem:[#allocation24 + $0x1d90] sm:$0xff]
    %v1744 = vld [vmem:[#allocation24 + $0x1d98] sm:$0xff]
    %v1745 = vld [vmem:[#allocation24 + $0x1da0] sm:$0xff]
    %v1746 = vld [vmem:[#allocation24 + $0x1da8] sm:$0xff]
    %v1747 = vld [vmem:[#allocation24 + $0x1db0] sm:$0xff]
    %v1748 = vld [vmem:[#allocation24 + $0x1db8] sm:$0xff]
    %v1749 = vld [vmem:[#allocation24 + $0x1dc0] sm:$0xff]
    %v1750 = vld [vmem:[#allocation24 + $0x1dc8] sm:$0xff]
    %v1751 = vld [vmem:[#allocation24 + $0x1dd0] sm:$0xff]
    %v1752 = vld [vmem:[#allocation24 + $0x1dd8] sm:$0xff]
    %v1753 = vld [vmem:[#allocation24 + $0x1de0] sm:$0xff]
    %v1754 = vld [vmem:[#allocation24 + $0x1de8] sm:$0xff]
    %v1755 = vld [vmem:[#allocation24 + $0x1df0] sm:$0xff]
    %v1756 = vld [vmem:[#allocation24 + $0x1df8] sm:$0xff]
    %v1757 = vld [vmem:[#allocation24 + $0x1e00] sm:$0xff]
    %v1758 = vld [vmem:[#allocation24 + $0x1e08] sm:$0xff]
    %v1759 = vld [vmem:[#allocation24 + $0x1e10] sm:$0xff]
    %v1760 = vld [vmem:[#allocation24 + $0x1e18] sm:$0xff]
    %v1761 = vld [vmem:[#allocation24 + $0x1e20] sm:$0xff]
    %v1762 = vld [vmem:[#allocation24 + $0x1e28] sm:$0xff]
    %v1763 = vld [vmem:[#allocation24 + $0x1e30] sm:$0xff]
    %v1764 = vld [vmem:[#allocation24 + $0x1e38] sm:$0xff]
    %v1765 = vld [vmem:[#allocation24 + $0x1e40] sm:$0xff]
    %v1766 = vld [vmem:[#allocation24 + $0x1e48] sm:$0xff]
    %v1767 = vld [vmem:[#allocation24 + $0x1e50] sm:$0xff]
    %v1768 = vld [vmem:[#allocation24 + $0x1e58] sm:$0xff]
    %v1769 = vld [vmem:[#allocation24 + $0x1e60] sm:$0xff]
    %v1770 = vld [vmem:[#allocation24 + $0x1e68] sm:$0xff]
    %v1771 = vld [vmem:[#allocation24 + $0x1e70] sm:$0xff]
    %v1772 = vld [vmem:[#allocation24 + $0x1e78] sm:$0xff]
    %v1773 = vld [vmem:[#allocation24 + $0x1e80] sm:$0xff]
    %v1774 = vld [vmem:[#allocation24 + $0x1e88] sm:$0xff]
    %v1775 = vld [vmem:[#allocation24 + $0x1e90] sm:$0xff]
    %v1776 = vld [vmem:[#allocation24 + $0x1e98] sm:$0xff]
    %v1777 = vld [vmem:[#allocation24 + $0x1ea0] sm:$0xff]
    %v1778 = vld [vmem:[#allocation24 + $0x1ea8] sm:$0xff]
    %v1779 = vld [vmem:[#allocation24 + $0x1eb0] sm:$0xff]
    %v1780 = vld [vmem:[#allocation24 + $0x1eb8] sm:$0xff]
    %v1781 = vld [vmem:[#allocation24 + $0x1ec0] sm:$0xff]
    %v1782 = vld [vmem:[#allocation24 + $0x1ec8] sm:$0xff]
    %v1783 = vld [vmem:[#allocation24 + $0x1ed0] sm:$0xff]
    %v1784 = vld [vmem:[#allocation24 + $0x1ed8] sm:$0xff]
    %v1785 = vld [vmem:[#allocation24 + $0x1ee0] sm:$0xff]
    %v1786 = vld [vmem:[#allocation24 + $0x1ee8] sm:$0xff]
    %v1787 = vld [vmem:[#allocation24 + $0x1ef0] sm:$0xff]
    %v1788 = vld [vmem:[#allocation24 + $0x1ef8] sm:$0xff]
    %v1789 = vld [vmem:[#allocation24 + $0x1f00] sm:$0xff]
    %v1790 = vld [vmem:[#allocation24 + $0x1f08] sm:$0xff]
    %v1791 = vld [vmem:[#allocation24 + $0x1f10] sm:$0xff]
    %v1792 = vld [vmem:[#allocation24 + $0x1f18] sm:$0xff]
    %v1793 = vld [vmem:[#allocation24 + $0x1f20] sm:$0xff]
    %v1794 = vld [vmem:[#allocation24 + $0x1f28] sm:$0xff]
    %v1795 = vld [vmem:[#allocation24 + $0x1f30] sm:$0xff]
    %v1796 = vld [vmem:[#allocation24 + $0x1f38] sm:$0xff]
    %v1797 = vld [vmem:[#allocation24 + $0x1f40] sm:$0xff]
    %v1798 = vld [vmem:[#allocation24 + $0x1f48] sm:$0xff]
    %v1799 = vld [vmem:[#allocation24 + $0x1f50] sm:$0xff]
    %v1800 = vld [vmem:[#allocation24 + $0x1f58] sm:$0xff]
    %v1801 = vld [vmem:[#allocation24 + $0x1f60] sm:$0xff]
    %v1802 = vld [vmem:[#allocation24 + $0x1f68] sm:$0xff]
    %v1803 = vld [vmem:[#allocation24 + $0x1f70] sm:$0xff]
    %v1804 = vld [vmem:[#allocation24 + $0x1f78] sm:$0xff]
    %v1805 = vld [vmem:[#allocation24 + $0x1f80] sm:$0xff]
    %v1806 = vld [vmem:[#allocation24 + $0x1f88] sm:$0xff]
    %v1807 = vld [vmem:[#allocation24 + $0x1f90] sm:$0xff]
    %v1808 = vld [vmem:[#allocation24 + $0x1f98] sm:$0xff]
    %v1809 = vld [vmem:[#allocation24 + $0x1fa0] sm:$0xff]
    %v1810 = vld [vmem:[#allocation24 + $0x1fa8] sm:$0xff]
    %v1811 = vld [vmem:[#allocation24 + $0x1fb0] sm:$0xff]
    %v1812 = vld [vmem:[#allocation24 + $0x1fb8] sm:$0xff]
    %v1813 = vld [vmem:[#allocation24 + $0x1fc0] sm:$0xff]
    %v1814 = vld [vmem:[#allocation24 + $0x1fc8] sm:$0xff]
    %v1815 = vld [vmem:[#allocation24 + $0x1fd0] sm:$0xff]
    %v1816 = vld [vmem:[#allocation24 + $0x1fd8] sm:$0xff]
    %v1817 = vld [vmem:[#allocation24 + $0x1fe0] sm:$0xff]
    %v1818 = vld [vmem:[#allocation24 + $0x1fe8] sm:$0xff]
    %v1819 = vld [vmem:[#allocation24 + $0x1ff0] sm:$0xff]
    %v1820 = vld [vmem:[#allocation24 + $0x1ff8] sm:$0xff]
    %1821 = vmatprep.subr.mxu0 %v918
    %1822 = vmatpush1.msra.mxu0 %v917
    %1823 = vmatprep.subr.mxu0 %v910
    %1824 = vmatpush1.msra.mxu0 %v909
    %1825 = vmatprep.subr.mxu0 %v902
    %1826 = vmatpush1.msra.mxu0 %v901
    %1827 = vmatprep.subr.mxu0 %v894
    %1828 = vmatpush1.msra.mxu0 %v893
    %1829 = vmatprep.subr.mxu0 %v886
    %1830 = vmatpush1.msra.mxu0 %v885
    %1831 = vmatprep.subr.mxu0 %v878
    %1832 = vmatpush1.msra.mxu0 %v877
    %1833 = vmatprep.subr.mxu0 %v870
    %1834 = vmatpush1.msra.mxu0 %v869
    %1835 = vmatprep.subr.mxu0 %v862
    %1836 = vmatpush1.msra.mxu0 %v861
    %1837 = vmatprep.subr.mxu0 %v854
    %1838 = vmatpush1.msra.mxu0 %v853
    %1839 = vmatprep.subr.mxu0 %v846
    %1840 = vmatpush1.msra.mxu0 %v845
    %1841 = vmatprep.subr.mxu0 %v838
    %1842 = vmatpush1.msra.mxu0 %v837
    %1843 = vmatprep.subr.mxu0 %v830
    %1844 = vmatpush1.msra.mxu0 %v829
    %1845 = vmatprep.subr.mxu0 %v822
    %1846 = vmatpush1.msra.mxu0 %v821
    %1847 = vmatprep.subr.mxu0 %v814
    %1848 = vmatpush1.msra.mxu0 %v813
    %1849 = vmatprep.subr.mxu0 %v806
    %1850 = vmatpush1.msra.mxu0 %v805
    %1851 = vmatprep.subr.mxu0 %v798
    %1852 = vmatpush1.msra.mxu0 %v797
    %1853 = vmatprep.subr.mxu0 %v1046
    %1854 = vmatpush2.msra.mxu0 %v1045
    %1855 = vmatprep.subr.mxu0 %v1038
    %1856 = vmatpush2.msra.mxu0 %v1037
    %1857 = vmatprep.subr.mxu0 %v1030
    %1858 = vmatpush2.msra.mxu0 %v1029
    %1859 = vmatprep.subr.mxu0 %v1022
    %1860 = vmatpush2.msra.mxu0 %v1021
    %1861 = vmatprep.subr.mxu0 %v1014
    %1862 = vmatpush2.msra.mxu0 %v1013
    %1863 = vmatprep.subr.mxu0 %v1006
    %1864 = vmatpush2.msra.mxu0 %v1005
    %1865 = vmatprep.subr.mxu0 %v998
    %1866 = vmatpush2.msra.mxu0 %v997
    %1867 = vmatprep.subr.mxu0 %v990
    %1868 = vmatpush2.msra.mxu0 %v989
    %1869 = vmatprep.subr.mxu0 %v982
    %1870 = vmatpush2.msra.mxu0 %v981
    %1871 = vmatprep.subr.mxu0 %v974
    %1872 = vmatpush2.msra.mxu0 %v973
    %1873 = vmatprep.subr.mxu0 %v966
    %1874 = vmatpush2.msra.mxu0 %v965
    %1875 = vmatprep.subr.mxu0 %v958
    %1876 = vmatpush2.msra.mxu0 %v957
    %1877 = vmatprep.subr.mxu0 %v950
    %1878 = vmatpush2.msra.mxu0 %v949
    %1879 = vmatprep.subr.mxu0 %v942
    %1880 = vmatpush2.msra.mxu0 %v941
    %1881 = vmatprep.subr.mxu0 %v934
    %1882 = vmatpush2.msra.mxu0 %v933
    %1883 = vmatprep.subr.mxu0 %v926
    %1884 = vmatpush2.msra.mxu0 %v925
    %1885 = vmatprep.mubr.f32.mxu0 %v784
    %1886 = vmatmul.mubr.f32.gmra.mxu0 %v775
    %v1887 = vpop.f32.mrf.mxu0
    %v1888 = vadd.f32 0.0, %v1887
    %v1889 = vpop.f32.mrf.mxu0
    %v1890 = vadd.f32 0.0, %v1889
    %1891 = vdwg.mxu0
    %1892 = vmatprep.subr.mxu0 %v1174
    %1893 = vmatpush1.msra.mxu0 %v1173
    %1894 = vmatprep.subr.mxu0 %v1166
    %1895 = vmatpush1.msra.mxu0 %v1165
    %1896 = vmatprep.subr.mxu0 %v1158
    %1897 = vmatpush1.msra.mxu0 %v1157
    %1898 = vmatprep.subr.mxu0 %v1150
    %1899 = vmatpush1.msra.mxu0 %v1149
    %1900 = vmatprep.subr.mxu0 %v1142
    %1901 = vmatpush1.msra.mxu0 %v1141
    %1902 = vmatprep.subr.mxu0 %v1134
    %1903 = vmatpush1.msra.mxu0 %v1133
    %1904 = vmatprep.subr.mxu0 %v1126
    %1905 = vmatpush1.msra.mxu0 %v1125
    %1906 = vmatprep.subr.mxu0 %v1118
    %1907 = vmatpush1.msra.mxu0 %v1117
    %1908 = vmatprep.subr.mxu0 %v1110
    %1909 = vmatpush1.msra.mxu0 %v1109
    %1910 = vmatprep.subr.mxu0 %v1102
    %1911 = vmatpush1.msra.mxu0 %v1101
    %1912 = vmatprep.subr.mxu0 %v1094
    %1913 = vmatpush1.msra.mxu0 %v1093
    %1914 = vmatprep.subr.mxu0 %v1086
    %1915 = vmatpush1.msra.mxu0 %v1085
    %1916 = vmatprep.subr.mxu0 %v1078
    %1917 = vmatpush1.msra.mxu0 %v1077
    %1918 = vmatprep.subr.mxu0 %v1070
    %1919 = vmatpush1.msra.mxu0 %v1069
    %1920 = vmatprep.subr.mxu0 %v1062
    %1921 = vmatpush1.msra.mxu0 %v1061
    %1922 = vmatprep.subr.mxu0 %v1054
    %1923 = vmatpush1.msra.mxu0 %v1053
    %1924 = vmatprep.subr.mxu0 %v1302
    %1925 = vmatpush2.msra.mxu0 %v1301
    %1926 = vmatprep.subr.mxu0 %v1294
    %1927 = vmatpush2.msra.mxu0 %v1293
    %1928 = vmatprep.subr.mxu0 %v1286
    %1929 = vmatpush2.msra.mxu0 %v1285
    %1930 = vmatprep.subr.mxu0 %v1278
    %1931 = vmatpush2.msra.mxu0 %v1277
    %1932 = vmatprep.subr.mxu0 %v1270
    %1933 = vmatpush2.msra.mxu0 %v1269
    %1934 = vmatprep.subr.mxu0 %v1262
    %1935 = vmatpush2.msra.mxu0 %v1261
    %1936 = vmatprep.subr.mxu0 %v1254
    %1937 = vmatpush2.msra.mxu0 %v1253
    %1938 = vmatprep.subr.mxu0 %v1246
    %1939 = vmatpush2.msra.mxu0 %v1245
    %1940 = vmatprep.subr.mxu0 %v1238
    %1941 = vmatpush2.msra.mxu0 %v1237
    %1942 = vmatprep.subr.mxu0 %v1230
    %1943 = vmatpush2.msra.mxu0 %v1229
    %1944 = vmatprep.subr.mxu0 %v1222
    %1945 = vmatpush2.msra.mxu0 %v1221
    %1946 = vmatprep.subr.mxu0 %v1214
    %1947 = vmatpush2.msra.mxu0 %v1213
    %1948 = vmatprep.subr.mxu0 %v1206
    %1949 = vmatpush2.msra.mxu0 %v1205
    %1950 = vmatprep.subr.mxu0 %v1198
    %1951 = vmatpush2.msra.mxu0 %v1197
    %1952 = vmatprep.subr.mxu0 %v1190
    %1953 = vmatpush2.msra.mxu0 %v1189
    %1954 = vmatprep.subr.mxu0 %v1182
    %1955 = vmatpush2.msra.mxu0 %v1181
    %1956 = vmatprep.mubr.f32.mxu0 %v788
    %1957 = vmatmul.mubr.f32.gmra.mxu0 %v786
    %v1958 = vpop.f32.mrf.mxu0
    %v1959 = vadd.f32 %v1888, %v1958
    %v1960 = vpop.f32.mrf.mxu0
    %v1961 = vadd.f32 %v1890, %v1960
    %1962 = vdwg.mxu0
    %1963 = vmatprep.subr.mxu0 %v1430
    %1964 = vmatpush1.msra.mxu0 %v1429
    %1965 = vmatprep.subr.mxu0 %v1422
    %1966 = vmatpush1.msra.mxu0 %v1421
    %1967 = vmatprep.subr.mxu0 %v1414
    %1968 = vmatpush1.msra.mxu0 %v1413
    %1969 = vmatprep.subr.mxu0 %v1406
    %1970 = vmatpush1.msra.mxu0 %v1405
    %1971 = vmatprep.subr.mxu0 %v1398
    %1972 = vmatpush1.msra.mxu0 %v1397
    %1973 = vmatprep.subr.mxu0 %v1390
    %1974 = vmatpush1.msra.mxu0 %v1389
    %1975 = vmatprep.subr.mxu0 %v1382
    %1976 = vmatpush1.msra.mxu0 %v1381
    %1977 = vmatprep.subr.mxu0 %v1374
    %1978 = vmatpush1.msra.mxu0 %v1373
    %1979 = vmatprep.subr.mxu0 %v1366
    %1980 = vmatpush1.msra.mxu0 %v1365
    %1981 = vmatprep.subr.mxu0 %v1358
    %1982 = vmatpush1.msra.mxu0 %v1357
    %1983 = vmatprep.subr.mxu0 %v1350
    %1984 = vmatpush1.msra.mxu0 %v1349
    %1985 = vmatprep.subr.mxu0 %v1342
    %1986 = vmatpush1.msra.mxu0 %v1341
    %1987 = vmatprep.subr.mxu0 %v1334
    %1988 = vmatpush1.msra.mxu0 %v1333
    %1989 = vmatprep.subr.mxu0 %v1326
    %1990 = vmatpush1.msra.mxu0 %v1325
    %1991 = vmatprep.subr.mxu0 %v1318
    %1992 = vmatpush1.msra.mxu0 %v1317
    %1993 = vmatprep.subr.mxu0 %v1310
    %1994 = vmatpush1.msra.mxu0 %v1309
    %1995 = vmatprep.subr.mxu0 %v1558
    %1996 = vmatpush2.msra.mxu0 %v1557
    %1997 = vmatprep.subr.mxu0 %v1550
    %1998 = vmatpush2.msra.mxu0 %v1549
    %1999 = vmatprep.subr.mxu0 %v1542
    %2000 = vmatpush2.msra.mxu0 %v1541
    %2001 = vmatprep.subr.mxu0 %v1534
    %2002 = vmatpush2.msra.mxu0 %v1533
    %2003 = vmatprep.subr.mxu0 %v1526
    %2004 = vmatpush2.msra.mxu0 %v1525
    %2005 = vmatprep.subr.mxu0 %v1518
    %2006 = vmatpush2.msra.mxu0 %v1517
    %2007 = vmatprep.subr.mxu0 %v1510
    %2008 = vmatpush2.msra.mxu0 %v1509
    %2009 = vmatprep.subr.mxu0 %v1502
    %2010 = vmatpush2.msra.mxu0 %v1501
    %2011 = vmatprep.subr.mxu0 %v1494
    %2012 = vmatpush2.msra.mxu0 %v1493
    %2013 = vmatprep.subr.mxu0 %v1486
    %2014 = vmatpush2.msra.mxu0 %v1485
    %2015 = vmatprep.subr.mxu0 %v1478
    %2016 = vmatpush2.msra.mxu0 %v1477
    %2017 = vmatprep.subr.mxu0 %v1470
    %2018 = vmatpush2.msra.mxu0 %v1469
    %2019 = vmatprep.subr.mxu0 %v1462
    %2020 = vmatpush2.msra.mxu0 %v1461
    %2021 = vmatprep.subr.mxu0 %v1454
    %2022 = vmatpush2.msra.mxu0 %v1453
    %2023 = vmatprep.subr.mxu0 %v1446
    %2024 = vmatpush2.msra.mxu0 %v1445
    %2025 = vmatprep.subr.mxu0 %v1438
    %2026 = vmatpush2.msra.mxu0 %v1437
    %2027 = vmatprep.mubr.f32.mxu0 %v791
    %2028 = vmatmul.mubr.f32.gmra.mxu0 %v780
    %v2029 = vpop.f32.mrf.mxu0
    %v2030 = vadd.f32 %v1959, %v2029
    %v2031 = vpop.f32.mrf.mxu0
    %v2032 = vadd.f32 %v1961, %v2031
    %2033 = vdwg.mxu0
    %2034 = vmatprep.subr.mxu0 %v1686
    %2035 = vmatpush1.msra.mxu0 %v1685
    %2036 = vmatprep.subr.mxu0 %v1678
    %2037 = vmatpush1.msra.mxu0 %v1677
    %2038 = vmatprep.subr.mxu0 %v1670
    %2039 = vmatpush1.msra.mxu0 %v1669
    %2040 = vmatprep.subr.mxu0 %v1662
    %2041 = vmatpush1.msra.mxu0 %v1661
    %2042 = vmatprep.subr.mxu0 %v1654
    %2043 = vmatpush1.msra.mxu0 %v1653
    %2044 = vmatprep.subr.mxu0 %v1646
    %2045 = vmatpush1.msra.mxu0 %v1645
    %2046 = vmatprep.subr.mxu0 %v1638
    %2047 = vmatpush1.msra.mxu0 %v1637
    %2048 = vmatprep.subr.mxu0 %v1630
    %2049 = vmatpush1.msra.mxu0 %v1629
    %2050 = vmatprep.subr.mxu0 %v1622
    %2051 = vmatpush1.msra.mxu0 %v1621
    %2052 = vmatprep.subr.mxu0 %v1614
    %2053 = vmatpush1.msra.mxu0 %v1613
    %2054 = vmatprep.subr.mxu0 %v1606
    %2055 = vmatpush1.msra.mxu0 %v1605
    %2056 = vmatprep.subr.mxu0 %v1598
    %2057 = vmatpush1.msra.mxu0 %v1597
    %2058 = vmatprep.subr.mxu0 %v1590
    %2059 = vmatpush1.msra.mxu0 %v1589
    %2060 = vmatprep.subr.mxu0 %v1582
    %2061 = vmatpush1.msra.mxu0 %v1581
    %2062 = vmatprep.subr.mxu0 %v1574
    %2063 = vmatpush1.msra.mxu0 %v1573
    %2064 = vmatprep.subr.mxu0 %v1566
    %2065 = vmatpush1.msra.mxu0 %v1565
    %2066 = vmatprep.subr.mxu0 %v1814
    %2067 = vmatpush2.msra.mxu0 %v1813
    %2068 = vmatprep.subr.mxu0 %v1806
    %2069 = vmatpush2.msra.mxu0 %v1805
    %2070 = vmatprep.subr.mxu0 %v1798
    %2071 = vmatpush2.msra.mxu0 %v1797
    %2072 = vmatprep.subr.mxu0 %v1790
    %2073 = vmatpush2.msra.mxu0 %v1789
    %2074 = vmatprep.subr.mxu0 %v1782
    %2075 = vmatpush2.msra.mxu0 %v1781
    %2076 = vmatprep.subr.mxu0 %v1774
    %2077 = vmatpush2.msra.mxu0 %v1773
    %2078 = vmatprep.subr.mxu0 %v1766
    %2079 = vmatpush2.msra.mxu0 %v1765
    %2080 = vmatprep.subr.mxu0 %v1758
    %2081 = vmatpush2.msra.mxu0 %v1757
    %2082 = vmatprep.subr.mxu0 %v1750
    %2083 = vmatpush2.msra.mxu0 %v1749
    %2084 = vmatprep.subr.mxu0 %v1742
    %2085 = vmatpush2.msra.mxu0 %v1741
    %2086 = vmatprep.subr.mxu0 %v1734
    %2087 = vmatpush2.msra.mxu0 %v1733
    %2088 = vmatprep.subr.mxu0 %v1726
    %2089 = vmatpush2.msra.mxu0 %v1725
    %2090 = vmatprep.subr.mxu0 %v1718
    %2091 = vmatpush2.msra.mxu0 %v1717
    %2092 = vmatprep.subr.mxu0 %v1710
    %2093 = vmatpush2.msra.mxu0 %v1709
    %2094 = vmatprep.subr.mxu0 %v1702
    %2095 = vmatpush2.msra.mxu0 %v1701
    %2096 = vmatprep.subr.mxu0 %v1694
    %2097 = vmatpush2.msra.mxu0 %v1693
    %2098 = vmatprep.mubr.f32.mxu0 %v795
    %2099 = vmatmul.mubr.f32.gmra.mxu0 %v793
    %v2100 = vpop.f32.mrf.mxu0
    %v2101 = vadd.f32 %v2030, %v2100
    %v2102 = vpop.f32.mrf.mxu0
    %v2103 = vadd.f32 %v2032, %v2102
    %2104 = vdwg.mxu0
    %2105 = vmatprep.subr.mxu0 %v920
    %2106 = vmatpush1.msra.mxu0 %v919
    %2107 = vmatprep.subr.mxu0 %v912
    %2108 = vmatpush1.msra.mxu0 %v911
    %2109 = vmatprep.subr.mxu0 %v904
    %2110 = vmatpush1.msra.mxu0 %v903
    %2111 = vmatprep.subr.mxu0 %v896
    %2112 = vmatpush1.msra.mxu0 %v895
    %2113 = vmatprep.subr.mxu0 %v888
    %2114 = vmatpush1.msra.mxu0 %v887
    %2115 = vmatprep.subr.mxu0 %v880
    %2116 = vmatpush1.msra.mxu0 %v879
    %2117 = vmatprep.subr.mxu0 %v872
    %2118 = vmatpush1.msra.mxu0 %v871
    %2119 = vmatprep.subr.mxu0 %v864
    %2120 = vmatpush1.msra.mxu0 %v863
    %2121 = vmatprep.subr.mxu0 %v856
    %2122 = vmatpush1.msra.mxu0 %v855
    %2123 = vmatprep.subr.mxu0 %v848
    %2124 = vmatpush1.msra.mxu0 %v847
    %2125 = vmatprep.subr.mxu0 %v840
    %2126 = vmatpush1.msra.mxu0 %v839
    %2127 = vmatprep.subr.mxu0 %v832
    %2128 = vmatpush1.msra.mxu0 %v831
    %2129 = vmatprep.subr.mxu0 %v824
    %2130 = vmatpush1.msra.mxu0 %v823
    %2131 = vmatprep.subr.mxu0 %v816
    %2132 = vmatpush1.msra.mxu0 %v815
    %2133 = vmatprep.subr.mxu0 %v808
    %2134 = vmatpush1.msra.mxu0 %v807
    %2135 = vmatprep.subr.mxu0 %v800
    %2136 = vmatpush1.msra.mxu0 %v799
    %2137 = vmatprep.subr.mxu0 %v1048
    %2138 = vmatpush2.msra.mxu0 %v1047
    %2139 = vmatprep.subr.mxu0 %v1040
    %2140 = vmatpush2.msra.mxu0 %v1039
    %2141 = vmatprep.subr.mxu0 %v1032
    %2142 = vmatpush2.msra.mxu0 %v1031
    %2143 = vmatprep.subr.mxu0 %v1024
    %2144 = vmatpush2.msra.mxu0 %v1023
    %2145 = vmatprep.subr.mxu0 %v1016
    %2146 = vmatpush2.msra.mxu0 %v1015
    %2147 = vmatprep.subr.mxu0 %v1008
    %2148 = vmatpush2.msra.mxu0 %v1007
    %2149 = vmatprep.subr.mxu0 %v1000
    %2150 = vmatpush2.msra.mxu0 %v999
    %2151 = vmatprep.subr.mxu0 %v992
    %2152 = vmatpush2.msra.mxu0 %v991
    %2153 = vmatprep.subr.mxu0 %v984
    %2154 = vmatpush2.msra.mxu0 %v983
    %2155 = vmatprep.subr.mxu0 %v976
    %2156 = vmatpush2.msra.mxu0 %v975
    %2157 = vmatprep.subr.mxu0 %v968
    %2158 = vmatpush2.msra.mxu0 %v967
    %2159 = vmatprep.subr.mxu0 %v960
    %2160 = vmatpush2.msra.mxu0 %v959
    %2161 = vmatprep.subr.mxu0 %v952
    %2162 = vmatpush2.msra.mxu0 %v951
    %2163 = vmatprep.subr.mxu0 %v944
    %2164 = vmatpush2.msra.mxu0 %v943
    %2165 = vmatprep.subr.mxu0 %v936
    %2166 = vmatpush2.msra.mxu0 %v935
    %2167 = vmatprep.subr.mxu0 %v928
    %2168 = vmatpush2.msra.mxu0 %v927
    %2169 = vmatprep.mubr.f32.mxu0 %v784
    %2170 = vmatmul.mubr.f32.gmra.mxu0 %v775
    %v2171 = vpop.f32.mrf.mxu0
    %v2172 = vadd.f32 0.0, %v2171
    %v2173 = vpop.f32.mrf.mxu0
    %v2174 = vadd.f32 0.0, %v2173
    %2175 = vdwg.mxu0
    %2176 = vmatprep.subr.mxu0 %v1176
    %2177 = vmatpush1.msra.mxu0 %v1175
    %2178 = vmatprep.subr.mxu0 %v1168
    %2179 = vmatpush1.msra.mxu0 %v1167
    %2180 = vmatprep.subr.mxu0 %v1160
    %2181 = vmatpush1.msra.mxu0 %v1159
    %2182 = vmatprep.subr.mxu0 %v1152
    %2183 = vmatpush1.msra.mxu0 %v1151
    %2184 = vmatprep.subr.mxu0 %v1144
    %2185 = vmatpush1.msra.mxu0 %v1143
    %2186 = vmatprep.subr.mxu0 %v1136
    %2187 = vmatpush1.msra.mxu0 %v1135
    %2188 = vmatprep.subr.mxu0 %v1128
    %2189 = vmatpush1.msra.mxu0 %v1127
    %2190 = vmatprep.subr.mxu0 %v1120
    %2191 = vmatpush1.msra.mxu0 %v1119
    %2192 = vmatprep.subr.mxu0 %v1112
    %2193 = vmatpush1.msra.mxu0 %v1111
    %2194 = vmatprep.subr.mxu0 %v1104
    %2195 = vmatpush1.msra.mxu0 %v1103
    %2196 = vmatprep.subr.mxu0 %v1096
    %2197 = vmatpush1.msra.mxu0 %v1095
    %2198 = vmatprep.subr.mxu0 %v1088
    %2199 = vmatpush1.msra.mxu0 %v1087
    %2200 = vmatprep.subr.mxu0 %v1080
    %2201 = vmatpush1.msra.mxu0 %v1079
    %2202 = vmatprep.subr.mxu0 %v1072
    %2203 = vmatpush1.msra.mxu0 %v1071
    %2204 = vmatprep.subr.mxu0 %v1064
    %2205 = vmatpush1.msra.mxu0 %v1063
    %2206 = vmatprep.subr.mxu0 %v1056
    %2207 = vmatpush1.msra.mxu0 %v1055
    %2208 = vmatprep.subr.mxu0 %v1304
    %2209 = vmatpush2.msra.mxu0 %v1303
    %2210 = vmatprep.subr.mxu0 %v1296
    %2211 = vmatpush2.msra.mxu0 %v1295
    %2212 = vmatprep.subr.mxu0 %v1288
    %2213 = vmatpush2.msra.mxu0 %v1287
    %2214 = vmatprep.subr.mxu0 %v1280
    %2215 = vmatpush2.msra.mxu0 %v1279
    %2216 = vmatprep.subr.mxu0 %v1272
    %2217 = vmatpush2.msra.mxu0 %v1271
    %2218 = vmatprep.subr.mxu0 %v1264
    %2219 = vmatpush2.msra.mxu0 %v1263
    %2220 = vmatprep.subr.mxu0 %v1256
    %2221 = vmatpush2.msra.mxu0 %v1255
    %2222 = vmatprep.subr.mxu0 %v1248
    %2223 = vmatpush2.msra.mxu0 %v1247
    %2224 = vmatprep.subr.mxu0 %v1240
    %2225 = vmatpush2.msra.mxu0 %v1239
    %2226 = vmatprep.subr.mxu0 %v1232
    %2227 = vmatpush2.msra.mxu0 %v1231
    %2228 = vmatprep.subr.mxu0 %v1224
    %2229 = vmatpush2.msra.mxu0 %v1223
    %2230 = vmatprep.subr.mxu0 %v1216
    %2231 = vmatpush2.msra.mxu0 %v1215
    %2232 = vmatprep.subr.mxu0 %v1208
    %2233 = vmatpush2.msra.mxu0 %v1207
    %2234 = vmatprep.subr.mxu0 %v1200
    %2235 = vmatpush2.msra.mxu0 %v1199
    %2236 = vmatprep.subr.mxu0 %v1192
    %2237 = vmatpush2.msra.mxu0 %v1191
    %2238 = vmatprep.subr.mxu0 %v1184
    %2239 = vmatpush2.msra.mxu0 %v1183
    %2240 = vmatprep.mubr.f32.mxu0 %v788
    %2241 = vmatmul.mubr.f32.gmra.mxu0 %v786
    %v2242 = vpop.f32.mrf.mxu0
    %v2243 = vadd.f32 %v2172, %v2242
    %v2244 = vpop.f32.mrf.mxu0
    %v2245 = vadd.f32 %v2174, %v2244
    %2246 = vdwg.mxu0
    %2247 = vmatprep.subr.mxu0 %v1432
    %2248 = vmatpush1.msra.mxu0 %v1431
    %2249 = vmatprep.subr.mxu0 %v1424
    %2250 = vmatpush1.msra.mxu0 %v1423
    %2251 = vmatprep.subr.mxu0 %v1416
    %2252 = vmatpush1.msra.mxu0 %v1415
    %2253 = vmatprep.subr.mxu0 %v1408
    %2254 = vmatpush1.msra.mxu0 %v1407
    %2255 = vmatprep.subr.mxu0 %v1400
    %2256 = vmatpush1.msra.mxu0 %v1399
    %2257 = vmatprep.subr.mxu0 %v1392
    %2258 = vmatpush1.msra.mxu0 %v1391
    %2259 = vmatprep.subr.mxu0 %v1384
    %2260 = vmatpush1.msra.mxu0 %v1383
    %2261 = vmatprep.subr.mxu0 %v1376
    %2262 = vmatpush1.msra.mxu0 %v1375
    %2263 = vmatprep.subr.mxu0 %v1368
    %2264 = vmatpush1.msra.mxu0 %v1367
    %2265 = vmatprep.subr.mxu0 %v1360
    %2266 = vmatpush1.msra.mxu0 %v1359
    %2267 = vmatprep.subr.mxu0 %v1352
    %2268 = vmatpush1.msra.mxu0 %v1351
    %2269 = vmatprep.subr.mxu0 %v1344
    %2270 = vmatpush1.msra.mxu0 %v1343
    %2271 = vmatprep.subr.mxu0 %v1336
    %2272 = vmatpush1.msra.mxu0 %v1335
    %2273 = vmatprep.subr.mxu0 %v1328
    %2274 = vmatpush1.msra.mxu0 %v1327
    %2275 = vmatprep.subr.mxu0 %v1320
    %2276 = vmatpush1.msra.mxu0 %v1319
    %2277 = vmatprep.subr.mxu0 %v1312
    %2278 = vmatpush1.msra.mxu0 %v1311
    %2279 = vmatprep.subr.mxu0 %v1560
    %2280 = vmatpush2.msra.mxu0 %v1559
    %2281 = vmatprep.subr.mxu0 %v1552
    %2282 = vmatpush2.msra.mxu0 %v1551
    %2283 = vmatprep.subr.mxu0 %v1544
    %2284 = vmatpush2.msra.mxu0 %v1543
    %2285 = vmatprep.subr.mxu0 %v1536
    %2286 = vmatpush2.msra.mxu0 %v1535
    %2287 = vmatprep.subr.mxu0 %v1528
    %2288 = vmatpush2.msra.mxu0 %v1527
    %2289 = vmatprep.subr.mxu0 %v1520
    %2290 = vmatpush2.msra.mxu0 %v1519
    %2291 = vmatprep.subr.mxu0 %v1512
    %2292 = vmatpush2.msra.mxu0 %v1511
    %2293 = vmatprep.subr.mxu0 %v1504
    %2294 = vmatpush2.msra.mxu0 %v1503
    %2295 = vmatprep.subr.mxu0 %v1496
    %2296 = vmatpush2.msra.mxu0 %v1495
    %2297 = vmatprep.subr.mxu0 %v1488
    %2298 = vmatpush2.msra.mxu0 %v1487
    %2299 = vmatprep.subr.mxu0 %v1480
    %2300 = vmatpush2.msra.mxu0 %v1479
    %2301 = vmatprep.subr.mxu0 %v1472
    %2302 = vmatpush2.msra.mxu0 %v1471
    %2303 = vmatprep.subr.mxu0 %v1464
    %2304 = vmatpush2.msra.mxu0 %v1463
    %2305 = vmatprep.subr.mxu0 %v1456
    %2306 = vmatpush2.msra.mxu0 %v1455
    %2307 = vmatprep.subr.mxu0 %v1448
    %2308 = vmatpush2.msra.mxu0 %v1447
    %2309 = vmatprep.subr.mxu0 %v1440
    %2310 = vmatpush2.msra.mxu0 %v1439
    %2311 = vmatprep.mubr.f32.mxu0 %v791
    %2312 = vmatmul.mubr.f32.gmra.mxu0 %v780
    %v2313 = vpop.f32.mrf.mxu0
    %v2314 = vadd.f32 %v2243, %v2313
    %v2315 = vpop.f32.mrf.mxu0
    %v2316 = vadd.f32 %v2245, %v2315
    %2317 = vdwg.mxu0
    %2318 = vmatprep.subr.mxu0 %v1688
    %2319 = vmatpush1.msra.mxu0 %v1687
    %2320 = vmatprep.subr.mxu0 %v1680
    %2321 = vmatpush1.msra.mxu0 %v1679
    %2322 = vmatprep.subr.mxu0 %v1672
    %2323 = vmatpush1.msra.mxu0 %v1671
    %2324 = vmatprep.subr.mxu0 %v1664
    %2325 = vmatpush1.msra.mxu0 %v1663
    %2326 = vmatprep.subr.mxu0 %v1656
    %2327 = vmatpush1.msra.mxu0 %v1655
    %2328 = vmatprep.subr.mxu0 %v1648
    %2329 = vmatpush1.msra.mxu0 %v1647
    %2330 = vmatprep.subr.mxu0 %v1640
    %2331 = vmatpush1.msra.mxu0 %v1639
    %2332 = vmatprep.subr.mxu0 %v1632
    %2333 = vmatpush1.msra.mxu0 %v1631
    %2334 = vmatprep.subr.mxu0 %v1624
    %2335 = vmatpush1.msra.mxu0 %v1623
    %2336 = vmatprep.subr.mxu0 %v1616
    %2337 = vmatpush1.msra.mxu0 %v1615
    %2338 = vmatprep.subr.mxu0 %v1608
    %2339 = vmatpush1.msra.mxu0 %v1607
    %2340 = vmatprep.subr.mxu0 %v1600
    %2341 = vmatpush1.msra.mxu0 %v1599
    %2342 = vmatprep.subr.mxu0 %v1592
    %2343 = vmatpush1.msra.mxu0 %v1591
    %2344 = vmatprep.subr.mxu0 %v1584
    %2345 = vmatpush1.msra.mxu0 %v1583
    %2346 = vmatprep.subr.mxu0 %v1576
    %2347 = vmatpush1.msra.mxu0 %v1575
    %2348 = vmatprep.subr.mxu0 %v1568
    %2349 = vmatpush1.msra.mxu0 %v1567
    %2350 = vmatprep.subr.mxu0 %v1816
    %2351 = vmatpush2.msra.mxu0 %v1815
    %2352 = vmatprep.subr.mxu0 %v1808
    %2353 = vmatpush2.msra.mxu0 %v1807
    %2354 = vmatprep.subr.mxu0 %v1800
    %2355 = vmatpush2.msra.mxu0 %v1799
    %2356 = vmatprep.subr.mxu0 %v1792
    %2357 = vmatpush2.msra.mxu0 %v1791
    %2358 = vmatprep.subr.mxu0 %v1784
    %2359 = vmatpush2.msra.mxu0 %v1783
    %2360 = vmatprep.subr.mxu0 %v1776
    %2361 = vmatpush2.msra.mxu0 %v1775
    %2362 = vmatprep.subr.mxu0 %v1768
    %2363 = vmatpush2.msra.mxu0 %v1767
    %2364 = vmatprep.subr.mxu0 %v1760
    %2365 = vmatpush2.msra.mxu0 %v1759
    %2366 = vmatprep.subr.mxu0 %v1752
    %2367 = vmatpush2.msra.mxu0 %v1751
    %2368 = vmatprep.subr.mxu0 %v1744
    %2369 = vmatpush2.msra.mxu0 %v1743
    %2370 = vmatprep.subr.mxu0 %v1736
    %2371 = vmatpush2.msra.mxu0 %v1735
    %2372 = vmatprep.subr.mxu0 %v1728
    %2373 = vmatpush2.msra.mxu0 %v1727
    %2374 = vmatprep.subr.mxu0 %v1720
    %2375 = vmatpush2.msra.mxu0 %v1719
    %2376 = vmatprep.subr.mxu0 %v1712
    %2377 = vmatpush2.msra.mxu0 %v1711
    %2378 = vmatprep.subr.mxu0 %v1704
    %2379 = vmatpush2.msra.mxu0 %v1703
    %2380 = vmatprep.subr.mxu0 %v1696
    %2381 = vmatpush2.msra.mxu0 %v1695
    %2382 = vmatprep.mubr.f32.mxu0 %v795
    %2383 = vmatmul.mubr.f32.gmra.mxu0 %v793
    %v2384 = vpop.f32.mrf.mxu0
    %v2385 = vadd.f32 %v2314, %v2384
    %v2386 = vpop.f32.mrf.mxu0
    %v2387 = vadd.f32 %v2316, %v2386
    %2388 = vdwg.mxu0
    %2389 = vmatprep.subr.mxu0 %v922
    %2390 = vmatpush1.msra.mxu0 %v921
    %2391 = vmatprep.subr.mxu0 %v914
    %2392 = vmatpush1.msra.mxu0 %v913
    %2393 = vmatprep.subr.mxu0 %v906
    %2394 = vmatpush1.msra.mxu0 %v905
    %2395 = vmatprep.subr.mxu0 %v898
    %2396 = vmatpush1.msra.mxu0 %v897
    %2397 = vmatprep.subr.mxu0 %v890
    %2398 = vmatpush1.msra.mxu0 %v889
    %2399 = vmatprep.subr.mxu0 %v882
    %2400 = vmatpush1.msra.mxu0 %v881
    %2401 = vmatprep.subr.mxu0 %v874
    %2402 = vmatpush1.msra.mxu0 %v873
    %2403 = vmatprep.subr.mxu0 %v866
    %2404 = vmatpush1.msra.mxu0 %v865
    %2405 = vmatprep.subr.mxu0 %v858
    %2406 = vmatpush1.msra.mxu0 %v857
    %2407 = vmatprep.subr.mxu0 %v850
    %2408 = vmatpush1.msra.mxu0 %v849
    %2409 = vmatprep.subr.mxu0 %v842
    %2410 = vmatpush1.msra.mxu0 %v841
    %2411 = vmatprep.subr.mxu0 %v834
    %2412 = vmatpush1.msra.mxu0 %v833
    %2413 = vmatprep.subr.mxu0 %v826
    %2414 = vmatpush1.msra.mxu0 %v825
    %2415 = vmatprep.subr.mxu0 %v818
    %2416 = vmatpush1.msra.mxu0 %v817
    %2417 = vmatprep.subr.mxu0 %v810
    %2418 = vmatpush1.msra.mxu0 %v809
    %2419 = vmatprep.subr.mxu0 %v802
    %2420 = vmatpush1.msra.mxu0 %v801
    %2421 = vmatprep.subr.mxu0 %v1050
    %2422 = vmatpush2.msra.mxu0 %v1049
    %2423 = vmatprep.subr.mxu0 %v1042
    %2424 = vmatpush2.msra.mxu0 %v1041
    %2425 = vmatprep.subr.mxu0 %v1034
    %2426 = vmatpush2.msra.mxu0 %v1033
    %2427 = vmatprep.subr.mxu0 %v1026
    %2428 = vmatpush2.msra.mxu0 %v1025
    %2429 = vmatprep.subr.mxu0 %v1018
    %2430 = vmatpush2.msra.mxu0 %v1017
    %2431 = vmatprep.subr.mxu0 %v1010
    %2432 = vmatpush2.msra.mxu0 %v1009
    %2433 = vmatprep.subr.mxu0 %v1002
    %2434 = vmatpush2.msra.mxu0 %v1001
    %2435 = vmatprep.subr.mxu0 %v994
    %2436 = vmatpush2.msra.mxu0 %v993
    %2437 = vmatprep.subr.mxu0 %v986
    %2438 = vmatpush2.msra.mxu0 %v985
    %2439 = vmatprep.subr.mxu0 %v978
    %2440 = vmatpush2.msra.mxu0 %v977
    %2441 = vmatprep.subr.mxu0 %v970
    %2442 = vmatpush2.msra.mxu0 %v969
    %2443 = vmatprep.subr.mxu0 %v962
    %2444 = vmatpush2.msra.mxu0 %v961
    %2445 = vmatprep.subr.mxu0 %v954
    %2446 = vmatpush2.msra.mxu0 %v953
    %2447 = vmatprep.subr.mxu0 %v946
    %2448 = vmatpush2.msra.mxu0 %v945
    %2449 = vmatprep.subr.mxu0 %v938
    %2450 = vmatpush2.msra.mxu0 %v937
    %2451 = vmatprep.subr.mxu0 %v930
    %2452 = vmatpush2.msra.mxu0 %v929
    %2453 = vmatprep.mubr.f32.mxu0 %v784
    %2454 = vmatmul.mubr.f32.gmra.mxu0 %v775
    %v2455 = vpop.f32.mrf.mxu0
    %v2456 = vadd.f32 0.0, %v2455
    %v2457 = vpop.f32.mrf.mxu0
    %v2458 = vadd.f32 0.0, %v2457
    %2459 = vdwg.mxu0
    %2460 = vmatprep.subr.mxu0 %v1178
    %2461 = vmatpush1.msra.mxu0 %v1177
    %2462 = vmatprep.subr.mxu0 %v1170
    %2463 = vmatpush1.msra.mxu0 %v1169
    %2464 = vmatprep.subr.mxu0 %v1162
    %2465 = vmatpush1.msra.mxu0 %v1161
    %2466 = vmatprep.subr.mxu0 %v1154
    %2467 = vmatpush1.msra.mxu0 %v1153
    %2468 = vmatprep.subr.mxu0 %v1146
    %2469 = vmatpush1.msra.mxu0 %v1145
    %2470 = vmatprep.subr.mxu0 %v1138
    %2471 = vmatpush1.msra.mxu0 %v1137
    %2472 = vmatprep.subr.mxu0 %v1130
    %2473 = vmatpush1.msra.mxu0 %v1129
    %2474 = vmatprep.subr.mxu0 %v1122
    %2475 = vmatpush1.msra.mxu0 %v1121
    %2476 = vmatprep.subr.mxu0 %v1114
    %2477 = vmatpush1.msra.mxu0 %v1113
    %2478 = vmatprep.subr.mxu0 %v1106
    %2479 = vmatpush1.msra.mxu0 %v1105
    %2480 = vmatprep.subr.mxu0 %v1098
    %2481 = vmatpush1.msra.mxu0 %v1097
    %2482 = vmatprep.subr.mxu0 %v1090
    %2483 = vmatpush1.msra.mxu0 %v1089
    %2484 = vmatprep.subr.mxu0 %v1082
    %2485 = vmatpush1.msra.mxu0 %v1081
    %2486 = vmatprep.subr.mxu0 %v1074
    %2487 = vmatpush1.msra.mxu0 %v1073
    %2488 = vmatprep.subr.mxu0 %v1066
    %2489 = vmatpush1.msra.mxu0 %v1065
    %2490 = vmatprep.subr.mxu0 %v1058
    %2491 = vmatpush1.msra.mxu0 %v1057
    %2492 = vmatprep.subr.mxu0 %v1306
    %2493 = vmatpush2.msra.mxu0 %v1305
    %2494 = vmatprep.subr.mxu0 %v1298
    %2495 = vmatpush2.msra.mxu0 %v1297
    %2496 = vmatprep.subr.mxu0 %v1290
    %2497 = vmatpush2.msra.mxu0 %v1289
    %2498 = vmatprep.subr.mxu0 %v1282
    %2499 = vmatpush2.msra.mxu0 %v1281
    %2500 = vmatprep.subr.mxu0 %v1274
    %2501 = vmatpush2.msra.mxu0 %v1273
    %2502 = vmatprep.subr.mxu0 %v1266
    %2503 = vmatpush2.msra.mxu0 %v1265
    %2504 = vmatprep.subr.mxu0 %v1258
    %2505 = vmatpush2.msra.mxu0 %v1257
    %2506 = vmatprep.subr.mxu0 %v1250
    %2507 = vmatpush2.msra.mxu0 %v1249
    %2508 = vmatprep.subr.mxu0 %v1242
    %2509 = vmatpush2.msra.mxu0 %v1241
    %2510 = vmatprep.subr.mxu0 %v1234
    %2511 = vmatpush2.msra.mxu0 %v1233
    %2512 = vmatprep.subr.mxu0 %v1226
    %2513 = vmatpush2.msra.mxu0 %v1225
    %2514 = vmatprep.subr.mxu0 %v1218
    %2515 = vmatpush2.msra.mxu0 %v1217
    %2516 = vmatprep.subr.mxu0 %v1210
    %2517 = vmatpush2.msra.mxu0 %v1209
    %2518 = vmatprep.subr.mxu0 %v1202
    %2519 = vmatpush2.msra.mxu0 %v1201
    %2520 = vmatprep.subr.mxu0 %v1194
    %2521 = vmatpush2.msra.mxu0 %v1193
    %2522 = vmatprep.subr.mxu0 %v1186
    %2523 = vmatpush2.msra.mxu0 %v1185
    %2524 = vmatprep.mubr.f32.mxu0 %v788
    %2525 = vmatmul.mubr.f32.gmra.mxu0 %v786
    %v2526 = vpop.f32.mrf.mxu0
    %v2527 = vadd.f32 %v2456, %v2526
    %v2528 = vpop.f32.mrf.mxu0
    %v2529 = vadd.f32 %v2458, %v2528
    %2530 = vdwg.mxu0
    %2531 = vmatprep.subr.mxu0 %v1434
    %2532 = vmatpush1.msra.mxu0 %v1433
    %2533 = vmatprep.subr.mxu0 %v1426
    %2534 = vmatpush1.msra.mxu0 %v1425
    %2535 = vmatprep.subr.mxu0 %v1418
    %2536 = vmatpush1.msra.mxu0 %v1417
    %2537 = vmatprep.subr.mxu0 %v1410
    %2538 = vmatpush1.msra.mxu0 %v1409
    %2539 = vmatprep.subr.mxu0 %v1402
    %2540 = vmatpush1.msra.mxu0 %v1401
    %2541 = vmatprep.subr.mxu0 %v1394
    %2542 = vmatpush1.msra.mxu0 %v1393
    %2543 = vmatprep.subr.mxu0 %v1386
    %2544 = vmatpush1.msra.mxu0 %v1385
    %2545 = vmatprep.subr.mxu0 %v1378
    %2546 = vmatpush1.msra.mxu0 %v1377
    %2547 = vmatprep.subr.mxu0 %v1370
    %2548 = vmatpush1.msra.mxu0 %v1369
    %2549 = vmatprep.subr.mxu0 %v1362
    %2550 = vmatpush1.msra.mxu0 %v1361
    %2551 = vmatprep.subr.mxu0 %v1354
    %2552 = vmatpush1.msra.mxu0 %v1353
    %2553 = vmatprep.subr.mxu0 %v1346
    %2554 = vmatpush1.msra.mxu0 %v1345
    %2555 = vmatprep.subr.mxu0 %v1338
    %2556 = vmatpush1.msra.mxu0 %v1337
    %2557 = vmatprep.subr.mxu0 %v1330
    %2558 = vmatpush1.msra.mxu0 %v1329
    %2559 = vmatprep.subr.mxu0 %v1322
    %2560 = vmatpush1.msra.mxu0 %v1321
    %2561 = vmatprep.subr.mxu0 %v1314
    %2562 = vmatpush1.msra.mxu0 %v1313
    %2563 = vmatprep.subr.mxu0 %v1562
    %2564 = vmatpush2.msra.mxu0 %v1561
    %2565 = vmatprep.subr.mxu0 %v1554
    %2566 = vmatpush2.msra.mxu0 %v1553
    %2567 = vmatprep.subr.mxu0 %v1546
    %2568 = vmatpush2.msra.mxu0 %v1545
    %2569 = vmatprep.subr.mxu0 %v1538
    %2570 = vmatpush2.msra.mxu0 %v1537
    %2571 = vmatprep.subr.mxu0 %v1530
    %2572 = vmatpush2.msra.mxu0 %v1529
    %2573 = vmatprep.subr.mxu0 %v1522
    %2574 = vmatpush2.msra.mxu0 %v1521
    %2575 = vmatprep.subr.mxu0 %v1514
    %2576 = vmatpush2.msra.mxu0 %v1513
    %2577 = vmatprep.subr.mxu0 %v1506
    %2578 = vmatpush2.msra.mxu0 %v1505
    %2579 = vmatprep.subr.mxu0 %v1498
    %2580 = vmatpush2.msra.mxu0 %v1497
    %2581 = vmatprep.subr.mxu0 %v1490
    %2582 = vmatpush2.msra.mxu0 %v1489
    %2583 = vmatprep.subr.mxu0 %v1482
    %2584 = vmatpush2.msra.mxu0 %v1481
    %2585 = vmatprep.subr.mxu0 %v1474
    %2586 = vmatpush2.msra.mxu0 %v1473
    %2587 = vmatprep.subr.mxu0 %v1466
    %2588 = vmatpush2.msra.mxu0 %v1465
    %2589 = vmatprep.subr.mxu0 %v1458
    %2590 = vmatpush2.msra.mxu0 %v1457
    %2591 = vmatprep.subr.mxu0 %v1450
    %2592 = vmatpush2.msra.mxu0 %v1449
    %2593 = vmatprep.subr.mxu0 %v1442
    %2594 = vmatpush2.msra.mxu0 %v1441
    %2595 = vmatprep.mubr.f32.mxu0 %v791
    %2596 = vmatmul.mubr.f32.gmra.mxu0 %v780
    %v2597 = vpop.f32.mrf.mxu0
    %v2598 = vadd.f32 %v2527, %v2597
    %v2599 = vpop.f32.mrf.mxu0
    %v2600 = vadd.f32 %v2529, %v2599
    %2601 = vdwg.mxu0
    %2602 = vmatprep.subr.mxu0 %v1690
    %2603 = vmatpush1.msra.mxu0 %v1689
    %2604 = vmatprep.subr.mxu0 %v1682
    %2605 = vmatpush1.msra.mxu0 %v1681
    %2606 = vmatprep.subr.mxu0 %v1674
    %2607 = vmatpush1.msra.mxu0 %v1673
    %2608 = vmatprep.subr.mxu0 %v1666
    %2609 = vmatpush1.msra.mxu0 %v1665
    %2610 = vmatprep.subr.mxu0 %v1658
    %2611 = vmatpush1.msra.mxu0 %v1657
    %2612 = vmatprep.subr.mxu0 %v1650
    %2613 = vmatpush1.msra.mxu0 %v1649
    %2614 = vmatprep.subr.mxu0 %v1642
    %2615 = vmatpush1.msra.mxu0 %v1641
    %2616 = vmatprep.subr.mxu0 %v1634
    %2617 = vmatpush1.msra.mxu0 %v1633
    %2618 = vmatprep.subr.mxu0 %v1626
    %2619 = vmatpush1.msra.mxu0 %v1625
    %2620 = vmatprep.subr.mxu0 %v1618
    %2621 = vmatpush1.msra.mxu0 %v1617
    %2622 = vmatprep.subr.mxu0 %v1610
    %2623 = vmatpush1.msra.mxu0 %v1609
    %2624 = vmatprep.subr.mxu0 %v1602
    %2625 = vmatpush1.msra.mxu0 %v1601
    %2626 = vmatprep.subr.mxu0 %v1594
    %2627 = vmatpush1.msra.mxu0 %v1593
    %2628 = vmatprep.subr.mxu0 %v1586
    %2629 = vmatpush1.msra.mxu0 %v1585
    %2630 = vmatprep.subr.mxu0 %v1578
    %2631 = vmatpush1.msra.mxu0 %v1577
    %2632 = vmatprep.subr.mxu0 %v1570
    %2633 = vmatpush1.msra.mxu0 %v1569
    %2634 = vmatprep.subr.mxu0 %v1818
    %2635 = vmatpush2.msra.mxu0 %v1817
    %2636 = vmatprep.subr.mxu0 %v1810
    %2637 = vmatpush2.msra.mxu0 %v1809
    %2638 = vmatprep.subr.mxu0 %v1802
    %2639 = vmatpush2.msra.mxu0 %v1801
    %2640 = vmatprep.subr.mxu0 %v1794
    %2641 = vmatpush2.msra.mxu0 %v1793
    %2642 = vmatprep.subr.mxu0 %v1786
    %2643 = vmatpush2.msra.mxu0 %v1785
    %2644 = vmatprep.subr.mxu0 %v1778
    %2645 = vmatpush2.msra.mxu0 %v1777
    %2646 = vmatprep.subr.mxu0 %v1770
    %2647 = vmatpush2.msra.mxu0 %v1769
    %2648 = vmatprep.subr.mxu0 %v1762
    %2649 = vmatpush2.msra.mxu0 %v1761
    %2650 = vmatprep.subr.mxu0 %v1754
    %2651 = vmatpush2.msra.mxu0 %v1753
    %2652 = vmatprep.subr.mxu0 %v1746
    %2653 = vmatpush2.msra.mxu0 %v1745
    %2654 = vmatprep.subr.mxu0 %v1738
    %2655 = vmatpush2.msra.mxu0 %v1737
    %2656 = vmatprep.subr.mxu0 %v1730
    %2657 = vmatpush2.msra.mxu0 %v1729
    %2658 = vmatprep.subr.mxu0 %v1722
    %2659 = vmatpush2.msra.mxu0 %v1721
    %2660 = vmatprep.subr.mxu0 %v1714
    %2661 = vmatpush2.msra.mxu0 %v1713
    %2662 = vmatprep.subr.mxu0 %v1706
    %2663 = vmatpush2.msra.mxu0 %v1705
    %2664 = vmatprep.subr.mxu0 %v1698
    %2665 = vmatpush2.msra.mxu0 %v1697
    %2666 = vmatprep.mubr.f32.mxu0 %v795
    %2667 = vmatmul.mubr.f32.gmra.mxu0 %v793
    %v2668 = vpop.f32.mrf.mxu0
    %v2669 = vadd.f32 %v2598, %v2668
    %v2670 = vpop.f32.mrf.mxu0
    %v2671 = vadd.f32 %v2600, %v2670
    %2672 = vdwg.mxu0
    %2673 = vmatprep.subr.mxu0 %v924
    %2674 = vmatpush1.msra.mxu0 %v923
    %2675 = vmatprep.subr.mxu0 %v916
    %2676 = vmatpush1.msra.mxu0 %v915
    %2677 = vmatprep.subr.mxu0 %v908
    %2678 = vmatpush1.msra.mxu0 %v907
    %2679 = vmatprep.subr.mxu0 %v900
    %2680 = vmatpush1.msra.mxu0 %v899
    %2681 = vmatprep.subr.mxu0 %v892
    %2682 = vmatpush1.msra.mxu0 %v891
    %2683 = vmatprep.subr.mxu0 %v884
    %2684 = vmatpush1.msra.mxu0 %v883
    %2685 = vmatprep.subr.mxu0 %v876
    %2686 = vmatpush1.msra.mxu0 %v875
    %2687 = vmatprep.subr.mxu0 %v868
    %2688 = vmatpush1.msra.mxu0 %v867
    %2689 = vmatprep.subr.mxu0 %v860
    %2690 = vmatpush1.msra.mxu0 %v859
    %2691 = vmatprep.subr.mxu0 %v852
    %2692 = vmatpush1.msra.mxu0 %v851
    %2693 = vmatprep.subr.mxu0 %v844
    %2694 = vmatpush1.msra.mxu0 %v843
    %2695 = vmatprep.subr.mxu0 %v836
    %2696 = vmatpush1.msra.mxu0 %v835
    %2697 = vmatprep.subr.mxu0 %v828
    %2698 = vmatpush1.msra.mxu0 %v827
    %2699 = vmatprep.subr.mxu0 %v820
    %2700 = vmatpush1.msra.mxu0 %v819
    %2701 = vmatprep.subr.mxu0 %v812
    %2702 = vmatpush1.msra.mxu0 %v811
    %2703 = vmatprep.subr.mxu0 %v804
    %2704 = vmatpush1.msra.mxu0 %v803
    %2705 = vmatprep.subr.mxu0 %v1052
    %2706 = vmatpush2.msra.mxu0 %v1051
    %2707 = vmatprep.subr.mxu0 %v1044
    %2708 = vmatpush2.msra.mxu0 %v1043
    %2709 = vmatprep.subr.mxu0 %v1036
    %2710 = vmatpush2.msra.mxu0 %v1035
    %2711 = vmatprep.subr.mxu0 %v1028
    %2712 = vmatpush2.msra.mxu0 %v1027
    %2713 = vmatprep.subr.mxu0 %v1020
    %2714 = vmatpush2.msra.mxu0 %v1019
    %2715 = vmatprep.subr.mxu0 %v1012
    %2716 = vmatpush2.msra.mxu0 %v1011
    %2717 = vmatprep.subr.mxu0 %v1004
    %2718 = vmatpush2.msra.mxu0 %v1003
    %2719 = vmatprep.subr.mxu0 %v996
    %2720 = vmatpush2.msra.mxu0 %v995
    %2721 = vmatprep.subr.mxu0 %v988
    %2722 = vmatpush2.msra.mxu0 %v987
    %2723 = vmatprep.subr.mxu0 %v980
    %2724 = vmatpush2.msra.mxu0 %v979
    %2725 = vmatprep.subr.mxu0 %v972
    %2726 = vmatpush2.msra.mxu0 %v971
    %2727 = vmatprep.subr.mxu0 %v964
    %2728 = vmatpush2.msra.mxu0 %v963
    %2729 = vmatprep.subr.mxu0 %v956
    %2730 = vmatpush2.msra.mxu0 %v955
    %2731 = vmatprep.subr.mxu0 %v948
    %2732 = vmatpush2.msra.mxu0 %v947
    %2733 = vmatprep.subr.mxu0 %v940
    %2734 = vmatpush2.msra.mxu0 %v939
    %2735 = vmatprep.subr.mxu0 %v932
    %2736 = vmatpush2.msra.mxu0 %v931
    %2737 = vmatprep.mubr.f32.mxu0 %v784
    %2738 = vmatmul.mubr.f32.gmra.mxu0 %v775
    %v2739 = vpop.f32.mrf.mxu0
    %v2740 = vadd.f32 0.0, %v2739
    %v2741 = vpop.f32.mrf.mxu0
    %v2742 = vadd.f32 0.0, %v2741
    %2743 = vdwg.mxu0
    %2744 = vmatprep.subr.mxu0 %v1180
    %2745 = vmatpush1.msra.mxu0 %v1179
    %2746 = vmatprep.subr.mxu0 %v1172
    %2747 = vmatpush1.msra.mxu0 %v1171
    %2748 = vmatprep.subr.mxu0 %v1164
    %2749 = vmatpush1.msra.mxu0 %v1163
    %2750 = vmatprep.subr.mxu0 %v1156
    %2751 = vmatpush1.msra.mxu0 %v1155
    %2752 = vmatprep.subr.mxu0 %v1148
    %2753 = vmatpush1.msra.mxu0 %v1147
    %2754 = vmatprep.subr.mxu0 %v1140
    %2755 = vmatpush1.msra.mxu0 %v1139
    %2756 = vmatprep.subr.mxu0 %v1132
    %2757 = vmatpush1.msra.mxu0 %v1131
    %2758 = vmatprep.subr.mxu0 %v1124
    %2759 = vmatpush1.msra.mxu0 %v1123
    %2760 = vmatprep.subr.mxu0 %v1116
    %2761 = vmatpush1.msra.mxu0 %v1115
    %2762 = vmatprep.subr.mxu0 %v1108
    %2763 = vmatpush1.msra.mxu0 %v1107
    %2764 = vmatprep.subr.mxu0 %v1100
    %2765 = vmatpush1.msra.mxu0 %v1099
    %2766 = vmatprep.subr.mxu0 %v1092
    %2767 = vmatpush1.msra.mxu0 %v1091
    %2768 = vmatprep.subr.mxu0 %v1084
    %2769 = vmatpush1.msra.mxu0 %v1083
    %2770 = vmatprep.subr.mxu0 %v1076
    %2771 = vmatpush1.msra.mxu0 %v1075
    %2772 = vmatprep.subr.mxu0 %v1068
    %2773 = vmatpush1.msra.mxu0 %v1067
    %2774 = vmatprep.subr.mxu0 %v1060
    %2775 = vmatpush1.msra.mxu0 %v1059
    %2776 = vmatprep.subr.mxu0 %v1308
    %2777 = vmatpush2.msra.mxu0 %v1307
    %2778 = vmatprep.subr.mxu0 %v1300
    %2779 = vmatpush2.msra.mxu0 %v1299
    %2780 = vmatprep.subr.mxu0 %v1292
    %2781 = vmatpush2.msra.mxu0 %v1291
    %2782 = vmatprep.subr.mxu0 %v1284
    %2783 = vmatpush2.msra.mxu0 %v1283
    %2784 = vmatprep.subr.mxu0 %v1276
    %2785 = vmatpush2.msra.mxu0 %v1275
    %2786 = vmatprep.subr.mxu0 %v1268
    %2787 = vmatpush2.msra.mxu0 %v1267
    %2788 = vmatprep.subr.mxu0 %v1260
    %2789 = vmatpush2.msra.mxu0 %v1259
    %2790 = vmatprep.subr.mxu0 %v1252
    %2791 = vmatpush2.msra.mxu0 %v1251
    %2792 = vmatprep.subr.mxu0 %v1244
    %2793 = vmatpush2.msra.mxu0 %v1243
    %2794 = vmatprep.subr.mxu0 %v1236
    %2795 = vmatpush2.msra.mxu0 %v1235
    %2796 = vmatprep.subr.mxu0 %v1228
    %2797 = vmatpush2.msra.mxu0 %v1227
    %2798 = vmatprep.subr.mxu0 %v1220
    %2799 = vmatpush2.msra.mxu0 %v1219
    %2800 = vmatprep.subr.mxu0 %v1212
    %2801 = vmatpush2.msra.mxu0 %v1211
    %2802 = vmatprep.subr.mxu0 %v1204
    %2803 = vmatpush2.msra.mxu0 %v1203
    %2804 = vmatprep.subr.mxu0 %v1196
    %2805 = vmatpush2.msra.mxu0 %v1195
    %2806 = vmatprep.subr.mxu0 %v1188
    %2807 = vmatpush2.msra.mxu0 %v1187
    %2808 = vmatprep.mubr.f32.mxu0 %v788
    %2809 = vmatmul.mubr.f32.gmra.mxu0 %v786
    %v2810 = vpop.f32.mrf.mxu0
    %v2811 = vadd.f32 %v2740, %v2810
    %v2812 = vpop.f32.mrf.mxu0
    %v2813 = vadd.f32 %v2742, %v2812
    %2814 = vdwg.mxu0
    %2815 = vmatprep.subr.mxu0 %v1436
    %2816 = vmatpush1.msra.mxu0 %v1435
    %2817 = vmatprep.subr.mxu0 %v1428
    %2818 = vmatpush1.msra.mxu0 %v1427
    %2819 = vmatprep.subr.mxu0 %v1420
    %2820 = vmatpush1.msra.mxu0 %v1419
    %2821 = vmatprep.subr.mxu0 %v1412
    %2822 = vmatpush1.msra.mxu0 %v1411
    %2823 = vmatprep.subr.mxu0 %v1404
    %2824 = vmatpush1.msra.mxu0 %v1403
    %2825 = vmatprep.subr.mxu0 %v1396
    %2826 = vmatpush1.msra.mxu0 %v1395
    %2827 = vmatprep.subr.mxu0 %v1388
    %2828 = vmatpush1.msra.mxu0 %v1387
    %2829 = vmatprep.subr.mxu0 %v1380
    %2830 = vmatpush1.msra.mxu0 %v1379
    %2831 = vmatprep.subr.mxu0 %v1372
    %2832 = vmatpush1.msra.mxu0 %v1371
    %2833 = vmatprep.subr.mxu0 %v1364
    %2834 = vmatpush1.msra.mxu0 %v1363
    %2835 = vmatprep.subr.mxu0 %v1356
    %2836 = vmatpush1.msra.mxu0 %v1355
    %2837 = vmatprep.subr.mxu0 %v1348
    %2838 = vmatpush1.msra.mxu0 %v1347
    %2839 = vmatprep.subr.mxu0 %v1340
    %2840 = vmatpush1.msra.mxu0 %v1339
    %2841 = vmatprep.subr.mxu0 %v1332
    %2842 = vmatpush1.msra.mxu0 %v1331
    %2843 = vmatprep.subr.mxu0 %v1324
    %2844 = vmatpush1.msra.mxu0 %v1323
    %2845 = vmatprep.subr.mxu0 %v1316
    %2846 = vmatpush1.msra.mxu0 %v1315
    %2847 = vmatprep.subr.mxu0 %v1564
    %2848 = vmatpush2.msra.mxu0 %v1563
    %2849 = vmatprep.subr.mxu0 %v1556
    %2850 = vmatpush2.msra.mxu0 %v1555
    %2851 = vmatprep.subr.mxu0 %v1548
    %2852 = vmatpush2.msra.mxu0 %v1547
    %2853 = vmatprep.subr.mxu0 %v1540
    %2854 = vmatpush2.msra.mxu0 %v1539
    %2855 = vmatprep.subr.mxu0 %v1532
    %2856 = vmatpush2.msra.mxu0 %v1531
    %2857 = vmatprep.subr.mxu0 %v1524
    %2858 = vmatpush2.msra.mxu0 %v1523
    %2859 = vmatprep.subr.mxu0 %v1516
    %2860 = vmatpush2.msra.mxu0 %v1515
    %2861 = vmatprep.subr.mxu0 %v1508
    %2862 = vmatpush2.msra.mxu0 %v1507
    %2863 = vmatprep.subr.mxu0 %v1500
    %2864 = vmatpush2.msra.mxu0 %v1499
    %2865 = vmatprep.subr.mxu0 %v1492
    %2866 = vmatpush2.msra.mxu0 %v1491
    %2867 = vmatprep.subr.mxu0 %v1484
    %2868 = vmatpush2.msra.mxu0 %v1483
    %2869 = vmatprep.subr.mxu0 %v1476
    %2870 = vmatpush2.msra.mxu0 %v1475
    %2871 = vmatprep.subr.mxu0 %v1468
    %2872 = vmatpush2.msra.mxu0 %v1467
    %2873 = vmatprep.subr.mxu0 %v1460
    %2874 = vmatpush2.msra.mxu0 %v1459
    %2875 = vmatprep.subr.mxu0 %v1452
    %2876 = vmatpush2.msra.mxu0 %v1451
    %2877 = vmatprep.subr.mxu0 %v1444
    %2878 = vmatpush2.msra.mxu0 %v1443
    %2879 = vmatprep.mubr.f32.mxu0 %v791
    %2880 = vmatmul.mubr.f32.gmra.mxu0 %v780
    %v2881 = vpop.f32.mrf.mxu0
    %v2882 = vadd.f32 %v2811, %v2881
    %v2883 = vpop.f32.mrf.mxu0
    %v2884 = vadd.f32 %v2813, %v2883
    %2885 = vdwg.mxu0
    %2886 = vmatprep.subr.mxu0 %v1692
    %2887 = vmatpush1.msra.mxu0 %v1691
    %2888 = vmatprep.subr.mxu0 %v1684
    %2889 = vmatpush1.msra.mxu0 %v1683
    %2890 = vmatprep.subr.mxu0 %v1676
    %2891 = vmatpush1.msra.mxu0 %v1675
    %2892 = vmatprep.subr.mxu0 %v1668
    %2893 = vmatpush1.msra.mxu0 %v1667
    %2894 = vmatprep.subr.mxu0 %v1660
    %2895 = vmatpush1.msra.mxu0 %v1659
    %2896 = vmatprep.subr.mxu0 %v1652
    %2897 = vmatpush1.msra.mxu0 %v1651
    %2898 = vmatprep.subr.mxu0 %v1644
    %2899 = vmatpush1.msra.mxu0 %v1643
    %2900 = vmatprep.subr.mxu0 %v1636
    %2901 = vmatpush1.msra.mxu0 %v1635
    %2902 = vmatprep.subr.mxu0 %v1628
    %2903 = vmatpush1.msra.mxu0 %v1627
    %2904 = vmatprep.subr.mxu0 %v1620
    %2905 = vmatpush1.msra.mxu0 %v1619
    %2906 = vmatprep.subr.mxu0 %v1612
    %2907 = vmatpush1.msra.mxu0 %v1611
    %2908 = vmatprep.subr.mxu0 %v1604
    %2909 = vmatpush1.msra.mxu0 %v1603
    %2910 = vmatprep.subr.mxu0 %v1596
    %2911 = vmatpush1.msra.mxu0 %v1595
    %2912 = vmatprep.subr.mxu0 %v1588
    %2913 = vmatpush1.msra.mxu0 %v1587
    %2914 = vmatprep.subr.mxu0 %v1580
    %2915 = vmatpush1.msra.mxu0 %v1579
    %2916 = vmatprep.subr.mxu0 %v1572
    %2917 = vmatpush1.msra.mxu0 %v1571
    %2918 = vmatprep.subr.mxu0 %v1820
    %2919 = vmatpush2.msra.mxu0 %v1819
    %2920 = vmatprep.subr.mxu0 %v1812
    %2921 = vmatpush2.msra.mxu0 %v1811
    %2922 = vmatprep.subr.mxu0 %v1804
    %2923 = vmatpush2.msra.mxu0 %v1803
    %2924 = vmatprep.subr.mxu0 %v1796
    %2925 = vmatpush2.msra.mxu0 %v1795
    %2926 = vmatprep.subr.mxu0 %v1788
    %2927 = vmatpush2.msra.mxu0 %v1787
    %2928 = vmatprep.subr.mxu0 %v1780
    %2929 = vmatpush2.msra.mxu0 %v1779
    %2930 = vmatprep.subr.mxu0 %v1772
    %2931 = vmatpush2.msra.mxu0 %v1771
    %2932 = vmatprep.subr.mxu0 %v1764
    %2933 = vmatpush2.msra.mxu0 %v1763
    %2934 = vmatprep.subr.mxu0 %v1756
    %2935 = vmatpush2.msra.mxu0 %v1755
    %2936 = vmatprep.subr.mxu0 %v1748
    %2937 = vmatpush2.msra.mxu0 %v1747
    %2938 = vmatprep.subr.mxu0 %v1740
    %2939 = vmatpush2.msra.mxu0 %v1739
    %2940 = vmatprep.subr.mxu0 %v1732
    %2941 = vmatpush2.msra.mxu0 %v1731
    %2942 = vmatprep.subr.mxu0 %v1724
    %2943 = vmatpush2.msra.mxu0 %v1723
    %2944 = vmatprep.subr.mxu0 %v1716
    %2945 = vmatpush2.msra.mxu0 %v1715
    %2946 = vmatprep.subr.mxu0 %v1708
    %2947 = vmatpush2.msra.mxu0 %v1707
    %2948 = vmatprep.subr.mxu0 %v1700
    %2949 = vmatpush2.msra.mxu0 %v1699
    %2950 = vmatprep.mubr.f32.mxu0 %v795
    %2951 = vmatmul.mubr.f32.gmra.mxu0 %v793
    %v2952 = vpop.f32.mrf.mxu0
    %v2953 = vadd.f32 %v2882, %v2952
    %v2954 = vpop.f32.mrf.mxu0
    %v2955 = vadd.f32 %v2884, %v2954
    %2956 = vdwg.mxu0
    %v2958 = vrot.slane %v2103, 6
    %v2961 = vrot.slane %v2385, 4
    %v2964 = vrot.slane %v2387, 2
    %v2967 = vrot.slane %v2671, 6
    %v2970 = vrot.slane %v2953, 4
    %v2973 = vrot.slane %v2955, 2
    %v2975 = vsel %vm448, %v2101, %v2958
    %vm2976 = vcmask 1043456
    %v2977 = vsel %vm2976, %v2975, %v2961
    %vm2978 = vcmask 1045504
    %v2979 = vsel %vm2978, %v2977, %v2964
    %v2980 = vsel %vm448, %v2669, %v2967
    %v2981 = vsel %vm2976, %v2980, %v2970
    %v2982 = vsel %vm2978, %v2981, %v2973
    %v2983 = vld [vmem:[#allocation29] sm:$0xff]
    %v2984 = vld [vmem:[#allocation29 + $0x8] sm:$0xff]
    %v2985 = vld [vmem:[#allocation29 + $0x10] sm:$0xff]
    %v2986 = vld [vmem:[#allocation29 + $0x18] sm:$0xff]
    %v2987 = vld [vmem:[#allocation29 + $0x20] sm:$0xff]
    %v2988 = vld [vmem:[#allocation29 + $0x28] sm:$0xff]
    %v2989 = vld [vmem:[#allocation29 + $0x30] sm:$0xff]
    %v2990 = vld [vmem:[#allocation29 + $0x38] sm:$0xff]
    %v2991 = vld [vmem:[#allocation29 + $0x40] sm:$0xff]
    %v2992 = vld [vmem:[#allocation29 + $0x48] sm:$0xff]
    %v2993 = vld [vmem:[#allocation29 + $0x50] sm:$0xff]
    %v2994 = vld [vmem:[#allocation29 + $0x58] sm:$0xff]
    %v2995 = vld [vmem:[#allocation29 + $0x60] sm:$0xff]
    %v2996 = vld [vmem:[#allocation29 + $0x68] sm:$0xff]
    %v2997 = vld [vmem:[#allocation29 + $0x70] sm:$0xff]
    %v2998 = vld [vmem:[#allocation29 + $0x78] sm:$0xff]
    %v2999 = vld [vmem:[#allocation30] sm:$0x1]
    %v3001 = vlaneseq
    %v3002 = vshrl.u32 %v3001, 7
    %v3003 = vsub.s32 0, %v3002
    %v3004 = vrot.slane %v2999, %v3003
    %3006 = vmatprep.subr.mxu0 0.0
    %3007 = vmatpush1.msra.mxu0 %v2998
    %3008 = vmatprep.subr.mxu0 0.0
    %3009 = vmatpush1.msra.mxu0 %v2997
    %3010 = vmatprep.subr.mxu0 0.0
    %3011 = vmatpush1.msra.mxu0 %v2996
    %3012 = vmatprep.subr.mxu0 0.0
    %3013 = vmatpush1.msra.mxu0 %v2995
    %3014 = vmatprep.subr.mxu0 0.0
    %3015 = vmatpush1.msra.mxu0 %v2994
    %3016 = vmatprep.subr.mxu0 0.0
    %3017 = vmatpush1.msra.mxu0 %v2993
    %3018 = vmatprep.subr.mxu0 0.0
    %3019 = vmatpush1.msra.mxu0 %v2992
    %3020 = vmatprep.subr.mxu0 0.0
    %3021 = vmatpush1.msra.mxu0 %v2991
    %3022 = vmatprep.subr.mxu0 0.0
    %3023 = vmatpush1.msra.mxu0 %v2990
    %3024 = vmatprep.subr.mxu0 0.0
    %3025 = vmatpush1.msra.mxu0 %v2989
    %3026 = vmatprep.subr.mxu0 0.0
    %3027 = vmatpush1.msra.mxu0 %v2988
    %3028 = vmatprep.subr.mxu0 0.0
    %3029 = vmatpush1.msra.mxu0 %v2987
    %3030 = vmatprep.subr.mxu0 0.0
    %3031 = vmatpush1.msra.mxu0 %v2986
    %3032 = vmatprep.subr.mxu0 0.0
    %3033 = vmatpush1.msra.mxu0 %v2985
    %3034 = vmatprep.subr.mxu0 0.0
    %3035 = vmatpush1.msra.mxu0 %v2984
    %3036 = vmatprep.subr.mxu0 0.0
    %3037 = vmatpush1.msra.mxu0 %v2983
    %3038 = vmatprep.subr.mxu0 0.0
    %3039 = vmatpush2.msra.mxu0 0.0
    %3040 = vmatprep.subr.mxu0 0.0
    %3041 = vmatpush2.msra.mxu0 0.0
    %3042 = vmatprep.subr.mxu0 0.0
    %3043 = vmatpush2.msra.mxu0 0.0
    %3044 = vmatprep.subr.mxu0 0.0
    %3045 = vmatpush2.msra.mxu0 0.0
    %3046 = vmatprep.subr.mxu0 0.0
    %3047 = vmatpush2.msra.mxu0 0.0
    %3048 = vmatprep.subr.mxu0 0.0
    %3049 = vmatpush2.msra.mxu0 0.0
    %3050 = vmatprep.subr.mxu0 0.0
    %3051 = vmatpush2.msra.mxu0 0.0
    %3052 = vmatprep.subr.mxu0 0.0
    %3053 = vmatpush2.msra.mxu0 0.0
    %3054 = vmatprep.subr.mxu0 0.0
    %3055 = vmatpush2.msra.mxu0 0.0
    %3056 = vmatprep.subr.mxu0 0.0
    %3057 = vmatpush2.msra.mxu0 0.0
    %3058 = vmatprep.subr.mxu0 0.0
    %3059 = vmatpush2.msra.mxu0 0.0
    %3060 = vmatprep.subr.mxu0 0.0
    %3061 = vmatpush2.msra.mxu0 0.0
    %3062 = vmatprep.subr.mxu0 0.0
    %3063 = vmatpush2.msra.mxu0 0.0
    %3064 = vmatprep.subr.mxu0 0.0
    %3065 = vmatpush2.msra.mxu0 0.0
    %3066 = vmatprep.subr.mxu0 0.0
    %3067 = vmatpush2.msra.mxu0 0.0
    %3068 = vmatprep.subr.mxu0 0.0
    %3069 = vmatpush2.msra.mxu0 0.0
    %3070 = vmatprep.mubr.f32.mxu0 0.0
    %3071 = vmatmul.mubr.f32.gmra.mxu0 %v697
    %v3072 = vpop.f32.mrf.mxu0
    %v3073 = vadd.f32 %v3004, %v3072
    %v3074 = vpop.f32.mrf.mxu0
    %3075 = vmatprep.mubr.f32.mxu0 0.0
    %3076 = vmatmul.mubr.f32.gmra.mxu0 %v698
    %v3077 = vpop.f32.mrf.mxu0
    %v3078 = vadd.f32 %v3004, %v3077
    %v3079 = vpop.f32.mrf.mxu0
    %3080 = vmatprep.mubr.f32.mxu0 0.0
    %3081 = vmatmul.mubr.f32.gmra.mxu0 %v699
    %v3082 = vpop.f32.mrf.mxu0
    %v3083 = vadd.f32 %v3004, %v3082
    %v3084 = vpop.f32.mrf.mxu0
    %3085 = vmatprep.mubr.f32.mxu0 0.0
    %3086 = vmatmul.mubr.f32.gmra.mxu0 %v700
    %v3087 = vpop.f32.mrf.mxu0
    %v3088 = vadd.f32 %v3004, %v3087
    %v3089 = vpop.f32.mrf.mxu0
    %3090 = vdwg.mxu0
    %v3092 = vsel %vm550, %v422, 0
    %v3095 = vsel %vm550, %v423, 0
    %v3098 = vsel %vm550, %v424, 0
    %v3101 = vsel %vm550, %v425, 0
    %3103 = vmatprep.subr.mxu0 0.0
    %3104 = vmatpush1.msra.mxu0 0.0
    %3105 = vmatprep.subr.mxu0 0.0
    %3106 = vmatpush1.msra.mxu0 0.0
    %3107 = vmatprep.subr.mxu0 0.0
    %3108 = vmatpush1.msra.mxu0 0.0
    %3109 = vmatprep.subr.mxu0 0.0
    %3110 = vmatpush1.msra.mxu0 0.0
    %3111 = vmatprep.subr.mxu0 0.0
    %3112 = vmatpush1.msra.mxu0 0.0
    %3113 = vmatprep.subr.mxu0 0.0
    %3114 = vmatpush1.msra.mxu0 0.0
    %3115 = vmatprep.subr.mxu0 0.0
    %3116 = vmatpush1.msra.mxu0 0.0
    %3117 = vmatprep.subr.mxu0 0.0
    %3118 = vmatpush1.msra.mxu0 0.0
    %3119 = vmatprep.subr.mxu0 0.0
    %3120 = vmatpush1.msra.mxu0 0.0
    %3121 = vmatprep.subr.mxu0 0.0
    %3122 = vmatpush1.msra.mxu0 0.0
    %3123 = vmatprep.subr.mxu0 0.0
    %3124 = vmatpush1.msra.mxu0 0.0
    %3125 = vmatprep.subr.mxu0 0.0
    %3126 = vmatpush1.msra.mxu0 0.0
    %3127 = vmatprep.subr.mxu0 0.0
    %3128 = vmatpush1.msra.mxu0 0.0
    %3129 = vmatprep.subr.mxu0 0.0
    %3130 = vmatpush1.msra.mxu0 0.0
    %3131 = vmatprep.subr.mxu0 0.0
    %3132 = vmatpush1.msra.mxu0 %v2982
    %3133 = vmatprep.subr.mxu0 0.0
    %3134 = vmatpush1.msra.mxu0 %v2979
    %3135 = vmatprep.subr.mxu0 0.0
    %3136 = vmatpush2.msra.mxu0 0.0
    %3137 = vmatprep.subr.mxu0 0.0
    %3138 = vmatpush2.msra.mxu0 0.0
    %3139 = vmatprep.subr.mxu0 0.0
    %3140 = vmatpush2.msra.mxu0 0.0
    %3141 = vmatprep.subr.mxu0 0.0
    %3142 = vmatpush2.msra.mxu0 0.0
    %3143 = vmatprep.subr.mxu0 0.0
    %3144 = vmatpush2.msra.mxu0 0.0
    %3145 = vmatprep.subr.mxu0 0.0
    %3146 = vmatpush2.msra.mxu0 0.0
    %3147 = vmatprep.subr.mxu0 0.0
    %3148 = vmatpush2.msra.mxu0 0.0
    %3149 = vmatprep.subr.mxu0 0.0
    %3150 = vmatpush2.msra.mxu0 0.0
    %3151 = vmatprep.subr.mxu0 0.0
    %3152 = vmatpush2.msra.mxu0 0.0
    %3153 = vmatprep.subr.mxu0 0.0
    %3154 = vmatpush2.msra.mxu0 0.0
    %3155 = vmatprep.subr.mxu0 0.0
    %3156 = vmatpush2.msra.mxu0 0.0
    %3157 = vmatprep.subr.mxu0 0.0
    %3158 = vmatpush2.msra.mxu0 0.0
    %3159 = vmatprep.subr.mxu0 0.0
    %3160 = vmatpush2.msra.mxu0 0.0
    %3161 = vmatprep.subr.mxu0 0.0
    %3162 = vmatpush2.msra.mxu0 0.0
    %3163 = vmatprep.subr.mxu0 0.0
    %3164 = vmatpush2.msra.mxu0 0.0
    %3165 = vmatprep.subr.mxu0 0.0
    %3166 = vmatpush2.msra.mxu0 0.0
    %3167 = vmatprep.mubr.f32.mxu0 0.0
    %3168 = vmatmul.mubr.f32.gmra.mxu0 %v3092
    %v3169 = vpop.f32.mrf.mxu0
    %v3170 = vadd.f32 %v3073, %v3169
    %v3171 = vpop.f32.mrf.mxu0
    %3172 = vmatprep.mubr.f32.mxu0 0.0
    %3173 = vmatmul.mubr.f32.gmra.mxu0 %v3095
    %v3174 = vpop.f32.mrf.mxu0
    %v3175 = vadd.f32 %v3078, %v3174
    %v3176 = vpop.f32.mrf.mxu0
    %3177 = vmatprep.mubr.f32.mxu0 0.0
    %3178 = vmatmul.mubr.f32.gmra.mxu0 %v3098
    %v3179 = vpop.f32.mrf.mxu0
    %v3180 = vadd.f32 %v3083, %v3179
    %v3181 = vpop.f32.mrf.mxu0
    %3182 = vmatprep.mubr.f32.mxu0 0.0
    %3183 = vmatmul.mubr.f32.gmra.mxu0 %v3101
    %v3184 = vpop.f32.mrf.mxu0
    %v3185 = vadd.f32 %v3088, %v3184
    %v3186 = vpop.f32.mrf.mxu0
    %3187 = vdwg.mxu0
    %v3188 = vadd.f32 %v3170, %v3175
    %v3189 = vadd.f32 %v3188, %v3180
    %v3190 = vadd.f32 %v3189, %v3185
    %v3191 = vrot.slane %v3190, 4
    %v3192 = vadd.f32 %v3190, %v3191
    %v3193 = vrot.slane %v3192, 2
    %v3194 = vadd.f32 %v3192, %v3193
    %v3195 = vrot.slane %v3194, 1
    %v3196 = vadd.f32 %v3194, %v3195
    %v3197 = vmul.f32 %v3196, 0.03125
    %v3198 = vmul.f32 %v3170, %v3170
    %v3199 = vmul.f32 %v3175, %v3175
    %v3200 = vmul.f32 %v3180, %v3180
    %v3201 = vmul.f32 %v3185, %v3185
    %v3202 = vadd.f32 %v3198, %v3199
    %v3203 = vadd.f32 %v3202, %v3200
    %v3204 = vadd.f32 %v3203, %v3201
    %v3205 = vrot.slane %v3204, 4
    %v3206 = vadd.f32 %v3204, %v3205
    %v3207 = vrot.slane %v3206, 2
    %v3208 = vadd.f32 %v3206, %v3207
    %v3209 = vrot.slane %v3208, 1
    %v3210 = vadd.f32 %v3208, %v3209
    %v3211 = vmul.f32 %v3210, 0.03125
    %v3212 = vmul.f32 %v3197, %v3197
    %v3213 = vsub.f32 %v3211, %v3212
    %v3214 = vadd.f32 %v3213, 1e-05
    %v3215 = vrsqrt.pop %v3214
    %v3216 = vsub.f32 %v3170, %v3197
    %v3217 = vsub.f32 %v3175, %v3197
    %v3218 = vsub.f32 %v3180, %v3197
    %v3219 = vsub.f32 %v3185, %v3197
    %v3220 = vld [vmem:[#allocation14] sm:$0x1]
    %v3221 = vmul.f32 %v3215, %v3220
    %v3222 = vlaneseq
    %v3223 = vshrl.u32 %v3222, 7
    %v3224 = vsub.s32 0, %v3223
    %v3225 = vrot.slane %v3221, %v3224
    %v3226 = vmul.f32 %v3216, %v3225
    %v3227 = vmul.f32 %v3217, %v3225
    %v3228 = vmul.f32 %v3218, %v3225
    %v3229 = vmul.f32 %v3219, %v3225
    %v3230 = vld [vmem:[#allocation15] sm:$0x1]
    %v3232 = vlaneseq
    %v3233 = vshrl.u32 %v3232, 7
    %v3234 = vsub.s32 0, %v3233
    %v3235 = vrot.slane %v3230, %v3234
    %v3237 = vadd.f32 %v3226, %v3235
    %v3238 = vadd.f32 %v3227, %v3235
    %v3239 = vadd.f32 %v3228, %v3235
    %v3240 = vadd.f32 %v3229, %v3235
    %3241 = vmatprep.subr.mxu0 0.0
    %3242 = vmatpush1.msra.mxu0 0.0
    %3243 = vmatprep.subr.mxu0 0.0
    %3244 = vmatpush1.msra.mxu0 0.0
    %3245 = vmatprep.subr.mxu0 0.0
    %3246 = vmatpush1.msra.mxu0 0.0
    %3247 = vmatprep.subr.mxu0 0.0
    %3248 = vmatpush1.msra.mxu0 0.0
    %3249 = vmatprep.subr.mxu0 0.0
    %3250 = vmatpush1.msra.mxu0 0.0
    %3251 = vmatprep.subr.mxu0 0.0
    %3252 = vmatpush1.msra.mxu0 0.0
    %3253 = vmatprep.subr.mxu0 0.0
    %3254 = vmatpush1.msra.mxu0 0.0
    %3255 = vmatprep.subr.mxu0 0.0
    %3256 = vmatpush1.msra.mxu0 0.0
    %3257 = vmatprep.subr.mxu0 0.0
    %3258 = vmatpush1.msra.mxu0 0.0
    %3259 = vmatprep.subr.mxu0 0.0
    %3260 = vmatpush1.msra.mxu0 0.0
    %3261 = vmatprep.subr.mxu0 0.0
    %3262 = vmatpush1.msra.mxu0 0.0
    %3263 = vmatprep.subr.mxu0 0.0
    %3264 = vmatpush1.msra.mxu0 0.0
    %3265 = vmatprep.subr.mxu0 0.0
    %3266 = vmatpush1.msra.mxu0 %v3240
    %3267 = vmatprep.subr.mxu0 0.0
    %3268 = vmatpush1.msra.mxu0 %v3239
    %3269 = vmatprep.subr.mxu0 0.0
    %3270 = vmatpush1.msra.mxu0 %v3238
    %3271 = vmatprep.subr.mxu0 0.0
    %3272 = vmatpush1.msra.mxu0 %v3237
    %3273 = vmatprep.subr.mxu0 0.0
    %3274 = vmatpush2.msra.mxu0 0.0
    %3275 = vmatprep.subr.mxu0 0.0
    %3276 = vmatpush2.msra.mxu0 0.0
    %3277 = vmatprep.subr.mxu0 0.0
    %3278 = vmatpush2.msra.mxu0 0.0
    %3279 = vmatprep.subr.mxu0 0.0
    %3280 = vmatpush2.msra.mxu0 0.0
    %3281 = vmatprep.subr.mxu0 0.0
    %3282 = vmatpush2.msra.mxu0 0.0
    %3283 = vmatprep.subr.mxu0 0.0
    %3284 = vmatpush2.msra.mxu0 0.0
    %3285 = vmatprep.subr.mxu0 0.0
    %3286 = vmatpush2.msra.mxu0 0.0
    %3287 = vmatprep.subr.mxu0 0.0
    %3288 = vmatpush2.msra.mxu0 0.0
    %3289 = vmatprep.subr.mxu0 0.0
    %3290 = vmatpush2.msra.mxu0 0.0
    %3291 = vmatprep.subr.mxu0 0.0
    %3292 = vmatpush2.msra.mxu0 0.0
    %3293 = vmatprep.subr.mxu0 0.0
    %3294 = vmatpush2.msra.mxu0 0.0
    %3295 = vmatprep.subr.mxu0 0.0
    %3296 = vmatpush2.msra.mxu0 0.0
    %3297 = vmatprep.subr.mxu0 0.0
    %3298 = vmatpush2.msra.mxu0 0.0
    %3299 = vmatprep.subr.mxu0 0.0
    %3300 = vmatpush2.msra.mxu0 0.0
    %3301 = vmatprep.subr.mxu0 0.0
    %3302 = vmatpush2.msra.mxu0 0.0
    %3303 = vmatprep.subr.mxu0 0.0
    %3304 = vmatpush2.msra.mxu0 0.0
    %3305 = vmatprep.mubr.f32.mxu0 0.0
    %3306 = vmatmul.mubr.f32.gmra.mxu0 %v703
    %v3307 = vpop.f32.mrf.mxu0
    %v3308 = vadd.f32 0.0, %v3307
    %v3309 = vpop.f32.mrf.mxu0
    %3310 = vmatprep.mubr.f32.mxu0 0.0
    %3311 = vmatmul.mubr.f32.gmra.mxu0 %v706
    %v3312 = vpop.f32.mrf.mxu0
    %v3313 = vadd.f32 0.0, %v3312
    %v3314 = vpop.f32.mrf.mxu0
    %3315 = vdwg.mxu0
    %v3317 = vrot.slane %v3308, 2
    %v3319 = vrot.slane %v3308, 4
    %v3321 = vrot.slane %v3308, 6
    %v3324 = vrot.slane %v3313, 2
    %v3326 = vrot.slane %v3313, 4
    %v3328 = vrot.slane %v3313, 6
    %v3330 = vld [vmem:[#allocation26] sm:$0xff]
    %v3331 = vld [vmem:[#allocation26 + $0x8] sm:$0xff]
    %v3332 = vld [vmem:[#allocation26 + $0x10] sm:$0xff]
    %v3333 = vld [vmem:[#allocation26 + $0x18] sm:$0xff]
    %v3334 = vld [vmem:[#allocation26 + $0x20] sm:$0xff]
    %v3335 = vld [vmem:[#allocation26 + $0x28] sm:$0xff]
    %v3336 = vld [vmem:[#allocation26 + $0x30] sm:$0xff]
    %v3337 = vld [vmem:[#allocation26 + $0x38] sm:$0xff]
    %v3338 = vld [vmem:[#allocation26 + $0x40] sm:$0xff]
    %v3339 = vld [vmem:[#allocation26 + $0x48] sm:$0xff]
    %v3340 = vld [vmem:[#allocation26 + $0x50] sm:$0xff]
    %v3341 = vld [vmem:[#allocation26 + $0x58] sm:$0xff]
    %v3342 = vld [vmem:[#allocation26 + $0x60] sm:$0xff]
    %v3343 = vld [vmem:[#allocation26 + $0x68] sm:$0xff]
    %v3344 = vld [vmem:[#allocation26 + $0x70] sm:$0xff]
    %v3345 = vld [vmem:[#allocation26 + $0x78] sm:$0xff]
    %v3346 = vld [vmem:[#allocation26 + $0x80] sm:$0xff]
    %v3347 = vld [vmem:[#allocation26 + $0x88] sm:$0xff]
    %v3348 = vld [vmem:[#allocation26 + $0x90] sm:$0xff]
    %v3349 = vld [vmem:[#allocation26 + $0x98] sm:$0xff]
    %v3350 = vld [vmem:[#allocation26 + $0xa0] sm:$0xff]
    %v3351 = vld [vmem:[#allocation26 + $0xa8] sm:$0xff]
    %v3352 = vld [vmem:[#allocation26 + $0xb0] sm:$0xff]
    %v3353 = vld [vmem:[#allocation26 + $0xb8] sm:$0xff]
    %v3354 = vld [vmem:[#allocation26 + $0xc0] sm:$0xff]
    %v3355 = vld [vmem:[#allocation26 + $0xc8] sm:$0xff]
    %v3356 = vld [vmem:[#allocation26 + $0xd0] sm:$0xff]
    %v3357 = vld [vmem:[#allocation26 + $0xd8] sm:$0xff]
    %v3358 = vld [vmem:[#allocation26 + $0xe0] sm:$0xff]
    %v3359 = vld [vmem:[#allocation26 + $0xe8] sm:$0xff]
    %v3360 = vld [vmem:[#allocation26 + $0xf0] sm:$0xff]
    %v3361 = vld [vmem:[#allocation26 + $0xf8] sm:$0xff]
    %v3362 = vld [vmem:[#allocation26 + $0x100] sm:$0xff]
    %v3363 = vld [vmem:[#allocation26 + $0x108] sm:$0xff]
    %v3364 = vld [vmem:[#allocation26 + $0x110] sm:$0xff]
    %v3365 = vld [vmem:[#allocation26 + $0x118] sm:$0xff]
    %v3366 = vld [vmem:[#allocation26 + $0x120] sm:$0xff]
    %v3367 = vld [vmem:[#allocation26 + $0x128] sm:$0xff]
    %v3368 = vld [vmem:[#allocation26 + $0x130] sm:$0xff]
    %v3369 = vld [vmem:[#allocation26 + $0x138] sm:$0xff]
    %v3370 = vld [vmem:[#allocation26 + $0x140] sm:$0xff]
    %v3371 = vld [vmem:[#allocation26 + $0x148] sm:$0xff]
    %v3372 = vld [vmem:[#allocation26 + $0x150] sm:$0xff]
    %v3373 = vld [vmem:[#allocation26 + $0x158] sm:$0xff]
    %v3374 = vld [vmem:[#allocation26 + $0x160] sm:$0xff]
    %v3375 = vld [vmem:[#allocation26 + $0x168] sm:$0xff]
    %v3376 = vld [vmem:[#allocation26 + $0x170] sm:$0xff]
    %v3377 = vld [vmem:[#allocation26 + $0x178] sm:$0xff]
    %v3378 = vld [vmem:[#allocation26 + $0x180] sm:$0xff]
    %v3379 = vld [vmem:[#allocation26 + $0x188] sm:$0xff]
    %v3380 = vld [vmem:[#allocation26 + $0x190] sm:$0xff]
    %v3381 = vld [vmem:[#allocation26 + $0x198] sm:$0xff]
    %v3382 = vld [vmem:[#allocation26 + $0x1a0] sm:$0xff]
    %v3383 = vld [vmem:[#allocation26 + $0x1a8] sm:$0xff]
    %v3384 = vld [vmem:[#allocation26 + $0x1b0] sm:$0xff]
    %v3385 = vld [vmem:[#allocation26 + $0x1b8] sm:$0xff]
    %v3386 = vld [vmem:[#allocation26 + $0x1c0] sm:$0xff]
    %v3387 = vld [vmem:[#allocation26 + $0x1c8] sm:$0xff]
    %v3388 = vld [vmem:[#allocation26 + $0x1d0] sm:$0xff]
    %v3389 = vld [vmem:[#allocation26 + $0x1d8] sm:$0xff]
    %v3390 = vld [vmem:[#allocation26 + $0x1e0] sm:$0xff]
    %v3391 = vld [vmem:[#allocation26 + $0x1e8] sm:$0xff]
    %v3392 = vld [vmem:[#allocation26 + $0x1f0] sm:$0xff]
    %v3393 = vld [vmem:[#allocation26 + $0x1f8] sm:$0xff]
    %v3394 = vld [vmem:[#allocation26 + $0x200] sm:$0xff]
    %v3395 = vld [vmem:[#allocation26 + $0x208] sm:$0xff]
    %v3396 = vld [vmem:[#allocation26 + $0x210] sm:$0xff]
    %v3397 = vld [vmem:[#allocation26 + $0x218] sm:$0xff]
    %v3398 = vld [vmem:[#allocation26 + $0x220] sm:$0xff]
    %v3399 = vld [vmem:[#allocation26 + $0x228] sm:$0xff]
    %v3400 = vld [vmem:[#allocation26 + $0x230] sm:$0xff]
    %v3401 = vld [vmem:[#allocation26 + $0x238] sm:$0xff]
    %v3402 = vld [vmem:[#allocation26 + $0x240] sm:$0xff]
    %v3403 = vld [vmem:[#allocation26 + $0x248] sm:$0xff]
    %v3404 = vld [vmem:[#allocation26 + $0x250] sm:$0xff]
    %v3405 = vld [vmem:[#allocation26 + $0x258] sm:$0xff]
    %v3406 = vld [vmem:[#allocation26 + $0x260] sm:$0xff]
    %v3407 = vld [vmem:[#allocation26 + $0x268] sm:$0xff]
    %v3408 = vld [vmem:[#allocation26 + $0x270] sm:$0xff]
    %v3409 = vld [vmem:[#allocation26 + $0x278] sm:$0xff]
    %v3410 = vld [vmem:[#allocation26 + $0x280] sm:$0xff]
    %v3411 = vld [vmem:[#allocation26 + $0x288] sm:$0xff]
    %v3412 = vld [vmem:[#allocation26 + $0x290] sm:$0xff]
    %v3413 = vld [vmem:[#allocation26 + $0x298] sm:$0xff]
    %v3414 = vld [vmem:[#allocation26 + $0x2a0] sm:$0xff]
    %v3415 = vld [vmem:[#allocation26 + $0x2a8] sm:$0xff]
    %v3416 = vld [vmem:[#allocation26 + $0x2b0] sm:$0xff]
    %v3417 = vld [vmem:[#allocation26 + $0x2b8] sm:$0xff]
    %v3418 = vld [vmem:[#allocation26 + $0x2c0] sm:$0xff]
    %v3419 = vld [vmem:[#allocation26 + $0x2c8] sm:$0xff]
    %v3420 = vld [vmem:[#allocation26 + $0x2d0] sm:$0xff]
    %v3421 = vld [vmem:[#allocation26 + $0x2d8] sm:$0xff]
    %v3422 = vld [vmem:[#allocation26 + $0x2e0] sm:$0xff]
    %v3423 = vld [vmem:[#allocation26 + $0x2e8] sm:$0xff]
    %v3424 = vld [vmem:[#allocation26 + $0x2f0] sm:$0xff]
    %v3425 = vld [vmem:[#allocation26 + $0x2f8] sm:$0xff]
    %v3426 = vld [vmem:[#allocation26 + $0x300] sm:$0xff]
    %v3427 = vld [vmem:[#allocation26 + $0x308] sm:$0xff]
    %v3428 = vld [vmem:[#allocation26 + $0x310] sm:$0xff]
    %v3429 = vld [vmem:[#allocation26 + $0x318] sm:$0xff]
    %v3430 = vld [vmem:[#allocation26 + $0x320] sm:$0xff]
    %v3431 = vld [vmem:[#allocation26 + $0x328] sm:$0xff]
    %v3432 = vld [vmem:[#allocation26 + $0x330] sm:$0xff]
    %v3433 = vld [vmem:[#allocation26 + $0x338] sm:$0xff]
    %v3434 = vld [vmem:[#allocation26 + $0x340] sm:$0xff]
    %v3435 = vld [vmem:[#allocation26 + $0x348] sm:$0xff]
    %v3436 = vld [vmem:[#allocation26 + $0x350] sm:$0xff]
    %v3437 = vld [vmem:[#allocation26 + $0x358] sm:$0xff]
    %v3438 = vld [vmem:[#allocation26 + $0x360] sm:$0xff]
    %v3439 = vld [vmem:[#allocation26 + $0x368] sm:$0xff]
    %v3440 = vld [vmem:[#allocation26 + $0x370] sm:$0xff]
    %v3441 = vld [vmem:[#allocation26 + $0x378] sm:$0xff]
    %v3442 = vld [vmem:[#allocation26 + $0x380] sm:$0xff]
    %v3443 = vld [vmem:[#allocation26 + $0x388] sm:$0xff]
    %v3444 = vld [vmem:[#allocation26 + $0x390] sm:$0xff]
    %v3445 = vld [vmem:[#allocation26 + $0x398] sm:$0xff]
    %v3446 = vld [vmem:[#allocation26 + $0x3a0] sm:$0xff]
    %v3447 = vld [vmem:[#allocation26 + $0x3a8] sm:$0xff]
    %v3448 = vld [vmem:[#allocation26 + $0x3b0] sm:$0xff]
    %v3449 = vld [vmem:[#allocation26 + $0x3b8] sm:$0xff]
    %v3450 = vld [vmem:[#allocation26 + $0x3c0] sm:$0xff]
    %v3451 = vld [vmem:[#allocation26 + $0x3c8] sm:$0xff]
    %v3452 = vld [vmem:[#allocation26 + $0x3d0] sm:$0xff]
    %v3453 = vld [vmem:[#allocation26 + $0x3d8] sm:$0xff]
    %v3454 = vld [vmem:[#allocation26 + $0x3e0] sm:$0xff]
    %v3455 = vld [vmem:[#allocation26 + $0x3e8] sm:$0xff]
    %v3456 = vld [vmem:[#allocation26 + $0x3f0] sm:$0xff]
    %v3457 = vld [vmem:[#allocation26 + $0x3f8] sm:$0xff]
    %v3458 = vld [vmem:[#allocation26 + $0x400] sm:$0xff]
    %v3459 = vld [vmem:[#allocation26 + $0x408] sm:$0xff]
    %v3460 = vld [vmem:[#allocation26 + $0x410] sm:$0xff]
    %v3461 = vld [vmem:[#allocation26 + $0x418] sm:$0xff]
    %v3462 = vld [vmem:[#allocation26 + $0x420] sm:$0xff]
    %v3463 = vld [vmem:[#allocation26 + $0x428] sm:$0xff]
    %v3464 = vld [vmem:[#allocation26 + $0x430] sm:$0xff]
    %v3465 = vld [vmem:[#allocation26 + $0x438] sm:$0xff]
    %v3466 = vld [vmem:[#allocation26 + $0x440] sm:$0xff]
    %v3467 = vld [vmem:[#allocation26 + $0x448] sm:$0xff]
    %v3468 = vld [vmem:[#allocation26 + $0x450] sm:$0xff]
    %v3469 = vld [vmem:[#allocation26 + $0x458] sm:$0xff]
    %v3470 = vld [vmem:[#allocation26 + $0x460] sm:$0xff]
    %v3471 = vld [vmem:[#allocation26 + $0x468] sm:$0xff]
    %v3472 = vld [vmem:[#allocation26 + $0x470] sm:$0xff]
    %v3473 = vld [vmem:[#allocation26 + $0x478] sm:$0xff]
    %v3474 = vld [vmem:[#allocation26 + $0x480] sm:$0xff]
    %v3475 = vld [vmem:[#allocation26 + $0x488] sm:$0xff]
    %v3476 = vld [vmem:[#allocation26 + $0x490] sm:$0xff]
    %v3477 = vld [vmem:[#allocation26 + $0x498] sm:$0xff]
    %v3478 = vld [vmem:[#allocation26 + $0x4a0] sm:$0xff]
    %v3479 = vld [vmem:[#allocation26 + $0x4a8] sm:$0xff]
    %v3480 = vld [vmem:[#allocation26 + $0x4b0] sm:$0xff]
    %v3481 = vld [vmem:[#allocation26 + $0x4b8] sm:$0xff]
    %v3482 = vld [vmem:[#allocation26 + $0x4c0] sm:$0xff]
    %v3483 = vld [vmem:[#allocation26 + $0x4c8] sm:$0xff]
    %v3484 = vld [vmem:[#allocation26 + $0x4d0] sm:$0xff]
    %v3485 = vld [vmem:[#allocation26 + $0x4d8] sm:$0xff]
    %v3486 = vld [vmem:[#allocation26 + $0x4e0] sm:$0xff]
    %v3487 = vld [vmem:[#allocation26 + $0x4e8] sm:$0xff]
    %v3488 = vld [vmem:[#allocation26 + $0x4f0] sm:$0xff]
    %v3489 = vld [vmem:[#allocation26 + $0x4f8] sm:$0xff]
    %v3490 = vld [vmem:[#allocation26 + $0x500] sm:$0xff]
    %v3491 = vld [vmem:[#allocation26 + $0x508] sm:$0xff]
    %v3492 = vld [vmem:[#allocation26 + $0x510] sm:$0xff]
    %v3493 = vld [vmem:[#allocation26 + $0x518] sm:$0xff]
    %v3494 = vld [vmem:[#allocation26 + $0x520] sm:$0xff]
    %v3495 = vld [vmem:[#allocation26 + $0x528] sm:$0xff]
    %v3496 = vld [vmem:[#allocation26 + $0x530] sm:$0xff]
    %v3497 = vld [vmem:[#allocation26 + $0x538] sm:$0xff]
    %v3498 = vld [vmem:[#allocation26 + $0x540] sm:$0xff]
    %v3499 = vld [vmem:[#allocation26 + $0x548] sm:$0xff]
    %v3500 = vld [vmem:[#allocation26 + $0x550] sm:$0xff]
    %v3501 = vld [vmem:[#allocation26 + $0x558] sm:$0xff]
    %v3502 = vld [vmem:[#allocation26 + $0x560] sm:$0xff]
    %v3503 = vld [vmem:[#allocation26 + $0x568] sm:$0xff]
    %v3504 = vld [vmem:[#allocation26 + $0x570] sm:$0xff]
    %v3505 = vld [vmem:[#allocation26 + $0x578] sm:$0xff]
    %v3506 = vld [vmem:[#allocation26 + $0x580] sm:$0xff]
    %v3507 = vld [vmem:[#allocation26 + $0x588] sm:$0xff]
    %v3508 = vld [vmem:[#allocation26 + $0x590] sm:$0xff]
    %v3509 = vld [vmem:[#allocation26 + $0x598] sm:$0xff]
    %v3510 = vld [vmem:[#allocation26 + $0x5a0] sm:$0xff]
    %v3511 = vld [vmem:[#allocation26 + $0x5a8] sm:$0xff]
    %v3512 = vld [vmem:[#allocation26 + $0x5b0] sm:$0xff]
    %v3513 = vld [vmem:[#allocation26 + $0x5b8] sm:$0xff]
    %v3514 = vld [vmem:[#allocation26 + $0x5c0] sm:$0xff]
    %v3515 = vld [vmem:[#allocation26 + $0x5c8] sm:$0xff]
    %v3516 = vld [vmem:[#allocation26 + $0x5d0] sm:$0xff]
    %v3517 = vld [vmem:[#allocation26 + $0x5d8] sm:$0xff]
    %v3518 = vld [vmem:[#allocation26 + $0x5e0] sm:$0xff]
    %v3519 = vld [vmem:[#allocation26 + $0x5e8] sm:$0xff]
    %v3520 = vld [vmem:[#allocation26 + $0x5f0] sm:$0xff]
    %v3521 = vld [vmem:[#allocation26 + $0x5f8] sm:$0xff]
    %v3522 = vld [vmem:[#allocation26 + $0x600] sm:$0xff]
    %v3523 = vld [vmem:[#allocation26 + $0x608] sm:$0xff]
    %v3524 = vld [vmem:[#allocation26 + $0x610] sm:$0xff]
    %v3525 = vld [vmem:[#allocation26 + $0x618] sm:$0xff]
    %v3526 = vld [vmem:[#allocation26 + $0x620] sm:$0xff]
    %v3527 = vld [vmem:[#allocation26 + $0x628] sm:$0xff]
    %v3528 = vld [vmem:[#allocation26 + $0x630] sm:$0xff]
    %v3529 = vld [vmem:[#allocation26 + $0x638] sm:$0xff]
    %v3530 = vld [vmem:[#allocation26 + $0x640] sm:$0xff]
    %v3531 = vld [vmem:[#allocation26 + $0x648] sm:$0xff]
    %v3532 = vld [vmem:[#allocation26 + $0x650] sm:$0xff]
    %v3533 = vld [vmem:[#allocation26 + $0x658] sm:$0xff]
    %v3534 = vld [vmem:[#allocation26 + $0x660] sm:$0xff]
    %v3535 = vld [vmem:[#allocation26 + $0x668] sm:$0xff]
    %v3536 = vld [vmem:[#allocation26 + $0x670] sm:$0xff]
    %v3537 = vld [vmem:[#allocation26 + $0x678] sm:$0xff]
    %v3538 = vld [vmem:[#allocation26 + $0x680] sm:$0xff]
    %v3539 = vld [vmem:[#allocation26 + $0x688] sm:$0xff]
    %v3540 = vld [vmem:[#allocation26 + $0x690] sm:$0xff]
    %v3541 = vld [vmem:[#allocation26 + $0x698] sm:$0xff]
    %v3542 = vld [vmem:[#allocation26 + $0x6a0] sm:$0xff]
    %v3543 = vld [vmem:[#allocation26 + $0x6a8] sm:$0xff]
    %v3544 = vld [vmem:[#allocation26 + $0x6b0] sm:$0xff]
    %v3545 = vld [vmem:[#allocation26 + $0x6b8] sm:$0xff]
    %v3546 = vld [vmem:[#allocation26 + $0x6c0] sm:$0xff]
    %v3547 = vld [vmem:[#allocation26 + $0x6c8] sm:$0xff]
    %v3548 = vld [vmem:[#allocation26 + $0x6d0] sm:$0xff]
    %v3549 = vld [vmem:[#allocation26 + $0x6d8] sm:$0xff]
    %v3550 = vld [vmem:[#allocation26 + $0x6e0] sm:$0xff]
    %v3551 = vld [vmem:[#allocation26 + $0x6e8] sm:$0xff]
    %v3552 = vld [vmem:[#allocation26 + $0x6f0] sm:$0xff]
    %v3553 = vld [vmem:[#allocation26 + $0x6f8] sm:$0xff]
    %v3554 = vld [vmem:[#allocation26 + $0x700] sm:$0xff]
    %v3555 = vld [vmem:[#allocation26 + $0x708] sm:$0xff]
    %v3556 = vld [vmem:[#allocation26 + $0x710] sm:$0xff]
    %v3557 = vld [vmem:[#allocation26 + $0x718] sm:$0xff]
    %v3558 = vld [vmem:[#allocation26 + $0x720] sm:$0xff]
    %v3559 = vld [vmem:[#allocation26 + $0x728] sm:$0xff]
    %v3560 = vld [vmem:[#allocation26 + $0x730] sm:$0xff]
    %v3561 = vld [vmem:[#allocation26 + $0x738] sm:$0xff]
    %v3562 = vld [vmem:[#allocation26 + $0x740] sm:$0xff]
    %v3563 = vld [vmem:[#allocation26 + $0x748] sm:$0xff]
    %v3564 = vld [vmem:[#allocation26 + $0x750] sm:$0xff]
    %v3565 = vld [vmem:[#allocation26 + $0x758] sm:$0xff]
    %v3566 = vld [vmem:[#allocation26 + $0x760] sm:$0xff]
    %v3567 = vld [vmem:[#allocation26 + $0x768] sm:$0xff]
    %v3568 = vld [vmem:[#allocation26 + $0x770] sm:$0xff]
    %v3569 = vld [vmem:[#allocation26 + $0x778] sm:$0xff]
    %v3570 = vld [vmem:[#allocation26 + $0x780] sm:$0xff]
    %v3571 = vld [vmem:[#allocation26 + $0x788] sm:$0xff]
    %v3572 = vld [vmem:[#allocation26 + $0x790] sm:$0xff]
    %v3573 = vld [vmem:[#allocation26 + $0x798] sm:$0xff]
    %v3574 = vld [vmem:[#allocation26 + $0x7a0] sm:$0xff]
    %v3575 = vld [vmem:[#allocation26 + $0x7a8] sm:$0xff]
    %v3576 = vld [vmem:[#allocation26 + $0x7b0] sm:$0xff]
    %v3577 = vld [vmem:[#allocation26 + $0x7b8] sm:$0xff]
    %v3578 = vld [vmem:[#allocation26 + $0x7c0] sm:$0xff]
    %v3579 = vld [vmem:[#allocation26 + $0x7c8] sm:$0xff]
    %v3580 = vld [vmem:[#allocation26 + $0x7d0] sm:$0xff]
    %v3581 = vld [vmem:[#allocation26 + $0x7d8] sm:$0xff]
    %v3582 = vld [vmem:[#allocation26 + $0x7e0] sm:$0xff]
    %v3583 = vld [vmem:[#allocation26 + $0x7e8] sm:$0xff]
    %v3584 = vld [vmem:[#allocation26 + $0x7f0] sm:$0xff]
    %v3585 = vld [vmem:[#allocation26 + $0x7f8] sm:$0xff]
    %v3586 = vld [vmem:[#allocation26 + $0x800] sm:$0xff]
    %v3587 = vld [vmem:[#allocation26 + $0x808] sm:$0xff]
    %v3588 = vld [vmem:[#allocation26 + $0x810] sm:$0xff]
    %v3589 = vld [vmem:[#allocation26 + $0x818] sm:$0xff]
    %v3590 = vld [vmem:[#allocation26 + $0x820] sm:$0xff]
    %v3591 = vld [vmem:[#allocation26 + $0x828] sm:$0xff]
    %v3592 = vld [vmem:[#allocation26 + $0x830] sm:$0xff]
    %v3593 = vld [vmem:[#allocation26 + $0x838] sm:$0xff]
    %v3594 = vld [vmem:[#allocation26 + $0x840] sm:$0xff]
    %v3595 = vld [vmem:[#allocation26 + $0x848] sm:$0xff]
    %v3596 = vld [vmem:[#allocation26 + $0x850] sm:$0xff]
    %v3597 = vld [vmem:[#allocation26 + $0x858] sm:$0xff]
    %v3598 = vld [vmem:[#allocation26 + $0x860] sm:$0xff]
    %v3599 = vld [vmem:[#allocation26 + $0x868] sm:$0xff]
    %v3600 = vld [vmem:[#allocation26 + $0x870] sm:$0xff]
    %v3601 = vld [vmem:[#allocation26 + $0x878] sm:$0xff]
    %v3602 = vld [vmem:[#allocation26 + $0x880] sm:$0xff]
    %v3603 = vld [vmem:[#allocation26 + $0x888] sm:$0xff]
    %v3604 = vld [vmem:[#allocation26 + $0x890] sm:$0xff]
    %v3605 = vld [vmem:[#allocation26 + $0x898] sm:$0xff]
    %v3606 = vld [vmem:[#allocation26 + $0x8a0] sm:$0xff]
    %v3607 = vld [vmem:[#allocation26 + $0x8a8] sm:$0xff]
    %v3608 = vld [vmem:[#allocation26 + $0x8b0] sm:$0xff]
    %v3609 = vld [vmem:[#allocation26 + $0x8b8] sm:$0xff]
    %v3610 = vld [vmem:[#allocation26 + $0x8c0] sm:$0xff]
    %v3611 = vld [vmem:[#allocation26 + $0x8c8] sm:$0xff]
    %v3612 = vld [vmem:[#allocation26 + $0x8d0] sm:$0xff]
    %v3613 = vld [vmem:[#allocation26 + $0x8d8] sm:$0xff]
    %v3614 = vld [vmem:[#allocation26 + $0x8e0] sm:$0xff]
    %v3615 = vld [vmem:[#allocation26 + $0x8e8] sm:$0xff]
    %v3616 = vld [vmem:[#allocation26 + $0x8f0] sm:$0xff]
    %v3617 = vld [vmem:[#allocation26 + $0x8f8] sm:$0xff]
    %v3618 = vld [vmem:[#allocation26 + $0x900] sm:$0xff]
    %v3619 = vld [vmem:[#allocation26 + $0x908] sm:$0xff]
    %v3620 = vld [vmem:[#allocation26 + $0x910] sm:$0xff]
    %v3621 = vld [vmem:[#allocation26 + $0x918] sm:$0xff]
    %v3622 = vld [vmem:[#allocation26 + $0x920] sm:$0xff]
    %v3623 = vld [vmem:[#allocation26 + $0x928] sm:$0xff]
    %v3624 = vld [vmem:[#allocation26 + $0x930] sm:$0xff]
    %v3625 = vld [vmem:[#allocation26 + $0x938] sm:$0xff]
    %v3626 = vld [vmem:[#allocation26 + $0x940] sm:$0xff]
    %v3627 = vld [vmem:[#allocation26 + $0x948] sm:$0xff]
    %v3628 = vld [vmem:[#allocation26 + $0x950] sm:$0xff]
    %v3629 = vld [vmem:[#allocation26 + $0x958] sm:$0xff]
    %v3630 = vld [vmem:[#allocation26 + $0x960] sm:$0xff]
    %v3631 = vld [vmem:[#allocation26 + $0x968] sm:$0xff]
    %v3632 = vld [vmem:[#allocation26 + $0x970] sm:$0xff]
    %v3633 = vld [vmem:[#allocation26 + $0x978] sm:$0xff]
    %v3634 = vld [vmem:[#allocation26 + $0x980] sm:$0xff]
    %v3635 = vld [vmem:[#allocation26 + $0x988] sm:$0xff]
    %v3636 = vld [vmem:[#allocation26 + $0x990] sm:$0xff]
    %v3637 = vld [vmem:[#allocation26 + $0x998] sm:$0xff]
    %v3638 = vld [vmem:[#allocation26 + $0x9a0] sm:$0xff]
    %v3639 = vld [vmem:[#allocation26 + $0x9a8] sm:$0xff]
    %v3640 = vld [vmem:[#allocation26 + $0x9b0] sm:$0xff]
    %v3641 = vld [vmem:[#allocation26 + $0x9b8] sm:$0xff]
    %v3642 = vld [vmem:[#allocation26 + $0x9c0] sm:$0xff]
    %v3643 = vld [vmem:[#allocation26 + $0x9c8] sm:$0xff]
    %v3644 = vld [vmem:[#allocation26 + $0x9d0] sm:$0xff]
    %v3645 = vld [vmem:[#allocation26 + $0x9d8] sm:$0xff]
    %v3646 = vld [vmem:[#allocation26 + $0x9e0] sm:$0xff]
    %v3647 = vld [vmem:[#allocation26 + $0x9e8] sm:$0xff]
    %v3648 = vld [vmem:[#allocation26 + $0x9f0] sm:$0xff]
    %v3649 = vld [vmem:[#allocation26 + $0x9f8] sm:$0xff]
    %v3650 = vld [vmem:[#allocation26 + $0xa00] sm:$0xff]
    %v3651 = vld [vmem:[#allocation26 + $0xa08] sm:$0xff]
    %v3652 = vld [vmem:[#allocation26 + $0xa10] sm:$0xff]
    %v3653 = vld [vmem:[#allocation26 + $0xa18] sm:$0xff]
    %v3654 = vld [vmem:[#allocation26 + $0xa20] sm:$0xff]
    %v3655 = vld [vmem:[#allocation26 + $0xa28] sm:$0xff]
    %v3656 = vld [vmem:[#allocation26 + $0xa30] sm:$0xff]
    %v3657 = vld [vmem:[#allocation26 + $0xa38] sm:$0xff]
    %v3658 = vld [vmem:[#allocation26 + $0xa40] sm:$0xff]
    %v3659 = vld [vmem:[#allocation26 + $0xa48] sm:$0xff]
    %v3660 = vld [vmem:[#allocation26 + $0xa50] sm:$0xff]
    %v3661 = vld [vmem:[#allocation26 + $0xa58] sm:$0xff]
    %v3662 = vld [vmem:[#allocation26 + $0xa60] sm:$0xff]
    %v3663 = vld [vmem:[#allocation26 + $0xa68] sm:$0xff]
    %v3664 = vld [vmem:[#allocation26 + $0xa70] sm:$0xff]
    %v3665 = vld [vmem:[#allocation26 + $0xa78] sm:$0xff]
    %v3666 = vld [vmem:[#allocation26 + $0xa80] sm:$0xff]
    %v3667 = vld [vmem:[#allocation26 + $0xa88] sm:$0xff]
    %v3668 = vld [vmem:[#allocation26 + $0xa90] sm:$0xff]
    %v3669 = vld [vmem:[#allocation26 + $0xa98] sm:$0xff]
    %v3670 = vld [vmem:[#allocation26 + $0xaa0] sm:$0xff]
    %v3671 = vld [vmem:[#allocation26 + $0xaa8] sm:$0xff]
    %v3672 = vld [vmem:[#allocation26 + $0xab0] sm:$0xff]
    %v3673 = vld [vmem:[#allocation26 + $0xab8] sm:$0xff]
    %v3674 = vld [vmem:[#allocation26 + $0xac0] sm:$0xff]
    %v3675 = vld [vmem:[#allocation26 + $0xac8] sm:$0xff]
    %v3676 = vld [vmem:[#allocation26 + $0xad0] sm:$0xff]
    %v3677 = vld [vmem:[#allocation26 + $0xad8] sm:$0xff]
    %v3678 = vld [vmem:[#allocation26 + $0xae0] sm:$0xff]
    %v3679 = vld [vmem:[#allocation26 + $0xae8] sm:$0xff]
    %v3680 = vld [vmem:[#allocation26 + $0xaf0] sm:$0xff]
    %v3681 = vld [vmem:[#allocation26 + $0xaf8] sm:$0xff]
    %v3682 = vld [vmem:[#allocation26 + $0xb00] sm:$0xff]
    %v3683 = vld [vmem:[#allocation26 + $0xb08] sm:$0xff]
    %v3684 = vld [vmem:[#allocation26 + $0xb10] sm:$0xff]
    %v3685 = vld [vmem:[#allocation26 + $0xb18] sm:$0xff]
    %v3686 = vld [vmem:[#allocation26 + $0xb20] sm:$0xff]
    %v3687 = vld [vmem:[#allocation26 + $0xb28] sm:$0xff]
    %v3688 = vld [vmem:[#allocation26 + $0xb30] sm:$0xff]
    %v3689 = vld [vmem:[#allocation26 + $0xb38] sm:$0xff]
    %v3690 = vld [vmem:[#allocation26 + $0xb40] sm:$0xff]
    %v3691 = vld [vmem:[#allocation26 + $0xb48] sm:$0xff]
    %v3692 = vld [vmem:[#allocation26 + $0xb50] sm:$0xff]
    %v3693 = vld [vmem:[#allocation26 + $0xb58] sm:$0xff]
    %v3694 = vld [vmem:[#allocation26 + $0xb60] sm:$0xff]
    %v3695 = vld [vmem:[#allocation26 + $0xb68] sm:$0xff]
    %v3696 = vld [vmem:[#allocation26 + $0xb70] sm:$0xff]
    %v3697 = vld [vmem:[#allocation26 + $0xb78] sm:$0xff]
    %v3698 = vld [vmem:[#allocation26 + $0xb80] sm:$0xff]
    %v3699 = vld [vmem:[#allocation26 + $0xb88] sm:$0xff]
    %v3700 = vld [vmem:[#allocation26 + $0xb90] sm:$0xff]
    %v3701 = vld [vmem:[#allocation26 + $0xb98] sm:$0xff]
    %v3702 = vld [vmem:[#allocation26 + $0xba0] sm:$0xff]
    %v3703 = vld [vmem:[#allocation26 + $0xba8] sm:$0xff]
    %v3704 = vld [vmem:[#allocation26 + $0xbb0] sm:$0xff]
    %v3705 = vld [vmem:[#allocation26 + $0xbb8] sm:$0xff]
    %v3706 = vld [vmem:[#allocation26 + $0xbc0] sm:$0xff]
    %v3707 = vld [vmem:[#allocation26 + $0xbc8] sm:$0xff]
    %v3708 = vld [vmem:[#allocation26 + $0xbd0] sm:$0xff]
    %v3709 = vld [vmem:[#allocation26 + $0xbd8] sm:$0xff]
    %v3710 = vld [vmem:[#allocation26 + $0xbe0] sm:$0xff]
    %v3711 = vld [vmem:[#allocation26 + $0xbe8] sm:$0xff]
    %v3712 = vld [vmem:[#allocation26 + $0xbf0] sm:$0xff]
    %v3713 = vld [vmem:[#allocation26 + $0xbf8] sm:$0xff]
    %v3714 = vld [vmem:[#allocation26 + $0xc00] sm:$0xff]
    %v3715 = vld [vmem:[#allocation26 + $0xc08] sm:$0xff]
    %v3716 = vld [vmem:[#allocation26 + $0xc10] sm:$0xff]
    %v3717 = vld [vmem:[#allocation26 + $0xc18] sm:$0xff]
    %v3718 = vld [vmem:[#allocation26 + $0xc20] sm:$0xff]
    %v3719 = vld [vmem:[#allocation26 + $0xc28] sm:$0xff]
    %v3720 = vld [vmem:[#allocation26 + $0xc30] sm:$0xff]
    %v3721 = vld [vmem:[#allocation26 + $0xc38] sm:$0xff]
    %v3722 = vld [vmem:[#allocation26 + $0xc40] sm:$0xff]
    %v3723 = vld [vmem:[#allocation26 + $0xc48] sm:$0xff]
    %v3724 = vld [vmem:[#allocation26 + $0xc50] sm:$0xff]
    %v3725 = vld [vmem:[#allocation26 + $0xc58] sm:$0xff]
    %v3726 = vld [vmem:[#allocation26 + $0xc60] sm:$0xff]
    %v3727 = vld [vmem:[#allocation26 + $0xc68] sm:$0xff]
    %v3728 = vld [vmem:[#allocation26 + $0xc70] sm:$0xff]
    %v3729 = vld [vmem:[#allocation26 + $0xc78] sm:$0xff]
    %v3730 = vld [vmem:[#allocation26 + $0xc80] sm:$0xff]
    %v3731 = vld [vmem:[#allocation26 + $0xc88] sm:$0xff]
    %v3732 = vld [vmem:[#allocation26 + $0xc90] sm:$0xff]
    %v3733 = vld [vmem:[#allocation26 + $0xc98] sm:$0xff]
    %v3734 = vld [vmem:[#allocation26 + $0xca0] sm:$0xff]
    %v3735 = vld [vmem:[#allocation26 + $0xca8] sm:$0xff]
    %v3736 = vld [vmem:[#allocation26 + $0xcb0] sm:$0xff]
    %v3737 = vld [vmem:[#allocation26 + $0xcb8] sm:$0xff]
    %v3738 = vld [vmem:[#allocation26 + $0xcc0] sm:$0xff]
    %v3739 = vld [vmem:[#allocation26 + $0xcc8] sm:$0xff]
    %v3740 = vld [vmem:[#allocation26 + $0xcd0] sm:$0xff]
    %v3741 = vld [vmem:[#allocation26 + $0xcd8] sm:$0xff]
    %v3742 = vld [vmem:[#allocation26 + $0xce0] sm:$0xff]
    %v3743 = vld [vmem:[#allocation26 + $0xce8] sm:$0xff]
    %v3744 = vld [vmem:[#allocation26 + $0xcf0] sm:$0xff]
    %v3745 = vld [vmem:[#allocation26 + $0xcf8] sm:$0xff]
    %v3746 = vld [vmem:[#allocation26 + $0xd00] sm:$0xff]
    %v3747 = vld [vmem:[#allocation26 + $0xd08] sm:$0xff]
    %v3748 = vld [vmem:[#allocation26 + $0xd10] sm:$0xff]
    %v3749 = vld [vmem:[#allocation26 + $0xd18] sm:$0xff]
    %v3750 = vld [vmem:[#allocation26 + $0xd20] sm:$0xff]
    %v3751 = vld [vmem:[#allocation26 + $0xd28] sm:$0xff]
    %v3752 = vld [vmem:[#allocation26 + $0xd30] sm:$0xff]
    %v3753 = vld [vmem:[#allocation26 + $0xd38] sm:$0xff]
    %v3754 = vld [vmem:[#allocation26 + $0xd40] sm:$0xff]
    %v3755 = vld [vmem:[#allocation26 + $0xd48] sm:$0xff]
    %v3756 = vld [vmem:[#allocation26 + $0xd50] sm:$0xff]
    %v3757 = vld [vmem:[#allocation26 + $0xd58] sm:$0xff]
    %v3758 = vld [vmem:[#allocation26 + $0xd60] sm:$0xff]
    %v3759 = vld [vmem:[#allocation26 + $0xd68] sm:$0xff]
    %v3760 = vld [vmem:[#allocation26 + $0xd70] sm:$0xff]
    %v3761 = vld [vmem:[#allocation26 + $0xd78] sm:$0xff]
    %v3762 = vld [vmem:[#allocation26 + $0xd80] sm:$0xff]
    %v3763 = vld [vmem:[#allocation26 + $0xd88] sm:$0xff]
    %v3764 = vld [vmem:[#allocation26 + $0xd90] sm:$0xff]
    %v3765 = vld [vmem:[#allocation26 + $0xd98] sm:$0xff]
    %v3766 = vld [vmem:[#allocation26 + $0xda0] sm:$0xff]
    %v3767 = vld [vmem:[#allocation26 + $0xda8] sm:$0xff]
    %v3768 = vld [vmem:[#allocation26 + $0xdb0] sm:$0xff]
    %v3769 = vld [vmem:[#allocation26 + $0xdb8] sm:$0xff]
    %v3770 = vld [vmem:[#allocation26 + $0xdc0] sm:$0xff]
    %v3771 = vld [vmem:[#allocation26 + $0xdc8] sm:$0xff]
    %v3772 = vld [vmem:[#allocation26 + $0xdd0] sm:$0xff]
    %v3773 = vld [vmem:[#allocation26 + $0xdd8] sm:$0xff]
    %v3774 = vld [vmem:[#allocation26 + $0xde0] sm:$0xff]
    %v3775 = vld [vmem:[#allocation26 + $0xde8] sm:$0xff]
    %v3776 = vld [vmem:[#allocation26 + $0xdf0] sm:$0xff]
    %v3777 = vld [vmem:[#allocation26 + $0xdf8] sm:$0xff]
    %v3778 = vld [vmem:[#allocation26 + $0xe00] sm:$0xff]
    %v3779 = vld [vmem:[#allocation26 + $0xe08] sm:$0xff]
    %v3780 = vld [vmem:[#allocation26 + $0xe10] sm:$0xff]
    %v3781 = vld [vmem:[#allocation26 + $0xe18] sm:$0xff]
    %v3782 = vld [vmem:[#allocation26 + $0xe20] sm:$0xff]
    %v3783 = vld [vmem:[#allocation26 + $0xe28] sm:$0xff]
    %v3784 = vld [vmem:[#allocation26 + $0xe30] sm:$0xff]
    %v3785 = vld [vmem:[#allocation26 + $0xe38] sm:$0xff]
    %v3786 = vld [vmem:[#allocation26 + $0xe40] sm:$0xff]
    %v3787 = vld [vmem:[#allocation26 + $0xe48] sm:$0xff]
    %v3788 = vld [vmem:[#allocation26 + $0xe50] sm:$0xff]
    %v3789 = vld [vmem:[#allocation26 + $0xe58] sm:$0xff]
    %v3790 = vld [vmem:[#allocation26 + $0xe60] sm:$0xff]
    %v3791 = vld [vmem:[#allocation26 + $0xe68] sm:$0xff]
    %v3792 = vld [vmem:[#allocation26 + $0xe70] sm:$0xff]
    %v3793 = vld [vmem:[#allocation26 + $0xe78] sm:$0xff]
    %v3794 = vld [vmem:[#allocation26 + $0xe80] sm:$0xff]
    %v3795 = vld [vmem:[#allocation26 + $0xe88] sm:$0xff]
    %v3796 = vld [vmem:[#allocation26 + $0xe90] sm:$0xff]
    %v3797 = vld [vmem:[#allocation26 + $0xe98] sm:$0xff]
    %v3798 = vld [vmem:[#allocation26 + $0xea0] sm:$0xff]
    %v3799 = vld [vmem:[#allocation26 + $0xea8] sm:$0xff]
    %v3800 = vld [vmem:[#allocation26 + $0xeb0] sm:$0xff]
    %v3801 = vld [vmem:[#allocation26 + $0xeb8] sm:$0xff]
    %v3802 = vld [vmem:[#allocation26 + $0xec0] sm:$0xff]
    %v3803 = vld [vmem:[#allocation26 + $0xec8] sm:$0xff]
    %v3804 = vld [vmem:[#allocation26 + $0xed0] sm:$0xff]
    %v3805 = vld [vmem:[#allocation26 + $0xed8] sm:$0xff]
    %v3806 = vld [vmem:[#allocation26 + $0xee0] sm:$0xff]
    %v3807 = vld [vmem:[#allocation26 + $0xee8] sm:$0xff]
    %v3808 = vld [vmem:[#allocation26 + $0xef0] sm:$0xff]
    %v3809 = vld [vmem:[#allocation26 + $0xef8] sm:$0xff]
    %v3810 = vld [vmem:[#allocation26 + $0xf00] sm:$0xff]
    %v3811 = vld [vmem:[#allocation26 + $0xf08] sm:$0xff]
    %v3812 = vld [vmem:[#allocation26 + $0xf10] sm:$0xff]
    %v3813 = vld [vmem:[#allocation26 + $0xf18] sm:$0xff]
    %v3814 = vld [vmem:[#allocation26 + $0xf20] sm:$0xff]
    %v3815 = vld [vmem:[#allocation26 + $0xf28] sm:$0xff]
    %v3816 = vld [vmem:[#allocation26 + $0xf30] sm:$0xff]
    %v3817 = vld [vmem:[#allocation26 + $0xf38] sm:$0xff]
    %v3818 = vld [vmem:[#allocation26 + $0xf40] sm:$0xff]
    %v3819 = vld [vmem:[#allocation26 + $0xf48] sm:$0xff]
    %v3820 = vld [vmem:[#allocation26 + $0xf50] sm:$0xff]
    %v3821 = vld [vmem:[#allocation26 + $0xf58] sm:$0xff]
    %v3822 = vld [vmem:[#allocation26 + $0xf60] sm:$0xff]
    %v3823 = vld [vmem:[#allocation26 + $0xf68] sm:$0xff]
    %v3824 = vld [vmem:[#allocation26 + $0xf70] sm:$0xff]
    %v3825 = vld [vmem:[#allocation26 + $0xf78] sm:$0xff]
    %v3826 = vld [vmem:[#allocation26 + $0xf80] sm:$0xff]
    %v3827 = vld [vmem:[#allocation26 + $0xf88] sm:$0xff]
    %v3828 = vld [vmem:[#allocation26 + $0xf90] sm:$0xff]
    %v3829 = vld [vmem:[#allocation26 + $0xf98] sm:$0xff]
    %v3830 = vld [vmem:[#allocation26 + $0xfa0] sm:$0xff]
    %v3831 = vld [vmem:[#allocation26 + $0xfa8] sm:$0xff]
    %v3832 = vld [vmem:[#allocation26 + $0xfb0] sm:$0xff]
    %v3833 = vld [vmem:[#allocation26 + $0xfb8] sm:$0xff]
    %v3834 = vld [vmem:[#allocation26 + $0xfc0] sm:$0xff]
    %v3835 = vld [vmem:[#allocation26 + $0xfc8] sm:$0xff]
    %v3836 = vld [vmem:[#allocation26 + $0xfd0] sm:$0xff]
    %v3837 = vld [vmem:[#allocation26 + $0xfd8] sm:$0xff]
    %v3838 = vld [vmem:[#allocation26 + $0xfe0] sm:$0xff]
    %v3839 = vld [vmem:[#allocation26 + $0xfe8] sm:$0xff]
    %v3840 = vld [vmem:[#allocation26 + $0xff0] sm:$0xff]
    %v3841 = vld [vmem:[#allocation26 + $0xff8] sm:$0xff]
    %v3842 = vld [vmem:[#allocation26 + $0x1000] sm:$0xff]
    %v3843 = vld [vmem:[#allocation26 + $0x1008] sm:$0xff]
    %v3844 = vld [vmem:[#allocation26 + $0x1010] sm:$0xff]
    %v3845 = vld [vmem:[#allocation26 + $0x1018] sm:$0xff]
    %v3846 = vld [vmem:[#allocation26 + $0x1020] sm:$0xff]
    %v3847 = vld [vmem:[#allocation26 + $0x1028] sm:$0xff]
    %v3848 = vld [vmem:[#allocation26 + $0x1030] sm:$0xff]
    %v3849 = vld [vmem:[#allocation26 + $0x1038] sm:$0xff]
    %v3850 = vld [vmem:[#allocation26 + $0x1040] sm:$0xff]
    %v3851 = vld [vmem:[#allocation26 + $0x1048] sm:$0xff]
    %v3852 = vld [vmem:[#allocation26 + $0x1050] sm:$0xff]
    %v3853 = vld [vmem:[#allocation26 + $0x1058] sm:$0xff]
    %v3854 = vld [vmem:[#allocation26 + $0x1060] sm:$0xff]
    %v3855 = vld [vmem:[#allocation26 + $0x1068] sm:$0xff]
    %v3856 = vld [vmem:[#allocation26 + $0x1070] sm:$0xff]
    %v3857 = vld [vmem:[#allocation26 + $0x1078] sm:$0xff]
    %v3858 = vld [vmem:[#allocation26 + $0x1080] sm:$0xff]
    %v3859 = vld [vmem:[#allocation26 + $0x1088] sm:$0xff]
    %v3860 = vld [vmem:[#allocation26 + $0x1090] sm:$0xff]
    %v3861 = vld [vmem:[#allocation26 + $0x1098] sm:$0xff]
    %v3862 = vld [vmem:[#allocation26 + $0x10a0] sm:$0xff]
    %v3863 = vld [vmem:[#allocation26 + $0x10a8] sm:$0xff]
    %v3864 = vld [vmem:[#allocation26 + $0x10b0] sm:$0xff]
    %v3865 = vld [vmem:[#allocation26 + $0x10b8] sm:$0xff]
    %v3866 = vld [vmem:[#allocation26 + $0x10c0] sm:$0xff]
    %v3867 = vld [vmem:[#allocation26 + $0x10c8] sm:$0xff]
    %v3868 = vld [vmem:[#allocation26 + $0x10d0] sm:$0xff]
    %v3869 = vld [vmem:[#allocation26 + $0x10d8] sm:$0xff]
    %v3870 = vld [vmem:[#allocation26 + $0x10e0] sm:$0xff]
    %v3871 = vld [vmem:[#allocation26 + $0x10e8] sm:$0xff]
    %v3872 = vld [vmem:[#allocation26 + $0x10f0] sm:$0xff]
    %v3873 = vld [vmem:[#allocation26 + $0x10f8] sm:$0xff]
    %v3874 = vld [vmem:[#allocation26 + $0x1100] sm:$0xff]
    %v3875 = vld [vmem:[#allocation26 + $0x1108] sm:$0xff]
    %v3876 = vld [vmem:[#allocation26 + $0x1110] sm:$0xff]
    %v3877 = vld [vmem:[#allocation26 + $0x1118] sm:$0xff]
    %v3878 = vld [vmem:[#allocation26 + $0x1120] sm:$0xff]
    %v3879 = vld [vmem:[#allocation26 + $0x1128] sm:$0xff]
    %v3880 = vld [vmem:[#allocation26 + $0x1130] sm:$0xff]
    %v3881 = vld [vmem:[#allocation26 + $0x1138] sm:$0xff]
    %v3882 = vld [vmem:[#allocation26 + $0x1140] sm:$0xff]
    %v3883 = vld [vmem:[#allocation26 + $0x1148] sm:$0xff]
    %v3884 = vld [vmem:[#allocation26 + $0x1150] sm:$0xff]
    %v3885 = vld [vmem:[#allocation26 + $0x1158] sm:$0xff]
    %v3886 = vld [vmem:[#allocation26 + $0x1160] sm:$0xff]
    %v3887 = vld [vmem:[#allocation26 + $0x1168] sm:$0xff]
    %v3888 = vld [vmem:[#allocation26 + $0x1170] sm:$0xff]
    %v3889 = vld [vmem:[#allocation26 + $0x1178] sm:$0xff]
    %v3890 = vld [vmem:[#allocation26 + $0x1180] sm:$0xff]
    %v3891 = vld [vmem:[#allocation26 + $0x1188] sm:$0xff]
    %v3892 = vld [vmem:[#allocation26 + $0x1190] sm:$0xff]
    %v3893 = vld [vmem:[#allocation26 + $0x1198] sm:$0xff]
    %v3894 = vld [vmem:[#allocation26 + $0x11a0] sm:$0xff]
    %v3895 = vld [vmem:[#allocation26 + $0x11a8] sm:$0xff]
    %v3896 = vld [vmem:[#allocation26 + $0x11b0] sm:$0xff]
    %v3897 = vld [vmem:[#allocation26 + $0x11b8] sm:$0xff]
    %v3898 = vld [vmem:[#allocation26 + $0x11c0] sm:$0xff]
    %v3899 = vld [vmem:[#allocation26 + $0x11c8] sm:$0xff]
    %v3900 = vld [vmem:[#allocation26 + $0x11d0] sm:$0xff]
    %v3901 = vld [vmem:[#allocation26 + $0x11d8] sm:$0xff]
    %v3902 = vld [vmem:[#allocation26 + $0x11e0] sm:$0xff]
    %v3903 = vld [vmem:[#allocation26 + $0x11e8] sm:$0xff]
    %v3904 = vld [vmem:[#allocation26 + $0x11f0] sm:$0xff]
    %v3905 = vld [vmem:[#allocation26 + $0x11f8] sm:$0xff]
    %v3906 = vld [vmem:[#allocation26 + $0x1200] sm:$0xff]
    %v3907 = vld [vmem:[#allocation26 + $0x1208] sm:$0xff]
    %v3908 = vld [vmem:[#allocation26 + $0x1210] sm:$0xff]
    %v3909 = vld [vmem:[#allocation26 + $0x1218] sm:$0xff]
    %v3910 = vld [vmem:[#allocation26 + $0x1220] sm:$0xff]
    %v3911 = vld [vmem:[#allocation26 + $0x1228] sm:$0xff]
    %v3912 = vld [vmem:[#allocation26 + $0x1230] sm:$0xff]
    %v3913 = vld [vmem:[#allocation26 + $0x1238] sm:$0xff]
    %v3914 = vld [vmem:[#allocation26 + $0x1240] sm:$0xff]
    %v3915 = vld [vmem:[#allocation26 + $0x1248] sm:$0xff]
    %v3916 = vld [vmem:[#allocation26 + $0x1250] sm:$0xff]
    %v3917 = vld [vmem:[#allocation26 + $0x1258] sm:$0xff]
    %v3918 = vld [vmem:[#allocation26 + $0x1260] sm:$0xff]
    %v3919 = vld [vmem:[#allocation26 + $0x1268] sm:$0xff]
    %v3920 = vld [vmem:[#allocation26 + $0x1270] sm:$0xff]
    %v3921 = vld [vmem:[#allocation26 + $0x1278] sm:$0xff]
    %v3922 = vld [vmem:[#allocation26 + $0x1280] sm:$0xff]
    %v3923 = vld [vmem:[#allocation26 + $0x1288] sm:$0xff]
    %v3924 = vld [vmem:[#allocation26 + $0x1290] sm:$0xff]
    %v3925 = vld [vmem:[#allocation26 + $0x1298] sm:$0xff]
    %v3926 = vld [vmem:[#allocation26 + $0x12a0] sm:$0xff]
    %v3927 = vld [vmem:[#allocation26 + $0x12a8] sm:$0xff]
    %v3928 = vld [vmem:[#allocation26 + $0x12b0] sm:$0xff]
    %v3929 = vld [vmem:[#allocation26 + $0x12b8] sm:$0xff]
    %v3930 = vld [vmem:[#allocation26 + $0x12c0] sm:$0xff]
    %v3931 = vld [vmem:[#allocation26 + $0x12c8] sm:$0xff]
    %v3932 = vld [vmem:[#allocation26 + $0x12d0] sm:$0xff]
    %v3933 = vld [vmem:[#allocation26 + $0x12d8] sm:$0xff]
    %v3934 = vld [vmem:[#allocation26 + $0x12e0] sm:$0xff]
    %v3935 = vld [vmem:[#allocation26 + $0x12e8] sm:$0xff]
    %v3936 = vld [vmem:[#allocation26 + $0x12f0] sm:$0xff]
    %v3937 = vld [vmem:[#allocation26 + $0x12f8] sm:$0xff]
    %v3938 = vld [vmem:[#allocation26 + $0x1300] sm:$0xff]
    %v3939 = vld [vmem:[#allocation26 + $0x1308] sm:$0xff]
    %v3940 = vld [vmem:[#allocation26 + $0x1310] sm:$0xff]
    %v3941 = vld [vmem:[#allocation26 + $0x1318] sm:$0xff]
    %v3942 = vld [vmem:[#allocation26 + $0x1320] sm:$0xff]
    %v3943 = vld [vmem:[#allocation26 + $0x1328] sm:$0xff]
    %v3944 = vld [vmem:[#allocation26 + $0x1330] sm:$0xff]
    %v3945 = vld [vmem:[#allocation26 + $0x1338] sm:$0xff]
    %v3946 = vld [vmem:[#allocation26 + $0x1340] sm:$0xff]
    %v3947 = vld [vmem:[#allocation26 + $0x1348] sm:$0xff]
    %v3948 = vld [vmem:[#allocation26 + $0x1350] sm:$0xff]
    %v3949 = vld [vmem:[#allocation26 + $0x1358] sm:$0xff]
    %v3950 = vld [vmem:[#allocation26 + $0x1360] sm:$0xff]
    %v3951 = vld [vmem:[#allocation26 + $0x1368] sm:$0xff]
    %v3952 = vld [vmem:[#allocation26 + $0x1370] sm:$0xff]
    %v3953 = vld [vmem:[#allocation26 + $0x1378] sm:$0xff]
    %v3954 = vld [vmem:[#allocation26 + $0x1380] sm:$0xff]
    %v3955 = vld [vmem:[#allocation26 + $0x1388] sm:$0xff]
    %v3956 = vld [vmem:[#allocation26 + $0x1390] sm:$0xff]
    %v3957 = vld [vmem:[#allocation26 + $0x1398] sm:$0xff]
    %v3958 = vld [vmem:[#allocation26 + $0x13a0] sm:$0xff]
    %v3959 = vld [vmem:[#allocation26 + $0x13a8] sm:$0xff]
    %v3960 = vld [vmem:[#allocation26 + $0x13b0] sm:$0xff]
    %v3961 = vld [vmem:[#allocation26 + $0x13b8] sm:$0xff]
    %v3962 = vld [vmem:[#allocation26 + $0x13c0] sm:$0xff]
    %v3963 = vld [vmem:[#allocation26 + $0x13c8] sm:$0xff]
    %v3964 = vld [vmem:[#allocation26 + $0x13d0] sm:$0xff]
    %v3965 = vld [vmem:[#allocation26 + $0x13d8] sm:$0xff]
    %v3966 = vld [vmem:[#allocation26 + $0x13e0] sm:$0xff]
    %v3967 = vld [vmem:[#allocation26 + $0x13e8] sm:$0xff]
    %v3968 = vld [vmem:[#allocation26 + $0x13f0] sm:$0xff]
    %v3969 = vld [vmem:[#allocation26 + $0x13f8] sm:$0xff]
    %v3970 = vld [vmem:[#allocation26 + $0x1400] sm:$0xff]
    %v3971 = vld [vmem:[#allocation26 + $0x1408] sm:$0xff]
    %v3972 = vld [vmem:[#allocation26 + $0x1410] sm:$0xff]
    %v3973 = vld [vmem:[#allocation26 + $0x1418] sm:$0xff]
    %v3974 = vld [vmem:[#allocation26 + $0x1420] sm:$0xff]
    %v3975 = vld [vmem:[#allocation26 + $0x1428] sm:$0xff]
    %v3976 = vld [vmem:[#allocation26 + $0x1430] sm:$0xff]
    %v3977 = vld [vmem:[#allocation26 + $0x1438] sm:$0xff]
    %v3978 = vld [vmem:[#allocation26 + $0x1440] sm:$0xff]
    %v3979 = vld [vmem:[#allocation26 + $0x1448] sm:$0xff]
    %v3980 = vld [vmem:[#allocation26 + $0x1450] sm:$0xff]
    %v3981 = vld [vmem:[#allocation26 + $0x1458] sm:$0xff]
    %v3982 = vld [vmem:[#allocation26 + $0x1460] sm:$0xff]
    %v3983 = vld [vmem:[#allocation26 + $0x1468] sm:$0xff]
    %v3984 = vld [vmem:[#allocation26 + $0x1470] sm:$0xff]
    %v3985 = vld [vmem:[#allocation26 + $0x1478] sm:$0xff]
    %v3986 = vld [vmem:[#allocation26 + $0x1480] sm:$0xff]
    %v3987 = vld [vmem:[#allocation26 + $0x1488] sm:$0xff]
    %v3988 = vld [vmem:[#allocation26 + $0x1490] sm:$0xff]
    %v3989 = vld [vmem:[#allocation26 + $0x1498] sm:$0xff]
    %v3990 = vld [vmem:[#allocation26 + $0x14a0] sm:$0xff]
    %v3991 = vld [vmem:[#allocation26 + $0x14a8] sm:$0xff]
    %v3992 = vld [vmem:[#allocation26 + $0x14b0] sm:$0xff]
    %v3993 = vld [vmem:[#allocation26 + $0x14b8] sm:$0xff]
    %v3994 = vld [vmem:[#allocation26 + $0x14c0] sm:$0xff]
    %v3995 = vld [vmem:[#allocation26 + $0x14c8] sm:$0xff]
    %v3996 = vld [vmem:[#allocation26 + $0x14d0] sm:$0xff]
    %v3997 = vld [vmem:[#allocation26 + $0x14d8] sm:$0xff]
    %v3998 = vld [vmem:[#allocation26 + $0x14e0] sm:$0xff]
    %v3999 = vld [vmem:[#allocation26 + $0x14e8] sm:$0xff]
    %v4000 = vld [vmem:[#allocation26 + $0x14f0] sm:$0xff]
    %v4001 = vld [vmem:[#allocation26 + $0x14f8] sm:$0xff]
    %v4002 = vld [vmem:[#allocation26 + $0x1500] sm:$0xff]
    %v4003 = vld [vmem:[#allocation26 + $0x1508] sm:$0xff]
    %v4004 = vld [vmem:[#allocation26 + $0x1510] sm:$0xff]
    %v4005 = vld [vmem:[#allocation26 + $0x1518] sm:$0xff]
    %v4006 = vld [vmem:[#allocation26 + $0x1520] sm:$0xff]
    %v4007 = vld [vmem:[#allocation26 + $0x1528] sm:$0xff]
    %v4008 = vld [vmem:[#allocation26 + $0x1530] sm:$0xff]
    %v4009 = vld [vmem:[#allocation26 + $0x1538] sm:$0xff]
    %v4010 = vld [vmem:[#allocation26 + $0x1540] sm:$0xff]
    %v4011 = vld [vmem:[#allocation26 + $0x1548] sm:$0xff]
    %v4012 = vld [vmem:[#allocation26 + $0x1550] sm:$0xff]
    %v4013 = vld [vmem:[#allocation26 + $0x1558] sm:$0xff]
    %v4014 = vld [vmem:[#allocation26 + $0x1560] sm:$0xff]
    %v4015 = vld [vmem:[#allocation26 + $0x1568] sm:$0xff]
    %v4016 = vld [vmem:[#allocation26 + $0x1570] sm:$0xff]
    %v4017 = vld [vmem:[#allocation26 + $0x1578] sm:$0xff]
    %v4018 = vld [vmem:[#allocation26 + $0x1580] sm:$0xff]
    %v4019 = vld [vmem:[#allocation26 + $0x1588] sm:$0xff]
    %v4020 = vld [vmem:[#allocation26 + $0x1590] sm:$0xff]
    %v4021 = vld [vmem:[#allocation26 + $0x1598] sm:$0xff]
    %v4022 = vld [vmem:[#allocation26 + $0x15a0] sm:$0xff]
    %v4023 = vld [vmem:[#allocation26 + $0x15a8] sm:$0xff]
    %v4024 = vld [vmem:[#allocation26 + $0x15b0] sm:$0xff]
    %v4025 = vld [vmem:[#allocation26 + $0x15b8] sm:$0xff]
    %v4026 = vld [vmem:[#allocation26 + $0x15c0] sm:$0xff]
    %v4027 = vld [vmem:[#allocation26 + $0x15c8] sm:$0xff]
    %v4028 = vld [vmem:[#allocation26 + $0x15d0] sm:$0xff]
    %v4029 = vld [vmem:[#allocation26 + $0x15d8] sm:$0xff]
    %v4030 = vld [vmem:[#allocation26 + $0x15e0] sm:$0xff]
    %v4031 = vld [vmem:[#allocation26 + $0x15e8] sm:$0xff]
    %v4032 = vld [vmem:[#allocation26 + $0x15f0] sm:$0xff]
    %v4033 = vld [vmem:[#allocation26 + $0x15f8] sm:$0xff]
    %v4034 = vld [vmem:[#allocation26 + $0x1600] sm:$0xff]
    %v4035 = vld [vmem:[#allocation26 + $0x1608] sm:$0xff]
    %v4036 = vld [vmem:[#allocation26 + $0x1610] sm:$0xff]
    %v4037 = vld [vmem:[#allocation26 + $0x1618] sm:$0xff]
    %v4038 = vld [vmem:[#allocation26 + $0x1620] sm:$0xff]
    %v4039 = vld [vmem:[#allocation26 + $0x1628] sm:$0xff]
    %v4040 = vld [vmem:[#allocation26 + $0x1630] sm:$0xff]
    %v4041 = vld [vmem:[#allocation26 + $0x1638] sm:$0xff]
    %v4042 = vld [vmem:[#allocation26 + $0x1640] sm:$0xff]
    %v4043 = vld [vmem:[#allocation26 + $0x1648] sm:$0xff]
    %v4044 = vld [vmem:[#allocation26 + $0x1650] sm:$0xff]
    %v4045 = vld [vmem:[#allocation26 + $0x1658] sm:$0xff]
    %v4046 = vld [vmem:[#allocation26 + $0x1660] sm:$0xff]
    %v4047 = vld [vmem:[#allocation26 + $0x1668] sm:$0xff]
    %v4048 = vld [vmem:[#allocation26 + $0x1670] sm:$0xff]
    %v4049 = vld [vmem:[#allocation26 + $0x1678] sm:$0xff]
    %v4050 = vld [vmem:[#allocation26 + $0x1680] sm:$0xff]
    %v4051 = vld [vmem:[#allocation26 + $0x1688] sm:$0xff]
    %v4052 = vld [vmem:[#allocation26 + $0x1690] sm:$0xff]
    %v4053 = vld [vmem:[#allocation26 + $0x1698] sm:$0xff]
    %v4054 = vld [vmem:[#allocation26 + $0x16a0] sm:$0xff]
    %v4055 = vld [vmem:[#allocation26 + $0x16a8] sm:$0xff]
    %v4056 = vld [vmem:[#allocation26 + $0x16b0] sm:$0xff]
    %v4057 = vld [vmem:[#allocation26 + $0x16b8] sm:$0xff]
    %v4058 = vld [vmem:[#allocation26 + $0x16c0] sm:$0xff]
    %v4059 = vld [vmem:[#allocation26 + $0x16c8] sm:$0xff]
    %v4060 = vld [vmem:[#allocation26 + $0x16d0] sm:$0xff]
    %v4061 = vld [vmem:[#allocation26 + $0x16d8] sm:$0xff]
    %v4062 = vld [vmem:[#allocation26 + $0x16e0] sm:$0xff]
    %v4063 = vld [vmem:[#allocation26 + $0x16e8] sm:$0xff]
    %v4064 = vld [vmem:[#allocation26 + $0x16f0] sm:$0xff]
    %v4065 = vld [vmem:[#allocation26 + $0x16f8] sm:$0xff]
    %v4066 = vld [vmem:[#allocation26 + $0x1700] sm:$0xff]
    %v4067 = vld [vmem:[#allocation26 + $0x1708] sm:$0xff]
    %v4068 = vld [vmem:[#allocation26 + $0x1710] sm:$0xff]
    %v4069 = vld [vmem:[#allocation26 + $0x1718] sm:$0xff]
    %v4070 = vld [vmem:[#allocation26 + $0x1720] sm:$0xff]
    %v4071 = vld [vmem:[#allocation26 + $0x1728] sm:$0xff]
    %v4072 = vld [vmem:[#allocation26 + $0x1730] sm:$0xff]
    %v4073 = vld [vmem:[#allocation26 + $0x1738] sm:$0xff]
    %v4074 = vld [vmem:[#allocation26 + $0x1740] sm:$0xff]
    %v4075 = vld [vmem:[#allocation26 + $0x1748] sm:$0xff]
    %v4076 = vld [vmem:[#allocation26 + $0x1750] sm:$0xff]
    %v4077 = vld [vmem:[#allocation26 + $0x1758] sm:$0xff]
    %v4078 = vld [vmem:[#allocation26 + $0x1760] sm:$0xff]
    %v4079 = vld [vmem:[#allocation26 + $0x1768] sm:$0xff]
    %v4080 = vld [vmem:[#allocation26 + $0x1770] sm:$0xff]
    %v4081 = vld [vmem:[#allocation26 + $0x1778] sm:$0xff]
    %v4082 = vld [vmem:[#allocation26 + $0x1780] sm:$0xff]
    %v4083 = vld [vmem:[#allocation26 + $0x1788] sm:$0xff]
    %v4084 = vld [vmem:[#allocation26 + $0x1790] sm:$0xff]
    %v4085 = vld [vmem:[#allocation26 + $0x1798] sm:$0xff]
    %v4086 = vld [vmem:[#allocation26 + $0x17a0] sm:$0xff]
    %v4087 = vld [vmem:[#allocation26 + $0x17a8] sm:$0xff]
    %v4088 = vld [vmem:[#allocation26 + $0x17b0] sm:$0xff]
    %v4089 = vld [vmem:[#allocation26 + $0x17b8] sm:$0xff]
    %v4090 = vld [vmem:[#allocation26 + $0x17c0] sm:$0xff]
    %v4091 = vld [vmem:[#allocation26 + $0x17c8] sm:$0xff]
    %v4092 = vld [vmem:[#allocation26 + $0x17d0] sm:$0xff]
    %v4093 = vld [vmem:[#allocation26 + $0x17d8] sm:$0xff]
    %v4094 = vld [vmem:[#allocation26 + $0x17e0] sm:$0xff]
    %v4095 = vld [vmem:[#allocation26 + $0x17e8] sm:$0xff]
    %v4096 = vld [vmem:[#allocation26 + $0x17f0] sm:$0xff]
    %v4097 = vld [vmem:[#allocation26 + $0x17f8] sm:$0xff]
    %v4098 = vld [vmem:[#allocation26 + $0x1800] sm:$0xff]
    %v4099 = vld [vmem:[#allocation26 + $0x1808] sm:$0xff]
    %v4100 = vld [vmem:[#allocation26 + $0x1810] sm:$0xff]
    %v4101 = vld [vmem:[#allocation26 + $0x1818] sm:$0xff]
    %v4102 = vld [vmem:[#allocation26 + $0x1820] sm:$0xff]
    %v4103 = vld [vmem:[#allocation26 + $0x1828] sm:$0xff]
    %v4104 = vld [vmem:[#allocation26 + $0x1830] sm:$0xff]
    %v4105 = vld [vmem:[#allocation26 + $0x1838] sm:$0xff]
    %v4106 = vld [vmem:[#allocation26 + $0x1840] sm:$0xff]
    %v4107 = vld [vmem:[#allocation26 + $0x1848] sm:$0xff]
    %v4108 = vld [vmem:[#allocation26 + $0x1850] sm:$0xff]
    %v4109 = vld [vmem:[#allocation26 + $0x1858] sm:$0xff]
    %v4110 = vld [vmem:[#allocation26 + $0x1860] sm:$0xff]
    %v4111 = vld [vmem:[#allocation26 + $0x1868] sm:$0xff]
    %v4112 = vld [vmem:[#allocation26 + $0x1870] sm:$0xff]
    %v4113 = vld [vmem:[#allocation26 + $0x1878] sm:$0xff]
    %v4114 = vld [vmem:[#allocation26 + $0x1880] sm:$0xff]
    %v4115 = vld [vmem:[#allocation26 + $0x1888] sm:$0xff]
    %v4116 = vld [vmem:[#allocation26 + $0x1890] sm:$0xff]
    %v4117 = vld [vmem:[#allocation26 + $0x1898] sm:$0xff]
    %v4118 = vld [vmem:[#allocation26 + $0x18a0] sm:$0xff]
    %v4119 = vld [vmem:[#allocation26 + $0x18a8] sm:$0xff]
    %v4120 = vld [vmem:[#allocation26 + $0x18b0] sm:$0xff]
    %v4121 = vld [vmem:[#allocation26 + $0x18b8] sm:$0xff]
    %v4122 = vld [vmem:[#allocation26 + $0x18c0] sm:$0xff]
    %v4123 = vld [vmem:[#allocation26 + $0x18c8] sm:$0xff]
    %v4124 = vld [vmem:[#allocation26 + $0x18d0] sm:$0xff]
    %v4125 = vld [vmem:[#allocation26 + $0x18d8] sm:$0xff]
    %v4126 = vld [vmem:[#allocation26 + $0x18e0] sm:$0xff]
    %v4127 = vld [vmem:[#allocation26 + $0x18e8] sm:$0xff]
    %v4128 = vld [vmem:[#allocation26 + $0x18f0] sm:$0xff]
    %v4129 = vld [vmem:[#allocation26 + $0x18f8] sm:$0xff]
    %v4130 = vld [vmem:[#allocation26 + $0x1900] sm:$0xff]
    %v4131 = vld [vmem:[#allocation26 + $0x1908] sm:$0xff]
    %v4132 = vld [vmem:[#allocation26 + $0x1910] sm:$0xff]
    %v4133 = vld [vmem:[#allocation26 + $0x1918] sm:$0xff]
    %v4134 = vld [vmem:[#allocation26 + $0x1920] sm:$0xff]
    %v4135 = vld [vmem:[#allocation26 + $0x1928] sm:$0xff]
    %v4136 = vld [vmem:[#allocation26 + $0x1930] sm:$0xff]
    %v4137 = vld [vmem:[#allocation26 + $0x1938] sm:$0xff]
    %v4138 = vld [vmem:[#allocation26 + $0x1940] sm:$0xff]
    %v4139 = vld [vmem:[#allocation26 + $0x1948] sm:$0xff]
    %v4140 = vld [vmem:[#allocation26 + $0x1950] sm:$0xff]
    %v4141 = vld [vmem:[#allocation26 + $0x1958] sm:$0xff]
    %v4142 = vld [vmem:[#allocation26 + $0x1960] sm:$0xff]
    %v4143 = vld [vmem:[#allocation26 + $0x1968] sm:$0xff]
    %v4144 = vld [vmem:[#allocation26 + $0x1970] sm:$0xff]
    %v4145 = vld [vmem:[#allocation26 + $0x1978] sm:$0xff]
    %v4146 = vld [vmem:[#allocation26 + $0x1980] sm:$0xff]
    %v4147 = vld [vmem:[#allocation26 + $0x1988] sm:$0xff]
    %v4148 = vld [vmem:[#allocation26 + $0x1990] sm:$0xff]
    %v4149 = vld [vmem:[#allocation26 + $0x1998] sm:$0xff]
    %v4150 = vld [vmem:[#allocation26 + $0x19a0] sm:$0xff]
    %v4151 = vld [vmem:[#allocation26 + $0x19a8] sm:$0xff]
    %v4152 = vld [vmem:[#allocation26 + $0x19b0] sm:$0xff]
    %v4153 = vld [vmem:[#allocation26 + $0x19b8] sm:$0xff]
    %v4154 = vld [vmem:[#allocation26 + $0x19c0] sm:$0xff]
    %v4155 = vld [vmem:[#allocation26 + $0x19c8] sm:$0xff]
    %v4156 = vld [vmem:[#allocation26 + $0x19d0] sm:$0xff]
    %v4157 = vld [vmem:[#allocation26 + $0x19d8] sm:$0xff]
    %v4158 = vld [vmem:[#allocation26 + $0x19e0] sm:$0xff]
    %v4159 = vld [vmem:[#allocation26 + $0x19e8] sm:$0xff]
    %v4160 = vld [vmem:[#allocation26 + $0x19f0] sm:$0xff]
    %v4161 = vld [vmem:[#allocation26 + $0x19f8] sm:$0xff]
    %v4162 = vld [vmem:[#allocation26 + $0x1a00] sm:$0xff]
    %v4163 = vld [vmem:[#allocation26 + $0x1a08] sm:$0xff]
    %v4164 = vld [vmem:[#allocation26 + $0x1a10] sm:$0xff]
    %v4165 = vld [vmem:[#allocation26 + $0x1a18] sm:$0xff]
    %v4166 = vld [vmem:[#allocation26 + $0x1a20] sm:$0xff]
    %v4167 = vld [vmem:[#allocation26 + $0x1a28] sm:$0xff]
    %v4168 = vld [vmem:[#allocation26 + $0x1a30] sm:$0xff]
    %v4169 = vld [vmem:[#allocation26 + $0x1a38] sm:$0xff]
    %v4170 = vld [vmem:[#allocation26 + $0x1a40] sm:$0xff]
    %v4171 = vld [vmem:[#allocation26 + $0x1a48] sm:$0xff]
    %v4172 = vld [vmem:[#allocation26 + $0x1a50] sm:$0xff]
    %v4173 = vld [vmem:[#allocation26 + $0x1a58] sm:$0xff]
    %v4174 = vld [vmem:[#allocation26 + $0x1a60] sm:$0xff]
    %v4175 = vld [vmem:[#allocation26 + $0x1a68] sm:$0xff]
    %v4176 = vld [vmem:[#allocation26 + $0x1a70] sm:$0xff]
    %v4177 = vld [vmem:[#allocation26 + $0x1a78] sm:$0xff]
    %v4178 = vld [vmem:[#allocation26 + $0x1a80] sm:$0xff]
    %v4179 = vld [vmem:[#allocation26 + $0x1a88] sm:$0xff]
    %v4180 = vld [vmem:[#allocation26 + $0x1a90] sm:$0xff]
    %v4181 = vld [vmem:[#allocation26 + $0x1a98] sm:$0xff]
    %v4182 = vld [vmem:[#allocation26 + $0x1aa0] sm:$0xff]
    %v4183 = vld [vmem:[#allocation26 + $0x1aa8] sm:$0xff]
    %v4184 = vld [vmem:[#allocation26 + $0x1ab0] sm:$0xff]
    %v4185 = vld [vmem:[#allocation26 + $0x1ab8] sm:$0xff]
    %v4186 = vld [vmem:[#allocation26 + $0x1ac0] sm:$0xff]
    %v4187 = vld [vmem:[#allocation26 + $0x1ac8] sm:$0xff]
    %v4188 = vld [vmem:[#allocation26 + $0x1ad0] sm:$0xff]
    %v4189 = vld [vmem:[#allocation26 + $0x1ad8] sm:$0xff]
    %v4190 = vld [vmem:[#allocation26 + $0x1ae0] sm:$0xff]
    %v4191 = vld [vmem:[#allocation26 + $0x1ae8] sm:$0xff]
    %v4192 = vld [vmem:[#allocation26 + $0x1af0] sm:$0xff]
    %v4193 = vld [vmem:[#allocation26 + $0x1af8] sm:$0xff]
    %v4194 = vld [vmem:[#allocation26 + $0x1b00] sm:$0xff]
    %v4195 = vld [vmem:[#allocation26 + $0x1b08] sm:$0xff]
    %v4196 = vld [vmem:[#allocation26 + $0x1b10] sm:$0xff]
    %v4197 = vld [vmem:[#allocation26 + $0x1b18] sm:$0xff]
    %v4198 = vld [vmem:[#allocation26 + $0x1b20] sm:$0xff]
    %v4199 = vld [vmem:[#allocation26 + $0x1b28] sm:$0xff]
    %v4200 = vld [vmem:[#allocation26 + $0x1b30] sm:$0xff]
    %v4201 = vld [vmem:[#allocation26 + $0x1b38] sm:$0xff]
    %v4202 = vld [vmem:[#allocation26 + $0x1b40] sm:$0xff]
    %v4203 = vld [vmem:[#allocation26 + $0x1b48] sm:$0xff]
    %v4204 = vld [vmem:[#allocation26 + $0x1b50] sm:$0xff]
    %v4205 = vld [vmem:[#allocation26 + $0x1b58] sm:$0xff]
    %v4206 = vld [vmem:[#allocation26 + $0x1b60] sm:$0xff]
    %v4207 = vld [vmem:[#allocation26 + $0x1b68] sm:$0xff]
    %v4208 = vld [vmem:[#allocation26 + $0x1b70] sm:$0xff]
    %v4209 = vld [vmem:[#allocation26 + $0x1b78] sm:$0xff]
    %v4210 = vld [vmem:[#allocation26 + $0x1b80] sm:$0xff]
    %v4211 = vld [vmem:[#allocation26 + $0x1b88] sm:$0xff]
    %v4212 = vld [vmem:[#allocation26 + $0x1b90] sm:$0xff]
    %v4213 = vld [vmem:[#allocation26 + $0x1b98] sm:$0xff]
    %v4214 = vld [vmem:[#allocation26 + $0x1ba0] sm:$0xff]
    %v4215 = vld [vmem:[#allocation26 + $0x1ba8] sm:$0xff]
    %v4216 = vld [vmem:[#allocation26 + $0x1bb0] sm:$0xff]
    %v4217 = vld [vmem:[#allocation26 + $0x1bb8] sm:$0xff]
    %v4218 = vld [vmem:[#allocation26 + $0x1bc0] sm:$0xff]
    %v4219 = vld [vmem:[#allocation26 + $0x1bc8] sm:$0xff]
    %v4220 = vld [vmem:[#allocation26 + $0x1bd0] sm:$0xff]
    %v4221 = vld [vmem:[#allocation26 + $0x1bd8] sm:$0xff]
    %v4222 = vld [vmem:[#allocation26 + $0x1be0] sm:$0xff]
    %v4223 = vld [vmem:[#allocation26 + $0x1be8] sm:$0xff]
    %v4224 = vld [vmem:[#allocation26 + $0x1bf0] sm:$0xff]
    %v4225 = vld [vmem:[#allocation26 + $0x1bf8] sm:$0xff]
    %v4226 = vld [vmem:[#allocation26 + $0x1c00] sm:$0xff]
    %v4227 = vld [vmem:[#allocation26 + $0x1c08] sm:$0xff]
    %v4228 = vld [vmem:[#allocation26 + $0x1c10] sm:$0xff]
    %v4229 = vld [vmem:[#allocation26 + $0x1c18] sm:$0xff]
    %v4230 = vld [vmem:[#allocation26 + $0x1c20] sm:$0xff]
    %v4231 = vld [vmem:[#allocation26 + $0x1c28] sm:$0xff]
    %v4232 = vld [vmem:[#allocation26 + $0x1c30] sm:$0xff]
    %v4233 = vld [vmem:[#allocation26 + $0x1c38] sm:$0xff]
    %v4234 = vld [vmem:[#allocation26 + $0x1c40] sm:$0xff]
    %v4235 = vld [vmem:[#allocation26 + $0x1c48] sm:$0xff]
    %v4236 = vld [vmem:[#allocation26 + $0x1c50] sm:$0xff]
    %v4237 = vld [vmem:[#allocation26 + $0x1c58] sm:$0xff]
    %v4238 = vld [vmem:[#allocation26 + $0x1c60] sm:$0xff]
    %v4239 = vld [vmem:[#allocation26 + $0x1c68] sm:$0xff]
    %v4240 = vld [vmem:[#allocation26 + $0x1c70] sm:$0xff]
    %v4241 = vld [vmem:[#allocation26 + $0x1c78] sm:$0xff]
    %v4242 = vld [vmem:[#allocation26 + $0x1c80] sm:$0xff]
    %v4243 = vld [vmem:[#allocation26 + $0x1c88] sm:$0xff]
    %v4244 = vld [vmem:[#allocation26 + $0x1c90] sm:$0xff]
    %v4245 = vld [vmem:[#allocation26 + $0x1c98] sm:$0xff]
    %v4246 = vld [vmem:[#allocation26 + $0x1ca0] sm:$0xff]
    %v4247 = vld [vmem:[#allocation26 + $0x1ca8] sm:$0xff]
    %v4248 = vld [vmem:[#allocation26 + $0x1cb0] sm:$0xff]
    %v4249 = vld [vmem:[#allocation26 + $0x1cb8] sm:$0xff]
    %v4250 = vld [vmem:[#allocation26 + $0x1cc0] sm:$0xff]
    %v4251 = vld [vmem:[#allocation26 + $0x1cc8] sm:$0xff]
    %v4252 = vld [vmem:[#allocation26 + $0x1cd0] sm:$0xff]
    %v4253 = vld [vmem:[#allocation26 + $0x1cd8] sm:$0xff]
    %v4254 = vld [vmem:[#allocation26 + $0x1ce0] sm:$0xff]
    %v4255 = vld [vmem:[#allocation26 + $0x1ce8] sm:$0xff]
    %v4256 = vld [vmem:[#allocation26 + $0x1cf0] sm:$0xff]
    %v4257 = vld [vmem:[#allocation26 + $0x1cf8] sm:$0xff]
    %v4258 = vld [vmem:[#allocation26 + $0x1d00] sm:$0xff]
    %v4259 = vld [vmem:[#allocation26 + $0x1d08] sm:$0xff]
    %v4260 = vld [vmem:[#allocation26 + $0x1d10] sm:$0xff]
    %v4261 = vld [vmem:[#allocation26 + $0x1d18] sm:$0xff]
    %v4262 = vld [vmem:[#allocation26 + $0x1d20] sm:$0xff]
    %v4263 = vld [vmem:[#allocation26 + $0x1d28] sm:$0xff]
    %v4264 = vld [vmem:[#allocation26 + $0x1d30] sm:$0xff]
    %v4265 = vld [vmem:[#allocation26 + $0x1d38] sm:$0xff]
    %v4266 = vld [vmem:[#allocation26 + $0x1d40] sm:$0xff]
    %v4267 = vld [vmem:[#allocation26 + $0x1d48] sm:$0xff]
    %v4268 = vld [vmem:[#allocation26 + $0x1d50] sm:$0xff]
    %v4269 = vld [vmem:[#allocation26 + $0x1d58] sm:$0xff]
    %v4270 = vld [vmem:[#allocation26 + $0x1d60] sm:$0xff]
    %v4271 = vld [vmem:[#allocation26 + $0x1d68] sm:$0xff]
    %v4272 = vld [vmem:[#allocation26 + $0x1d70] sm:$0xff]
    %v4273 = vld [vmem:[#allocation26 + $0x1d78] sm:$0xff]
    %v4274 = vld [vmem:[#allocation26 + $0x1d80] sm:$0xff]
    %v4275 = vld [vmem:[#allocation26 + $0x1d88] sm:$0xff]
    %v4276 = vld [vmem:[#allocation26 + $0x1d90] sm:$0xff]
    %v4277 = vld [vmem:[#allocation26 + $0x1d98] sm:$0xff]
    %v4278 = vld [vmem:[#allocation26 + $0x1da0] sm:$0xff]
    %v4279 = vld [vmem:[#allocation26 + $0x1da8] sm:$0xff]
    %v4280 = vld [vmem:[#allocation26 + $0x1db0] sm:$0xff]
    %v4281 = vld [vmem:[#allocation26 + $0x1db8] sm:$0xff]
    %v4282 = vld [vmem:[#allocation26 + $0x1dc0] sm:$0xff]
    %v4283 = vld [vmem:[#allocation26 + $0x1dc8] sm:$0xff]
    %v4284 = vld [vmem:[#allocation26 + $0x1dd0] sm:$0xff]
    %v4285 = vld [vmem:[#allocation26 + $0x1dd8] sm:$0xff]
    %v4286 = vld [vmem:[#allocation26 + $0x1de0] sm:$0xff]
    %v4287 = vld [vmem:[#allocation26 + $0x1de8] sm:$0xff]
    %v4288 = vld [vmem:[#allocation26 + $0x1df0] sm:$0xff]
    %v4289 = vld [vmem:[#allocation26 + $0x1df8] sm:$0xff]
    %v4290 = vld [vmem:[#allocation26 + $0x1e00] sm:$0xff]
    %v4291 = vld [vmem:[#allocation26 + $0x1e08] sm:$0xff]
    %v4292 = vld [vmem:[#allocation26 + $0x1e10] sm:$0xff]
    %v4293 = vld [vmem:[#allocation26 + $0x1e18] sm:$0xff]
    %v4294 = vld [vmem:[#allocation26 + $0x1e20] sm:$0xff]
    %v4295 = vld [vmem:[#allocation26 + $0x1e28] sm:$0xff]
    %v4296 = vld [vmem:[#allocation26 + $0x1e30] sm:$0xff]
    %v4297 = vld [vmem:[#allocation26 + $0x1e38] sm:$0xff]
    %v4298 = vld [vmem:[#allocation26 + $0x1e40] sm:$0xff]
    %v4299 = vld [vmem:[#allocation26 + $0x1e48] sm:$0xff]
    %v4300 = vld [vmem:[#allocation26 + $0x1e50] sm:$0xff]
    %v4301 = vld [vmem:[#allocation26 + $0x1e58] sm:$0xff]
    %v4302 = vld [vmem:[#allocation26 + $0x1e60] sm:$0xff]
    %v4303 = vld [vmem:[#allocation26 + $0x1e68] sm:$0xff]
    %v4304 = vld [vmem:[#allocation26 + $0x1e70] sm:$0xff]
    %v4305 = vld [vmem:[#allocation26 + $0x1e78] sm:$0xff]
    %v4306 = vld [vmem:[#allocation26 + $0x1e80] sm:$0xff]
    %v4307 = vld [vmem:[#allocation26 + $0x1e88] sm:$0xff]
    %v4308 = vld [vmem:[#allocation26 + $0x1e90] sm:$0xff]
    %v4309 = vld [vmem:[#allocation26 + $0x1e98] sm:$0xff]
    %v4310 = vld [vmem:[#allocation26 + $0x1ea0] sm:$0xff]
    %v4311 = vld [vmem:[#allocation26 + $0x1ea8] sm:$0xff]
    %v4312 = vld [vmem:[#allocation26 + $0x1eb0] sm:$0xff]
    %v4313 = vld [vmem:[#allocation26 + $0x1eb8] sm:$0xff]
    %v4314 = vld [vmem:[#allocation26 + $0x1ec0] sm:$0xff]
    %v4315 = vld [vmem:[#allocation26 + $0x1ec8] sm:$0xff]
    %v4316 = vld [vmem:[#allocation26 + $0x1ed0] sm:$0xff]
    %v4317 = vld [vmem:[#allocation26 + $0x1ed8] sm:$0xff]
    %v4318 = vld [vmem:[#allocation26 + $0x1ee0] sm:$0xff]
    %v4319 = vld [vmem:[#allocation26 + $0x1ee8] sm:$0xff]
    %v4320 = vld [vmem:[#allocation26 + $0x1ef0] sm:$0xff]
    %v4321 = vld [vmem:[#allocation26 + $0x1ef8] sm:$0xff]
    %v4322 = vld [vmem:[#allocation26 + $0x1f00] sm:$0xff]
    %v4323 = vld [vmem:[#allocation26 + $0x1f08] sm:$0xff]
    %v4324 = vld [vmem:[#allocation26 + $0x1f10] sm:$0xff]
    %v4325 = vld [vmem:[#allocation26 + $0x1f18] sm:$0xff]
    %v4326 = vld [vmem:[#allocation26 + $0x1f20] sm:$0xff]
    %v4327 = vld [vmem:[#allocation26 + $0x1f28] sm:$0xff]
    %v4328 = vld [vmem:[#allocation26 + $0x1f30] sm:$0xff]
    %v4329 = vld [vmem:[#allocation26 + $0x1f38] sm:$0xff]
    %v4330 = vld [vmem:[#allocation26 + $0x1f40] sm:$0xff]
    %v4331 = vld [vmem:[#allocation26 + $0x1f48] sm:$0xff]
    %v4332 = vld [vmem:[#allocation26 + $0x1f50] sm:$0xff]
    %v4333 = vld [vmem:[#allocation26 + $0x1f58] sm:$0xff]
    %v4334 = vld [vmem:[#allocation26 + $0x1f60] sm:$0xff]
    %v4335 = vld [vmem:[#allocation26 + $0x1f68] sm:$0xff]
    %v4336 = vld [vmem:[#allocation26 + $0x1f70] sm:$0xff]
    %v4337 = vld [vmem:[#allocation26 + $0x1f78] sm:$0xff]
    %v4338 = vld [vmem:[#allocation26 + $0x1f80] sm:$0xff]
    %v4339 = vld [vmem:[#allocation26 + $0x1f88] sm:$0xff]
    %v4340 = vld [vmem:[#allocation26 + $0x1f90] sm:$0xff]
    %v4341 = vld [vmem:[#allocation26 + $0x1f98] sm:$0xff]
    %v4342 = vld [vmem:[#allocation26 + $0x1fa0] sm:$0xff]
    %v4343 = vld [vmem:[#allocation26 + $0x1fa8] sm:$0xff]
    %v4344 = vld [vmem:[#allocation26 + $0x1fb0] sm:$0xff]
    %v4345 = vld [vmem:[#allocation26 + $0x1fb8] sm:$0xff]
    %v4346 = vld [vmem:[#allocation26 + $0x1fc0] sm:$0xff]
    %v4347 = vld [vmem:[#allocation26 + $0x1fc8] sm:$0xff]
    %v4348 = vld [vmem:[#allocation26 + $0x1fd0] sm:$0xff]
    %v4349 = vld [vmem:[#allocation26 + $0x1fd8] sm:$0xff]
    %v4350 = vld [vmem:[#allocation26 + $0x1fe0] sm:$0xff]
    %v4351 = vld [vmem:[#allocation26 + $0x1fe8] sm:$0xff]
    %v4352 = vld [vmem:[#allocation26 + $0x1ff0] sm:$0xff]
    %v4353 = vld [vmem:[#allocation26 + $0x1ff8] sm:$0xff]
    %4354 = vmatprep.subr.mxu0 %v3451
    %4355 = vmatpush1.msra.mxu0 %v3450
    %4356 = vmatprep.subr.mxu0 %v3443
    %4357 = vmatpush1.msra.mxu0 %v3442
    %4358 = vmatprep.subr.mxu0 %v3435
    %4359 = vmatpush1.msra.mxu0 %v3434
    %4360 = vmatprep.subr.mxu0 %v3427
    %4361 = vmatpush1.msra.mxu0 %v3426
    %4362 = vmatprep.subr.mxu0 %v3419
    %4363 = vmatpush1.msra.mxu0 %v3418
    %4364 = vmatprep.subr.mxu0 %v3411
    %4365 = vmatpush1.msra.mxu0 %v3410
    %4366 = vmatprep.subr.mxu0 %v3403
    %4367 = vmatpush1.msra.mxu0 %v3402
    %4368 = vmatprep.subr.mxu0 %v3395
    %4369 = vmatpush1.msra.mxu0 %v3394
    %4370 = vmatprep.subr.mxu0 %v3387
    %4371 = vmatpush1.msra.mxu0 %v3386
    %4372 = vmatprep.subr.mxu0 %v3379
    %4373 = vmatpush1.msra.mxu0 %v3378
    %4374 = vmatprep.subr.mxu0 %v3371
    %4375 = vmatpush1.msra.mxu0 %v3370
    %4376 = vmatprep.subr.mxu0 %v3363
    %4377 = vmatpush1.msra.mxu0 %v3362
    %4378 = vmatprep.subr.mxu0 %v3355
    %4379 = vmatpush1.msra.mxu0 %v3354
    %4380 = vmatprep.subr.mxu0 %v3347
    %4381 = vmatpush1.msra.mxu0 %v3346
    %4382 = vmatprep.subr.mxu0 %v3339
    %4383 = vmatpush1.msra.mxu0 %v3338
    %4384 = vmatprep.subr.mxu0 %v3331
    %4385 = vmatpush1.msra.mxu0 %v3330
    %4386 = vmatprep.subr.mxu0 %v3579
    %4387 = vmatpush2.msra.mxu0 %v3578
    %4388 = vmatprep.subr.mxu0 %v3571
    %4389 = vmatpush2.msra.mxu0 %v3570
    %4390 = vmatprep.subr.mxu0 %v3563
    %4391 = vmatpush2.msra.mxu0 %v3562
    %4392 = vmatprep.subr.mxu0 %v3555
    %4393 = vmatpush2.msra.mxu0 %v3554
    %4394 = vmatprep.subr.mxu0 %v3547
    %4395 = vmatpush2.msra.mxu0 %v3546
    %4396 = vmatprep.subr.mxu0 %v3539
    %4397 = vmatpush2.msra.mxu0 %v3538
    %4398 = vmatprep.subr.mxu0 %v3531
    %4399 = vmatpush2.msra.mxu0 %v3530
    %4400 = vmatprep.subr.mxu0 %v3523
    %4401 = vmatpush2.msra.mxu0 %v3522
    %4402 = vmatprep.subr.mxu0 %v3515
    %4403 = vmatpush2.msra.mxu0 %v3514
    %4404 = vmatprep.subr.mxu0 %v3507
    %4405 = vmatpush2.msra.mxu0 %v3506
    %4406 = vmatprep.subr.mxu0 %v3499
    %4407 = vmatpush2.msra.mxu0 %v3498
    %4408 = vmatprep.subr.mxu0 %v3491
    %4409 = vmatpush2.msra.mxu0 %v3490
    %4410 = vmatprep.subr.mxu0 %v3483
    %4411 = vmatpush2.msra.mxu0 %v3482
    %4412 = vmatprep.subr.mxu0 %v3475
    %4413 = vmatpush2.msra.mxu0 %v3474
    %4414 = vmatprep.subr.mxu0 %v3467
    %4415 = vmatpush2.msra.mxu0 %v3466
    %4416 = vmatprep.subr.mxu0 %v3459
    %4417 = vmatpush2.msra.mxu0 %v3458
    %4418 = vmatprep.mubr.f32.mxu0 %v3317
    %4419 = vmatmul.mubr.f32.gmra.mxu0 %v3308
    %v4420 = vpop.f32.mrf.mxu0
    %v4421 = vadd.f32 0.0, %v4420
    %v4422 = vpop.f32.mrf.mxu0
    %v4423 = vadd.f32 0.0, %v4422
    %4424 = vdwg.mxu0
    %4425 = vmatprep.subr.mxu0 %v3707
    %4426 = vmatpush1.msra.mxu0 %v3706
    %4427 = vmatprep.subr.mxu0 %v3699
    %4428 = vmatpush1.msra.mxu0 %v3698
    %4429 = vmatprep.subr.mxu0 %v3691
    %4430 = vmatpush1.msra.mxu0 %v3690
    %4431 = vmatprep.subr.mxu0 %v3683
    %4432 = vmatpush1.msra.mxu0 %v3682
    %4433 = vmatprep.subr.mxu0 %v3675
    %4434 = vmatpush1.msra.mxu0 %v3674
    %4435 = vmatprep.subr.mxu0 %v3667
    %4436 = vmatpush1.msra.mxu0 %v3666
    %4437 = vmatprep.subr.mxu0 %v3659
    %4438 = vmatpush1.msra.mxu0 %v3658
    %4439 = vmatprep.subr.mxu0 %v3651
    %4440 = vmatpush1.msra.mxu0 %v3650
    %4441 = vmatprep.subr.mxu0 %v3643
    %4442 = vmatpush1.msra.mxu0 %v3642
    %4443 = vmatprep.subr.mxu0 %v3635
    %4444 = vmatpush1.msra.mxu0 %v3634
    %4445 = vmatprep.subr.mxu0 %v3627
    %4446 = vmatpush1.msra.mxu0 %v3626
    %4447 = vmatprep.subr.mxu0 %v3619
    %4448 = vmatpush1.msra.mxu0 %v3618
    %4449 = vmatprep.subr.mxu0 %v3611
    %4450 = vmatpush1.msra.mxu0 %v3610
    %4451 = vmatprep.subr.mxu0 %v3603
    %4452 = vmatpush1.msra.mxu0 %v3602
    %4453 = vmatprep.subr.mxu0 %v3595
    %4454 = vmatpush1.msra.mxu0 %v3594
    %4455 = vmatprep.subr.mxu0 %v3587
    %4456 = vmatpush1.msra.mxu0 %v3586
    %4457 = vmatprep.subr.mxu0 %v3835
    %4458 = vmatpush2.msra.mxu0 %v3834
    %4459 = vmatprep.subr.mxu0 %v3827
    %4460 = vmatpush2.msra.mxu0 %v3826
    %4461 = vmatprep.subr.mxu0 %v3819
    %4462 = vmatpush2.msra.mxu0 %v3818
    %4463 = vmatprep.subr.mxu0 %v3811
    %4464 = vmatpush2.msra.mxu0 %v3810
    %4465 = vmatprep.subr.mxu0 %v3803
    %4466 = vmatpush2.msra.mxu0 %v3802
    %4467 = vmatprep.subr.mxu0 %v3795
    %4468 = vmatpush2.msra.mxu0 %v3794
    %4469 = vmatprep.subr.mxu0 %v3787
    %4470 = vmatpush2.msra.mxu0 %v3786
    %4471 = vmatprep.subr.mxu0 %v3779
    %4472 = vmatpush2.msra.mxu0 %v3778
    %4473 = vmatprep.subr.mxu0 %v3771
    %4474 = vmatpush2.msra.mxu0 %v3770
    %4475 = vmatprep.subr.mxu0 %v3763
    %4476 = vmatpush2.msra.mxu0 %v3762
    %4477 = vmatprep.subr.mxu0 %v3755
    %4478 = vmatpush2.msra.mxu0 %v3754
    %4479 = vmatprep.subr.mxu0 %v3747
    %4480 = vmatpush2.msra.mxu0 %v3746
    %4481 = vmatprep.subr.mxu0 %v3739
    %4482 = vmatpush2.msra.mxu0 %v3738
    %4483 = vmatprep.subr.mxu0 %v3731
    %4484 = vmatpush2.msra.mxu0 %v3730
    %4485 = vmatprep.subr.mxu0 %v3723
    %4486 = vmatpush2.msra.mxu0 %v3722
    %4487 = vmatprep.subr.mxu0 %v3715
    %4488 = vmatpush2.msra.mxu0 %v3714
    %4489 = vmatprep.mubr.f32.mxu0 %v3321
    %4490 = vmatmul.mubr.f32.gmra.mxu0 %v3319
    %v4491 = vpop.f32.mrf.mxu0
    %v4492 = vadd.f32 %v4421, %v4491
    %v4493 = vpop.f32.mrf.mxu0
    %v4494 = vadd.f32 %v4423, %v4493
    %4495 = vdwg.mxu0
    %4496 = vmatprep.subr.mxu0 %v3963
    %4497 = vmatpush1.msra.mxu0 %v3962
    %4498 = vmatprep.subr.mxu0 %v3955
    %4499 = vmatpush1.msra.mxu0 %v3954
    %4500 = vmatprep.subr.mxu0 %v3947
    %4501 = vmatpush1.msra.mxu0 %v3946
    %4502 = vmatprep.subr.mxu0 %v3939
    %4503 = vmatpush1.msra.mxu0 %v3938
    %4504 = vmatprep.subr.mxu0 %v3931
    %4505 = vmatpush1.msra.mxu0 %v3930
    %4506 = vmatprep.subr.mxu0 %v3923
    %4507 = vmatpush1.msra.mxu0 %v3922
    %4508 = vmatprep.subr.mxu0 %v3915
    %4509 = vmatpush1.msra.mxu0 %v3914
    %4510 = vmatprep.subr.mxu0 %v3907
    %4511 = vmatpush1.msra.mxu0 %v3906
    %4512 = vmatprep.subr.mxu0 %v3899
    %4513 = vmatpush1.msra.mxu0 %v3898
    %4514 = vmatprep.subr.mxu0 %v3891
    %4515 = vmatpush1.msra.mxu0 %v3890
    %4516 = vmatprep.subr.mxu0 %v3883
    %4517 = vmatpush1.msra.mxu0 %v3882
    %4518 = vmatprep.subr.mxu0 %v3875
    %4519 = vmatpush1.msra.mxu0 %v3874
    %4520 = vmatprep.subr.mxu0 %v3867
    %4521 = vmatpush1.msra.mxu0 %v3866
    %4522 = vmatprep.subr.mxu0 %v3859
    %4523 = vmatpush1.msra.mxu0 %v3858
    %4524 = vmatprep.subr.mxu0 %v3851
    %4525 = vmatpush1.msra.mxu0 %v3850
    %4526 = vmatprep.subr.mxu0 %v3843
    %4527 = vmatpush1.msra.mxu0 %v3842
    %4528 = vmatprep.subr.mxu0 %v4091
    %4529 = vmatpush2.msra.mxu0 %v4090
    %4530 = vmatprep.subr.mxu0 %v4083
    %4531 = vmatpush2.msra.mxu0 %v4082
    %4532 = vmatprep.subr.mxu0 %v4075
    %4533 = vmatpush2.msra.mxu0 %v4074
    %4534 = vmatprep.subr.mxu0 %v4067
    %4535 = vmatpush2.msra.mxu0 %v4066
    %4536 = vmatprep.subr.mxu0 %v4059
    %4537 = vmatpush2.msra.mxu0 %v4058
    %4538 = vmatprep.subr.mxu0 %v4051
    %4539 = vmatpush2.msra.mxu0 %v4050
    %4540 = vmatprep.subr.mxu0 %v4043
    %4541 = vmatpush2.msra.mxu0 %v4042
    %4542 = vmatprep.subr.mxu0 %v4035
    %4543 = vmatpush2.msra.mxu0 %v4034
    %4544 = vmatprep.subr.mxu0 %v4027
    %4545 = vmatpush2.msra.mxu0 %v4026
    %4546 = vmatprep.subr.mxu0 %v4019
    %4547 = vmatpush2.msra.mxu0 %v4018
    %4548 = vmatprep.subr.mxu0 %v4011
    %4549 = vmatpush2.msra.mxu0 %v4010
    %4550 = vmatprep.subr.mxu0 %v4003
    %4551 = vmatpush2.msra.mxu0 %v4002
    %4552 = vmatprep.subr.mxu0 %v3995
    %4553 = vmatpush2.msra.mxu0 %v3994
    %4554 = vmatprep.subr.mxu0 %v3987
    %4555 = vmatpush2.msra.mxu0 %v3986
    %4556 = vmatprep.subr.mxu0 %v3979
    %4557 = vmatpush2.msra.mxu0 %v3978
    %4558 = vmatprep.subr.mxu0 %v3971
    %4559 = vmatpush2.msra.mxu0 %v3970
    %4560 = vmatprep.mubr.f32.mxu0 %v3324
    %4561 = vmatmul.mubr.f32.gmra.mxu0 %v3313
    %v4562 = vpop.f32.mrf.mxu0
    %v4563 = vadd.f32 %v4492, %v4562
    %v4564 = vpop.f32.mrf.mxu0
    %v4565 = vadd.f32 %v4494, %v4564
    %4566 = vdwg.mxu0
    %4567 = vmatprep.subr.mxu0 %v4219
    %4568 = vmatpush1.msra.mxu0 %v4218
    %4569 = vmatprep.subr.mxu0 %v4211
    %4570 = vmatpush1.msra.mxu0 %v4210
    %4571 = vmatprep.subr.mxu0 %v4203
    %4572 = vmatpush1.msra.mxu0 %v4202
    %4573 = vmatprep.subr.mxu0 %v4195
    %4574 = vmatpush1.msra.mxu0 %v4194
    %4575 = vmatprep.subr.mxu0 %v4187
    %4576 = vmatpush1.msra.mxu0 %v4186
    %4577 = vmatprep.subr.mxu0 %v4179
    %4578 = vmatpush1.msra.mxu0 %v4178
    %4579 = vmatprep.subr.mxu0 %v4171
    %4580 = vmatpush1.msra.mxu0 %v4170
    %4581 = vmatprep.subr.mxu0 %v4163
    %4582 = vmatpush1.msra.mxu0 %v4162
    %4583 = vmatprep.subr.mxu0 %v4155
    %4584 = vmatpush1.msra.mxu0 %v4154
    %4585 = vmatprep.subr.mxu0 %v4147
    %4586 = vmatpush1.msra.mxu0 %v4146
    %4587 = vmatprep.subr.mxu0 %v4139
    %4588 = vmatpush1.msra.mxu0 %v4138
    %4589 = vmatprep.subr.mxu0 %v4131
    %4590 = vmatpush1.msra.mxu0 %v4130
    %4591 = vmatprep.subr.mxu0 %v4123
    %4592 = vmatpush1.msra.mxu0 %v4122
    %4593 = vmatprep.subr.mxu0 %v4115
    %4594 = vmatpush1.msra.mxu0 %v4114
    %4595 = vmatprep.subr.mxu0 %v4107
    %4596 = vmatpush1.msra.mxu0 %v4106
    %4597 = vmatprep.subr.mxu0 %v4099
    %4598 = vmatpush1.msra.mxu0 %v4098
    %4599 = vmatprep.subr.mxu0 %v4347
    %4600 = vmatpush2.msra.mxu0 %v4346
    %4601 = vmatprep.subr.mxu0 %v4339
    %4602 = vmatpush2.msra.mxu0 %v4338
    %4603 = vmatprep.subr.mxu0 %v4331
    %4604 = vmatpush2.msra.mxu0 %v4330
    %4605 = vmatprep.subr.mxu0 %v4323
    %4606 = vmatpush2.msra.mxu0 %v4322
    %4607 = vmatprep.subr.mxu0 %v4315
    %4608 = vmatpush2.msra.mxu0 %v4314
    %4609 = vmatprep.subr.mxu0 %v4307
    %4610 = vmatpush2.msra.mxu0 %v4306
    %4611 = vmatprep.subr.mxu0 %v4299
    %4612 = vmatpush2.msra.mxu0 %v4298
    %4613 = vmatprep.subr.mxu0 %v4291
    %4614 = vmatpush2.msra.mxu0 %v4290
    %4615 = vmatprep.subr.mxu0 %v4283
    %4616 = vmatpush2.msra.mxu0 %v4282
    %4617 = vmatprep.subr.mxu0 %v4275
    %4618 = vmatpush2.msra.mxu0 %v4274
    %4619 = vmatprep.subr.mxu0 %v4267
    %4620 = vmatpush2.msra.mxu0 %v4266
    %4621 = vmatprep.subr.mxu0 %v4259
    %4622 = vmatpush2.msra.mxu0 %v4258
    %4623 = vmatprep.subr.mxu0 %v4251
    %4624 = vmatpush2.msra.mxu0 %v4250
    %4625 = vmatprep.subr.mxu0 %v4243
    %4626 = vmatpush2.msra.mxu0 %v4242
    %4627 = vmatprep.subr.mxu0 %v4235
    %4628 = vmatpush2.msra.mxu0 %v4234
    %4629 = vmatprep.subr.mxu0 %v4227
    %4630 = vmatpush2.msra.mxu0 %v4226
    %4631 = vmatprep.mubr.f32.mxu0 %v3328
    %4632 = vmatmul.mubr.f32.gmra.mxu0 %v3326
    %v4633 = vpop.f32.mrf.mxu0
    %v4634 = vadd.f32 %v4563, %v4633
    %v4635 = vpop.f32.mrf.mxu0
    %v4636 = vadd.f32 %v4565, %v4635
    %4637 = vdwg.mxu0
    %4638 = vmatprep.subr.mxu0 %v3453
    %4639 = vmatpush1.msra.mxu0 %v3452
    %4640 = vmatprep.subr.mxu0 %v3445
    %4641 = vmatpush1.msra.mxu0 %v3444
    %4642 = vmatprep.subr.mxu0 %v3437
    %4643 = vmatpush1.msra.mxu0 %v3436
    %4644 = vmatprep.subr.mxu0 %v3429
    %4645 = vmatpush1.msra.mxu0 %v3428
    %4646 = vmatprep.subr.mxu0 %v3421
    %4647 = vmatpush1.msra.mxu0 %v3420
    %4648 = vmatprep.subr.mxu0 %v3413
    %4649 = vmatpush1.msra.mxu0 %v3412
    %4650 = vmatprep.subr.mxu0 %v3405
    %4651 = vmatpush1.msra.mxu0 %v3404
    %4652 = vmatprep.subr.mxu0 %v3397
    %4653 = vmatpush1.msra.mxu0 %v3396
    %4654 = vmatprep.subr.mxu0 %v3389
    %4655 = vmatpush1.msra.mxu0 %v3388
    %4656 = vmatprep.subr.mxu0 %v3381
    %4657 = vmatpush1.msra.mxu0 %v3380
    %4658 = vmatprep.subr.mxu0 %v3373
    %4659 = vmatpush1.msra.mxu0 %v3372
    %4660 = vmatprep.subr.mxu0 %v3365
    %4661 = vmatpush1.msra.mxu0 %v3364
    %4662 = vmatprep.subr.mxu0 %v3357
    %4663 = vmatpush1.msra.mxu0 %v3356
    %4664 = vmatprep.subr.mxu0 %v3349
    %4665 = vmatpush1.msra.mxu0 %v3348
    %4666 = vmatprep.subr.mxu0 %v3341
    %4667 = vmatpush1.msra.mxu0 %v3340
    %4668 = vmatprep.subr.mxu0 %v3333
    %4669 = vmatpush1.msra.mxu0 %v3332
    %4670 = vmatprep.subr.mxu0 %v3581
    %4671 = vmatpush2.msra.mxu0 %v3580
    %4672 = vmatprep.subr.mxu0 %v3573
    %4673 = vmatpush2.msra.mxu0 %v3572
    %4674 = vmatprep.subr.mxu0 %v3565
    %4675 = vmatpush2.msra.mxu0 %v3564
    %4676 = vmatprep.subr.mxu0 %v3557
    %4677 = vmatpush2.msra.mxu0 %v3556
    %4678 = vmatprep.subr.mxu0 %v3549
    %4679 = vmatpush2.msra.mxu0 %v3548
    %4680 = vmatprep.subr.mxu0 %v3541
    %4681 = vmatpush2.msra.mxu0 %v3540
    %4682 = vmatprep.subr.mxu0 %v3533
    %4683 = vmatpush2.msra.mxu0 %v3532
    %4684 = vmatprep.subr.mxu0 %v3525
    %4685 = vmatpush2.msra.mxu0 %v3524
    %4686 = vmatprep.subr.mxu0 %v3517
    %4687 = vmatpush2.msra.mxu0 %v3516
    %4688 = vmatprep.subr.mxu0 %v3509
    %4689 = vmatpush2.msra.mxu0 %v3508
    %4690 = vmatprep.subr.mxu0 %v3501
    %4691 = vmatpush2.msra.mxu0 %v3500
    %4692 = vmatprep.subr.mxu0 %v3493
    %4693 = vmatpush2.msra.mxu0 %v3492
    %4694 = vmatprep.subr.mxu0 %v3485
    %4695 = vmatpush2.msra.mxu0 %v3484
    %4696 = vmatprep.subr.mxu0 %v3477
    %4697 = vmatpush2.msra.mxu0 %v3476
    %4698 = vmatprep.subr.mxu0 %v3469
    %4699 = vmatpush2.msra.mxu0 %v3468
    %4700 = vmatprep.subr.mxu0 %v3461
    %4701 = vmatpush2.msra.mxu0 %v3460
    %4702 = vmatprep.mubr.f32.mxu0 %v3317
    %4703 = vmatmul.mubr.f32.gmra.mxu0 %v3308
    %v4704 = vpop.f32.mrf.mxu0
    %v4705 = vadd.f32 0.0, %v4704
    %v4706 = vpop.f32.mrf.mxu0
    %v4707 = vadd.f32 0.0, %v4706
    %4708 = vdwg.mxu0
    %4709 = vmatprep.subr.mxu0 %v3709
    %4710 = vmatpush1.msra.mxu0 %v3708
    %4711 = vmatprep.subr.mxu0 %v3701
    %4712 = vmatpush1.msra.mxu0 %v3700
    %4713 = vmatprep.subr.mxu0 %v3693
    %4714 = vmatpush1.msra.mxu0 %v3692
    %4715 = vmatprep.subr.mxu0 %v3685
    %4716 = vmatpush1.msra.mxu0 %v3684
    %4717 = vmatprep.subr.mxu0 %v3677
    %4718 = vmatpush1.msra.mxu0 %v3676
    %4719 = vmatprep.subr.mxu0 %v3669
    %4720 = vmatpush1.msra.mxu0 %v3668
    %4721 = vmatprep.subr.mxu0 %v3661
    %4722 = vmatpush1.msra.mxu0 %v3660
    %4723 = vmatprep.subr.mxu0 %v3653
    %4724 = vmatpush1.msra.mxu0 %v3652
    %4725 = vmatprep.subr.mxu0 %v3645
    %4726 = vmatpush1.msra.mxu0 %v3644
    %4727 = vmatprep.subr.mxu0 %v3637
    %4728 = vmatpush1.msra.mxu0 %v3636
    %4729 = vmatprep.subr.mxu0 %v3629
    %4730 = vmatpush1.msra.mxu0 %v3628
    %4731 = vmatprep.subr.mxu0 %v3621
    %4732 = vmatpush1.msra.mxu0 %v3620
    %4733 = vmatprep.subr.mxu0 %v3613
    %4734 = vmatpush1.msra.mxu0 %v3612
    %4735 = vmatprep.subr.mxu0 %v3605
    %4736 = vmatpush1.msra.mxu0 %v3604
    %4737 = vmatprep.subr.mxu0 %v3597
    %4738 = vmatpush1.msra.mxu0 %v3596
    %4739 = vmatprep.subr.mxu0 %v3589
    %4740 = vmatpush1.msra.mxu0 %v3588
    %4741 = vmatprep.subr.mxu0 %v3837
    %4742 = vmatpush2.msra.mxu0 %v3836
    %4743 = vmatprep.subr.mxu0 %v3829
    %4744 = vmatpush2.msra.mxu0 %v3828
    %4745 = vmatprep.subr.mxu0 %v3821
    %4746 = vmatpush2.msra.mxu0 %v3820
    %4747 = vmatprep.subr.mxu0 %v3813
    %4748 = vmatpush2.msra.mxu0 %v3812
    %4749 = vmatprep.subr.mxu0 %v3805
    %4750 = vmatpush2.msra.mxu0 %v3804
    %4751 = vmatprep.subr.mxu0 %v3797
    %4752 = vmatpush2.msra.mxu0 %v3796
    %4753 = vmatprep.subr.mxu0 %v3789
    %4754 = vmatpush2.msra.mxu0 %v3788
    %4755 = vmatprep.subr.mxu0 %v3781
    %4756 = vmatpush2.msra.mxu0 %v3780
    %4757 = vmatprep.subr.mxu0 %v3773
    %4758 = vmatpush2.msra.mxu0 %v3772
    %4759 = vmatprep.subr.mxu0 %v3765
    %4760 = vmatpush2.msra.mxu0 %v3764
    %4761 = vmatprep.subr.mxu0 %v3757
    %4762 = vmatpush2.msra.mxu0 %v3756
    %4763 = vmatprep.subr.mxu0 %v3749
    %4764 = vmatpush2.msra.mxu0 %v3748
    %4765 = vmatprep.subr.mxu0 %v3741
    %4766 = vmatpush2.msra.mxu0 %v3740
    %4767 = vmatprep.subr.mxu0 %v3733
    %4768 = vmatpush2.msra.mxu0 %v3732
    %4769 = vmatprep.subr.mxu0 %v3725
    %4770 = vmatpush2.msra.mxu0 %v3724
    %4771 = vmatprep.subr.mxu0 %v3717
    %4772 = vmatpush2.msra.mxu0 %v3716
    %4773 = vmatprep.mubr.f32.mxu0 %v3321
    %4774 = vmatmul.mubr.f32.gmra.mxu0 %v3319
    %v4775 = vpop.f32.mrf.mxu0
    %v4776 = vadd.f32 %v4705, %v4775
    %v4777 = vpop.f32.mrf.mxu0
    %v4778 = vadd.f32 %v4707, %v4777
    %4779 = vdwg.mxu0
    %4780 = vmatprep.subr.mxu0 %v3965
    %4781 = vmatpush1.msra.mxu0 %v3964
    %4782 = vmatprep.subr.mxu0 %v3957
    %4783 = vmatpush1.msra.mxu0 %v3956
    %4784 = vmatprep.subr.mxu0 %v3949
    %4785 = vmatpush1.msra.mxu0 %v3948
    %4786 = vmatprep.subr.mxu0 %v3941
    %4787 = vmatpush1.msra.mxu0 %v3940
    %4788 = vmatprep.subr.mxu0 %v3933
    %4789 = vmatpush1.msra.mxu0 %v3932
    %4790 = vmatprep.subr.mxu0 %v3925
    %4791 = vmatpush1.msra.mxu0 %v3924
    %4792 = vmatprep.subr.mxu0 %v3917
    %4793 = vmatpush1.msra.mxu0 %v3916
    %4794 = vmatprep.subr.mxu0 %v3909
    %4795 = vmatpush1.msra.mxu0 %v3908
    %4796 = vmatprep.subr.mxu0 %v3901
    %4797 = vmatpush1.msra.mxu0 %v3900
    %4798 = vmatprep.subr.mxu0 %v3893
    %4799 = vmatpush1.msra.mxu0 %v3892
    %4800 = vmatprep.subr.mxu0 %v3885
    %4801 = vmatpush1.msra.mxu0 %v3884
    %4802 = vmatprep.subr.mxu0 %v3877
    %4803 = vmatpush1.msra.mxu0 %v3876
    %4804 = vmatprep.subr.mxu0 %v3869
    %4805 = vmatpush1.msra.mxu0 %v3868
    %4806 = vmatprep.subr.mxu0 %v3861
    %4807 = vmatpush1.msra.mxu0 %v3860
    %4808 = vmatprep.subr.mxu0 %v3853
    %4809 = vmatpush1.msra.mxu0 %v3852
    %4810 = vmatprep.subr.mxu0 %v3845
    %4811 = vmatpush1.msra.mxu0 %v3844
    %4812 = vmatprep.subr.mxu0 %v4093
    %4813 = vmatpush2.msra.mxu0 %v4092
    %4814 = vmatprep.subr.mxu0 %v4085
    %4815 = vmatpush2.msra.mxu0 %v4084
    %4816 = vmatprep.subr.mxu0 %v4077
    %4817 = vmatpush2.msra.mxu0 %v4076
    %4818 = vmatprep.subr.mxu0 %v4069
    %4819 = vmatpush2.msra.mxu0 %v4068
    %4820 = vmatprep.subr.mxu0 %v4061
    %4821 = vmatpush2.msra.mxu0 %v4060
    %4822 = vmatprep.subr.mxu0 %v4053
    %4823 = vmatpush2.msra.mxu0 %v4052
    %4824 = vmatprep.subr.mxu0 %v4045
    %4825 = vmatpush2.msra.mxu0 %v4044
    %4826 = vmatprep.subr.mxu0 %v4037
    %4827 = vmatpush2.msra.mxu0 %v4036
    %4828 = vmatprep.subr.mxu0 %v4029
    %4829 = vmatpush2.msra.mxu0 %v4028
    %4830 = vmatprep.subr.mxu0 %v4021
    %4831 = vmatpush2.msra.mxu0 %v4020
    %4832 = vmatprep.subr.mxu0 %v4013
    %4833 = vmatpush2.msra.mxu0 %v4012
    %4834 = vmatprep.subr.mxu0 %v4005
    %4835 = vmatpush2.msra.mxu0 %v4004
    %4836 = vmatprep.subr.mxu0 %v3997
    %4837 = vmatpush2.msra.mxu0 %v3996
    %4838 = vmatprep.subr.mxu0 %v3989
    %4839 = vmatpush2.msra.mxu0 %v3988
    %4840 = vmatprep.subr.mxu0 %v3981
    %4841 = vmatpush2.msra.mxu0 %v3980
    %4842 = vmatprep.subr.mxu0 %v3973
    %4843 = vmatpush2.msra.mxu0 %v3972
    %4844 = vmatprep.mubr.f32.mxu0 %v3324
    %4845 = vmatmul.mubr.f32.gmra.mxu0 %v3313
    %v4846 = vpop.f32.mrf.mxu0
    %v4847 = vadd.f32 %v4776, %v4846
    %v4848 = vpop.f32.mrf.mxu0
    %v4849 = vadd.f32 %v4778, %v4848
    %4850 = vdwg.mxu0
    %4851 = vmatprep.subr.mxu0 %v4221
    %4852 = vmatpush1.msra.mxu0 %v4220
    %4853 = vmatprep.subr.mxu0 %v4213
    %4854 = vmatpush1.msra.mxu0 %v4212
    %4855 = vmatprep.subr.mxu0 %v4205
    %4856 = vmatpush1.msra.mxu0 %v4204
    %4857 = vmatprep.subr.mxu0 %v4197
    %4858 = vmatpush1.msra.mxu0 %v4196
    %4859 = vmatprep.subr.mxu0 %v4189
    %4860 = vmatpush1.msra.mxu0 %v4188
    %4861 = vmatprep.subr.mxu0 %v4181
    %4862 = vmatpush1.msra.mxu0 %v4180
    %4863 = vmatprep.subr.mxu0 %v4173
    %4864 = vmatpush1.msra.mxu0 %v4172
    %4865 = vmatprep.subr.mxu0 %v4165
    %4866 = vmatpush1.msra.mxu0 %v4164
    %4867 = vmatprep.subr.mxu0 %v4157
    %4868 = vmatpush1.msra.mxu0 %v4156
    %4869 = vmatprep.subr.mxu0 %v4149
    %4870 = vmatpush1.msra.mxu0 %v4148
    %4871 = vmatprep.subr.mxu0 %v4141
    %4872 = vmatpush1.msra.mxu0 %v4140
    %4873 = vmatprep.subr.mxu0 %v4133
    %4874 = vmatpush1.msra.mxu0 %v4132
    %4875 = vmatprep.subr.mxu0 %v4125
    %4876 = vmatpush1.msra.mxu0 %v4124
    %4877 = vmatprep.subr.mxu0 %v4117
    %4878 = vmatpush1.msra.mxu0 %v4116
    %4879 = vmatprep.subr.mxu0 %v4109
    %4880 = vmatpush1.msra.mxu0 %v4108
    %4881 = vmatprep.subr.mxu0 %v4101
    %4882 = vmatpush1.msra.mxu0 %v4100
    %4883 = vmatprep.subr.mxu0 %v4349
    %4884 = vmatpush2.msra.mxu0 %v4348
    %4885 = vmatprep.subr.mxu0 %v4341
    %4886 = vmatpush2.msra.mxu0 %v4340
    %4887 = vmatprep.subr.mxu0 %v4333
    %4888 = vmatpush2.msra.mxu0 %v4332
    %4889 = vmatprep.subr.mxu0 %v4325
    %4890 = vmatpush2.msra.mxu0 %v4324
    %4891 = vmatprep.subr.mxu0 %v4317
    %4892 = vmatpush2.msra.mxu0 %v4316
    %4893 = vmatprep.subr.mxu0 %v4309
    %4894 = vmatpush2.msra.mxu0 %v4308
    %4895 = vmatprep.subr.mxu0 %v4301
    %4896 = vmatpush2.msra.mxu0 %v4300
    %4897 = vmatprep.subr.mxu0 %v4293
    %4898 = vmatpush2.msra.mxu0 %v4292
    %4899 = vmatprep.subr.mxu0 %v4285
    %4900 = vmatpush2.msra.mxu0 %v4284
    %4901 = vmatprep.subr.mxu0 %v4277
    %4902 = vmatpush2.msra.mxu0 %v4276
    %4903 = vmatprep.subr.mxu0 %v4269
    %4904 = vmatpush2.msra.mxu0 %v4268
    %4905 = vmatprep.subr.mxu0 %v4261
    %4906 = vmatpush2.msra.mxu0 %v4260
    %4907 = vmatprep.subr.mxu0 %v4253
    %4908 = vmatpush2.msra.mxu0 %v4252
    %4909 = vmatprep.subr.mxu0 %v4245
    %4910 = vmatpush2.msra.mxu0 %v4244
    %4911 = vmatprep.subr.mxu0 %v4237
    %4912 = vmatpush2.msra.mxu0 %v4236
    %4913 = vmatprep.subr.mxu0 %v4229
    %4914 = vmatpush2.msra.mxu0 %v4228
    %4915 = vmatprep.mubr.f32.mxu0 %v3328
    %4916 = vmatmul.mubr.f32.gmra.mxu0 %v3326
    %v4917 = vpop.f32.mrf.mxu0
    %v4918 = vadd.f32 %v4847, %v4917
    %v4919 = vpop.f32.mrf.mxu0
    %v4920 = vadd.f32 %v4849, %v4919
    %4921 = vdwg.mxu0
    %4922 = vmatprep.subr.mxu0 %v3455
    %4923 = vmatpush1.msra.mxu0 %v3454
    %4924 = vmatprep.subr.mxu0 %v3447
    %4925 = vmatpush1.msra.mxu0 %v3446
    %4926 = vmatprep.subr.mxu0 %v3439
    %4927 = vmatpush1.msra.mxu0 %v3438
    %4928 = vmatprep.subr.mxu0 %v3431
    %4929 = vmatpush1.msra.mxu0 %v3430
    %4930 = vmatprep.subr.mxu0 %v3423
    %4931 = vmatpush1.msra.mxu0 %v3422
    %4932 = vmatprep.subr.mxu0 %v3415
    %4933 = vmatpush1.msra.mxu0 %v3414
    %4934 = vmatprep.subr.mxu0 %v3407
    %4935 = vmatpush1.msra.mxu0 %v3406
    %4936 = vmatprep.subr.mxu0 %v3399
    %4937 = vmatpush1.msra.mxu0 %v3398
    %4938 = vmatprep.subr.mxu0 %v3391
    %4939 = vmatpush1.msra.mxu0 %v3390
    %4940 = vmatprep.subr.mxu0 %v3383
    %4941 = vmatpush1.msra.mxu0 %v3382
    %4942 = vmatprep.subr.mxu0 %v3375
    %4943 = vmatpush1.msra.mxu0 %v3374
    %4944 = vmatprep.subr.mxu0 %v3367
    %4945 = vmatpush1.msra.mxu0 %v3366
    %4946 = vmatprep.subr.mxu0 %v3359
    %4947 = vmatpush1.msra.mxu0 %v3358
    %4948 = vmatprep.subr.mxu0 %v3351
    %4949 = vmatpush1.msra.mxu0 %v3350
    %4950 = vmatprep.subr.mxu0 %v3343
    %4951 = vmatpush1.msra.mxu0 %v3342
    %4952 = vmatprep.subr.mxu0 %v3335
    %4953 = vmatpush1.msra.mxu0 %v3334
    %4954 = vmatprep.subr.mxu0 %v3583
    %4955 = vmatpush2.msra.mxu0 %v3582
    %4956 = vmatprep.subr.mxu0 %v3575
    %4957 = vmatpush2.msra.mxu0 %v3574
    %4958 = vmatprep.subr.mxu0 %v3567
    %4959 = vmatpush2.msra.mxu0 %v3566
    %4960 = vmatprep.subr.mxu0 %v3559
    %4961 = vmatpush2.msra.mxu0 %v3558
    %4962 = vmatprep.subr.mxu0 %v3551
    %4963 = vmatpush2.msra.mxu0 %v3550
    %4964 = vmatprep.subr.mxu0 %v3543
    %4965 = vmatpush2.msra.mxu0 %v3542
    %4966 = vmatprep.subr.mxu0 %v3535
    %4967 = vmatpush2.msra.mxu0 %v3534
    %4968 = vmatprep.subr.mxu0 %v3527
    %4969 = vmatpush2.msra.mxu0 %v3526
    %4970 = vmatprep.subr.mxu0 %v3519
    %4971 = vmatpush2.msra.mxu0 %v3518
    %4972 = vmatprep.subr.mxu0 %v3511
    %4973 = vmatpush2.msra.mxu0 %v3510
    %4974 = vmatprep.subr.mxu0 %v3503
    %4975 = vmatpush2.msra.mxu0 %v3502
    %4976 = vmatprep.subr.mxu0 %v3495
    %4977 = vmatpush2.msra.mxu0 %v3494
    %4978 = vmatprep.subr.mxu0 %v3487
    %4979 = vmatpush2.msra.mxu0 %v3486
    %4980 = vmatprep.subr.mxu0 %v3479
    %4981 = vmatpush2.msra.mxu0 %v3478
    %4982 = vmatprep.subr.mxu0 %v3471
    %4983 = vmatpush2.msra.mxu0 %v3470
    %4984 = vmatprep.subr.mxu0 %v3463
    %4985 = vmatpush2.msra.mxu0 %v3462
    %4986 = vmatprep.mubr.f32.mxu0 %v3317
    %4987 = vmatmul.mubr.f32.gmra.mxu0 %v3308
    %v4988 = vpop.f32.mrf.mxu0
    %v4989 = vadd.f32 0.0, %v4988
    %v4990 = vpop.f32.mrf.mxu0
    %v4991 = vadd.f32 0.0, %v4990
    %4992 = vdwg.mxu0
    %4993 = vmatprep.subr.mxu0 %v3711
    %4994 = vmatpush1.msra.mxu0 %v3710
    %4995 = vmatprep.subr.mxu0 %v3703
    %4996 = vmatpush1.msra.mxu0 %v3702
    %4997 = vmatprep.subr.mxu0 %v3695
    %4998 = vmatpush1.msra.mxu0 %v3694
    %4999 = vmatprep.subr.mxu0 %v3687
    %5000 = vmatpush1.msra.mxu0 %v3686
    %5001 = vmatprep.subr.mxu0 %v3679
    %5002 = vmatpush1.msra.mxu0 %v3678
    %5003 = vmatprep.subr.mxu0 %v3671
    %5004 = vmatpush1.msra.mxu0 %v3670
    %5005 = vmatprep.subr.mxu0 %v3663
    %5006 = vmatpush1.msra.mxu0 %v3662
    %5007 = vmatprep.subr.mxu0 %v3655
    %5008 = vmatpush1.msra.mxu0 %v3654
    %5009 = vmatprep.subr.mxu0 %v3647
    %5010 = vmatpush1.msra.mxu0 %v3646
    %5011 = vmatprep.subr.mxu0 %v3639
    %5012 = vmatpush1.msra.mxu0 %v3638
    %5013 = vmatprep.subr.mxu0 %v3631
    %5014 = vmatpush1.msra.mxu0 %v3630
    %5015 = vmatprep.subr.mxu0 %v3623
    %5016 = vmatpush1.msra.mxu0 %v3622
    %5017 = vmatprep.subr.mxu0 %v3615
    %5018 = vmatpush1.msra.mxu0 %v3614
    %5019 = vmatprep.subr.mxu0 %v3607
    %5020 = vmatpush1.msra.mxu0 %v3606
    %5021 = vmatprep.subr.mxu0 %v3599
    %5022 = vmatpush1.msra.mxu0 %v3598
    %5023 = vmatprep.subr.mxu0 %v3591
    %5024 = vmatpush1.msra.mxu0 %v3590
    %5025 = vmatprep.subr.mxu0 %v3839
    %5026 = vmatpush2.msra.mxu0 %v3838
    %5027 = vmatprep.subr.mxu0 %v3831
    %5028 = vmatpush2.msra.mxu0 %v3830
    %5029 = vmatprep.subr.mxu0 %v3823
    %5030 = vmatpush2.msra.mxu0 %v3822
    %5031 = vmatprep.subr.mxu0 %v3815
    %5032 = vmatpush2.msra.mxu0 %v3814
    %5033 = vmatprep.subr.mxu0 %v3807
    %5034 = vmatpush2.msra.mxu0 %v3806
    %5035 = vmatprep.subr.mxu0 %v3799
    %5036 = vmatpush2.msra.mxu0 %v3798
    %5037 = vmatprep.subr.mxu0 %v3791
    %5038 = vmatpush2.msra.mxu0 %v3790
    %5039 = vmatprep.subr.mxu0 %v3783
    %5040 = vmatpush2.msra.mxu0 %v3782
    %5041 = vmatprep.subr.mxu0 %v3775
    %5042 = vmatpush2.msra.mxu0 %v3774
    %5043 = vmatprep.subr.mxu0 %v3767
    %5044 = vmatpush2.msra.mxu0 %v3766
    %5045 = vmatprep.subr.mxu0 %v3759
    %5046 = vmatpush2.msra.mxu0 %v3758
    %5047 = vmatprep.subr.mxu0 %v3751
    %5048 = vmatpush2.msra.mxu0 %v3750
    %5049 = vmatprep.subr.mxu0 %v3743
    %5050 = vmatpush2.msra.mxu0 %v3742
    %5051 = vmatprep.subr.mxu0 %v3735
    %5052 = vmatpush2.msra.mxu0 %v3734
    %5053 = vmatprep.subr.mxu0 %v3727
    %5054 = vmatpush2.msra.mxu0 %v3726
    %5055 = vmatprep.subr.mxu0 %v3719
    %5056 = vmatpush2.msra.mxu0 %v3718
    %5057 = vmatprep.mubr.f32.mxu0 %v3321
    %5058 = vmatmul.mubr.f32.gmra.mxu0 %v3319
    %v5059 = vpop.f32.mrf.mxu0
    %v5060 = vadd.f32 %v4989, %v5059
    %v5061 = vpop.f32.mrf.mxu0
    %v5062 = vadd.f32 %v4991, %v5061
    %5063 = vdwg.mxu0
    %5064 = vmatprep.subr.mxu0 %v3967
    %5065 = vmatpush1.msra.mxu0 %v3966
    %5066 = vmatprep.subr.mxu0 %v3959
    %5067 = vmatpush1.msra.mxu0 %v3958
    %5068 = vmatprep.subr.mxu0 %v3951
    %5069 = vmatpush1.msra.mxu0 %v3950
    %5070 = vmatprep.subr.mxu0 %v3943
    %5071 = vmatpush1.msra.mxu0 %v3942
    %5072 = vmatprep.subr.mxu0 %v3935
    %5073 = vmatpush1.msra.mxu0 %v3934
    %5074 = vmatprep.subr.mxu0 %v3927
    %5075 = vmatpush1.msra.mxu0 %v3926
    %5076 = vmatprep.subr.mxu0 %v3919
    %5077 = vmatpush1.msra.mxu0 %v3918
    %5078 = vmatprep.subr.mxu0 %v3911
    %5079 = vmatpush1.msra.mxu0 %v3910
    %5080 = vmatprep.subr.mxu0 %v3903
    %5081 = vmatpush1.msra.mxu0 %v3902
    %5082 = vmatprep.subr.mxu0 %v3895
    %5083 = vmatpush1.msra.mxu0 %v3894
    %5084 = vmatprep.subr.mxu0 %v3887
    %5085 = vmatpush1.msra.mxu0 %v3886
    %5086 = vmatprep.subr.mxu0 %v3879
    %5087 = vmatpush1.msra.mxu0 %v3878
    %5088 = vmatprep.subr.mxu0 %v3871
    %5089 = vmatpush1.msra.mxu0 %v3870
    %5090 = vmatprep.subr.mxu0 %v3863
    %5091 = vmatpush1.msra.mxu0 %v3862
    %5092 = vmatprep.subr.mxu0 %v3855
    %5093 = vmatpush1.msra.mxu0 %v3854
    %5094 = vmatprep.subr.mxu0 %v3847
    %5095 = vmatpush1.msra.mxu0 %v3846
    %5096 = vmatprep.subr.mxu0 %v4095
    %5097 = vmatpush2.msra.mxu0 %v4094
    %5098 = vmatprep.subr.mxu0 %v4087
    %5099 = vmatpush2.msra.mxu0 %v4086
    %5100 = vmatprep.subr.mxu0 %v4079
    %5101 = vmatpush2.msra.mxu0 %v4078
    %5102 = vmatprep.subr.mxu0 %v4071
    %5103 = vmatpush2.msra.mxu0 %v4070
    %5104 = vmatprep.subr.mxu0 %v4063
    %5105 = vmatpush2.msra.mxu0 %v4062
    %5106 = vmatprep.subr.mxu0 %v4055
    %5107 = vmatpush2.msra.mxu0 %v4054
    %5108 = vmatprep.subr.mxu0 %v4047
    %5109 = vmatpush2.msra.mxu0 %v4046
    %5110 = vmatprep.subr.mxu0 %v4039
    %5111 = vmatpush2.msra.mxu0 %v4038
    %5112 = vmatprep.subr.mxu0 %v4031
    %5113 = vmatpush2.msra.mxu0 %v4030
    %5114 = vmatprep.subr.mxu0 %v4023
    %5115 = vmatpush2.msra.mxu0 %v4022
    %5116 = vmatprep.subr.mxu0 %v4015
    %5117 = vmatpush2.msra.mxu0 %v4014
    %5118 = vmatprep.subr.mxu0 %v4007
    %5119 = vmatpush2.msra.mxu0 %v4006
    %5120 = vmatprep.subr.mxu0 %v3999
    %5121 = vmatpush2.msra.mxu0 %v3998
    %5122 = vmatprep.subr.mxu0 %v3991
    %5123 = vmatpush2.msra.mxu0 %v3990
    %5124 = vmatprep.subr.mxu0 %v3983
    %5125 = vmatpush2.msra.mxu0 %v3982
    %5126 = vmatprep.subr.mxu0 %v3975
    %5127 = vmatpush2.msra.mxu0 %v3974
    %5128 = vmatprep.mubr.f32.mxu0 %v3324
    %5129 = vmatmul.mubr.f32.gmra.mxu0 %v3313
    %v5130 = vpop.f32.mrf.mxu0
    %v5131 = vadd.f32 %v5060, %v5130
    %v5132 = vpop.f32.mrf.mxu0
    %v5133 = vadd.f32 %v5062, %v5132
    %5134 = vdwg.mxu0
    %5135 = vmatprep.subr.mxu0 %v4223
    %5136 = vmatpush1.msra.mxu0 %v4222
    %5137 = vmatprep.subr.mxu0 %v4215
    %5138 = vmatpush1.msra.mxu0 %v4214
    %5139 = vmatprep.subr.mxu0 %v4207
    %5140 = vmatpush1.msra.mxu0 %v4206
    %5141 = vmatprep.subr.mxu0 %v4199
    %5142 = vmatpush1.msra.mxu0 %v4198
    %5143 = vmatprep.subr.mxu0 %v4191
    %5144 = vmatpush1.msra.mxu0 %v4190
    %5145 = vmatprep.subr.mxu0 %v4183
    %5146 = vmatpush1.msra.mxu0 %v4182
    %5147 = vmatprep.subr.mxu0 %v4175
    %5148 = vmatpush1.msra.mxu0 %v4174
    %5149 = vmatprep.subr.mxu0 %v4167
    %5150 = vmatpush1.msra.mxu0 %v4166
    %5151 = vmatprep.subr.mxu0 %v4159
    %5152 = vmatpush1.msra.mxu0 %v4158
    %5153 = vmatprep.subr.mxu0 %v4151
    %5154 = vmatpush1.msra.mxu0 %v4150
    %5155 = vmatprep.subr.mxu0 %v4143
    %5156 = vmatpush1.msra.mxu0 %v4142
    %5157 = vmatprep.subr.mxu0 %v4135
    %5158 = vmatpush1.msra.mxu0 %v4134
    %5159 = vmatprep.subr.mxu0 %v4127
    %5160 = vmatpush1.msra.mxu0 %v4126
    %5161 = vmatprep.subr.mxu0 %v4119
    %5162 = vmatpush1.msra.mxu0 %v4118
    %5163 = vmatprep.subr.mxu0 %v4111
    %5164 = vmatpush1.msra.mxu0 %v4110
    %5165 = vmatprep.subr.mxu0 %v4103
    %5166 = vmatpush1.msra.mxu0 %v4102
    %5167 = vmatprep.subr.mxu0 %v4351
    %5168 = vmatpush2.msra.mxu0 %v4350
    %5169 = vmatprep.subr.mxu0 %v4343
    %5170 = vmatpush2.msra.mxu0 %v4342
    %5171 = vmatprep.subr.mxu0 %v4335
    %5172 = vmatpush2.msra.mxu0 %v4334
    %5173 = vmatprep.subr.mxu0 %v4327
    %5174 = vmatpush2.msra.mxu0 %v4326
    %5175 = vmatprep.subr.mxu0 %v4319
    %5176 = vmatpush2.msra.mxu0 %v4318
    %5177 = vmatprep.subr.mxu0 %v4311
    %5178 = vmatpush2.msra.mxu0 %v4310
    %5179 = vmatprep.subr.mxu0 %v4303
    %5180 = vmatpush2.msra.mxu0 %v4302
    %5181 = vmatprep.subr.mxu0 %v4295
    %5182 = vmatpush2.msra.mxu0 %v4294
    %5183 = vmatprep.subr.mxu0 %v4287
    %5184 = vmatpush2.msra.mxu0 %v4286
    %5185 = vmatprep.subr.mxu0 %v4279
    %5186 = vmatpush2.msra.mxu0 %v4278
    %5187 = vmatprep.subr.mxu0 %v4271
    %5188 = vmatpush2.msra.mxu0 %v4270
    %5189 = vmatprep.subr.mxu0 %v4263
    %5190 = vmatpush2.msra.mxu0 %v4262
    %5191 = vmatprep.subr.mxu0 %v4255
    %5192 = vmatpush2.msra.mxu0 %v4254
    %5193 = vmatprep.subr.mxu0 %v4247
    %5194 = vmatpush2.msra.mxu0 %v4246
    %5195 = vmatprep.subr.mxu0 %v4239
    %5196 = vmatpush2.msra.mxu0 %v4238
    %5197 = vmatprep.subr.mxu0 %v4231
    %5198 = vmatpush2.msra.mxu0 %v4230
    %5199 = vmatprep.mubr.f32.mxu0 %v3328
    %5200 = vmatmul.mubr.f32.gmra.mxu0 %v3326
    %v5201 = vpop.f32.mrf.mxu0
    %v5202 = vadd.f32 %v5131, %v5201
    %v5203 = vpop.f32.mrf.mxu0
    %v5204 = vadd.f32 %v5133, %v5203
    %5205 = vdwg.mxu0
    %5206 = vmatprep.subr.mxu0 %v3457
    %5207 = vmatpush1.msra.mxu0 %v3456
    %5208 = vmatprep.subr.mxu0 %v3449
    %5209 = vmatpush1.msra.mxu0 %v3448
    %5210 = vmatprep.subr.mxu0 %v3441
    %5211 = vmatpush1.msra.mxu0 %v3440
    %5212 = vmatprep.subr.mxu0 %v3433
    %5213 = vmatpush1.msra.mxu0 %v3432
    %5214 = vmatprep.subr.mxu0 %v3425
    %5215 = vmatpush1.msra.mxu0 %v3424
    %5216 = vmatprep.subr.mxu0 %v3417
    %5217 = vmatpush1.msra.mxu0 %v3416
    %5218 = vmatprep.subr.mxu0 %v3409
    %5219 = vmatpush1.msra.mxu0 %v3408
    %5220 = vmatprep.subr.mxu0 %v3401
    %5221 = vmatpush1.msra.mxu0 %v3400
    %5222 = vmatprep.subr.mxu0 %v3393
    %5223 = vmatpush1.msra.mxu0 %v3392
    %5224 = vmatprep.subr.mxu0 %v3385
    %5225 = vmatpush1.msra.mxu0 %v3384
    %5226 = vmatprep.subr.mxu0 %v3377
    %5227 = vmatpush1.msra.mxu0 %v3376
    %5228 = vmatprep.subr.mxu0 %v3369
    %5229 = vmatpush1.msra.mxu0 %v3368
    %5230 = vmatprep.subr.mxu0 %v3361
    %5231 = vmatpush1.msra.mxu0 %v3360
    %5232 = vmatprep.subr.mxu0 %v3353
    %5233 = vmatpush1.msra.mxu0 %v3352
    %5234 = vmatprep.subr.mxu0 %v3345
    %5235 = vmatpush1.msra.mxu0 %v3344
    %5236 = vmatprep.subr.mxu0 %v3337
    %5237 = vmatpush1.msra.mxu0 %v3336
    %5238 = vmatprep.subr.mxu0 %v3585
    %5239 = vmatpush2.msra.mxu0 %v3584
    %5240 = vmatprep.subr.mxu0 %v3577
    %5241 = vmatpush2.msra.mxu0 %v3576
    %5242 = vmatprep.subr.mxu0 %v3569
    %5243 = vmatpush2.msra.mxu0 %v3568
    %5244 = vmatprep.subr.mxu0 %v3561
    %5245 = vmatpush2.msra.mxu0 %v3560
    %5246 = vmatprep.subr.mxu0 %v3553
    %5247 = vmatpush2.msra.mxu0 %v3552
    %5248 = vmatprep.subr.mxu0 %v3545
    %5249 = vmatpush2.msra.mxu0 %v3544
    %5250 = vmatprep.subr.mxu0 %v3537
    %5251 = vmatpush2.msra.mxu0 %v3536
    %5252 = vmatprep.subr.mxu0 %v3529
    %5253 = vmatpush2.msra.mxu0 %v3528
    %5254 = vmatprep.subr.mxu0 %v3521
    %5255 = vmatpush2.msra.mxu0 %v3520
    %5256 = vmatprep.subr.mxu0 %v3513
    %5257 = vmatpush2.msra.mxu0 %v3512
    %5258 = vmatprep.subr.mxu0 %v3505
    %5259 = vmatpush2.msra.mxu0 %v3504
    %5260 = vmatprep.subr.mxu0 %v3497
    %5261 = vmatpush2.msra.mxu0 %v3496
    %5262 = vmatprep.subr.mxu0 %v3489
    %5263 = vmatpush2.msra.mxu0 %v3488
    %5264 = vmatprep.subr.mxu0 %v3481
    %5265 = vmatpush2.msra.mxu0 %v3480
    %5266 = vmatprep.subr.mxu0 %v3473
    %5267 = vmatpush2.msra.mxu0 %v3472
    %5268 = vmatprep.subr.mxu0 %v3465
    %5269 = vmatpush2.msra.mxu0 %v3464
    %5270 = vmatprep.mubr.f32.mxu0 %v3317
    %5271 = vmatmul.mubr.f32.gmra.mxu0 %v3308
    %v5272 = vpop.f32.mrf.mxu0
    %v5273 = vadd.f32 0.0, %v5272
    %v5274 = vpop.f32.mrf.mxu0
    %v5275 = vadd.f32 0.0, %v5274
    %5276 = vdwg.mxu0
    %5277 = vmatprep.subr.mxu0 %v3713
    %5278 = vmatpush1.msra.mxu0 %v3712
    %5279 = vmatprep.subr.mxu0 %v3705
    %5280 = vmatpush1.msra.mxu0 %v3704
    %5281 = vmatprep.subr.mxu0 %v3697
    %5282 = vmatpush1.msra.mxu0 %v3696
    %5283 = vmatprep.subr.mxu0 %v3689
    %5284 = vmatpush1.msra.mxu0 %v3688
    %5285 = vmatprep.subr.mxu0 %v3681
    %5286 = vmatpush1.msra.mxu0 %v3680
    %5287 = vmatprep.subr.mxu0 %v3673
    %5288 = vmatpush1.msra.mxu0 %v3672
    %5289 = vmatprep.subr.mxu0 %v3665
    %5290 = vmatpush1.msra.mxu0 %v3664
    %5291 = vmatprep.subr.mxu0 %v3657
    %5292 = vmatpush1.msra.mxu0 %v3656
    %5293 = vmatprep.subr.mxu0 %v3649
    %5294 = vmatpush1.msra.mxu0 %v3648
    %5295 = vmatprep.subr.mxu0 %v3641
    %5296 = vmatpush1.msra.mxu0 %v3640
    %5297 = vmatprep.subr.mxu0 %v3633
    %5298 = vmatpush1.msra.mxu0 %v3632
    %5299 = vmatprep.subr.mxu0 %v3625
    %5300 = vmatpush1.msra.mxu0 %v3624
    %5301 = vmatprep.subr.mxu0 %v3617
    %5302 = vmatpush1.msra.mxu0 %v3616
    %5303 = vmatprep.subr.mxu0 %v3609
    %5304 = vmatpush1.msra.mxu0 %v3608
    %5305 = vmatprep.subr.mxu0 %v3601
    %5306 = vmatpush1.msra.mxu0 %v3600
    %5307 = vmatprep.subr.mxu0 %v3593
    %5308 = vmatpush1.msra.mxu0 %v3592
    %5309 = vmatprep.subr.mxu0 %v3841
    %5310 = vmatpush2.msra.mxu0 %v3840
    %5311 = vmatprep.subr.mxu0 %v3833
    %5312 = vmatpush2.msra.mxu0 %v3832
    %5313 = vmatprep.subr.mxu0 %v3825
    %5314 = vmatpush2.msra.mxu0 %v3824
    %5315 = vmatprep.subr.mxu0 %v3817
    %5316 = vmatpush2.msra.mxu0 %v3816
    %5317 = vmatprep.subr.mxu0 %v3809
    %5318 = vmatpush2.msra.mxu0 %v3808
    %5319 = vmatprep.subr.mxu0 %v3801
    %5320 = vmatpush2.msra.mxu0 %v3800
    %5321 = vmatprep.subr.mxu0 %v3793
    %5322 = vmatpush2.msra.mxu0 %v3792
    %5323 = vmatprep.subr.mxu0 %v3785
    %5324 = vmatpush2.msra.mxu0 %v3784
    %5325 = vmatprep.subr.mxu0 %v3777
    %5326 = vmatpush2.msra.mxu0 %v3776
    %5327 = vmatprep.subr.mxu0 %v3769
    %5328 = vmatpush2.msra.mxu0 %v3768
    %5329 = vmatprep.subr.mxu0 %v3761
    %5330 = vmatpush2.msra.mxu0 %v3760
    %5331 = vmatprep.subr.mxu0 %v3753
    %5332 = vmatpush2.msra.mxu0 %v3752
    %5333 = vmatprep.subr.mxu0 %v3745
    %5334 = vmatpush2.msra.mxu0 %v3744
    %5335 = vmatprep.subr.mxu0 %v3737
    %5336 = vmatpush2.msra.mxu0 %v3736
    %5337 = vmatprep.subr.mxu0 %v3729
    %5338 = vmatpush2.msra.mxu0 %v3728
    %5339 = vmatprep.subr.mxu0 %v3721
    %5340 = vmatpush2.msra.mxu0 %v3720
    %5341 = vmatprep.mubr.f32.mxu0 %v3321
    %5342 = vmatmul.mubr.f32.gmra.mxu0 %v3319
    %v5343 = vpop.f32.mrf.mxu0
    %v5344 = vadd.f32 %v5273, %v5343
    %v5345 = vpop.f32.mrf.mxu0
    %v5346 = vadd.f32 %v5275, %v5345
    %5347 = vdwg.mxu0
    %5348 = vmatprep.subr.mxu0 %v3969
    %5349 = vmatpush1.msra.mxu0 %v3968
    %5350 = vmatprep.subr.mxu0 %v3961
    %5351 = vmatpush1.msra.mxu0 %v3960
    %5352 = vmatprep.subr.mxu0 %v3953
    %5353 = vmatpush1.msra.mxu0 %v3952
    %5354 = vmatprep.subr.mxu0 %v3945
    %5355 = vmatpush1.msra.mxu0 %v3944
    %5356 = vmatprep.subr.mxu0 %v3937
    %5357 = vmatpush1.msra.mxu0 %v3936
    %5358 = vmatprep.subr.mxu0 %v3929
    %5359 = vmatpush1.msra.mxu0 %v3928
    %5360 = vmatprep.subr.mxu0 %v3921
    %5361 = vmatpush1.msra.mxu0 %v3920
    %5362 = vmatprep.subr.mxu0 %v3913
    %5363 = vmatpush1.msra.mxu0 %v3912
    %5364 = vmatprep.subr.mxu0 %v3905
    %5365 = vmatpush1.msra.mxu0 %v3904
    %5366 = vmatprep.subr.mxu0 %v3897
    %5367 = vmatpush1.msra.mxu0 %v3896
    %5368 = vmatprep.subr.mxu0 %v3889
    %5369 = vmatpush1.msra.mxu0 %v3888
    %5370 = vmatprep.subr.mxu0 %v3881
    %5371 = vmatpush1.msra.mxu0 %v3880
    %5372 = vmatprep.subr.mxu0 %v3873
    %5373 = vmatpush1.msra.mxu0 %v3872
    %5374 = vmatprep.subr.mxu0 %v3865
    %5375 = vmatpush1.msra.mxu0 %v3864
    %5376 = vmatprep.subr.mxu0 %v3857
    %5377 = vmatpush1.msra.mxu0 %v3856
    %5378 = vmatprep.subr.mxu0 %v3849
    %5379 = vmatpush1.msra.mxu0 %v3848
    %5380 = vmatprep.subr.mxu0 %v4097
    %5381 = vmatpush2.msra.mxu0 %v4096
    %5382 = vmatprep.subr.mxu0 %v4089
    %5383 = vmatpush2.msra.mxu0 %v4088
    %5384 = vmatprep.subr.mxu0 %v4081
    %5385 = vmatpush2.msra.mxu0 %v4080
    %5386 = vmatprep.subr.mxu0 %v4073
    %5387 = vmatpush2.msra.mxu0 %v4072
    %5388 = vmatprep.subr.mxu0 %v4065
    %5389 = vmatpush2.msra.mxu0 %v4064
    %5390 = vmatprep.subr.mxu0 %v4057
    %5391 = vmatpush2.msra.mxu0 %v4056
    %5392 = vmatprep.subr.mxu0 %v4049
    %5393 = vmatpush2.msra.mxu0 %v4048
    %5394 = vmatprep.subr.mxu0 %v4041
    %5395 = vmatpush2.msra.mxu0 %v4040
    %5396 = vmatprep.subr.mxu0 %v4033
    %5397 = vmatpush2.msra.mxu0 %v4032
    %5398 = vmatprep.subr.mxu0 %v4025
    %5399 = vmatpush2.msra.mxu0 %v4024
    %5400 = vmatprep.subr.mxu0 %v4017
    %5401 = vmatpush2.msra.mxu0 %v4016
    %5402 = vmatprep.subr.mxu0 %v4009
    %5403 = vmatpush2.msra.mxu0 %v4008
    %5404 = vmatprep.subr.mxu0 %v4001
    %5405 = vmatpush2.msra.mxu0 %v4000
    %5406 = vmatprep.subr.mxu0 %v3993
    %5407 = vmatpush2.msra.mxu0 %v3992
    %5408 = vmatprep.subr.mxu0 %v3985
    %5409 = vmatpush2.msra.mxu0 %v3984
    %5410 = vmatprep.subr.mxu0 %v3977
    %5411 = vmatpush2.msra.mxu0 %v3976
    %5412 = vmatprep.mubr.f32.mxu0 %v3324
    %5413 = vmatmul.mubr.f32.gmra.mxu0 %v3313
    %v5414 = vpop.f32.mrf.mxu0
    %v5415 = vadd.f32 %v5344, %v5414
    %v5416 = vpop.f32.mrf.mxu0
    %v5417 = vadd.f32 %v5346, %v5416
    %5418 = vdwg.mxu0
    %5419 = vmatprep.subr.mxu0 %v4225
    %5420 = vmatpush1.msra.mxu0 %v4224
    %5421 = vmatprep.subr.mxu0 %v4217
    %5422 = vmatpush1.msra.mxu0 %v4216
    %5423 = vmatprep.subr.mxu0 %v4209
    %5424 = vmatpush1.msra.mxu0 %v4208
    %5425 = vmatprep.subr.mxu0 %v4201
    %5426 = vmatpush1.msra.mxu0 %v4200
    %5427 = vmatprep.subr.mxu0 %v4193
    %5428 = vmatpush1.msra.mxu0 %v4192
    %5429 = vmatprep.subr.mxu0 %v4185
    %5430 = vmatpush1.msra.mxu0 %v4184
    %5431 = vmatprep.subr.mxu0 %v4177
    %5432 = vmatpush1.msra.mxu0 %v4176
    %5433 = vmatprep.subr.mxu0 %v4169
    %5434 = vmatpush1.msra.mxu0 %v4168
    %5435 = vmatprep.subr.mxu0 %v4161
    %5436 = vmatpush1.msra.mxu0 %v4160
    %5437 = vmatprep.subr.mxu0 %v4153
    %5438 = vmatpush1.msra.mxu0 %v4152
    %5439 = vmatprep.subr.mxu0 %v4145
    %5440 = vmatpush1.msra.mxu0 %v4144
    %5441 = vmatprep.subr.mxu0 %v4137
    %5442 = vmatpush1.msra.mxu0 %v4136
    %5443 = vmatprep.subr.mxu0 %v4129
    %5444 = vmatpush1.msra.mxu0 %v4128
    %5445 = vmatprep.subr.mxu0 %v4121
    %5446 = vmatpush1.msra.mxu0 %v4120
    %5447 = vmatprep.subr.mxu0 %v4113
    %5448 = vmatpush1.msra.mxu0 %v4112
    %5449 = vmatprep.subr.mxu0 %v4105
    %5450 = vmatpush1.msra.mxu0 %v4104
    %5451 = vmatprep.subr.mxu0 %v4353
    %5452 = vmatpush2.msra.mxu0 %v4352
    %5453 = vmatprep.subr.mxu0 %v4345
    %5454 = vmatpush2.msra.mxu0 %v4344
    %5455 = vmatprep.subr.mxu0 %v4337
    %5456 = vmatpush2.msra.mxu0 %v4336
    %5457 = vmatprep.subr.mxu0 %v4329
    %5458 = vmatpush2.msra.mxu0 %v4328
    %5459 = vmatprep.subr.mxu0 %v4321
    %5460 = vmatpush2.msra.mxu0 %v4320
    %5461 = vmatprep.subr.mxu0 %v4313
    %5462 = vmatpush2.msra.mxu0 %v4312
    %5463 = vmatprep.subr.mxu0 %v4305
    %5464 = vmatpush2.msra.mxu0 %v4304
    %5465 = vmatprep.subr.mxu0 %v4297
    %5466 = vmatpush2.msra.mxu0 %v4296
    %5467 = vmatprep.subr.mxu0 %v4289
    %5468 = vmatpush2.msra.mxu0 %v4288
    %5469 = vmatprep.subr.mxu0 %v4281
    %5470 = vmatpush2.msra.mxu0 %v4280
    %5471 = vmatprep.subr.mxu0 %v4273
    %5472 = vmatpush2.msra.mxu0 %v4272
    %5473 = vmatprep.subr.mxu0 %v4265
    %5474 = vmatpush2.msra.mxu0 %v4264
    %5475 = vmatprep.subr.mxu0 %v4257
    %5476 = vmatpush2.msra.mxu0 %v4256
    %5477 = vmatprep.subr.mxu0 %v4249
    %5478 = vmatpush2.msra.mxu0 %v4248
    %5479 = vmatprep.subr.mxu0 %v4241
    %5480 = vmatpush2.msra.mxu0 %v4240
    %5481 = vmatprep.subr.mxu0 %v4233
    %5482 = vmatpush2.msra.mxu0 %v4232
    %5483 = vmatprep.mubr.f32.mxu0 %v3328
    %5484 = vmatmul.mubr.f32.gmra.mxu0 %v3326
    %v5485 = vpop.f32.mrf.mxu0
    %v5486 = vadd.f32 %v5415, %v5485
    %v5487 = vpop.f32.mrf.mxu0
    %v5488 = vadd.f32 %v5417, %v5487
    %5489 = vdwg.mxu0
    %v5491 = vrot.slane %v4636, 6
    %v5494 = vrot.slane %v4918, 4
    %v5497 = vrot.slane %v4920, 2
    %v5500 = vrot.slane %v5204, 6
    %v5503 = vrot.slane %v5486, 4
    %v5506 = vrot.slane %v5488, 2
    %v5508 = vsel %vm448, %v4634, %v5491
    %v5509 = vsel %vm2976, %v5508, %v5494
    %v5510 = vsel %vm2978, %v5509, %v5497
    %v5511 = vsel %vm448, %v5202, %v5500
    %v5512 = vsel %vm2976, %v5511, %v5503
    %v5513 = vsel %vm2978, %v5512, %v5506
    %v5514 = vld [vmem:[#allocation32] sm:$0xff]
    %v5515 = vld [vmem:[#allocation32 + $0x8] sm:$0xff]
    %v5516 = vld [vmem:[#allocation32 + $0x10] sm:$0xff]
    %v5517 = vld [vmem:[#allocation32 + $0x18] sm:$0xff]
    %v5518 = vld [vmem:[#allocation32 + $0x20] sm:$0xff]
    %v5519 = vld [vmem:[#allocation32 + $0x28] sm:$0xff]
    %v5520 = vld [vmem:[#allocation32 + $0x30] sm:$0xff]
    %v5521 = vld [vmem:[#allocation32 + $0x38] sm:$0xff]
    %v5522 = vld [vmem:[#allocation32 + $0x40] sm:$0xff]
    %v5523 = vld [vmem:[#allocation32 + $0x48] sm:$0xff]
    %v5524 = vld [vmem:[#allocation32 + $0x50] sm:$0xff]
    %v5525 = vld [vmem:[#allocation32 + $0x58] sm:$0xff]
    %v5526 = vld [vmem:[#allocation32 + $0x60] sm:$0xff]
    %v5527 = vld [vmem:[#allocation32 + $0x68] sm:$0xff]
    %v5528 = vld [vmem:[#allocation32 + $0x70] sm:$0xff]
    %v5529 = vld [vmem:[#allocation32 + $0x78] sm:$0xff]
    %v5530 = vld [vmem:[#allocation33] sm:$0x1]
    %v5532 = vlaneseq
    %v5533 = vshrl.u32 %v5532, 7
    %v5534 = vsub.s32 0, %v5533
    %v5535 = vrot.slane %v5530, %v5534
    %5537 = vmatprep.subr.mxu0 0.0
    %5538 = vmatpush1.msra.mxu0 %v5529
    %5539 = vmatprep.subr.mxu0 0.0
    %5540 = vmatpush1.msra.mxu0 %v5528
    %5541 = vmatprep.subr.mxu0 0.0
    %5542 = vmatpush1.msra.mxu0 %v5527
    %5543 = vmatprep.subr.mxu0 0.0
    %5544 = vmatpush1.msra.mxu0 %v5526
    %5545 = vmatprep.subr.mxu0 0.0
    %5546 = vmatpush1.msra.mxu0 %v5525
    %5547 = vmatprep.subr.mxu0 0.0
    %5548 = vmatpush1.msra.mxu0 %v5524
    %5549 = vmatprep.subr.mxu0 0.0
    %5550 = vmatpush1.msra.mxu0 %v5523
    %5551 = vmatprep.subr.mxu0 0.0
    %5552 = vmatpush1.msra.mxu0 %v5522
    %5553 = vmatprep.subr.mxu0 0.0
    %5554 = vmatpush1.msra.mxu0 %v5521
    %5555 = vmatprep.subr.mxu0 0.0
    %5556 = vmatpush1.msra.mxu0 %v5520
    %5557 = vmatprep.subr.mxu0 0.0
    %5558 = vmatpush1.msra.mxu0 %v5519
    %5559 = vmatprep.subr.mxu0 0.0
    %5560 = vmatpush1.msra.mxu0 %v5518
    %5561 = vmatprep.subr.mxu0 0.0
    %5562 = vmatpush1.msra.mxu0 %v5517
    %5563 = vmatprep.subr.mxu0 0.0
    %5564 = vmatpush1.msra.mxu0 %v5516
    %5565 = vmatprep.subr.mxu0 0.0
    %5566 = vmatpush1.msra.mxu0 %v5515
    %5567 = vmatprep.subr.mxu0 0.0
    %5568 = vmatpush1.msra.mxu0 %v5514
    %5569 = vmatprep.subr.mxu0 0.0
    %5570 = vmatpush2.msra.mxu0 0.0
    %5571 = vmatprep.subr.mxu0 0.0
    %5572 = vmatpush2.msra.mxu0 0.0
    %5573 = vmatprep.subr.mxu0 0.0
    %5574 = vmatpush2.msra.mxu0 0.0
    %5575 = vmatprep.subr.mxu0 0.0
    %5576 = vmatpush2.msra.mxu0 0.0
    %5577 = vmatprep.subr.mxu0 0.0
    %5578 = vmatpush2.msra.mxu0 0.0
    %5579 = vmatprep.subr.mxu0 0.0
    %5580 = vmatpush2.msra.mxu0 0.0
    %5581 = vmatprep.subr.mxu0 0.0
    %5582 = vmatpush2.msra.mxu0 0.0
    %5583 = vmatprep.subr.mxu0 0.0
    %5584 = vmatpush2.msra.mxu0 0.0
    %5585 = vmatprep.subr.mxu0 0.0
    %5586 = vmatpush2.msra.mxu0 0.0
    %5587 = vmatprep.subr.mxu0 0.0
    %5588 = vmatpush2.msra.mxu0 0.0
    %5589 = vmatprep.subr.mxu0 0.0
    %5590 = vmatpush2.msra.mxu0 0.0
    %5591 = vmatprep.subr.mxu0 0.0
    %5592 = vmatpush2.msra.mxu0 0.0
    %5593 = vmatprep.subr.mxu0 0.0
    %5594 = vmatpush2.msra.mxu0 0.0
    %5595 = vmatprep.subr.mxu0 0.0
    %5596 = vmatpush2.msra.mxu0 0.0
    %5597 = vmatprep.subr.mxu0 0.0
    %5598 = vmatpush2.msra.mxu0 0.0
    %5599 = vmatprep.subr.mxu0 0.0
    %5600 = vmatpush2.msra.mxu0 0.0
    %5601 = vmatprep.mubr.f32.mxu0 0.0
    %5602 = vmatmul.mubr.f32.gmra.mxu0 %v3237
    %v5603 = vpop.f32.mrf.mxu0
    %v5604 = vadd.f32 %v5535, %v5603
    %v5605 = vpop.f32.mrf.mxu0
    %5606 = vmatprep.mubr.f32.mxu0 0.0
    %5607 = vmatmul.mubr.f32.gmra.mxu0 %v3238
    %v5608 = vpop.f32.mrf.mxu0
    %v5609 = vadd.f32 %v5535, %v5608
    %v5610 = vpop.f32.mrf.mxu0
    %5611 = vmatprep.mubr.f32.mxu0 0.0
    %5612 = vmatmul.mubr.f32.gmra.mxu0 %v3239
    %v5613 = vpop.f32.mrf.mxu0
    %v5614 = vadd.f32 %v5535, %v5613
    %v5615 = vpop.f32.mrf.mxu0
    %5616 = vmatprep.mubr.f32.mxu0 0.0
    %5617 = vmatmul.mubr.f32.gmra.mxu0 %v3240
    %v5618 = vpop.f32.mrf.mxu0
    %v5619 = vadd.f32 %v5535, %v5618
    %v5620 = vpop.f32.mrf.mxu0
    %5621 = vdwg.mxu0
    %5622 = vmatprep.subr.mxu0 0.0
    %5623 = vmatpush1.msra.mxu0 0.0
    %5624 = vmatprep.subr.mxu0 0.0
    %5625 = vmatpush1.msra.mxu0 0.0
    %5626 = vmatprep.subr.mxu0 0.0
    %5627 = vmatpush1.msra.mxu0 0.0
    %5628 = vmatprep.subr.mxu0 0.0
    %5629 = vmatpush1.msra.mxu0 0.0
    %5630 = vmatprep.subr.mxu0 0.0
    %5631 = vmatpush1.msra.mxu0 0.0
    %5632 = vmatprep.subr.mxu0 0.0
    %5633 = vmatpush1.msra.mxu0 0.0
    %5634 = vmatprep.subr.mxu0 0.0
    %5635 = vmatpush1.msra.mxu0 0.0
    %5636 = vmatprep.subr.mxu0 0.0
    %5637 = vmatpush1.msra.mxu0 0.0
    %5638 = vmatprep.subr.mxu0 0.0
    %5639 = vmatpush1.msra.mxu0 0.0
    %5640 = vmatprep.subr.mxu0 0.0
    %5641 = vmatpush1.msra.mxu0 0.0
    %5642 = vmatprep.subr.mxu0 0.0
    %5643 = vmatpush1.msra.mxu0 0.0
    %5644 = vmatprep.subr.mxu0 0.0
    %5645 = vmatpush1.msra.mxu0 0.0
    %5646 = vmatprep.subr.mxu0 0.0
    %5647 = vmatpush1.msra.mxu0 0.0
    %5648 = vmatprep.subr.mxu0 0.0
    %5649 = vmatpush1.msra.mxu0 0.0
    %5650 = vmatprep.subr.mxu0 0.0
    %5651 = vmatpush1.msra.mxu0 %v5513
    %5652 = vmatprep.subr.mxu0 0.0
    %5653 = vmatpush1.msra.mxu0 %v5510
    %5654 = vmatprep.subr.mxu0 0.0
    %5655 = vmatpush2.msra.mxu0 0.0
    %5656 = vmatprep.subr.mxu0 0.0
    %5657 = vmatpush2.msra.mxu0 0.0
    %5658 = vmatprep.subr.mxu0 0.0
    %5659 = vmatpush2.msra.mxu0 0.0
    %5660 = vmatprep.subr.mxu0 0.0
    %5661 = vmatpush2.msra.mxu0 0.0
    %5662 = vmatprep.subr.mxu0 0.0
    %5663 = vmatpush2.msra.mxu0 0.0
    %5664 = vmatprep.subr.mxu0 0.0
    %5665 = vmatpush2.msra.mxu0 0.0
    %5666 = vmatprep.subr.mxu0 0.0
    %5667 = vmatpush2.msra.mxu0 0.0
    %5668 = vmatprep.subr.mxu0 0.0
    %5669 = vmatpush2.msra.mxu0 0.0
    %5670 = vmatprep.subr.mxu0 0.0
    %5671 = vmatpush2.msra.mxu0 0.0
    %5672 = vmatprep.subr.mxu0 0.0
    %5673 = vmatpush2.msra.mxu0 0.0
    %5674 = vmatprep.subr.mxu0 0.0
    %5675 = vmatpush2.msra.mxu0 0.0
    %5676 = vmatprep.subr.mxu0 0.0
    %5677 = vmatpush2.msra.mxu0 0.0
    %5678 = vmatprep.subr.mxu0 0.0
    %5679 = vmatpush2.msra.mxu0 0.0
    %5680 = vmatprep.subr.mxu0 0.0
    %5681 = vmatpush2.msra.mxu0 0.0
    %5682 = vmatprep.subr.mxu0 0.0
    %5683 = vmatpush2.msra.mxu0 0.0
    %5684 = vmatprep.subr.mxu0 0.0
    %5685 = vmatpush2.msra.mxu0 0.0
    %5686 = vmatprep.mubr.f32.mxu0 0.0
    %5687 = vmatmul.mubr.f32.gmra.mxu0 %v3092
    %v5688 = vpop.f32.mrf.mxu0
    %v5689 = vadd.f32 %v5604, %v5688
    %v5690 = vpop.f32.mrf.mxu0
    %5691 = vmatprep.mubr.f32.mxu0 0.0
    %5692 = vmatmul.mubr.f32.gmra.mxu0 %v3095
    %v5693 = vpop.f32.mrf.mxu0
    %v5694 = vadd.f32 %v5609, %v5693
    %v5695 = vpop.f32.mrf.mxu0
    %5696 = vmatprep.mubr.f32.mxu0 0.0
    %5697 = vmatmul.mubr.f32.gmra.mxu0 %v3098
    %v5698 = vpop.f32.mrf.mxu0
    %v5699 = vadd.f32 %v5614, %v5698
    %v5700 = vpop.f32.mrf.mxu0
    %5701 = vmatprep.mubr.f32.mxu0 0.0
    %5702 = vmatmul.mubr.f32.gmra.mxu0 %v3101
    %v5703 = vpop.f32.mrf.mxu0
    %v5704 = vadd.f32 %v5619, %v5703
    %v5705 = vpop.f32.mrf.mxu0
    %5706 = vdwg.mxu0
    %v5707 = vadd.f32 %v5689, %v5694
    %v5708 = vadd.f32 %v5707, %v5699
    %v5709 = vadd.f32 %v5708, %v5704
    %v5710 = vrot.slane %v5709, 4
    %v5711 = vadd.f32 %v5709, %v5710
    %v5712 = vrot.slane %v5711, 2
    %v5713 = vadd.f32 %v5711, %v5712
    %v5714 = vrot.slane %v5713, 1
    %v5715 = vadd.f32 %v5713, %v5714
    %v5716 = vmul.f32 %v5715, 0.03125
    %v5717 = vmul.f32 %v5689, %v5689
    %v5718 = vmul.f32 %v5694, %v5694
    %v5719 = vmul.f32 %v5699, %v5699
    %v5720 = vmul.f32 %v5704, %v5704
    %v5721 = vadd.f32 %v5717, %v5718
    %v5722 = vadd.f32 %v5721, %v5719
    %v5723 = vadd.f32 %v5722, %v5720
    %v5724 = vrot.slane %v5723, 4
    %v5725 = vadd.f32 %v5723, %v5724
    %v5726 = vrot.slane %v5725, 2
    %v5727 = vadd.f32 %v5725, %v5726
    %v5728 = vrot.slane %v5727, 1
    %v5729 = vadd.f32 %v5727, %v5728
    %v5730 = vmul.f32 %v5729, 0.03125
    %v5731 = vmul.f32 %v5716, %v5716
    %v5732 = vsub.f32 %v5730, %v5731
    %v5733 = vadd.f32 %v5732, 1e-05
    %v5734 = vrsqrt.pop %v5733
    %v5735 = vsub.f32 %v5689, %v5716
    %v5736 = vsub.f32 %v5694, %v5716
    %v5737 = vsub.f32 %v5699, %v5716
    %v5738 = vsub.f32 %v5704, %v5716
    %v5739 = vld [vmem:[#allocation17] sm:$0x1]
    %v5740 = vmul.f32 %v5734, %v5739
    %v5741 = vlaneseq
    %v5742 = vshrl.u32 %v5741, 7
    %v5743 = vsub.s32 0, %v5742
    %v5744 = vrot.slane %v5740, %v5743
    %v5745 = vmul.f32 %v5735, %v5744
    %v5746 = vmul.f32 %v5736, %v5744
    %v5747 = vmul.f32 %v5737, %v5744
    %v5748 = vmul.f32 %v5738, %v5744
    %v5749 = vld [vmem:[#allocation18] sm:$0x1]
    %v5751 = vlaneseq
    %v5752 = vshrl.u32 %v5751, 7
    %v5753 = vsub.s32 0, %v5752
    %v5754 = vrot.slane %v5749, %v5753
    %v5756 = vadd.f32 %v5745, %v5754
    %v5757 = vadd.f32 %v5746, %v5754
    %v5758 = vadd.f32 %v5747, %v5754
    %v5759 = vadd.f32 %v5748, %v5754
    %5760 = vmatprep.subr.mxu0 0.0
    %5761 = vmatpush1.msra.mxu0 0.0
    %5762 = vmatprep.subr.mxu0 0.0
    %5763 = vmatpush1.msra.mxu0 0.0
    %5764 = vmatprep.subr.mxu0 0.0
    %5765 = vmatpush1.msra.mxu0 0.0
    %5766 = vmatprep.subr.mxu0 0.0
    %5767 = vmatpush1.msra.mxu0 0.0
    %5768 = vmatprep.subr.mxu0 0.0
    %5769 = vmatpush1.msra.mxu0 0.0
    %5770 = vmatprep.subr.mxu0 0.0
    %5771 = vmatpush1.msra.mxu0 0.0
    %5772 = vmatprep.subr.mxu0 0.0
    %5773 = vmatpush1.msra.mxu0 0.0
    %5774 = vmatprep.subr.mxu0 0.0
    %5775 = vmatpush1.msra.mxu0 0.0
    %5776 = vmatprep.subr.mxu0 0.0
    %5777 = vmatpush1.msra.mxu0 0.0
    %5778 = vmatprep.subr.mxu0 0.0
    %5779 = vmatpush1.msra.mxu0 0.0
    %5780 = vmatprep.subr.mxu0 0.0
    %5781 = vmatpush1.msra.mxu0 0.0
    %5782 = vmatprep.subr.mxu0 0.0
    %5783 = vmatpush1.msra.mxu0 0.0
    %5784 = vmatprep.subr.mxu0 0.0
    %5785 = vmatpush1.msra.mxu0 %v5759
    %5786 = vmatprep.subr.mxu0 0.0
    %5787 = vmatpush1.msra.mxu0 %v5758
    %5788 = vmatprep.subr.mxu0 0.0
    %5789 = vmatpush1.msra.mxu0 %v5757
    %5790 = vmatprep.subr.mxu0 0.0
    %5791 = vmatpush1.msra.mxu0 %v5756
    %5792 = vmatprep.subr.mxu0 0.0
    %5793 = vmatpush2.msra.mxu0 0.0
    %5794 = vmatprep.subr.mxu0 0.0
    %5795 = vmatpush2.msra.mxu0 0.0
    %5796 = vmatprep.subr.mxu0 0.0
    %5797 = vmatpush2.msra.mxu0 0.0
    %5798 = vmatprep.subr.mxu0 0.0
    %5799 = vmatpush2.msra.mxu0 0.0
    %5800 = vmatprep.subr.mxu0 0.0
    %5801 = vmatpush2.msra.mxu0 0.0
    %5802 = vmatprep.subr.mxu0 0.0
    %5803 = vmatpush2.msra.mxu0 0.0
    %5804 = vmatprep.subr.mxu0 0.0
    %5805 = vmatpush2.msra.mxu0 0.0
    %5806 = vmatprep.subr.mxu0 0.0
    %5807 = vmatpush2.msra.mxu0 0.0
    %5808 = vmatprep.subr.mxu0 0.0
    %5809 = vmatpush2.msra.mxu0 0.0
    %5810 = vmatprep.subr.mxu0 0.0
    %5811 = vmatpush2.msra.mxu0 0.0
    %5812 = vmatprep.subr.mxu0 0.0
    %5813 = vmatpush2.msra.mxu0 0.0
    %5814 = vmatprep.subr.mxu0 0.0
    %5815 = vmatpush2.msra.mxu0 0.0
    %5816 = vmatprep.subr.mxu0 0.0
    %5817 = vmatpush2.msra.mxu0 0.0
    %5818 = vmatprep.subr.mxu0 0.0
    %5819 = vmatpush2.msra.mxu0 0.0
    %5820 = vmatprep.subr.mxu0 0.0
    %5821 = vmatpush2.msra.mxu0 0.0
    %5822 = vmatprep.subr.mxu0 0.0
    %5823 = vmatpush2.msra.mxu0 0.0
    %5824 = vmatprep.mubr.f32.mxu0 0.0
    %5825 = vmatmul.mubr.f32.gmra.mxu0 %v703
    %v5826 = vpop.f32.mrf.mxu0
    %v5827 = vadd.f32 0.0, %v5826
    %v5828 = vpop.f32.mrf.mxu0
    %5829 = vmatprep.mubr.f32.mxu0 0.0
    %5830 = vmatmul.mubr.f32.gmra.mxu0 %v706
    %v5831 = vpop.f32.mrf.mxu0
    %v5832 = vadd.f32 0.0, %v5831
    %v5833 = vpop.f32.mrf.mxu0
    %5834 = vdwg.mxu0
    %v5836 = vrot.slane %v5827, 2
    %v5838 = vrot.slane %v5827, 4
    %v5840 = vrot.slane %v5827, 6
    %v5843 = vrot.slane %v5832, 2
    %v5845 = vrot.slane %v5832, 4
    %v5847 = vrot.slane %v5832, 6
    %v5849 = vld [vmem:[#allocation27] sm:$0xff]
    %v5850 = vld [vmem:[#allocation27 + $0x8] sm:$0xff]
    %v5851 = vld [vmem:[#allocation27 + $0x10] sm:$0xff]
    %v5852 = vld [vmem:[#allocation27 + $0x18] sm:$0xff]
    %v5853 = vld [vmem:[#allocation27 + $0x20] sm:$0xff]
    %v5854 = vld [vmem:[#allocation27 + $0x28] sm:$0xff]
    %v5855 = vld [vmem:[#allocation27 + $0x30] sm:$0xff]
    %v5856 = vld [vmem:[#allocation27 + $0x38] sm:$0xff]
    %v5857 = vld [vmem:[#allocation27 + $0x40] sm:$0xff]
    %v5858 = vld [vmem:[#allocation27 + $0x48] sm:$0xff]
    %v5859 = vld [vmem:[#allocation27 + $0x50] sm:$0xff]
    %v5860 = vld [vmem:[#allocation27 + $0x58] sm:$0xff]
    %v5861 = vld [vmem:[#allocation27 + $0x60] sm:$0xff]
    %v5862 = vld [vmem:[#allocation27 + $0x68] sm:$0xff]
    %v5863 = vld [vmem:[#allocation27 + $0x70] sm:$0xff]
    %v5864 = vld [vmem:[#allocation27 + $0x78] sm:$0xff]
    %v5865 = vld [vmem:[#allocation27 + $0x80] sm:$0xff]
    %v5866 = vld [vmem:[#allocation27 + $0x88] sm:$0xff]
    %v5867 = vld [vmem:[#allocation27 + $0x90] sm:$0xff]
    %v5868 = vld [vmem:[#allocation27 + $0x98] sm:$0xff]
    %v5869 = vld [vmem:[#allocation27 + $0xa0] sm:$0xff]
    %v5870 = vld [vmem:[#allocation27 + $0xa8] sm:$0xff]
    %v5871 = vld [vmem:[#allocation27 + $0xb0] sm:$0xff]
    %v5872 = vld [vmem:[#allocation27 + $0xb8] sm:$0xff]
    %v5873 = vld [vmem:[#allocation27 + $0xc0] sm:$0xff]
    %v5874 = vld [vmem:[#allocation27 + $0xc8] sm:$0xff]
    %v5875 = vld [vmem:[#allocation27 + $0xd0] sm:$0xff]
    %v5876 = vld [vmem:[#allocation27 + $0xd8] sm:$0xff]
    %v5877 = vld [vmem:[#allocation27 + $0xe0] sm:$0xff]
    %v5878 = vld [vmem:[#allocation27 + $0xe8] sm:$0xff]
    %v5879 = vld [vmem:[#allocation27 + $0xf0] sm:$0xff]
    %v5880 = vld [vmem:[#allocation27 + $0xf8] sm:$0xff]
    %v5881 = vld [vmem:[#allocation27 + $0x100] sm:$0xff]
    %v5882 = vld [vmem:[#allocation27 + $0x108] sm:$0xff]
    %v5883 = vld [vmem:[#allocation27 + $0x110] sm:$0xff]
    %v5884 = vld [vmem:[#allocation27 + $0x118] sm:$0xff]
    %v5885 = vld [vmem:[#allocation27 + $0x120] sm:$0xff]
    %v5886 = vld [vmem:[#allocation27 + $0x128] sm:$0xff]
    %v5887 = vld [vmem:[#allocation27 + $0x130] sm:$0xff]
    %v5888 = vld [vmem:[#allocation27 + $0x138] sm:$0xff]
    %v5889 = vld [vmem:[#allocation27 + $0x140] sm:$0xff]
    %v5890 = vld [vmem:[#allocation27 + $0x148] sm:$0xff]
    %v5891 = vld [vmem:[#allocation27 + $0x150] sm:$0xff]
    %v5892 = vld [vmem:[#allocation27 + $0x158] sm:$0xff]
    %v5893 = vld [vmem:[#allocation27 + $0x160] sm:$0xff]
    %v5894 = vld [vmem:[#allocation27 + $0x168] sm:$0xff]
    %v5895 = vld [vmem:[#allocation27 + $0x170] sm:$0xff]
    %v5896 = vld [vmem:[#allocation27 + $0x178] sm:$0xff]
    %v5897 = vld [vmem:[#allocation27 + $0x180] sm:$0xff]
    %v5898 = vld [vmem:[#allocation27 + $0x188] sm:$0xff]
    %v5899 = vld [vmem:[#allocation27 + $0x190] sm:$0xff]
    %v5900 = vld [vmem:[#allocation27 + $0x198] sm:$0xff]
    %v5901 = vld [vmem:[#allocation27 + $0x1a0] sm:$0xff]
    %v5902 = vld [vmem:[#allocation27 + $0x1a8] sm:$0xff]
    %v5903 = vld [vmem:[#allocation27 + $0x1b0] sm:$0xff]
    %v5904 = vld [vmem:[#allocation27 + $0x1b8] sm:$0xff]
    %v5905 = vld [vmem:[#allocation27 + $0x1c0] sm:$0xff]
    %v5906 = vld [vmem:[#allocation27 + $0x1c8] sm:$0xff]
    %v5907 = vld [vmem:[#allocation27 + $0x1d0] sm:$0xff]
    %v5908 = vld [vmem:[#allocation27 + $0x1d8] sm:$0xff]
    %v5909 = vld [vmem:[#allocation27 + $0x1e0] sm:$0xff]
    %v5910 = vld [vmem:[#allocation27 + $0x1e8] sm:$0xff]
    %v5911 = vld [vmem:[#allocation27 + $0x1f0] sm:$0xff]
    %v5912 = vld [vmem:[#allocation27 + $0x1f8] sm:$0xff]
    %v5913 = vld [vmem:[#allocation27 + $0x200] sm:$0xff]
    %v5914 = vld [vmem:[#allocation27 + $0x208] sm:$0xff]
    %v5915 = vld [vmem:[#allocation27 + $0x210] sm:$0xff]
    %v5916 = vld [vmem:[#allocation27 + $0x218] sm:$0xff]
    %v5917 = vld [vmem:[#allocation27 + $0x220] sm:$0xff]
    %v5918 = vld [vmem:[#allocation27 + $0x228] sm:$0xff]
    %v5919 = vld [vmem:[#allocation27 + $0x230] sm:$0xff]
    %v5920 = vld [vmem:[#allocation27 + $0x238] sm:$0xff]
    %v5921 = vld [vmem:[#allocation27 + $0x240] sm:$0xff]
    %v5922 = vld [vmem:[#allocation27 + $0x248] sm:$0xff]
    %v5923 = vld [vmem:[#allocation27 + $0x250] sm:$0xff]
    %v5924 = vld [vmem:[#allocation27 + $0x258] sm:$0xff]
    %v5925 = vld [vmem:[#allocation27 + $0x260] sm:$0xff]
    %v5926 = vld [vmem:[#allocation27 + $0x268] sm:$0xff]
    %v5927 = vld [vmem:[#allocation27 + $0x270] sm:$0xff]
    %v5928 = vld [vmem:[#allocation27 + $0x278] sm:$0xff]
    %v5929 = vld [vmem:[#allocation27 + $0x280] sm:$0xff]
    %v5930 = vld [vmem:[#allocation27 + $0x288] sm:$0xff]
    %v5931 = vld [vmem:[#allocation27 + $0x290] sm:$0xff]
    %v5932 = vld [vmem:[#allocation27 + $0x298] sm:$0xff]
    %v5933 = vld [vmem:[#allocation27 + $0x2a0] sm:$0xff]
    %v5934 = vld [vmem:[#allocation27 + $0x2a8] sm:$0xff]
    %v5935 = vld [vmem:[#allocation27 + $0x2b0] sm:$0xff]
    %v5936 = vld [vmem:[#allocation27 + $0x2b8] sm:$0xff]
    %v5937 = vld [vmem:[#allocation27 + $0x2c0] sm:$0xff]
    %v5938 = vld [vmem:[#allocation27 + $0x2c8] sm:$0xff]
    %v5939 = vld [vmem:[#allocation27 + $0x2d0] sm:$0xff]
    %v5940 = vld [vmem:[#allocation27 + $0x2d8] sm:$0xff]
    %v5941 = vld [vmem:[#allocation27 + $0x2e0] sm:$0xff]
    %v5942 = vld [vmem:[#allocation27 + $0x2e8] sm:$0xff]
    %v5943 = vld [vmem:[#allocation27 + $0x2f0] sm:$0xff]
    %v5944 = vld [vmem:[#allocation27 + $0x2f8] sm:$0xff]
    %v5945 = vld [vmem:[#allocation27 + $0x300] sm:$0xff]
    %v5946 = vld [vmem:[#allocation27 + $0x308] sm:$0xff]
    %v5947 = vld [vmem:[#allocation27 + $0x310] sm:$0xff]
    %v5948 = vld [vmem:[#allocation27 + $0x318] sm:$0xff]
    %v5949 = vld [vmem:[#allocation27 + $0x320] sm:$0xff]
    %v5950 = vld [vmem:[#allocation27 + $0x328] sm:$0xff]
    %v5951 = vld [vmem:[#allocation27 + $0x330] sm:$0xff]
    %v5952 = vld [vmem:[#allocation27 + $0x338] sm:$0xff]
    %v5953 = vld [vmem:[#allocation27 + $0x340] sm:$0xff]
    %v5954 = vld [vmem:[#allocation27 + $0x348] sm:$0xff]
    %v5955 = vld [vmem:[#allocation27 + $0x350] sm:$0xff]
    %v5956 = vld [vmem:[#allocation27 + $0x358] sm:$0xff]
    %v5957 = vld [vmem:[#allocation27 + $0x360] sm:$0xff]
    %v5958 = vld [vmem:[#allocation27 + $0x368] sm:$0xff]
    %v5959 = vld [vmem:[#allocation27 + $0x370] sm:$0xff]
    %v5960 = vld [vmem:[#allocation27 + $0x378] sm:$0xff]
    %v5961 = vld [vmem:[#allocation27 + $0x380] sm:$0xff]
    %v5962 = vld [vmem:[#allocation27 + $0x388] sm:$0xff]
    %v5963 = vld [vmem:[#allocation27 + $0x390] sm:$0xff]
    %v5964 = vld [vmem:[#allocation27 + $0x398] sm:$0xff]
    %v5965 = vld [vmem:[#allocation27 + $0x3a0] sm:$0xff]
    %v5966 = vld [vmem:[#allocation27 + $0x3a8] sm:$0xff]
    %v5967 = vld [vmem:[#allocation27 + $0x3b0] sm:$0xff]
    %v5968 = vld [vmem:[#allocation27 + $0x3b8] sm:$0xff]
    %v5969 = vld [vmem:[#allocation27 + $0x3c0] sm:$0xff]
    %v5970 = vld [vmem:[#allocation27 + $0x3c8] sm:$0xff]
    %v5971 = vld [vmem:[#allocation27 + $0x3d0] sm:$0xff]
    %v5972 = vld [vmem:[#allocation27 + $0x3d8] sm:$0xff]
    %v5973 = vld [vmem:[#allocation27 + $0x3e0] sm:$0xff]
    %v5974 = vld [vmem:[#allocation27 + $0x3e8] sm:$0xff]
    %v5975 = vld [vmem:[#allocation27 + $0x3f0] sm:$0xff]
    %v5976 = vld [vmem:[#allocation27 + $0x3f8] sm:$0xff]
    %v5977 = vld [vmem:[#allocation27 + $0x400] sm:$0xff]
    %v5978 = vld [vmem:[#allocation27 + $0x408] sm:$0xff]
    %v5979 = vld [vmem:[#allocation27 + $0x410] sm:$0xff]
    %v5980 = vld [vmem:[#allocation27 + $0x418] sm:$0xff]
    %v5981 = vld [vmem:[#allocation27 + $0x420] sm:$0xff]
    %v5982 = vld [vmem:[#allocation27 + $0x428] sm:$0xff]
    %v5983 = vld [vmem:[#allocation27 + $0x430] sm:$0xff]
    %v5984 = vld [vmem:[#allocation27 + $0x438] sm:$0xff]
    %v5985 = vld [vmem:[#allocation27 + $0x440] sm:$0xff]
    %v5986 = vld [vmem:[#allocation27 + $0x448] sm:$0xff]
    %v5987 = vld [vmem:[#allocation27 + $0x450] sm:$0xff]
    %v5988 = vld [vmem:[#allocation27 + $0x458] sm:$0xff]
    %v5989 = vld [vmem:[#allocation27 + $0x460] sm:$0xff]
    %v5990 = vld [vmem:[#allocation27 + $0x468] sm:$0xff]
    %v5991 = vld [vmem:[#allocation27 + $0x470] sm:$0xff]
    %v5992 = vld [vmem:[#allocation27 + $0x478] sm:$0xff]
    %v5993 = vld [vmem:[#allocation27 + $0x480] sm:$0xff]
    %v5994 = vld [vmem:[#allocation27 + $0x488] sm:$0xff]
    %v5995 = vld [vmem:[#allocation27 + $0x490] sm:$0xff]
    %v5996 = vld [vmem:[#allocation27 + $0x498] sm:$0xff]
    %v5997 = vld [vmem:[#allocation27 + $0x4a0] sm:$0xff]
    %v5998 = vld [vmem:[#allocation27 + $0x4a8] sm:$0xff]
    %v5999 = vld [vmem:[#allocation27 + $0x4b0] sm:$0xff]
    %v6000 = vld [vmem:[#allocation27 + $0x4b8] sm:$0xff]
    %v6001 = vld [vmem:[#allocation27 + $0x4c0] sm:$0xff]
    %v6002 = vld [vmem:[#allocation27 + $0x4c8] sm:$0xff]
    %v6003 = vld [vmem:[#allocation27 + $0x4d0] sm:$0xff]
    %v6004 = vld [vmem:[#allocation27 + $0x4d8] sm:$0xff]
    %v6005 = vld [vmem:[#allocation27 + $0x4e0] sm:$0xff]
    %v6006 = vld [vmem:[#allocation27 + $0x4e8] sm:$0xff]
    %v6007 = vld [vmem:[#allocation27 + $0x4f0] sm:$0xff]
    %v6008 = vld [vmem:[#allocation27 + $0x4f8] sm:$0xff]
    %v6009 = vld [vmem:[#allocation27 + $0x500] sm:$0xff]
    %v6010 = vld [vmem:[#allocation27 + $0x508] sm:$0xff]
    %v6011 = vld [vmem:[#allocation27 + $0x510] sm:$0xff]
    %v6012 = vld [vmem:[#allocation27 + $0x518] sm:$0xff]
    %v6013 = vld [vmem:[#allocation27 + $0x520] sm:$0xff]
    %v6014 = vld [vmem:[#allocation27 + $0x528] sm:$0xff]
    %v6015 = vld [vmem:[#allocation27 + $0x530] sm:$0xff]
    %v6016 = vld [vmem:[#allocation27 + $0x538] sm:$0xff]
    %v6017 = vld [vmem:[#allocation27 + $0x540] sm:$0xff]
    %v6018 = vld [vmem:[#allocation27 + $0x548] sm:$0xff]
    %v6019 = vld [vmem:[#allocation27 + $0x550] sm:$0xff]
    %v6020 = vld [vmem:[#allocation27 + $0x558] sm:$0xff]
    %v6021 = vld [vmem:[#allocation27 + $0x560] sm:$0xff]
    %v6022 = vld [vmem:[#allocation27 + $0x568] sm:$0xff]
    %v6023 = vld [vmem:[#allocation27 + $0x570] sm:$0xff]
    %v6024 = vld [vmem:[#allocation27 + $0x578] sm:$0xff]
    %v6025 = vld [vmem:[#allocation27 + $0x580] sm:$0xff]
    %v6026 = vld [vmem:[#allocation27 + $0x588] sm:$0xff]
    %v6027 = vld [vmem:[#allocation27 + $0x590] sm:$0xff]
    %v6028 = vld [vmem:[#allocation27 + $0x598] sm:$0xff]
    %v6029 = vld [vmem:[#allocation27 + $0x5a0] sm:$0xff]
    %v6030 = vld [vmem:[#allocation27 + $0x5a8] sm:$0xff]
    %v6031 = vld [vmem:[#allocation27 + $0x5b0] sm:$0xff]
    %v6032 = vld [vmem:[#allocation27 + $0x5b8] sm:$0xff]
    %v6033 = vld [vmem:[#allocation27 + $0x5c0] sm:$0xff]
    %v6034 = vld [vmem:[#allocation27 + $0x5c8] sm:$0xff]
    %v6035 = vld [vmem:[#allocation27 + $0x5d0] sm:$0xff]
    %v6036 = vld [vmem:[#allocation27 + $0x5d8] sm:$0xff]
    %v6037 = vld [vmem:[#allocation27 + $0x5e0] sm:$0xff]
    %v6038 = vld [vmem:[#allocation27 + $0x5e8] sm:$0xff]
    %v6039 = vld [vmem:[#allocation27 + $0x5f0] sm:$0xff]
    %v6040 = vld [vmem:[#allocation27 + $0x5f8] sm:$0xff]
    %v6041 = vld [vmem:[#allocation27 + $0x600] sm:$0xff]
    %v6042 = vld [vmem:[#allocation27 + $0x608] sm:$0xff]
    %v6043 = vld [vmem:[#allocation27 + $0x610] sm:$0xff]
    %v6044 = vld [vmem:[#allocation27 + $0x618] sm:$0xff]
    %v6045 = vld [vmem:[#allocation27 + $0x620] sm:$0xff]
    %v6046 = vld [vmem:[#allocation27 + $0x628] sm:$0xff]
    %v6047 = vld [vmem:[#allocation27 + $0x630] sm:$0xff]
    %v6048 = vld [vmem:[#allocation27 + $0x638] sm:$0xff]
    %v6049 = vld [vmem:[#allocation27 + $0x640] sm:$0xff]
    %v6050 = vld [vmem:[#allocation27 + $0x648] sm:$0xff]
    %v6051 = vld [vmem:[#allocation27 + $0x650] sm:$0xff]
    %v6052 = vld [vmem:[#allocation27 + $0x658] sm:$0xff]
    %v6053 = vld [vmem:[#allocation27 + $0x660] sm:$0xff]
    %v6054 = vld [vmem:[#allocation27 + $0x668] sm:$0xff]
    %v6055 = vld [vmem:[#allocation27 + $0x670] sm:$0xff]
    %v6056 = vld [vmem:[#allocation27 + $0x678] sm:$0xff]
    %v6057 = vld [vmem:[#allocation27 + $0x680] sm:$0xff]
    %v6058 = vld [vmem:[#allocation27 + $0x688] sm:$0xff]
    %v6059 = vld [vmem:[#allocation27 + $0x690] sm:$0xff]
    %v6060 = vld [vmem:[#allocation27 + $0x698] sm:$0xff]
    %v6061 = vld [vmem:[#allocation27 + $0x6a0] sm:$0xff]
    %v6062 = vld [vmem:[#allocation27 + $0x6a8] sm:$0xff]
    %v6063 = vld [vmem:[#allocation27 + $0x6b0] sm:$0xff]
    %v6064 = vld [vmem:[#allocation27 + $0x6b8] sm:$0xff]
    %v6065 = vld [vmem:[#allocation27 + $0x6c0] sm:$0xff]
    %v6066 = vld [vmem:[#allocation27 + $0x6c8] sm:$0xff]
    %v6067 = vld [vmem:[#allocation27 + $0x6d0] sm:$0xff]
    %v6068 = vld [vmem:[#allocation27 + $0x6d8] sm:$0xff]
    %v6069 = vld [vmem:[#allocation27 + $0x6e0] sm:$0xff]
    %v6070 = vld [vmem:[#allocation27 + $0x6e8] sm:$0xff]
    %v6071 = vld [vmem:[#allocation27 + $0x6f0] sm:$0xff]
    %v6072 = vld [vmem:[#allocation27 + $0x6f8] sm:$0xff]
    %v6073 = vld [vmem:[#allocation27 + $0x700] sm:$0xff]
    %v6074 = vld [vmem:[#allocation27 + $0x708] sm:$0xff]
    %v6075 = vld [vmem:[#allocation27 + $0x710] sm:$0xff]
    %v6076 = vld [vmem:[#allocation27 + $0x718] sm:$0xff]
    %v6077 = vld [vmem:[#allocation27 + $0x720] sm:$0xff]
    %v6078 = vld [vmem:[#allocation27 + $0x728] sm:$0xff]
    %v6079 = vld [vmem:[#allocation27 + $0x730] sm:$0xff]
    %v6080 = vld [vmem:[#allocation27 + $0x738] sm:$0xff]
    %v6081 = vld [vmem:[#allocation27 + $0x740] sm:$0xff]
    %v6082 = vld [vmem:[#allocation27 + $0x748] sm:$0xff]
    %v6083 = vld [vmem:[#allocation27 + $0x750] sm:$0xff]
    %v6084 = vld [vmem:[#allocation27 + $0x758] sm:$0xff]
    %v6085 = vld [vmem:[#allocation27 + $0x760] sm:$0xff]
    %v6086 = vld [vmem:[#allocation27 + $0x768] sm:$0xff]
    %v6087 = vld [vmem:[#allocation27 + $0x770] sm:$0xff]
    %v6088 = vld [vmem:[#allocation27 + $0x778] sm:$0xff]
    %v6089 = vld [vmem:[#allocation27 + $0x780] sm:$0xff]
    %v6090 = vld [vmem:[#allocation27 + $0x788] sm:$0xff]
    %v6091 = vld [vmem:[#allocation27 + $0x790] sm:$0xff]
    %v6092 = vld [vmem:[#allocation27 + $0x798] sm:$0xff]
    %v6093 = vld [vmem:[#allocation27 + $0x7a0] sm:$0xff]
    %v6094 = vld [vmem:[#allocation27 + $0x7a8] sm:$0xff]
    %v6095 = vld [vmem:[#allocation27 + $0x7b0] sm:$0xff]
    %v6096 = vld [vmem:[#allocation27 + $0x7b8] sm:$0xff]
    %v6097 = vld [vmem:[#allocation27 + $0x7c0] sm:$0xff]
    %v6098 = vld [vmem:[#allocation27 + $0x7c8] sm:$0xff]
    %v6099 = vld [vmem:[#allocation27 + $0x7d0] sm:$0xff]
    %v6100 = vld [vmem:[#allocation27 + $0x7d8] sm:$0xff]
    %v6101 = vld [vmem:[#allocation27 + $0x7e0] sm:$0xff]
    %v6102 = vld [vmem:[#allocation27 + $0x7e8] sm:$0xff]
    %v6103 = vld [vmem:[#allocation27 + $0x7f0] sm:$0xff]
    %v6104 = vld [vmem:[#allocation27 + $0x7f8] sm:$0xff]
    %v6105 = vld [vmem:[#allocation27 + $0x800] sm:$0xff]
    %v6106 = vld [vmem:[#allocation27 + $0x808] sm:$0xff]
    %v6107 = vld [vmem:[#allocation27 + $0x810] sm:$0xff]
    %v6108 = vld [vmem:[#allocation27 + $0x818] sm:$0xff]
    %v6109 = vld [vmem:[#allocation27 + $0x820] sm:$0xff]
    %v6110 = vld [vmem:[#allocation27 + $0x828] sm:$0xff]
    %v6111 = vld [vmem:[#allocation27 + $0x830] sm:$0xff]
    %v6112 = vld [vmem:[#allocation27 + $0x838] sm:$0xff]
    %v6113 = vld [vmem:[#allocation27 + $0x840] sm:$0xff]
    %v6114 = vld [vmem:[#allocation27 + $0x848] sm:$0xff]
    %v6115 = vld [vmem:[#allocation27 + $0x850] sm:$0xff]
    %v6116 = vld [vmem:[#allocation27 + $0x858] sm:$0xff]
    %v6117 = vld [vmem:[#allocation27 + $0x860] sm:$0xff]
    %v6118 = vld [vmem:[#allocation27 + $0x868] sm:$0xff]
    %v6119 = vld [vmem:[#allocation27 + $0x870] sm:$0xff]
    %v6120 = vld [vmem:[#allocation27 + $0x878] sm:$0xff]
    %v6121 = vld [vmem:[#allocation27 + $0x880] sm:$0xff]
    %v6122 = vld [vmem:[#allocation27 + $0x888] sm:$0xff]
    %v6123 = vld [vmem:[#allocation27 + $0x890] sm:$0xff]
    %v6124 = vld [vmem:[#allocation27 + $0x898] sm:$0xff]
    %v6125 = vld [vmem:[#allocation27 + $0x8a0] sm:$0xff]
    %v6126 = vld [vmem:[#allocation27 + $0x8a8] sm:$0xff]
    %v6127 = vld [vmem:[#allocation27 + $0x8b0] sm:$0xff]
    %v6128 = vld [vmem:[#allocation27 + $0x8b8] sm:$0xff]
    %v6129 = vld [vmem:[#allocation27 + $0x8c0] sm:$0xff]
    %v6130 = vld [vmem:[#allocation27 + $0x8c8] sm:$0xff]
    %v6131 = vld [vmem:[#allocation27 + $0x8d0] sm:$0xff]
    %v6132 = vld [vmem:[#allocation27 + $0x8d8] sm:$0xff]
    %v6133 = vld [vmem:[#allocation27 + $0x8e0] sm:$0xff]
    %v6134 = vld [vmem:[#allocation27 + $0x8e8] sm:$0xff]
    %v6135 = vld [vmem:[#allocation27 + $0x8f0] sm:$0xff]
    %v6136 = vld [vmem:[#allocation27 + $0x8f8] sm:$0xff]
    %v6137 = vld [vmem:[#allocation27 + $0x900] sm:$0xff]
    %v6138 = vld [vmem:[#allocation27 + $0x908] sm:$0xff]
    %v6139 = vld [vmem:[#allocation27 + $0x910] sm:$0xff]
    %v6140 = vld [vmem:[#allocation27 + $0x918] sm:$0xff]
    %v6141 = vld [vmem:[#allocation27 + $0x920] sm:$0xff]
    %v6142 = vld [vmem:[#allocation27 + $0x928] sm:$0xff]
    %v6143 = vld [vmem:[#allocation27 + $0x930] sm:$0xff]
    %v6144 = vld [vmem:[#allocation27 + $0x938] sm:$0xff]
    %v6145 = vld [vmem:[#allocation27 + $0x940] sm:$0xff]
    %v6146 = vld [vmem:[#allocation27 + $0x948] sm:$0xff]
    %v6147 = vld [vmem:[#allocation27 + $0x950] sm:$0xff]
    %v6148 = vld [vmem:[#allocation27 + $0x958] sm:$0xff]
    %v6149 = vld [vmem:[#allocation27 + $0x960] sm:$0xff]
    %v6150 = vld [vmem:[#allocation27 + $0x968] sm:$0xff]
    %v6151 = vld [vmem:[#allocation27 + $0x970] sm:$0xff]
    %v6152 = vld [vmem:[#allocation27 + $0x978] sm:$0xff]
    %v6153 = vld [vmem:[#allocation27 + $0x980] sm:$0xff]
    %v6154 = vld [vmem:[#allocation27 + $0x988] sm:$0xff]
    %v6155 = vld [vmem:[#allocation27 + $0x990] sm:$0xff]
    %v6156 = vld [vmem:[#allocation27 + $0x998] sm:$0xff]
    %v6157 = vld [vmem:[#allocation27 + $0x9a0] sm:$0xff]
    %v6158 = vld [vmem:[#allocation27 + $0x9a8] sm:$0xff]
    %v6159 = vld [vmem:[#allocation27 + $0x9b0] sm:$0xff]
    %v6160 = vld [vmem:[#allocation27 + $0x9b8] sm:$0xff]
    %v6161 = vld [vmem:[#allocation27 + $0x9c0] sm:$0xff]
    %v6162 = vld [vmem:[#allocation27 + $0x9c8] sm:$0xff]
    %v6163 = vld [vmem:[#allocation27 + $0x9d0] sm:$0xff]
    %v6164 = vld [vmem:[#allocation27 + $0x9d8] sm:$0xff]
    %v6165 = vld [vmem:[#allocation27 + $0x9e0] sm:$0xff]
    %v6166 = vld [vmem:[#allocation27 + $0x9e8] sm:$0xff]
    %v6167 = vld [vmem:[#allocation27 + $0x9f0] sm:$0xff]
    %v6168 = vld [vmem:[#allocation27 + $0x9f8] sm:$0xff]
    %v6169 = vld [vmem:[#allocation27 + $0xa00] sm:$0xff]
    %v6170 = vld [vmem:[#allocation27 + $0xa08] sm:$0xff]
    %v6171 = vld [vmem:[#allocation27 + $0xa10] sm:$0xff]
    %v6172 = vld [vmem:[#allocation27 + $0xa18] sm:$0xff]
    %v6173 = vld [vmem:[#allocation27 + $0xa20] sm:$0xff]
    %v6174 = vld [vmem:[#allocation27 + $0xa28] sm:$0xff]
    %v6175 = vld [vmem:[#allocation27 + $0xa30] sm:$0xff]
    %v6176 = vld [vmem:[#allocation27 + $0xa38] sm:$0xff]
    %v6177 = vld [vmem:[#allocation27 + $0xa40] sm:$0xff]
    %v6178 = vld [vmem:[#allocation27 + $0xa48] sm:$0xff]
    %v6179 = vld [vmem:[#allocation27 + $0xa50] sm:$0xff]
    %v6180 = vld [vmem:[#allocation27 + $0xa58] sm:$0xff]
    %v6181 = vld [vmem:[#allocation27 + $0xa60] sm:$0xff]
    %v6182 = vld [vmem:[#allocation27 + $0xa68] sm:$0xff]
    %v6183 = vld [vmem:[#allocation27 + $0xa70] sm:$0xff]
    %v6184 = vld [vmem:[#allocation27 + $0xa78] sm:$0xff]
    %v6185 = vld [vmem:[#allocation27 + $0xa80] sm:$0xff]
    %v6186 = vld [vmem:[#allocation27 + $0xa88] sm:$0xff]
    %v6187 = vld [vmem:[#allocation27 + $0xa90] sm:$0xff]
    %v6188 = vld [vmem:[#allocation27 + $0xa98] sm:$0xff]
    %v6189 = vld [vmem:[#allocation27 + $0xaa0] sm:$0xff]
    %v6190 = vld [vmem:[#allocation27 + $0xaa8] sm:$0xff]
    %v6191 = vld [vmem:[#allocation27 + $0xab0] sm:$0xff]
    %v6192 = vld [vmem:[#allocation27 + $0xab8] sm:$0xff]
    %v6193 = vld [vmem:[#allocation27 + $0xac0] sm:$0xff]
    %v6194 = vld [vmem:[#allocation27 + $0xac8] sm:$0xff]
    %v6195 = vld [vmem:[#allocation27 + $0xad0] sm:$0xff]
    %v6196 = vld [vmem:[#allocation27 + $0xad8] sm:$0xff]
    %v6197 = vld [vmem:[#allocation27 + $0xae0] sm:$0xff]
    %v6198 = vld [vmem:[#allocation27 + $0xae8] sm:$0xff]
    %v6199 = vld [vmem:[#allocation27 + $0xaf0] sm:$0xff]
    %v6200 = vld [vmem:[#allocation27 + $0xaf8] sm:$0xff]
    %v6201 = vld [vmem:[#allocation27 + $0xb00] sm:$0xff]
    %v6202 = vld [vmem:[#allocation27 + $0xb08] sm:$0xff]
    %v6203 = vld [vmem:[#allocation27 + $0xb10] sm:$0xff]
    %v6204 = vld [vmem:[#allocation27 + $0xb18] sm:$0xff]
    %v6205 = vld [vmem:[#allocation27 + $0xb20] sm:$0xff]
    %v6206 = vld [vmem:[#allocation27 + $0xb28] sm:$0xff]
    %v6207 = vld [vmem:[#allocation27 + $0xb30] sm:$0xff]
    %v6208 = vld [vmem:[#allocation27 + $0xb38] sm:$0xff]
    %v6209 = vld [vmem:[#allocation27 + $0xb40] sm:$0xff]
    %v6210 = vld [vmem:[#allocation27 + $0xb48] sm:$0xff]
    %v6211 = vld [vmem:[#allocation27 + $0xb50] sm:$0xff]
    %v6212 = vld [vmem:[#allocation27 + $0xb58] sm:$0xff]
    %v6213 = vld [vmem:[#allocation27 + $0xb60] sm:$0xff]
    %v6214 = vld [vmem:[#allocation27 + $0xb68] sm:$0xff]
    %v6215 = vld [vmem:[#allocation27 + $0xb70] sm:$0xff]
    %v6216 = vld [vmem:[#allocation27 + $0xb78] sm:$0xff]
    %v6217 = vld [vmem:[#allocation27 + $0xb80] sm:$0xff]
    %v6218 = vld [vmem:[#allocation27 + $0xb88] sm:$0xff]
    %v6219 = vld [vmem:[#allocation27 + $0xb90] sm:$0xff]
    %v6220 = vld [vmem:[#allocation27 + $0xb98] sm:$0xff]
    %v6221 = vld [vmem:[#allocation27 + $0xba0] sm:$0xff]
    %v6222 = vld [vmem:[#allocation27 + $0xba8] sm:$0xff]
    %v6223 = vld [vmem:[#allocation27 + $0xbb0] sm:$0xff]
    %v6224 = vld [vmem:[#allocation27 + $0xbb8] sm:$0xff]
    %v6225 = vld [vmem:[#allocation27 + $0xbc0] sm:$0xff]
    %v6226 = vld [vmem:[#allocation27 + $0xbc8] sm:$0xff]
    %v6227 = vld [vmem:[#allocation27 + $0xbd0] sm:$0xff]
    %v6228 = vld [vmem:[#allocation27 + $0xbd8] sm:$0xff]
    %v6229 = vld [vmem:[#allocation27 + $0xbe0] sm:$0xff]
    %v6230 = vld [vmem:[#allocation27 + $0xbe8] sm:$0xff]
    %v6231 = vld [vmem:[#allocation27 + $0xbf0] sm:$0xff]
    %v6232 = vld [vmem:[#allocation27 + $0xbf8] sm:$0xff]
    %v6233 = vld [vmem:[#allocation27 + $0xc00] sm:$0xff]
    %v6234 = vld [vmem:[#allocation27 + $0xc08] sm:$0xff]
    %v6235 = vld [vmem:[#allocation27 + $0xc10] sm:$0xff]
    %v6236 = vld [vmem:[#allocation27 + $0xc18] sm:$0xff]
    %v6237 = vld [vmem:[#allocation27 + $0xc20] sm:$0xff]
    %v6238 = vld [vmem:[#allocation27 + $0xc28] sm:$0xff]
    %v6239 = vld [vmem:[#allocation27 + $0xc30] sm:$0xff]
    %v6240 = vld [vmem:[#allocation27 + $0xc38] sm:$0xff]
    %v6241 = vld [vmem:[#allocation27 + $0xc40] sm:$0xff]
    %v6242 = vld [vmem:[#allocation27 + $0xc48] sm:$0xff]
    %v6243 = vld [vmem:[#allocation27 + $0xc50] sm:$0xff]
    %v6244 = vld [vmem:[#allocation27 + $0xc58] sm:$0xff]
    %v6245 = vld [vmem:[#allocation27 + $0xc60] sm:$0xff]
    %v6246 = vld [vmem:[#allocation27 + $0xc68] sm:$0xff]
    %v6247 = vld [vmem:[#allocation27 + $0xc70] sm:$0xff]
    %v6248 = vld [vmem:[#allocation27 + $0xc78] sm:$0xff]
    %v6249 = vld [vmem:[#allocation27 + $0xc80] sm:$0xff]
    %v6250 = vld [vmem:[#allocation27 + $0xc88] sm:$0xff]
    %v6251 = vld [vmem:[#allocation27 + $0xc90] sm:$0xff]
    %v6252 = vld [vmem:[#allocation27 + $0xc98] sm:$0xff]
    %v6253 = vld [vmem:[#allocation27 + $0xca0] sm:$0xff]
    %v6254 = vld [vmem:[#allocation27 + $0xca8] sm:$0xff]
    %v6255 = vld [vmem:[#allocation27 + $0xcb0] sm:$0xff]
    %v6256 = vld [vmem:[#allocation27 + $0xcb8] sm:$0xff]
    %v6257 = vld [vmem:[#allocation27 + $0xcc0] sm:$0xff]
    %v6258 = vld [vmem:[#allocation27 + $0xcc8] sm:$0xff]
    %v6259 = vld [vmem:[#allocation27 + $0xcd0] sm:$0xff]
    %v6260 = vld [vmem:[#allocation27 + $0xcd8] sm:$0xff]
    %v6261 = vld [vmem:[#allocation27 + $0xce0] sm:$0xff]
    %v6262 = vld [vmem:[#allocation27 + $0xce8] sm:$0xff]
    %v6263 = vld [vmem:[#allocation27 + $0xcf0] sm:$0xff]
    %v6264 = vld [vmem:[#allocation27 + $0xcf8] sm:$0xff]
    %v6265 = vld [vmem:[#allocation27 + $0xd00] sm:$0xff]
    %v6266 = vld [vmem:[#allocation27 + $0xd08] sm:$0xff]
    %v6267 = vld [vmem:[#allocation27 + $0xd10] sm:$0xff]
    %v6268 = vld [vmem:[#allocation27 + $0xd18] sm:$0xff]
    %v6269 = vld [vmem:[#allocation27 + $0xd20] sm:$0xff]
    %v6270 = vld [vmem:[#allocation27 + $0xd28] sm:$0xff]
    %v6271 = vld [vmem:[#allocation27 + $0xd30] sm:$0xff]
    %v6272 = vld [vmem:[#allocation27 + $0xd38] sm:$0xff]
    %v6273 = vld [vmem:[#allocation27 + $0xd40] sm:$0xff]
    %v6274 = vld [vmem:[#allocation27 + $0xd48] sm:$0xff]
    %v6275 = vld [vmem:[#allocation27 + $0xd50] sm:$0xff]
    %v6276 = vld [vmem:[#allocation27 + $0xd58] sm:$0xff]
    %v6277 = vld [vmem:[#allocation27 + $0xd60] sm:$0xff]
    %v6278 = vld [vmem:[#allocation27 + $0xd68] sm:$0xff]
    %v6279 = vld [vmem:[#allocation27 + $0xd70] sm:$0xff]
    %v6280 = vld [vmem:[#allocation27 + $0xd78] sm:$0xff]
    %v6281 = vld [vmem:[#allocation27 + $0xd80] sm:$0xff]
    %v6282 = vld [vmem:[#allocation27 + $0xd88] sm:$0xff]
    %v6283 = vld [vmem:[#allocation27 + $0xd90] sm:$0xff]
    %v6284 = vld [vmem:[#allocation27 + $0xd98] sm:$0xff]
    %v6285 = vld [vmem:[#allocation27 + $0xda0] sm:$0xff]
    %v6286 = vld [vmem:[#allocation27 + $0xda8] sm:$0xff]
    %v6287 = vld [vmem:[#allocation27 + $0xdb0] sm:$0xff]
    %v6288 = vld [vmem:[#allocation27 + $0xdb8] sm:$0xff]
    %v6289 = vld [vmem:[#allocation27 + $0xdc0] sm:$0xff]
    %v6290 = vld [vmem:[#allocation27 + $0xdc8] sm:$0xff]
    %v6291 = vld [vmem:[#allocation27 + $0xdd0] sm:$0xff]
    %v6292 = vld [vmem:[#allocation27 + $0xdd8] sm:$0xff]
    %v6293 = vld [vmem:[#allocation27 + $0xde0] sm:$0xff]
    %v6294 = vld [vmem:[#allocation27 + $0xde8] sm:$0xff]
    %v6295 = vld [vmem:[#allocation27 + $0xdf0] sm:$0xff]
    %v6296 = vld [vmem:[#allocation27 + $0xdf8] sm:$0xff]
    %v6297 = vld [vmem:[#allocation27 + $0xe00] sm:$0xff]
    %v6298 = vld [vmem:[#allocation27 + $0xe08] sm:$0xff]
    %v6299 = vld [vmem:[#allocation27 + $0xe10] sm:$0xff]
    %v6300 = vld [vmem:[#allocation27 + $0xe18] sm:$0xff]
    %v6301 = vld [vmem:[#allocation27 + $0xe20] sm:$0xff]
    %v6302 = vld [vmem:[#allocation27 + $0xe28] sm:$0xff]
    %v6303 = vld [vmem:[#allocation27 + $0xe30] sm:$0xff]
    %v6304 = vld [vmem:[#allocation27 + $0xe38] sm:$0xff]
    %v6305 = vld [vmem:[#allocation27 + $0xe40] sm:$0xff]
    %v6306 = vld [vmem:[#allocation27 + $0xe48] sm:$0xff]
    %v6307 = vld [vmem:[#allocation27 + $0xe50] sm:$0xff]
    %v6308 = vld [vmem:[#allocation27 + $0xe58] sm:$0xff]
    %v6309 = vld [vmem:[#allocation27 + $0xe60] sm:$0xff]
    %v6310 = vld [vmem:[#allocation27 + $0xe68] sm:$0xff]
    %v6311 = vld [vmem:[#allocation27 + $0xe70] sm:$0xff]
    %v6312 = vld [vmem:[#allocation27 + $0xe78] sm:$0xff]
    %v6313 = vld [vmem:[#allocation27 + $0xe80] sm:$0xff]
    %v6314 = vld [vmem:[#allocation27 + $0xe88] sm:$0xff]
    %v6315 = vld [vmem:[#allocation27 + $0xe90] sm:$0xff]
    %v6316 = vld [vmem:[#allocation27 + $0xe98] sm:$0xff]
    %v6317 = vld [vmem:[#allocation27 + $0xea0] sm:$0xff]
    %v6318 = vld [vmem:[#allocation27 + $0xea8] sm:$0xff]
    %v6319 = vld [vmem:[#allocation27 + $0xeb0] sm:$0xff]
    %v6320 = vld [vmem:[#allocation27 + $0xeb8] sm:$0xff]
    %v6321 = vld [vmem:[#allocation27 + $0xec0] sm:$0xff]
    %v6322 = vld [vmem:[#allocation27 + $0xec8] sm:$0xff]
    %v6323 = vld [vmem:[#allocation27 + $0xed0] sm:$0xff]
    %v6324 = vld [vmem:[#allocation27 + $0xed8] sm:$0xff]
    %v6325 = vld [vmem:[#allocation27 + $0xee0] sm:$0xff]
    %v6326 = vld [vmem:[#allocation27 + $0xee8] sm:$0xff]
    %v6327 = vld [vmem:[#allocation27 + $0xef0] sm:$0xff]
    %v6328 = vld [vmem:[#allocation27 + $0xef8] sm:$0xff]
    %v6329 = vld [vmem:[#allocation27 + $0xf00] sm:$0xff]
    %v6330 = vld [vmem:[#allocation27 + $0xf08] sm:$0xff]
    %v6331 = vld [vmem:[#allocation27 + $0xf10] sm:$0xff]
    %v6332 = vld [vmem:[#allocation27 + $0xf18] sm:$0xff]
    %v6333 = vld [vmem:[#allocation27 + $0xf20] sm:$0xff]
    %v6334 = vld [vmem:[#allocation27 + $0xf28] sm:$0xff]
    %v6335 = vld [vmem:[#allocation27 + $0xf30] sm:$0xff]
    %v6336 = vld [vmem:[#allocation27 + $0xf38] sm:$0xff]
    %v6337 = vld [vmem:[#allocation27 + $0xf40] sm:$0xff]
    %v6338 = vld [vmem:[#allocation27 + $0xf48] sm:$0xff]
    %v6339 = vld [vmem:[#allocation27 + $0xf50] sm:$0xff]
    %v6340 = vld [vmem:[#allocation27 + $0xf58] sm:$0xff]
    %v6341 = vld [vmem:[#allocation27 + $0xf60] sm:$0xff]
    %v6342 = vld [vmem:[#allocation27 + $0xf68] sm:$0xff]
    %v6343 = vld [vmem:[#allocation27 + $0xf70] sm:$0xff]
    %v6344 = vld [vmem:[#allocation27 + $0xf78] sm:$0xff]
    %v6345 = vld [vmem:[#allocation27 + $0xf80] sm:$0xff]
    %v6346 = vld [vmem:[#allocation27 + $0xf88] sm:$0xff]
    %v6347 = vld [vmem:[#allocation27 + $0xf90] sm:$0xff]
    %v6348 = vld [vmem:[#allocation27 + $0xf98] sm:$0xff]
    %v6349 = vld [vmem:[#allocation27 + $0xfa0] sm:$0xff]
    %v6350 = vld [vmem:[#allocation27 + $0xfa8] sm:$0xff]
    %v6351 = vld [vmem:[#allocation27 + $0xfb0] sm:$0xff]
    %v6352 = vld [vmem:[#allocation27 + $0xfb8] sm:$0xff]
    %v6353 = vld [vmem:[#allocation27 + $0xfc0] sm:$0xff]
    %v6354 = vld [vmem:[#allocation27 + $0xfc8] sm:$0xff]
    %v6355 = vld [vmem:[#allocation27 + $0xfd0] sm:$0xff]
    %v6356 = vld [vmem:[#allocation27 + $0xfd8] sm:$0xff]
    %v6357 = vld [vmem:[#allocation27 + $0xfe0] sm:$0xff]
    %v6358 = vld [vmem:[#allocation27 + $0xfe8] sm:$0xff]
    %v6359 = vld [vmem:[#allocation27 + $0xff0] sm:$0xff]
    %v6360 = vld [vmem:[#allocation27 + $0xff8] sm:$0xff]
    %v6361 = vld [vmem:[#allocation27 + $0x1000] sm:$0xff]
    %v6362 = vld [vmem:[#allocation27 + $0x1008] sm:$0xff]
    %v6363 = vld [vmem:[#allocation27 + $0x1010] sm:$0xff]
    %v6364 = vld [vmem:[#allocation27 + $0x1018] sm:$0xff]
    %v6365 = vld [vmem:[#allocation27 + $0x1020] sm:$0xff]
    %v6366 = vld [vmem:[#allocation27 + $0x1028] sm:$0xff]
    %v6367 = vld [vmem:[#allocation27 + $0x1030] sm:$0xff]
    %v6368 = vld [vmem:[#allocation27 + $0x1038] sm:$0xff]
    %v6369 = vld [vmem:[#allocation27 + $0x1040] sm:$0xff]
    %v6370 = vld [vmem:[#allocation27 + $0x1048] sm:$0xff]
    %v6371 = vld [vmem:[#allocation27 + $0x1050] sm:$0xff]
    %v6372 = vld [vmem:[#allocation27 + $0x1058] sm:$0xff]
    %v6373 = vld [vmem:[#allocation27 + $0x1060] sm:$0xff]
    %v6374 = vld [vmem:[#allocation27 + $0x1068] sm:$0xff]
    %v6375 = vld [vmem:[#allocation27 + $0x1070] sm:$0xff]
    %v6376 = vld [vmem:[#allocation27 + $0x1078] sm:$0xff]
    %v6377 = vld [vmem:[#allocation27 + $0x1080] sm:$0xff]
    %v6378 = vld [vmem:[#allocation27 + $0x1088] sm:$0xff]
    %v6379 = vld [vmem:[#allocation27 + $0x1090] sm:$0xff]
    %v6380 = vld [vmem:[#allocation27 + $0x1098] sm:$0xff]
    %v6381 = vld [vmem:[#allocation27 + $0x10a0] sm:$0xff]
    %v6382 = vld [vmem:[#allocation27 + $0x10a8] sm:$0xff]
    %v6383 = vld [vmem:[#allocation27 + $0x10b0] sm:$0xff]
    %v6384 = vld [vmem:[#allocation27 + $0x10b8] sm:$0xff]
    %v6385 = vld [vmem:[#allocation27 + $0x10c0] sm:$0xff]
    %v6386 = vld [vmem:[#allocation27 + $0x10c8] sm:$0xff]
    %v6387 = vld [vmem:[#allocation27 + $0x10d0] sm:$0xff]
    %v6388 = vld [vmem:[#allocation27 + $0x10d8] sm:$0xff]
    %v6389 = vld [vmem:[#allocation27 + $0x10e0] sm:$0xff]
    %v6390 = vld [vmem:[#allocation27 + $0x10e8] sm:$0xff]
    %v6391 = vld [vmem:[#allocation27 + $0x10f0] sm:$0xff]
    %v6392 = vld [vmem:[#allocation27 + $0x10f8] sm:$0xff]
    %v6393 = vld [vmem:[#allocation27 + $0x1100] sm:$0xff]
    %v6394 = vld [vmem:[#allocation27 + $0x1108] sm:$0xff]
    %v6395 = vld [vmem:[#allocation27 + $0x1110] sm:$0xff]
    %v6396 = vld [vmem:[#allocation27 + $0x1118] sm:$0xff]
    %v6397 = vld [vmem:[#allocation27 + $0x1120] sm:$0xff]
    %v6398 = vld [vmem:[#allocation27 + $0x1128] sm:$0xff]
    %v6399 = vld [vmem:[#allocation27 + $0x1130] sm:$0xff]
    %v6400 = vld [vmem:[#allocation27 + $0x1138] sm:$0xff]
    %v6401 = vld [vmem:[#allocation27 + $0x1140] sm:$0xff]
    %v6402 = vld [vmem:[#allocation27 + $0x1148] sm:$0xff]
    %v6403 = vld [vmem:[#allocation27 + $0x1150] sm:$0xff]
    %v6404 = vld [vmem:[#allocation27 + $0x1158] sm:$0xff]
    %v6405 = vld [vmem:[#allocation27 + $0x1160] sm:$0xff]
    %v6406 = vld [vmem:[#allocation27 + $0x1168] sm:$0xff]
    %v6407 = vld [vmem:[#allocation27 + $0x1170] sm:$0xff]
    %v6408 = vld [vmem:[#allocation27 + $0x1178] sm:$0xff]
    %v6409 = vld [vmem:[#allocation27 + $0x1180] sm:$0xff]
    %v6410 = vld [vmem:[#allocation27 + $0x1188] sm:$0xff]
    %v6411 = vld [vmem:[#allocation27 + $0x1190] sm:$0xff]
    %v6412 = vld [vmem:[#allocation27 + $0x1198] sm:$0xff]
    %v6413 = vld [vmem:[#allocation27 + $0x11a0] sm:$0xff]
    %v6414 = vld [vmem:[#allocation27 + $0x11a8] sm:$0xff]
    %v6415 = vld [vmem:[#allocation27 + $0x11b0] sm:$0xff]
    %v6416 = vld [vmem:[#allocation27 + $0x11b8] sm:$0xff]
    %v6417 = vld [vmem:[#allocation27 + $0x11c0] sm:$0xff]
    %v6418 = vld [vmem:[#allocation27 + $0x11c8] sm:$0xff]
    %v6419 = vld [vmem:[#allocation27 + $0x11d0] sm:$0xff]
    %v6420 = vld [vmem:[#allocation27 + $0x11d8] sm:$0xff]
    %v6421 = vld [vmem:[#allocation27 + $0x11e0] sm:$0xff]
    %v6422 = vld [vmem:[#allocation27 + $0x11e8] sm:$0xff]
    %v6423 = vld [vmem:[#allocation27 + $0x11f0] sm:$0xff]
    %v6424 = vld [vmem:[#allocation27 + $0x11f8] sm:$0xff]
    %v6425 = vld [vmem:[#allocation27 + $0x1200] sm:$0xff]
    %v6426 = vld [vmem:[#allocation27 + $0x1208] sm:$0xff]
    %v6427 = vld [vmem:[#allocation27 + $0x1210] sm:$0xff]
    %v6428 = vld [vmem:[#allocation27 + $0x1218] sm:$0xff]
    %v6429 = vld [vmem:[#allocation27 + $0x1220] sm:$0xff]
    %v6430 = vld [vmem:[#allocation27 + $0x1228] sm:$0xff]
    %v6431 = vld [vmem:[#allocation27 + $0x1230] sm:$0xff]
    %v6432 = vld [vmem:[#allocation27 + $0x1238] sm:$0xff]
    %v6433 = vld [vmem:[#allocation27 + $0x1240] sm:$0xff]
    %v6434 = vld [vmem:[#allocation27 + $0x1248] sm:$0xff]
    %v6435 = vld [vmem:[#allocation27 + $0x1250] sm:$0xff]
    %v6436 = vld [vmem:[#allocation27 + $0x1258] sm:$0xff]
    %v6437 = vld [vmem:[#allocation27 + $0x1260] sm:$0xff]
    %v6438 = vld [vmem:[#allocation27 + $0x1268] sm:$0xff]
    %v6439 = vld [vmem:[#allocation27 + $0x1270] sm:$0xff]
    %v6440 = vld [vmem:[#allocation27 + $0x1278] sm:$0xff]
    %v6441 = vld [vmem:[#allocation27 + $0x1280] sm:$0xff]
    %v6442 = vld [vmem:[#allocation27 + $0x1288] sm:$0xff]
    %v6443 = vld [vmem:[#allocation27 + $0x1290] sm:$0xff]
    %v6444 = vld [vmem:[#allocation27 + $0x1298] sm:$0xff]
    %v6445 = vld [vmem:[#allocation27 + $0x12a0] sm:$0xff]
    %v6446 = vld [vmem:[#allocation27 + $0x12a8] sm:$0xff]
    %v6447 = vld [vmem:[#allocation27 + $0x12b0] sm:$0xff]
    %v6448 = vld [vmem:[#allocation27 + $0x12b8] sm:$0xff]
    %v6449 = vld [vmem:[#allocation27 + $0x12c0] sm:$0xff]
    %v6450 = vld [vmem:[#allocation27 + $0x12c8] sm:$0xff]
    %v6451 = vld [vmem:[#allocation27 + $0x12d0] sm:$0xff]
    %v6452 = vld [vmem:[#allocation27 + $0x12d8] sm:$0xff]
    %v6453 = vld [vmem:[#allocation27 + $0x12e0] sm:$0xff]
    %v6454 = vld [vmem:[#allocation27 + $0x12e8] sm:$0xff]
    %v6455 = vld [vmem:[#allocation27 + $0x12f0] sm:$0xff]
    %v6456 = vld [vmem:[#allocation27 + $0x12f8] sm:$0xff]
    %v6457 = vld [vmem:[#allocation27 + $0x1300] sm:$0xff]
    %v6458 = vld [vmem:[#allocation27 + $0x1308] sm:$0xff]
    %v6459 = vld [vmem:[#allocation27 + $0x1310] sm:$0xff]
    %v6460 = vld [vmem:[#allocation27 + $0x1318] sm:$0xff]
    %v6461 = vld [vmem:[#allocation27 + $0x1320] sm:$0xff]
    %v6462 = vld [vmem:[#allocation27 + $0x1328] sm:$0xff]
    %v6463 = vld [vmem:[#allocation27 + $0x1330] sm:$0xff]
    %v6464 = vld [vmem:[#allocation27 + $0x1338] sm:$0xff]
    %v6465 = vld [vmem:[#allocation27 + $0x1340] sm:$0xff]
    %v6466 = vld [vmem:[#allocation27 + $0x1348] sm:$0xff]
    %v6467 = vld [vmem:[#allocation27 + $0x1350] sm:$0xff]
    %v6468 = vld [vmem:[#allocation27 + $0x1358] sm:$0xff]
    %v6469 = vld [vmem:[#allocation27 + $0x1360] sm:$0xff]
    %v6470 = vld [vmem:[#allocation27 + $0x1368] sm:$0xff]
    %v6471 = vld [vmem:[#allocation27 + $0x1370] sm:$0xff]
    %v6472 = vld [vmem:[#allocation27 + $0x1378] sm:$0xff]
    %v6473 = vld [vmem:[#allocation27 + $0x1380] sm:$0xff]
    %v6474 = vld [vmem:[#allocation27 + $0x1388] sm:$0xff]
    %v6475 = vld [vmem:[#allocation27 + $0x1390] sm:$0xff]
    %v6476 = vld [vmem:[#allocation27 + $0x1398] sm:$0xff]
    %v6477 = vld [vmem:[#allocation27 + $0x13a0] sm:$0xff]
    %v6478 = vld [vmem:[#allocation27 + $0x13a8] sm:$0xff]
    %v6479 = vld [vmem:[#allocation27 + $0x13b0] sm:$0xff]
    %v6480 = vld [vmem:[#allocation27 + $0x13b8] sm:$0xff]
    %v6481 = vld [vmem:[#allocation27 + $0x13c0] sm:$0xff]
    %v6482 = vld [vmem:[#allocation27 + $0x13c8] sm:$0xff]
    %v6483 = vld [vmem:[#allocation27 + $0x13d0] sm:$0xff]
    %v6484 = vld [vmem:[#allocation27 + $0x13d8] sm:$0xff]
    %v6485 = vld [vmem:[#allocation27 + $0x13e0] sm:$0xff]
    %v6486 = vld [vmem:[#allocation27 + $0x13e8] sm:$0xff]
    %v6487 = vld [vmem:[#allocation27 + $0x13f0] sm:$0xff]
    %v6488 = vld [vmem:[#allocation27 + $0x13f8] sm:$0xff]
    %v6489 = vld [vmem:[#allocation27 + $0x1400] sm:$0xff]
    %v6490 = vld [vmem:[#allocation27 + $0x1408] sm:$0xff]
    %v6491 = vld [vmem:[#allocation27 + $0x1410] sm:$0xff]
    %v6492 = vld [vmem:[#allocation27 + $0x1418] sm:$0xff]
    %v6493 = vld [vmem:[#allocation27 + $0x1420] sm:$0xff]
    %v6494 = vld [vmem:[#allocation27 + $0x1428] sm:$0xff]
    %v6495 = vld [vmem:[#allocation27 + $0x1430] sm:$0xff]
    %v6496 = vld [vmem:[#allocation27 + $0x1438] sm:$0xff]
    %v6497 = vld [vmem:[#allocation27 + $0x1440] sm:$0xff]
    %v6498 = vld [vmem:[#allocation27 + $0x1448] sm:$0xff]
    %v6499 = vld [vmem:[#allocation27 + $0x1450] sm:$0xff]
    %v6500 = vld [vmem:[#allocation27 + $0x1458] sm:$0xff]
    %v6501 = vld [vmem:[#allocation27 + $0x1460] sm:$0xff]
    %v6502 = vld [vmem:[#allocation27 + $0x1468] sm:$0xff]
    %v6503 = vld [vmem:[#allocation27 + $0x1470] sm:$0xff]
    %v6504 = vld [vmem:[#allocation27 + $0x1478] sm:$0xff]
    %v6505 = vld [vmem:[#allocation27 + $0x1480] sm:$0xff]
    %v6506 = vld [vmem:[#allocation27 + $0x1488] sm:$0xff]
    %v6507 = vld [vmem:[#allocation27 + $0x1490] sm:$0xff]
    %v6508 = vld [vmem:[#allocation27 + $0x1498] sm:$0xff]
    %v6509 = vld [vmem:[#allocation27 + $0x14a0] sm:$0xff]
    %v6510 = vld [vmem:[#allocation27 + $0x14a8] sm:$0xff]
    %v6511 = vld [vmem:[#allocation27 + $0x14b0] sm:$0xff]
    %v6512 = vld [vmem:[#allocation27 + $0x14b8] sm:$0xff]
    %v6513 = vld [vmem:[#allocation27 + $0x14c0] sm:$0xff]
    %v6514 = vld [vmem:[#allocation27 + $0x14c8] sm:$0xff]
    %v6515 = vld [vmem:[#allocation27 + $0x14d0] sm:$0xff]
    %v6516 = vld [vmem:[#allocation27 + $0x14d8] sm:$0xff]
    %v6517 = vld [vmem:[#allocation27 + $0x14e0] sm:$0xff]
    %v6518 = vld [vmem:[#allocation27 + $0x14e8] sm:$0xff]
    %v6519 = vld [vmem:[#allocation27 + $0x14f0] sm:$0xff]
    %v6520 = vld [vmem:[#allocation27 + $0x14f8] sm:$0xff]
    %v6521 = vld [vmem:[#allocation27 + $0x1500] sm:$0xff]
    %v6522 = vld [vmem:[#allocation27 + $0x1508] sm:$0xff]
    %v6523 = vld [vmem:[#allocation27 + $0x1510] sm:$0xff]
    %v6524 = vld [vmem:[#allocation27 + $0x1518] sm:$0xff]
    %v6525 = vld [vmem:[#allocation27 + $0x1520] sm:$0xff]
    %v6526 = vld [vmem:[#allocation27 + $0x1528] sm:$0xff]
    %v6527 = vld [vmem:[#allocation27 + $0x1530] sm:$0xff]
    %v6528 = vld [vmem:[#allocation27 + $0x1538] sm:$0xff]
    %v6529 = vld [vmem:[#allocation27 + $0x1540] sm:$0xff]
    %v6530 = vld [vmem:[#allocation27 + $0x1548] sm:$0xff]
    %v6531 = vld [vmem:[#allocation27 + $0x1550] sm:$0xff]
    %v6532 = vld [vmem:[#allocation27 + $0x1558] sm:$0xff]
    %v6533 = vld [vmem:[#allocation27 + $0x1560] sm:$0xff]
    %v6534 = vld [vmem:[#allocation27 + $0x1568] sm:$0xff]
    %v6535 = vld [vmem:[#allocation27 + $0x1570] sm:$0xff]
    %v6536 = vld [vmem:[#allocation27 + $0x1578] sm:$0xff]
    %v6537 = vld [vmem:[#allocation27 + $0x1580] sm:$0xff]
    %v6538 = vld [vmem:[#allocation27 + $0x1588] sm:$0xff]
    %v6539 = vld [vmem:[#allocation27 + $0x1590] sm:$0xff]
    %v6540 = vld [vmem:[#allocation27 + $0x1598] sm:$0xff]
    %v6541 = vld [vmem:[#allocation27 + $0x15a0] sm:$0xff]
    %v6542 = vld [vmem:[#allocation27 + $0x15a8] sm:$0xff]
    %v6543 = vld [vmem:[#allocation27 + $0x15b0] sm:$0xff]
    %v6544 = vld [vmem:[#allocation27 + $0x15b8] sm:$0xff]
    %v6545 = vld [vmem:[#allocation27 + $0x15c0] sm:$0xff]
    %v6546 = vld [vmem:[#allocation27 + $0x15c8] sm:$0xff]
    %v6547 = vld [vmem:[#allocation27 + $0x15d0] sm:$0xff]
    %v6548 = vld [vmem:[#allocation27 + $0x15d8] sm:$0xff]
    %v6549 = vld [vmem:[#allocation27 + $0x15e0] sm:$0xff]
    %v6550 = vld [vmem:[#allocation27 + $0x15e8] sm:$0xff]
    %v6551 = vld [vmem:[#allocation27 + $0x15f0] sm:$0xff]
    %v6552 = vld [vmem:[#allocation27 + $0x15f8] sm:$0xff]
    %v6553 = vld [vmem:[#allocation27 + $0x1600] sm:$0xff]
    %v6554 = vld [vmem:[#allocation27 + $0x1608] sm:$0xff]
    %v6555 = vld [vmem:[#allocation27 + $0x1610] sm:$0xff]
    %v6556 = vld [vmem:[#allocation27 + $0x1618] sm:$0xff]
    %v6557 = vld [vmem:[#allocation27 + $0x1620] sm:$0xff]
    %v6558 = vld [vmem:[#allocation27 + $0x1628] sm:$0xff]
    %v6559 = vld [vmem:[#allocation27 + $0x1630] sm:$0xff]
    %v6560 = vld [vmem:[#allocation27 + $0x1638] sm:$0xff]
    %v6561 = vld [vmem:[#allocation27 + $0x1640] sm:$0xff]
    %v6562 = vld [vmem:[#allocation27 + $0x1648] sm:$0xff]
    %v6563 = vld [vmem:[#allocation27 + $0x1650] sm:$0xff]
    %v6564 = vld [vmem:[#allocation27 + $0x1658] sm:$0xff]
    %v6565 = vld [vmem:[#allocation27 + $0x1660] sm:$0xff]
    %v6566 = vld [vmem:[#allocation27 + $0x1668] sm:$0xff]
    %v6567 = vld [vmem:[#allocation27 + $0x1670] sm:$0xff]
    %v6568 = vld [vmem:[#allocation27 + $0x1678] sm:$0xff]
    %v6569 = vld [vmem:[#allocation27 + $0x1680] sm:$0xff]
    %v6570 = vld [vmem:[#allocation27 + $0x1688] sm:$0xff]
    %v6571 = vld [vmem:[#allocation27 + $0x1690] sm:$0xff]
    %v6572 = vld [vmem:[#allocation27 + $0x1698] sm:$0xff]
    %v6573 = vld [vmem:[#allocation27 + $0x16a0] sm:$0xff]
    %v6574 = vld [vmem:[#allocation27 + $0x16a8] sm:$0xff]
    %v6575 = vld [vmem:[#allocation27 + $0x16b0] sm:$0xff]
    %v6576 = vld [vmem:[#allocation27 + $0x16b8] sm:$0xff]
    %v6577 = vld [vmem:[#allocation27 + $0x16c0] sm:$0xff]
    %v6578 = vld [vmem:[#allocation27 + $0x16c8] sm:$0xff]
    %v6579 = vld [vmem:[#allocation27 + $0x16d0] sm:$0xff]
    %v6580 = vld [vmem:[#allocation27 + $0x16d8] sm:$0xff]
    %v6581 = vld [vmem:[#allocation27 + $0x16e0] sm:$0xff]
    %v6582 = vld [vmem:[#allocation27 + $0x16e8] sm:$0xff]
    %v6583 = vld [vmem:[#allocation27 + $0x16f0] sm:$0xff]
    %v6584 = vld [vmem:[#allocation27 + $0x16f8] sm:$0xff]
    %v6585 = vld [vmem:[#allocation27 + $0x1700] sm:$0xff]
    %v6586 = vld [vmem:[#allocation27 + $0x1708] sm:$0xff]
    %v6587 = vld [vmem:[#allocation27 + $0x1710] sm:$0xff]
    %v6588 = vld [vmem:[#allocation27 + $0x1718] sm:$0xff]
    %v6589 = vld [vmem:[#allocation27 + $0x1720] sm:$0xff]
    %v6590 = vld [vmem:[#allocation27 + $0x1728] sm:$0xff]
    %v6591 = vld [vmem:[#allocation27 + $0x1730] sm:$0xff]
    %v6592 = vld [vmem:[#allocation27 + $0x1738] sm:$0xff]
    %v6593 = vld [vmem:[#allocation27 + $0x1740] sm:$0xff]
    %v6594 = vld [vmem:[#allocation27 + $0x1748] sm:$0xff]
    %v6595 = vld [vmem:[#allocation27 + $0x1750] sm:$0xff]
    %v6596 = vld [vmem:[#allocation27 + $0x1758] sm:$0xff]
    %v6597 = vld [vmem:[#allocation27 + $0x1760] sm:$0xff]
    %v6598 = vld [vmem:[#allocation27 + $0x1768] sm:$0xff]
    %v6599 = vld [vmem:[#allocation27 + $0x1770] sm:$0xff]
    %v6600 = vld [vmem:[#allocation27 + $0x1778] sm:$0xff]
    %v6601 = vld [vmem:[#allocation27 + $0x1780] sm:$0xff]
    %v6602 = vld [vmem:[#allocation27 + $0x1788] sm:$0xff]
    %v6603 = vld [vmem:[#allocation27 + $0x1790] sm:$0xff]
    %v6604 = vld [vmem:[#allocation27 + $0x1798] sm:$0xff]
    %v6605 = vld [vmem:[#allocation27 + $0x17a0] sm:$0xff]
    %v6606 = vld [vmem:[#allocation27 + $0x17a8] sm:$0xff]
    %v6607 = vld [vmem:[#allocation27 + $0x17b0] sm:$0xff]
    %v6608 = vld [vmem:[#allocation27 + $0x17b8] sm:$0xff]
    %v6609 = vld [vmem:[#allocation27 + $0x17c0] sm:$0xff]
    %v6610 = vld [vmem:[#allocation27 + $0x17c8] sm:$0xff]
    %v6611 = vld [vmem:[#allocation27 + $0x17d0] sm:$0xff]
    %v6612 = vld [vmem:[#allocation27 + $0x17d8] sm:$0xff]
    %v6613 = vld [vmem:[#allocation27 + $0x17e0] sm:$0xff]
    %v6614 = vld [vmem:[#allocation27 + $0x17e8] sm:$0xff]
    %v6615 = vld [vmem:[#allocation27 + $0x17f0] sm:$0xff]
    %v6616 = vld [vmem:[#allocation27 + $0x17f8] sm:$0xff]
    %v6617 = vld [vmem:[#allocation27 + $0x1800] sm:$0xff]
    %v6618 = vld [vmem:[#allocation27 + $0x1808] sm:$0xff]
    %v6619 = vld [vmem:[#allocation27 + $0x1810] sm:$0xff]
    %v6620 = vld [vmem:[#allocation27 + $0x1818] sm:$0xff]
    %v6621 = vld [vmem:[#allocation27 + $0x1820] sm:$0xff]
    %v6622 = vld [vmem:[#allocation27 + $0x1828] sm:$0xff]
    %v6623 = vld [vmem:[#allocation27 + $0x1830] sm:$0xff]
    %v6624 = vld [vmem:[#allocation27 + $0x1838] sm:$0xff]
    %v6625 = vld [vmem:[#allocation27 + $0x1840] sm:$0xff]
    %v6626 = vld [vmem:[#allocation27 + $0x1848] sm:$0xff]
    %v6627 = vld [vmem:[#allocation27 + $0x1850] sm:$0xff]
    %v6628 = vld [vmem:[#allocation27 + $0x1858] sm:$0xff]
    %v6629 = vld [vmem:[#allocation27 + $0x1860] sm:$0xff]
    %v6630 = vld [vmem:[#allocation27 + $0x1868] sm:$0xff]
    %v6631 = vld [vmem:[#allocation27 + $0x1870] sm:$0xff]
    %v6632 = vld [vmem:[#allocation27 + $0x1878] sm:$0xff]
    %v6633 = vld [vmem:[#allocation27 + $0x1880] sm:$0xff]
    %v6634 = vld [vmem:[#allocation27 + $0x1888] sm:$0xff]
    %v6635 = vld [vmem:[#allocation27 + $0x1890] sm:$0xff]
    %v6636 = vld [vmem:[#allocation27 + $0x1898] sm:$0xff]
    %v6637 = vld [vmem:[#allocation27 + $0x18a0] sm:$0xff]
    %v6638 = vld [vmem:[#allocation27 + $0x18a8] sm:$0xff]
    %v6639 = vld [vmem:[#allocation27 + $0x18b0] sm:$0xff]
    %v6640 = vld [vmem:[#allocation27 + $0x18b8] sm:$0xff]
    %v6641 = vld [vmem:[#allocation27 + $0x18c0] sm:$0xff]
    %v6642 = vld [vmem:[#allocation27 + $0x18c8] sm:$0xff]
    %v6643 = vld [vmem:[#allocation27 + $0x18d0] sm:$0xff]
    %v6644 = vld [vmem:[#allocation27 + $0x18d8] sm:$0xff]
    %v6645 = vld [vmem:[#allocation27 + $0x18e0] sm:$0xff]
    %v6646 = vld [vmem:[#allocation27 + $0x18e8] sm:$0xff]
    %v6647 = vld [vmem:[#allocation27 + $0x18f0] sm:$0xff]
    %v6648 = vld [vmem:[#allocation27 + $0x18f8] sm:$0xff]
    %v6649 = vld [vmem:[#allocation27 + $0x1900] sm:$0xff]
    %v6650 = vld [vmem:[#allocation27 + $0x1908] sm:$0xff]
    %v6651 = vld [vmem:[#allocation27 + $0x1910] sm:$0xff]
    %v6652 = vld [vmem:[#allocation27 + $0x1918] sm:$0xff]
    %v6653 = vld [vmem:[#allocation27 + $0x1920] sm:$0xff]
    %v6654 = vld [vmem:[#allocation27 + $0x1928] sm:$0xff]
    %v6655 = vld [vmem:[#allocation27 + $0x1930] sm:$0xff]
    %v6656 = vld [vmem:[#allocation27 + $0x1938] sm:$0xff]
    %v6657 = vld [vmem:[#allocation27 + $0x1940] sm:$0xff]
    %v6658 = vld [vmem:[#allocation27 + $0x1948] sm:$0xff]
    %v6659 = vld [vmem:[#allocation27 + $0x1950] sm:$0xff]
    %v6660 = vld [vmem:[#allocation27 + $0x1958] sm:$0xff]
    %v6661 = vld [vmem:[#allocation27 + $0x1960] sm:$0xff]
    %v6662 = vld [vmem:[#allocation27 + $0x1968] sm:$0xff]
    %v6663 = vld [vmem:[#allocation27 + $0x1970] sm:$0xff]
    %v6664 = vld [vmem:[#allocation27 + $0x1978] sm:$0xff]
    %v6665 = vld [vmem:[#allocation27 + $0x1980] sm:$0xff]
    %v6666 = vld [vmem:[#allocation27 + $0x1988] sm:$0xff]
    %v6667 = vld [vmem:[#allocation27 + $0x1990] sm:$0xff]
    %v6668 = vld [vmem:[#allocation27 + $0x1998] sm:$0xff]
    %v6669 = vld [vmem:[#allocation27 + $0x19a0] sm:$0xff]
    %v6670 = vld [vmem:[#allocation27 + $0x19a8] sm:$0xff]
    %v6671 = vld [vmem:[#allocation27 + $0x19b0] sm:$0xff]
    %v6672 = vld [vmem:[#allocation27 + $0x19b8] sm:$0xff]
    %v6673 = vld [vmem:[#allocation27 + $0x19c0] sm:$0xff]
    %v6674 = vld [vmem:[#allocation27 + $0x19c8] sm:$0xff]
    %v6675 = vld [vmem:[#allocation27 + $0x19d0] sm:$0xff]
    %v6676 = vld [vmem:[#allocation27 + $0x19d8] sm:$0xff]
    %v6677 = vld [vmem:[#allocation27 + $0x19e0] sm:$0xff]
    %v6678 = vld [vmem:[#allocation27 + $0x19e8] sm:$0xff]
    %v6679 = vld [vmem:[#allocation27 + $0x19f0] sm:$0xff]
    %v6680 = vld [vmem:[#allocation27 + $0x19f8] sm:$0xff]
    %v6681 = vld [vmem:[#allocation27 + $0x1a00] sm:$0xff]
    %v6682 = vld [vmem:[#allocation27 + $0x1a08] sm:$0xff]
    %v6683 = vld [vmem:[#allocation27 + $0x1a10] sm:$0xff]
    %v6684 = vld [vmem:[#allocation27 + $0x1a18] sm:$0xff]
    %v6685 = vld [vmem:[#allocation27 + $0x1a20] sm:$0xff]
    %v6686 = vld [vmem:[#allocation27 + $0x1a28] sm:$0xff]
    %v6687 = vld [vmem:[#allocation27 + $0x1a30] sm:$0xff]
    %v6688 = vld [vmem:[#allocation27 + $0x1a38] sm:$0xff]
    %v6689 = vld [vmem:[#allocation27 + $0x1a40] sm:$0xff]
    %v6690 = vld [vmem:[#allocation27 + $0x1a48] sm:$0xff]
    %v6691 = vld [vmem:[#allocation27 + $0x1a50] sm:$0xff]
    %v6692 = vld [vmem:[#allocation27 + $0x1a58] sm:$0xff]
    %v6693 = vld [vmem:[#allocation27 + $0x1a60] sm:$0xff]
    %v6694 = vld [vmem:[#allocation27 + $0x1a68] sm:$0xff]
    %v6695 = vld [vmem:[#allocation27 + $0x1a70] sm:$0xff]
    %v6696 = vld [vmem:[#allocation27 + $0x1a78] sm:$0xff]
    %v6697 = vld [vmem:[#allocation27 + $0x1a80] sm:$0xff]
    %v6698 = vld [vmem:[#allocation27 + $0x1a88] sm:$0xff]
    %v6699 = vld [vmem:[#allocation27 + $0x1a90] sm:$0xff]
    %v6700 = vld [vmem:[#allocation27 + $0x1a98] sm:$0xff]
    %v6701 = vld [vmem:[#allocation27 + $0x1aa0] sm:$0xff]
    %v6702 = vld [vmem:[#allocation27 + $0x1aa8] sm:$0xff]
    %v6703 = vld [vmem:[#allocation27 + $0x1ab0] sm:$0xff]
    %v6704 = vld [vmem:[#allocation27 + $0x1ab8] sm:$0xff]
    %v6705 = vld [vmem:[#allocation27 + $0x1ac0] sm:$0xff]
    %v6706 = vld [vmem:[#allocation27 + $0x1ac8] sm:$0xff]
    %v6707 = vld [vmem:[#allocation27 + $0x1ad0] sm:$0xff]
    %v6708 = vld [vmem:[#allocation27 + $0x1ad8] sm:$0xff]
    %v6709 = vld [vmem:[#allocation27 + $0x1ae0] sm:$0xff]
    %v6710 = vld [vmem:[#allocation27 + $0x1ae8] sm:$0xff]
    %v6711 = vld [vmem:[#allocation27 + $0x1af0] sm:$0xff]
    %v6712 = vld [vmem:[#allocation27 + $0x1af8] sm:$0xff]
    %v6713 = vld [vmem:[#allocation27 + $0x1b00] sm:$0xff]
    %v6714 = vld [vmem:[#allocation27 + $0x1b08] sm:$0xff]
    %v6715 = vld [vmem:[#allocation27 + $0x1b10] sm:$0xff]
    %v6716 = vld [vmem:[#allocation27 + $0x1b18] sm:$0xff]
    %v6717 = vld [vmem:[#allocation27 + $0x1b20] sm:$0xff]
    %v6718 = vld [vmem:[#allocation27 + $0x1b28] sm:$0xff]
    %v6719 = vld [vmem:[#allocation27 + $0x1b30] sm:$0xff]
    %v6720 = vld [vmem:[#allocation27 + $0x1b38] sm:$0xff]
    %v6721 = vld [vmem:[#allocation27 + $0x1b40] sm:$0xff]
    %v6722 = vld [vmem:[#allocation27 + $0x1b48] sm:$0xff]
    %v6723 = vld [vmem:[#allocation27 + $0x1b50] sm:$0xff]
    %v6724 = vld [vmem:[#allocation27 + $0x1b58] sm:$0xff]
    %v6725 = vld [vmem:[#allocation27 + $0x1b60] sm:$0xff]
    %v6726 = vld [vmem:[#allocation27 + $0x1b68] sm:$0xff]
    %v6727 = vld [vmem:[#allocation27 + $0x1b70] sm:$0xff]
    %v6728 = vld [vmem:[#allocation27 + $0x1b78] sm:$0xff]
    %v6729 = vld [vmem:[#allocation27 + $0x1b80] sm:$0xff]
    %v6730 = vld [vmem:[#allocation27 + $0x1b88] sm:$0xff]
    %v6731 = vld [vmem:[#allocation27 + $0x1b90] sm:$0xff]
    %v6732 = vld [vmem:[#allocation27 + $0x1b98] sm:$0xff]
    %v6733 = vld [vmem:[#allocation27 + $0x1ba0] sm:$0xff]
    %v6734 = vld [vmem:[#allocation27 + $0x1ba8] sm:$0xff]
    %v6735 = vld [vmem:[#allocation27 + $0x1bb0] sm:$0xff]
    %v6736 = vld [vmem:[#allocation27 + $0x1bb8] sm:$0xff]
    %v6737 = vld [vmem:[#allocation27 + $0x1bc0] sm:$0xff]
    %v6738 = vld [vmem:[#allocation27 + $0x1bc8] sm:$0xff]
    %v6739 = vld [vmem:[#allocation27 + $0x1bd0] sm:$0xff]
    %v6740 = vld [vmem:[#allocation27 + $0x1bd8] sm:$0xff]
    %v6741 = vld [vmem:[#allocation27 + $0x1be0] sm:$0xff]
    %v6742 = vld [vmem:[#allocation27 + $0x1be8] sm:$0xff]
    %v6743 = vld [vmem:[#allocation27 + $0x1bf0] sm:$0xff]
    %v6744 = vld [vmem:[#allocation27 + $0x1bf8] sm:$0xff]
    %v6745 = vld [vmem:[#allocation27 + $0x1c00] sm:$0xff]
    %v6746 = vld [vmem:[#allocation27 + $0x1c08] sm:$0xff]
    %v6747 = vld [vmem:[#allocation27 + $0x1c10] sm:$0xff]
    %v6748 = vld [vmem:[#allocation27 + $0x1c18] sm:$0xff]
    %v6749 = vld [vmem:[#allocation27 + $0x1c20] sm:$0xff]
    %v6750 = vld [vmem:[#allocation27 + $0x1c28] sm:$0xff]
    %v6751 = vld [vmem:[#allocation27 + $0x1c30] sm:$0xff]
    %v6752 = vld [vmem:[#allocation27 + $0x1c38] sm:$0xff]
    %v6753 = vld [vmem:[#allocation27 + $0x1c40] sm:$0xff]
    %v6754 = vld [vmem:[#allocation27 + $0x1c48] sm:$0xff]
    %v6755 = vld [vmem:[#allocation27 + $0x1c50] sm:$0xff]
    %v6756 = vld [vmem:[#allocation27 + $0x1c58] sm:$0xff]
    %v6757 = vld [vmem:[#allocation27 + $0x1c60] sm:$0xff]
    %v6758 = vld [vmem:[#allocation27 + $0x1c68] sm:$0xff]
    %v6759 = vld [vmem:[#allocation27 + $0x1c70] sm:$0xff]
    %v6760 = vld [vmem:[#allocation27 + $0x1c78] sm:$0xff]
    %v6761 = vld [vmem:[#allocation27 + $0x1c80] sm:$0xff]
    %v6762 = vld [vmem:[#allocation27 + $0x1c88] sm:$0xff]
    %v6763 = vld [vmem:[#allocation27 + $0x1c90] sm:$0xff]
    %v6764 = vld [vmem:[#allocation27 + $0x1c98] sm:$0xff]
    %v6765 = vld [vmem:[#allocation27 + $0x1ca0] sm:$0xff]
    %v6766 = vld [vmem:[#allocation27 + $0x1ca8] sm:$0xff]
    %v6767 = vld [vmem:[#allocation27 + $0x1cb0] sm:$0xff]
    %v6768 = vld [vmem:[#allocation27 + $0x1cb8] sm:$0xff]
    %v6769 = vld [vmem:[#allocation27 + $0x1cc0] sm:$0xff]
    %v6770 = vld [vmem:[#allocation27 + $0x1cc8] sm:$0xff]
    %v6771 = vld [vmem:[#allocation27 + $0x1cd0] sm:$0xff]
    %v6772 = vld [vmem:[#allocation27 + $0x1cd8] sm:$0xff]
    %v6773 = vld [vmem:[#allocation27 + $0x1ce0] sm:$0xff]
    %v6774 = vld [vmem:[#allocation27 + $0x1ce8] sm:$0xff]
    %v6775 = vld [vmem:[#allocation27 + $0x1cf0] sm:$0xff]
    %v6776 = vld [vmem:[#allocation27 + $0x1cf8] sm:$0xff]
    %v6777 = vld [vmem:[#allocation27 + $0x1d00] sm:$0xff]
    %v6778 = vld [vmem:[#allocation27 + $0x1d08] sm:$0xff]
    %v6779 = vld [vmem:[#allocation27 + $0x1d10] sm:$0xff]
    %v6780 = vld [vmem:[#allocation27 + $0x1d18] sm:$0xff]
    %v6781 = vld [vmem:[#allocation27 + $0x1d20] sm:$0xff]
    %v6782 = vld [vmem:[#allocation27 + $0x1d28] sm:$0xff]
    %v6783 = vld [vmem:[#allocation27 + $0x1d30] sm:$0xff]
    %v6784 = vld [vmem:[#allocation27 + $0x1d38] sm:$0xff]
    %v6785 = vld [vmem:[#allocation27 + $0x1d40] sm:$0xff]
    %v6786 = vld [vmem:[#allocation27 + $0x1d48] sm:$0xff]
    %v6787 = vld [vmem:[#allocation27 + $0x1d50] sm:$0xff]
    %v6788 = vld [vmem:[#allocation27 + $0x1d58] sm:$0xff]
    %v6789 = vld [vmem:[#allocation27 + $0x1d60] sm:$0xff]
    %v6790 = vld [vmem:[#allocation27 + $0x1d68] sm:$0xff]
    %v6791 = vld [vmem:[#allocation27 + $0x1d70] sm:$0xff]
    %v6792 = vld [vmem:[#allocation27 + $0x1d78] sm:$0xff]
    %v6793 = vld [vmem:[#allocation27 + $0x1d80] sm:$0xff]
    %v6794 = vld [vmem:[#allocation27 + $0x1d88] sm:$0xff]
    %v6795 = vld [vmem:[#allocation27 + $0x1d90] sm:$0xff]
    %v6796 = vld [vmem:[#allocation27 + $0x1d98] sm:$0xff]
    %v6797 = vld [vmem:[#allocation27 + $0x1da0] sm:$0xff]
    %v6798 = vld [vmem:[#allocation27 + $0x1da8] sm:$0xff]
    %v6799 = vld [vmem:[#allocation27 + $0x1db0] sm:$0xff]
    %v6800 = vld [vmem:[#allocation27 + $0x1db8] sm:$0xff]
    %v6801 = vld [vmem:[#allocation27 + $0x1dc0] sm:$0xff]
    %v6802 = vld [vmem:[#allocation27 + $0x1dc8] sm:$0xff]
    %v6803 = vld [vmem:[#allocation27 + $0x1dd0] sm:$0xff]
    %v6804 = vld [vmem:[#allocation27 + $0x1dd8] sm:$0xff]
    %v6805 = vld [vmem:[#allocation27 + $0x1de0] sm:$0xff]
    %v6806 = vld [vmem:[#allocation27 + $0x1de8] sm:$0xff]
    %v6807 = vld [vmem:[#allocation27 + $0x1df0] sm:$0xff]
    %v6808 = vld [vmem:[#allocation27 + $0x1df8] sm:$0xff]
    %v6809 = vld [vmem:[#allocation27 + $0x1e00] sm:$0xff]
    %v6810 = vld [vmem:[#allocation27 + $0x1e08] sm:$0xff]
    %v6811 = vld [vmem:[#allocation27 + $0x1e10] sm:$0xff]
    %v6812 = vld [vmem:[#allocation27 + $0x1e18] sm:$0xff]
    %v6813 = vld [vmem:[#allocation27 + $0x1e20] sm:$0xff]
    %v6814 = vld [vmem:[#allocation27 + $0x1e28] sm:$0xff]
    %v6815 = vld [vmem:[#allocation27 + $0x1e30] sm:$0xff]
    %v6816 = vld [vmem:[#allocation27 + $0x1e38] sm:$0xff]
    %v6817 = vld [vmem:[#allocation27 + $0x1e40] sm:$0xff]
    %v6818 = vld [vmem:[#allocation27 + $0x1e48] sm:$0xff]
    %v6819 = vld [vmem:[#allocation27 + $0x1e50] sm:$0xff]
    %v6820 = vld [vmem:[#allocation27 + $0x1e58] sm:$0xff]
    %v6821 = vld [vmem:[#allocation27 + $0x1e60] sm:$0xff]
    %v6822 = vld [vmem:[#allocation27 + $0x1e68] sm:$0xff]
    %v6823 = vld [vmem:[#allocation27 + $0x1e70] sm:$0xff]
    %v6824 = vld [vmem:[#allocation27 + $0x1e78] sm:$0xff]
    %v6825 = vld [vmem:[#allocation27 + $0x1e80] sm:$0xff]
    %v6826 = vld [vmem:[#allocation27 + $0x1e88] sm:$0xff]
    %v6827 = vld [vmem:[#allocation27 + $0x1e90] sm:$0xff]
    %v6828 = vld [vmem:[#allocation27 + $0x1e98] sm:$0xff]
    %v6829 = vld [vmem:[#allocation27 + $0x1ea0] sm:$0xff]
    %v6830 = vld [vmem:[#allocation27 + $0x1ea8] sm:$0xff]
    %v6831 = vld [vmem:[#allocation27 + $0x1eb0] sm:$0xff]
    %v6832 = vld [vmem:[#allocation27 + $0x1eb8] sm:$0xff]
    %v6833 = vld [vmem:[#allocation27 + $0x1ec0] sm:$0xff]
    %v6834 = vld [vmem:[#allocation27 + $0x1ec8] sm:$0xff]
    %v6835 = vld [vmem:[#allocation27 + $0x1ed0] sm:$0xff]
    %v6836 = vld [vmem:[#allocation27 + $0x1ed8] sm:$0xff]
    %v6837 = vld [vmem:[#allocation27 + $0x1ee0] sm:$0xff]
    %v6838 = vld [vmem:[#allocation27 + $0x1ee8] sm:$0xff]
    %v6839 = vld [vmem:[#allocation27 + $0x1ef0] sm:$0xff]
    %v6840 = vld [vmem:[#allocation27 + $0x1ef8] sm:$0xff]
    %v6841 = vld [vmem:[#allocation27 + $0x1f00] sm:$0xff]
    %v6842 = vld [vmem:[#allocation27 + $0x1f08] sm:$0xff]
    %v6843 = vld [vmem:[#allocation27 + $0x1f10] sm:$0xff]
    %v6844 = vld [vmem:[#allocation27 + $0x1f18] sm:$0xff]
    %v6845 = vld [vmem:[#allocation27 + $0x1f20] sm:$0xff]
    %v6846 = vld [vmem:[#allocation27 + $0x1f28] sm:$0xff]
    %v6847 = vld [vmem:[#allocation27 + $0x1f30] sm:$0xff]
    %v6848 = vld [vmem:[#allocation27 + $0x1f38] sm:$0xff]
    %v6849 = vld [vmem:[#allocation27 + $0x1f40] sm:$0xff]
    %v6850 = vld [vmem:[#allocation27 + $0x1f48] sm:$0xff]
    %v6851 = vld [vmem:[#allocation27 + $0x1f50] sm:$0xff]
    %v6852 = vld [vmem:[#allocation27 + $0x1f58] sm:$0xff]
    %v6853 = vld [vmem:[#allocation27 + $0x1f60] sm:$0xff]
    %v6854 = vld [vmem:[#allocation27 + $0x1f68] sm:$0xff]
    %v6855 = vld [vmem:[#allocation27 + $0x1f70] sm:$0xff]
    %v6856 = vld [vmem:[#allocation27 + $0x1f78] sm:$0xff]
    %v6857 = vld [vmem:[#allocation27 + $0x1f80] sm:$0xff]
    %v6858 = vld [vmem:[#allocation27 + $0x1f88] sm:$0xff]
    %v6859 = vld [vmem:[#allocation27 + $0x1f90] sm:$0xff]
    %v6860 = vld [vmem:[#allocation27 + $0x1f98] sm:$0xff]
    %v6861 = vld [vmem:[#allocation27 + $0x1fa0] sm:$0xff]
    %v6862 = vld [vmem:[#allocation27 + $0x1fa8] sm:$0xff]
    %v6863 = vld [vmem:[#allocation27 + $0x1fb0] sm:$0xff]
    %v6864 = vld [vmem:[#allocation27 + $0x1fb8] sm:$0xff]
    %v6865 = vld [vmem:[#allocation27 + $0x1fc0] sm:$0xff]
    %v6866 = vld [vmem:[#allocation27 + $0x1fc8] sm:$0xff]
    %v6867 = vld [vmem:[#allocation27 + $0x1fd0] sm:$0xff]
    %v6868 = vld [vmem:[#allocation27 + $0x1fd8] sm:$0xff]
    %v6869 = vld [vmem:[#allocation27 + $0x1fe0] sm:$0xff]
    %v6870 = vld [vmem:[#allocation27 + $0x1fe8] sm:$0xff]
    %v6871 = vld [vmem:[#allocation27 + $0x1ff0] sm:$0xff]
    %v6872 = vld [vmem:[#allocation27 + $0x1ff8] sm:$0xff]
    %6873 = vmatprep.subr.mxu0 %v5970
    %6874 = vmatpush1.msra.mxu0 %v5969
    %6875 = vmatprep.subr.mxu0 %v5962
    %6876 = vmatpush1.msra.mxu0 %v5961
    %6877 = vmatprep.subr.mxu0 %v5954
    %6878 = vmatpush1.msra.mxu0 %v5953
    %6879 = vmatprep.subr.mxu0 %v5946
    %6880 = vmatpush1.msra.mxu0 %v5945
    %6881 = vmatprep.subr.mxu0 %v5938
    %6882 = vmatpush1.msra.mxu0 %v5937
    %6883 = vmatprep.subr.mxu0 %v5930
    %6884 = vmatpush1.msra.mxu0 %v5929
    %6885 = vmatprep.subr.mxu0 %v5922
    %6886 = vmatpush1.msra.mxu0 %v5921
    %6887 = vmatprep.subr.mxu0 %v5914
    %6888 = vmatpush1.msra.mxu0 %v5913
    %6889 = vmatprep.subr.mxu0 %v5906
    %6890 = vmatpush1.msra.mxu0 %v5905
    %6891 = vmatprep.subr.mxu0 %v5898
    %6892 = vmatpush1.msra.mxu0 %v5897
    %6893 = vmatprep.subr.mxu0 %v5890
    %6894 = vmatpush1.msra.mxu0 %v5889
    %6895 = vmatprep.subr.mxu0 %v5882
    %6896 = vmatpush1.msra.mxu0 %v5881
    %6897 = vmatprep.subr.mxu0 %v5874
    %6898 = vmatpush1.msra.mxu0 %v5873
    %6899 = vmatprep.subr.mxu0 %v5866
    %6900 = vmatpush1.msra.mxu0 %v5865
    %6901 = vmatprep.subr.mxu0 %v5858
    %6902 = vmatpush1.msra.mxu0 %v5857
    %6903 = vmatprep.subr.mxu0 %v5850
    %6904 = vmatpush1.msra.mxu0 %v5849
    %6905 = vmatprep.subr.mxu0 %v6098
    %6906 = vmatpush2.msra.mxu0 %v6097
    %6907 = vmatprep.subr.mxu0 %v6090
    %6908 = vmatpush2.msra.mxu0 %v6089
    %6909 = vmatprep.subr.mxu0 %v6082
    %6910 = vmatpush2.msra.mxu0 %v6081
    %6911 = vmatprep.subr.mxu0 %v6074
    %6912 = vmatpush2.msra.mxu0 %v6073
    %6913 = vmatprep.subr.mxu0 %v6066
    %6914 = vmatpush2.msra.mxu0 %v6065
    %6915 = vmatprep.subr.mxu0 %v6058
    %6916 = vmatpush2.msra.mxu0 %v6057
    %6917 = vmatprep.subr.mxu0 %v6050
    %6918 = vmatpush2.msra.mxu0 %v6049
    %6919 = vmatprep.subr.mxu0 %v6042
    %6920 = vmatpush2.msra.mxu0 %v6041
    %6921 = vmatprep.subr.mxu0 %v6034
    %6922 = vmatpush2.msra.mxu0 %v6033
    %6923 = vmatprep.subr.mxu0 %v6026
    %6924 = vmatpush2.msra.mxu0 %v6025
    %6925 = vmatprep.subr.mxu0 %v6018
    %6926 = vmatpush2.msra.mxu0 %v6017
    %6927 = vmatprep.subr.mxu0 %v6010
    %6928 = vmatpush2.msra.mxu0 %v6009
    %6929 = vmatprep.subr.mxu0 %v6002
    %6930 = vmatpush2.msra.mxu0 %v6001
    %6931 = vmatprep.subr.mxu0 %v5994
    %6932 = vmatpush2.msra.mxu0 %v5993
    %6933 = vmatprep.subr.mxu0 %v5986
    %6934 = vmatpush2.msra.mxu0 %v5985
    %6935 = vmatprep.subr.mxu0 %v5978
    %6936 = vmatpush2.msra.mxu0 %v5977
    %6937 = vmatprep.mubr.f32.mxu0 %v5836
    %6938 = vmatmul.mubr.f32.gmra.mxu0 %v5827
    %v6939 = vpop.f32.mrf.mxu0
    %v6940 = vadd.f32 0.0, %v6939
    %v6941 = vpop.f32.mrf.mxu0
    %v6942 = vadd.f32 0.0, %v6941
    %6943 = vdwg.mxu0
    %6944 = vmatprep.subr.mxu0 %v6226
    %6945 = vmatpush1.msra.mxu0 %v6225
    %6946 = vmatprep.subr.mxu0 %v6218
    %6947 = vmatpush1.msra.mxu0 %v6217
    %6948 = vmatprep.subr.mxu0 %v6210
    %6949 = vmatpush1.msra.mxu0 %v6209
    %6950 = vmatprep.subr.mxu0 %v6202
    %6951 = vmatpush1.msra.mxu0 %v6201
    %6952 = vmatprep.subr.mxu0 %v6194
    %6953 = vmatpush1.msra.mxu0 %v6193
    %6954 = vmatprep.subr.mxu0 %v6186
    %6955 = vmatpush1.msra.mxu0 %v6185
    %6956 = vmatprep.subr.mxu0 %v6178
    %6957 = vmatpush1.msra.mxu0 %v6177
    %6958 = vmatprep.subr.mxu0 %v6170
    %6959 = vmatpush1.msra.mxu0 %v6169
    %6960 = vmatprep.subr.mxu0 %v6162
    %6961 = vmatpush1.msra.mxu0 %v6161
    %6962 = vmatprep.subr.mxu0 %v6154
    %6963 = vmatpush1.msra.mxu0 %v6153
    %6964 = vmatprep.subr.mxu0 %v6146
    %6965 = vmatpush1.msra.mxu0 %v6145
    %6966 = vmatprep.subr.mxu0 %v6138
    %6967 = vmatpush1.msra.mxu0 %v6137
    %6968 = vmatprep.subr.mxu0 %v6130
    %6969 = vmatpush1.msra.mxu0 %v6129
    %6970 = vmatprep.subr.mxu0 %v6122
    %6971 = vmatpush1.msra.mxu0 %v6121
    %6972 = vmatprep.subr.mxu0 %v6114
    %6973 = vmatpush1.msra.mxu0 %v6113
    %6974 = vmatprep.subr.mxu0 %v6106
    %6975 = vmatpush1.msra.mxu0 %v6105
    %6976 = vmatprep.subr.mxu0 %v6354
    %6977 = vmatpush2.msra.mxu0 %v6353
    %6978 = vmatprep.subr.mxu0 %v6346
    %6979 = vmatpush2.msra.mxu0 %v6345
    %6980 = vmatprep.subr.mxu0 %v6338
    %6981 = vmatpush2.msra.mxu0 %v6337
    %6982 = vmatprep.subr.mxu0 %v6330
    %6983 = vmatpush2.msra.mxu0 %v6329
    %6984 = vmatprep.subr.mxu0 %v6322
    %6985 = vmatpush2.msra.mxu0 %v6321
    %6986 = vmatprep.subr.mxu0 %v6314
    %6987 = vmatpush2.msra.mxu0 %v6313
    %6988 = vmatprep.subr.mxu0 %v6306
    %6989 = vmatpush2.msra.mxu0 %v6305
    %6990 = vmatprep.subr.mxu0 %v6298
    %6991 = vmatpush2.msra.mxu0 %v6297
    %6992 = vmatprep.subr.mxu0 %v6290
    %6993 = vmatpush2.msra.mxu0 %v6289
    %6994 = vmatprep.subr.mxu0 %v6282
    %6995 = vmatpush2.msra.mxu0 %v6281
    %6996 = vmatprep.subr.mxu0 %v6274
    %6997 = vmatpush2.msra.mxu0 %v6273
    %6998 = vmatprep.subr.mxu0 %v6266
    %6999 = vmatpush2.msra.mxu0 %v6265
    %7000 = vmatprep.subr.mxu0 %v6258
    %7001 = vmatpush2.msra.mxu0 %v6257
    %7002 = vmatprep.subr.mxu0 %v6250
    %7003 = vmatpush2.msra.mxu0 %v6249
    %7004 = vmatprep.subr.mxu0 %v6242
    %7005 = vmatpush2.msra.mxu0 %v6241
    %7006 = vmatprep.subr.mxu0 %v6234
    %7007 = vmatpush2.msra.mxu0 %v6233
    %7008 = vmatprep.mubr.f32.mxu0 %v5840
    %7009 = vmatmul.mubr.f32.gmra.mxu0 %v5838
    %v7010 = vpop.f32.mrf.mxu0
    %v7011 = vadd.f32 %v6940, %v7010
    %v7012 = vpop.f32.mrf.mxu0
    %v7013 = vadd.f32 %v6942, %v7012
    %7014 = vdwg.mxu0
    %7015 = vmatprep.subr.mxu0 %v6482
    %7016 = vmatpush1.msra.mxu0 %v6481
    %7017 = vmatprep.subr.mxu0 %v6474
    %7018 = vmatpush1.msra.mxu0 %v6473
    %7019 = vmatprep.subr.mxu0 %v6466
    %7020 = vmatpush1.msra.mxu0 %v6465
    %7021 = vmatprep.subr.mxu0 %v6458
    %7022 = vmatpush1.msra.mxu0 %v6457
    %7023 = vmatprep.subr.mxu0 %v6450
    %7024 = vmatpush1.msra.mxu0 %v6449
    %7025 = vmatprep.subr.mxu0 %v6442
    %7026 = vmatpush1.msra.mxu0 %v6441
    %7027 = vmatprep.subr.mxu0 %v6434
    %7028 = vmatpush1.msra.mxu0 %v6433
    %7029 = vmatprep.subr.mxu0 %v6426
    %7030 = vmatpush1.msra.mxu0 %v6425
    %7031 = vmatprep.subr.mxu0 %v6418
    %7032 = vmatpush1.msra.mxu0 %v6417
    %7033 = vmatprep.subr.mxu0 %v6410
    %7034 = vmatpush1.msra.mxu0 %v6409
    %7035 = vmatprep.subr.mxu0 %v6402
    %7036 = vmatpush1.msra.mxu0 %v6401
    %7037 = vmatprep.subr.mxu0 %v6394
    %7038 = vmatpush1.msra.mxu0 %v6393
    %7039 = vmatprep.subr.mxu0 %v6386
    %7040 = vmatpush1.msra.mxu0 %v6385
    %7041 = vmatprep.subr.mxu0 %v6378
    %7042 = vmatpush1.msra.mxu0 %v6377
    %7043 = vmatprep.subr.mxu0 %v6370
    %7044 = vmatpush1.msra.mxu0 %v6369
    %7045 = vmatprep.subr.mxu0 %v6362
    %7046 = vmatpush1.msra.mxu0 %v6361
    %7047 = vmatprep.subr.mxu0 %v6610
    %7048 = vmatpush2.msra.mxu0 %v6609
    %7049 = vmatprep.subr.mxu0 %v6602
    %7050 = vmatpush2.msra.mxu0 %v6601
    %7051 = vmatprep.subr.mxu0 %v6594
    %7052 = vmatpush2.msra.mxu0 %v6593
    %7053 = vmatprep.subr.mxu0 %v6586
    %7054 = vmatpush2.msra.mxu0 %v6585
    %7055 = vmatprep.subr.mxu0 %v6578
    %7056 = vmatpush2.msra.mxu0 %v6577
    %7057 = vmatprep.subr.mxu0 %v6570
    %7058 = vmatpush2.msra.mxu0 %v6569
    %7059 = vmatprep.subr.mxu0 %v6562
    %7060 = vmatpush2.msra.mxu0 %v6561
    %7061 = vmatprep.subr.mxu0 %v6554
    %7062 = vmatpush2.msra.mxu0 %v6553
    %7063 = vmatprep.subr.mxu0 %v6546
    %7064 = vmatpush2.msra.mxu0 %v6545
    %7065 = vmatprep.subr.mxu0 %v6538
    %7066 = vmatpush2.msra.mxu0 %v6537
    %7067 = vmatprep.subr.mxu0 %v6530
    %7068 = vmatpush2.msra.mxu0 %v6529
    %7069 = vmatprep.subr.mxu0 %v6522
    %7070 = vmatpush2.msra.mxu0 %v6521
    %7071 = vmatprep.subr.mxu0 %v6514
    %7072 = vmatpush2.msra.mxu0 %v6513
    %7073 = vmatprep.subr.mxu0 %v6506
    %7074 = vmatpush2.msra.mxu0 %v6505
    %7075 = vmatprep.subr.mxu0 %v6498
    %7076 = vmatpush2.msra.mxu0 %v6497
    %7077 = vmatprep.subr.mxu0 %v6490
    %7078 = vmatpush2.msra.mxu0 %v6489
    %7079 = vmatprep.mubr.f32.mxu0 %v5843
    %7080 = vmatmul.mubr.f32.gmra.mxu0 %v5832
    %v7081 = vpop.f32.mrf.mxu0
    %v7082 = vadd.f32 %v7011, %v7081
    %v7083 = vpop.f32.mrf.mxu0
    %v7084 = vadd.f32 %v7013, %v7083
    %7085 = vdwg.mxu0
    %7086 = vmatprep.subr.mxu0 %v6738
    %7087 = vmatpush1.msra.mxu0 %v6737
    %7088 = vmatprep.subr.mxu0 %v6730
    %7089 = vmatpush1.msra.mxu0 %v6729
    %7090 = vmatprep.subr.mxu0 %v6722
    %7091 = vmatpush1.msra.mxu0 %v6721
    %7092 = vmatprep.subr.mxu0 %v6714
    %7093 = vmatpush1.msra.mxu0 %v6713
    %7094 = vmatprep.subr.mxu0 %v6706
    %7095 = vmatpush1.msra.mxu0 %v6705
    %7096 = vmatprep.subr.mxu0 %v6698
    %7097 = vmatpush1.msra.mxu0 %v6697
    %7098 = vmatprep.subr.mxu0 %v6690
    %7099 = vmatpush1.msra.mxu0 %v6689
    %7100 = vmatprep.subr.mxu0 %v6682
    %7101 = vmatpush1.msra.mxu0 %v6681
    %7102 = vmatprep.subr.mxu0 %v6674
    %7103 = vmatpush1.msra.mxu0 %v6673
    %7104 = vmatprep.subr.mxu0 %v6666
    %7105 = vmatpush1.msra.mxu0 %v6665
    %7106 = vmatprep.subr.mxu0 %v6658
    %7107 = vmatpush1.msra.mxu0 %v6657
    %7108 = vmatprep.subr.mxu0 %v6650
    %7109 = vmatpush1.msra.mxu0 %v6649
    %7110 = vmatprep.subr.mxu0 %v6642
    %7111 = vmatpush1.msra.mxu0 %v6641
    %7112 = vmatprep.subr.mxu0 %v6634
    %7113 = vmatpush1.msra.mxu0 %v6633
    %7114 = vmatprep.subr.mxu0 %v6626
    %7115 = vmatpush1.msra.mxu0 %v6625
    %7116 = vmatprep.subr.mxu0 %v6618
    %7117 = vmatpush1.msra.mxu0 %v6617
    %7118 = vmatprep.subr.mxu0 %v6866
    %7119 = vmatpush2.msra.mxu0 %v6865
    %7120 = vmatprep.subr.mxu0 %v6858
    %7121 = vmatpush2.msra.mxu0 %v6857
    %7122 = vmatprep.subr.mxu0 %v6850
    %7123 = vmatpush2.msra.mxu0 %v6849
    %7124 = vmatprep.subr.mxu0 %v6842
    %7125 = vmatpush2.msra.mxu0 %v6841
    %7126 = vmatprep.subr.mxu0 %v6834
    %7127 = vmatpush2.msra.mxu0 %v6833
    %7128 = vmatprep.subr.mxu0 %v6826
    %7129 = vmatpush2.msra.mxu0 %v6825
    %7130 = vmatprep.subr.mxu0 %v6818
    %7131 = vmatpush2.msra.mxu0 %v6817
    %7132 = vmatprep.subr.mxu0 %v6810
    %7133 = vmatpush2.msra.mxu0 %v6809
    %7134 = vmatprep.subr.mxu0 %v6802
    %7135 = vmatpush2.msra.mxu0 %v6801
    %7136 = vmatprep.subr.mxu0 %v6794
    %7137 = vmatpush2.msra.mxu0 %v6793
    %7138 = vmatprep.subr.mxu0 %v6786
    %7139 = vmatpush2.msra.mxu0 %v6785
    %7140 = vmatprep.subr.mxu0 %v6778
    %7141 = vmatpush2.msra.mxu0 %v6777
    %7142 = vmatprep.subr.mxu0 %v6770
    %7143 = vmatpush2.msra.mxu0 %v6769
    %7144 = vmatprep.subr.mxu0 %v6762
    %7145 = vmatpush2.msra.mxu0 %v6761
    %7146 = vmatprep.subr.mxu0 %v6754
    %7147 = vmatpush2.msra.mxu0 %v6753
    %7148 = vmatprep.subr.mxu0 %v6746
    %7149 = vmatpush2.msra.mxu0 %v6745
    %7150 = vmatprep.mubr.f32.mxu0 %v5847
    %7151 = vmatmul.mubr.f32.gmra.mxu0 %v5845
    %v7152 = vpop.f32.mrf.mxu0
    %v7153 = vadd.f32 %v7082, %v7152
    %v7154 = vpop.f32.mrf.mxu0
    %v7155 = vadd.f32 %v7084, %v7154
    %7156 = vdwg.mxu0
    %7157 = vmatprep.subr.mxu0 %v5972
    %7158 = vmatpush1.msra.mxu0 %v5971
    %7159 = vmatprep.subr.mxu0 %v5964
    %7160 = vmatpush1.msra.mxu0 %v5963
    %7161 = vmatprep.subr.mxu0 %v5956
    %7162 = vmatpush1.msra.mxu0 %v5955
    %7163 = vmatprep.subr.mxu0 %v5948
    %7164 = vmatpush1.msra.mxu0 %v5947
    %7165 = vmatprep.subr.mxu0 %v5940
    %7166 = vmatpush1.msra.mxu0 %v5939
    %7167 = vmatprep.subr.mxu0 %v5932
    %7168 = vmatpush1.msra.mxu0 %v5931
    %7169 = vmatprep.subr.mxu0 %v5924
    %7170 = vmatpush1.msra.mxu0 %v5923
    %7171 = vmatprep.subr.mxu0 %v5916
    %7172 = vmatpush1.msra.mxu0 %v5915
    %7173 = vmatprep.subr.mxu0 %v5908
    %7174 = vmatpush1.msra.mxu0 %v5907
    %7175 = vmatprep.subr.mxu0 %v5900
    %7176 = vmatpush1.msra.mxu0 %v5899
    %7177 = vmatprep.subr.mxu0 %v5892
    %7178 = vmatpush1.msra.mxu0 %v5891
    %7179 = vmatprep.subr.mxu0 %v5884
    %7180 = vmatpush1.msra.mxu0 %v5883
    %7181 = vmatprep.subr.mxu0 %v5876
    %7182 = vmatpush1.msra.mxu0 %v5875
    %7183 = vmatprep.subr.mxu0 %v5868
    %7184 = vmatpush1.msra.mxu0 %v5867
    %7185 = vmatprep.subr.mxu0 %v5860
    %7186 = vmatpush1.msra.mxu0 %v5859
    %7187 = vmatprep.subr.mxu0 %v5852
    %7188 = vmatpush1.msra.mxu0 %v5851
    %7189 = vmatprep.subr.mxu0 %v6100
    %7190 = vmatpush2.msra.mxu0 %v6099
    %7191 = vmatprep.subr.mxu0 %v6092
    %7192 = vmatpush2.msra.mxu0 %v6091
    %7193 = vmatprep.subr.mxu0 %v6084
    %7194 = vmatpush2.msra.mxu0 %v6083
    %7195 = vmatprep.subr.mxu0 %v6076
    %7196 = vmatpush2.msra.mxu0 %v6075
    %7197 = vmatprep.subr.mxu0 %v6068
    %7198 = vmatpush2.msra.mxu0 %v6067
    %7199 = vmatprep.subr.mxu0 %v6060
    %7200 = vmatpush2.msra.mxu0 %v6059
    %7201 = vmatprep.subr.mxu0 %v6052
    %7202 = vmatpush2.msra.mxu0 %v6051
    %7203 = vmatprep.subr.mxu0 %v6044
    %7204 = vmatpush2.msra.mxu0 %v6043
    %7205 = vmatprep.subr.mxu0 %v6036
    %7206 = vmatpush2.msra.mxu0 %v6035
    %7207 = vmatprep.subr.mxu0 %v6028
    %7208 = vmatpush2.msra.mxu0 %v6027
    %7209 = vmatprep.subr.mxu0 %v6020
    %7210 = vmatpush2.msra.mxu0 %v6019
    %7211 = vmatprep.subr.mxu0 %v6012
    %7212 = vmatpush2.msra.mxu0 %v6011
    %7213 = vmatprep.subr.mxu0 %v6004
    %7214 = vmatpush2.msra.mxu0 %v6003
    %7215 = vmatprep.subr.mxu0 %v5996
    %7216 = vmatpush2.msra.mxu0 %v5995
    %7217 = vmatprep.subr.mxu0 %v5988
    %7218 = vmatpush2.msra.mxu0 %v5987
    %7219 = vmatprep.subr.mxu0 %v5980
    %7220 = vmatpush2.msra.mxu0 %v5979
    %7221 = vmatprep.mubr.f32.mxu0 %v5836
    %7222 = vmatmul.mubr.f32.gmra.mxu0 %v5827
    %v7223 = vpop.f32.mrf.mxu0
    %v7224 = vadd.f32 0.0, %v7223
    %v7225 = vpop.f32.mrf.mxu0
    %v7226 = vadd.f32 0.0, %v7225
    %7227 = vdwg.mxu0
    %7228 = vmatprep.subr.mxu0 %v6228
    %7229 = vmatpush1.msra.mxu0 %v6227
    %7230 = vmatprep.subr.mxu0 %v6220
    %7231 = vmatpush1.msra.mxu0 %v6219
    %7232 = vmatprep.subr.mxu0 %v6212
    %7233 = vmatpush1.msra.mxu0 %v6211
    %7234 = vmatprep.subr.mxu0 %v6204
    %7235 = vmatpush1.msra.mxu0 %v6203
    %7236 = vmatprep.subr.mxu0 %v6196
    %7237 = vmatpush1.msra.mxu0 %v6195
    %7238 = vmatprep.subr.mxu0 %v6188
    %7239 = vmatpush1.msra.mxu0 %v6187
    %7240 = vmatprep.subr.mxu0 %v6180
    %7241 = vmatpush1.msra.mxu0 %v6179
    %7242 = vmatprep.subr.mxu0 %v6172
    %7243 = vmatpush1.msra.mxu0 %v6171
    %7244 = vmatprep.subr.mxu0 %v6164
    %7245 = vmatpush1.msra.mxu0 %v6163
    %7246 = vmatprep.subr.mxu0 %v6156
    %7247 = vmatpush1.msra.mxu0 %v6155
    %7248 = vmatprep.subr.mxu0 %v6148
    %7249 = vmatpush1.msra.mxu0 %v6147
    %7250 = vmatprep.subr.mxu0 %v6140
    %7251 = vmatpush1.msra.mxu0 %v6139
    %7252 = vmatprep.subr.mxu0 %v6132
    %7253 = vmatpush1.msra.mxu0 %v6131
    %7254 = vmatprep.subr.mxu0 %v6124
    %7255 = vmatpush1.msra.mxu0 %v6123
    %7256 = vmatprep.subr.mxu0 %v6116
    %7257 = vmatpush1.msra.mxu0 %v6115
    %7258 = vmatprep.subr.mxu0 %v6108
    %7259 = vmatpush1.msra.mxu0 %v6107
    %7260 = vmatprep.subr.mxu0 %v6356
    %7261 = vmatpush2.msra.mxu0 %v6355
    %7262 = vmatprep.subr.mxu0 %v6348
    %7263 = vmatpush2.msra.mxu0 %v6347
    %7264 = vmatprep.subr.mxu0 %v6340
    %7265 = vmatpush2.msra.mxu0 %v6339
    %7266 = vmatprep.subr.mxu0 %v6332
    %7267 = vmatpush2.msra.mxu0 %v6331
    %7268 = vmatprep.subr.mxu0 %v6324
    %7269 = vmatpush2.msra.mxu0 %v6323
    %7270 = vmatprep.subr.mxu0 %v6316
    %7271 = vmatpush2.msra.mxu0 %v6315
    %7272 = vmatprep.subr.mxu0 %v6308
    %7273 = vmatpush2.msra.mxu0 %v6307
    %7274 = vmatprep.subr.mxu0 %v6300
    %7275 = vmatpush2.msra.mxu0 %v6299
    %7276 = vmatprep.subr.mxu0 %v6292
    %7277 = vmatpush2.msra.mxu0 %v6291
    %7278 = vmatprep.subr.mxu0 %v6284
    %7279 = vmatpush2.msra.mxu0 %v6283
    %7280 = vmatprep.subr.mxu0 %v6276
    %7281 = vmatpush2.msra.mxu0 %v6275
    %7282 = vmatprep.subr.mxu0 %v6268
    %7283 = vmatpush2.msra.mxu0 %v6267
    %7284 = vmatprep.subr.mxu0 %v6260
    %7285 = vmatpush2.msra.mxu0 %v6259
    %7286 = vmatprep.subr.mxu0 %v6252
    %7287 = vmatpush2.msra.mxu0 %v6251
    %7288 = vmatprep.subr.mxu0 %v6244
    %7289 = vmatpush2.msra.mxu0 %v6243
    %7290 = vmatprep.subr.mxu0 %v6236
    %7291 = vmatpush2.msra.mxu0 %v6235
    %7292 = vmatprep.mubr.f32.mxu0 %v5840
    %7293 = vmatmul.mubr.f32.gmra.mxu0 %v5838
    %v7294 = vpop.f32.mrf.mxu0
    %v7295 = vadd.f32 %v7224, %v7294
    %v7296 = vpop.f32.mrf.mxu0
    %v7297 = vadd.f32 %v7226, %v7296
    %7298 = vdwg.mxu0
    %7299 = vmatprep.subr.mxu0 %v6484
    %7300 = vmatpush1.msra.mxu0 %v6483
    %7301 = vmatprep.subr.mxu0 %v6476
    %7302 = vmatpush1.msra.mxu0 %v6475
    %7303 = vmatprep.subr.mxu0 %v6468
    %7304 = vmatpush1.msra.mxu0 %v6467
    %7305 = vmatprep.subr.mxu0 %v6460
    %7306 = vmatpush1.msra.mxu0 %v6459
    %7307 = vmatprep.subr.mxu0 %v6452
    %7308 = vmatpush1.msra.mxu0 %v6451
    %7309 = vmatprep.subr.mxu0 %v6444
    %7310 = vmatpush1.msra.mxu0 %v6443
    %7311 = vmatprep.subr.mxu0 %v6436
    %7312 = vmatpush1.msra.mxu0 %v6435
    %7313 = vmatprep.subr.mxu0 %v6428
    %7314 = vmatpush1.msra.mxu0 %v6427
    %7315 = vmatprep.subr.mxu0 %v6420
    %7316 = vmatpush1.msra.mxu0 %v6419
    %7317 = vmatprep.subr.mxu0 %v6412
    %7318 = vmatpush1.msra.mxu0 %v6411
    %7319 = vmatprep.subr.mxu0 %v6404
    %7320 = vmatpush1.msra.mxu0 %v6403
    %7321 = vmatprep.subr.mxu0 %v6396
    %7322 = vmatpush1.msra.mxu0 %v6395
    %7323 = vmatprep.subr.mxu0 %v6388
    %7324 = vmatpush1.msra.mxu0 %v6387
    %7325 = vmatprep.subr.mxu0 %v6380
    %7326 = vmatpush1.msra.mxu0 %v6379
    %7327 = vmatprep.subr.mxu0 %v6372
    %7328 = vmatpush1.msra.mxu0 %v6371
    %7329 = vmatprep.subr.mxu0 %v6364
    %7330 = vmatpush1.msra.mxu0 %v6363
    %7331 = vmatprep.subr.mxu0 %v6612
    %7332 = vmatpush2.msra.mxu0 %v6611
    %7333 = vmatprep.subr.mxu0 %v6604
    %7334 = vmatpush2.msra.mxu0 %v6603
    %7335 = vmatprep.subr.mxu0 %v6596
    %7336 = vmatpush2.msra.mxu0 %v6595
    %7337 = vmatprep.subr.mxu0 %v6588
    %7338 = vmatpush2.msra.mxu0 %v6587
    %7339 = vmatprep.subr.mxu0 %v6580
    %7340 = vmatpush2.msra.mxu0 %v6579
    %7341 = vmatprep.subr.mxu0 %v6572
    %7342 = vmatpush2.msra.mxu0 %v6571
    %7343 = vmatprep.subr.mxu0 %v6564
    %7344 = vmatpush2.msra.mxu0 %v6563
    %7345 = vmatprep.subr.mxu0 %v6556
    %7346 = vmatpush2.msra.mxu0 %v6555
    %7347 = vmatprep.subr.mxu0 %v6548
    %7348 = vmatpush2.msra.mxu0 %v6547
    %7349 = vmatprep.subr.mxu0 %v6540
    %7350 = vmatpush2.msra.mxu0 %v6539
    %7351 = vmatprep.subr.mxu0 %v6532
    %7352 = vmatpush2.msra.mxu0 %v6531
    %7353 = vmatprep.subr.mxu0 %v6524
    %7354 = vmatpush2.msra.mxu0 %v6523
    %7355 = vmatprep.subr.mxu0 %v6516
    %7356 = vmatpush2.msra.mxu0 %v6515
    %7357 = vmatprep.subr.mxu0 %v6508
    %7358 = vmatpush2.msra.mxu0 %v6507
    %7359 = vmatprep.subr.mxu0 %v6500
    %7360 = vmatpush2.msra.mxu0 %v6499
    %7361 = vmatprep.subr.mxu0 %v6492
    %7362 = vmatpush2.msra.mxu0 %v6491
    %7363 = vmatprep.mubr.f32.mxu0 %v5843
    %7364 = vmatmul.mubr.f32.gmra.mxu0 %v5832
    %v7365 = vpop.f32.mrf.mxu0
    %v7366 = vadd.f32 %v7295, %v7365
    %v7367 = vpop.f32.mrf.mxu0
    %v7368 = vadd.f32 %v7297, %v7367
    %7369 = vdwg.mxu0
    %7370 = vmatprep.subr.mxu0 %v6740
    %7371 = vmatpush1.msra.mxu0 %v6739
    %7372 = vmatprep.subr.mxu0 %v6732
    %7373 = vmatpush1.msra.mxu0 %v6731
    %7374 = vmatprep.subr.mxu0 %v6724
    %7375 = vmatpush1.msra.mxu0 %v6723
    %7376 = vmatprep.subr.mxu0 %v6716
    %7377 = vmatpush1.msra.mxu0 %v6715
    %7378 = vmatprep.subr.mxu0 %v6708
    %7379 = vmatpush1.msra.mxu0 %v6707
    %7380 = vmatprep.subr.mxu0 %v6700
    %7381 = vmatpush1.msra.mxu0 %v6699
    %7382 = vmatprep.subr.mxu0 %v6692
    %7383 = vmatpush1.msra.mxu0 %v6691
    %7384 = vmatprep.subr.mxu0 %v6684
    %7385 = vmatpush1.msra.mxu0 %v6683
    %7386 = vmatprep.subr.mxu0 %v6676
    %7387 = vmatpush1.msra.mxu0 %v6675
    %7388 = vmatprep.subr.mxu0 %v6668
    %7389 = vmatpush1.msra.mxu0 %v6667
    %7390 = vmatprep.subr.mxu0 %v6660
    %7391 = vmatpush1.msra.mxu0 %v6659
    %7392 = vmatprep.subr.mxu0 %v6652
    %7393 = vmatpush1.msra.mxu0 %v6651
    %7394 = vmatprep.subr.mxu0 %v6644
    %7395 = vmatpush1.msra.mxu0 %v6643
    %7396 = vmatprep.subr.mxu0 %v6636
    %7397 = vmatpush1.msra.mxu0 %v6635
    %7398 = vmatprep.subr.mxu0 %v6628
    %7399 = vmatpush1.msra.mxu0 %v6627
    %7400 = vmatprep.subr.mxu0 %v6620
    %7401 = vmatpush1.msra.mxu0 %v6619
    %7402 = vmatprep.subr.mxu0 %v6868
    %7403 = vmatpush2.msra.mxu0 %v6867
    %7404 = vmatprep.subr.mxu0 %v6860
    %7405 = vmatpush2.msra.mxu0 %v6859
    %7406 = vmatprep.subr.mxu0 %v6852
    %7407 = vmatpush2.msra.mxu0 %v6851
    %7408 = vmatprep.subr.mxu0 %v6844
    %7409 = vmatpush2.msra.mxu0 %v6843
    %7410 = vmatprep.subr.mxu0 %v6836
    %7411 = vmatpush2.msra.mxu0 %v6835
    %7412 = vmatprep.subr.mxu0 %v6828
    %7413 = vmatpush2.msra.mxu0 %v6827
    %7414 = vmatprep.subr.mxu0 %v6820
    %7415 = vmatpush2.msra.mxu0 %v6819
    %7416 = vmatprep.subr.mxu0 %v6812
    %7417 = vmatpush2.msra.mxu0 %v6811
    %7418 = vmatprep.subr.mxu0 %v6804
    %7419 = vmatpush2.msra.mxu0 %v6803
    %7420 = vmatprep.subr.mxu0 %v6796
    %7421 = vmatpush2.msra.mxu0 %v6795
    %7422 = vmatprep.subr.mxu0 %v6788
    %7423 = vmatpush2.msra.mxu0 %v6787
    %7424 = vmatprep.subr.mxu0 %v6780
    %7425 = vmatpush2.msra.mxu0 %v6779
    %7426 = vmatprep.subr.mxu0 %v6772
    %7427 = vmatpush2.msra.mxu0 %v6771
    %7428 = vmatprep.subr.mxu0 %v6764
    %7429 = vmatpush2.msra.mxu0 %v6763
    %7430 = vmatprep.subr.mxu0 %v6756
    %7431 = vmatpush2.msra.mxu0 %v6755
    %7432 = vmatprep.subr.mxu0 %v6748
    %7433 = vmatpush2.msra.mxu0 %v6747
    %7434 = vmatprep.mubr.f32.mxu0 %v5847
    %7435 = vmatmul.mubr.f32.gmra.mxu0 %v5845
    %v7436 = vpop.f32.mrf.mxu0
    %v7437 = vadd.f32 %v7366, %v7436
    %v7438 = vpop.f32.mrf.mxu0
    %v7439 = vadd.f32 %v7368, %v7438
    %7440 = vdwg.mxu0
    %7441 = vmatprep.subr.mxu0 %v5974
    %7442 = vmatpush1.msra.mxu0 %v5973
    %7443 = vmatprep.subr.mxu0 %v5966
    %7444 = vmatpush1.msra.mxu0 %v5965
    %7445 = vmatprep.subr.mxu0 %v5958
    %7446 = vmatpush1.msra.mxu0 %v5957
    %7447 = vmatprep.subr.mxu0 %v5950
    %7448 = vmatpush1.msra.mxu0 %v5949
    %7449 = vmatprep.subr.mxu0 %v5942
    %7450 = vmatpush1.msra.mxu0 %v5941
    %7451 = vmatprep.subr.mxu0 %v5934
    %7452 = vmatpush1.msra.mxu0 %v5933
    %7453 = vmatprep.subr.mxu0 %v5926
    %7454 = vmatpush1.msra.mxu0 %v5925
    %7455 = vmatprep.subr.mxu0 %v5918
    %7456 = vmatpush1.msra.mxu0 %v5917
    %7457 = vmatprep.subr.mxu0 %v5910
    %7458 = vmatpush1.msra.mxu0 %v5909
    %7459 = vmatprep.subr.mxu0 %v5902
    %7460 = vmatpush1.msra.mxu0 %v5901
    %7461 = vmatprep.subr.mxu0 %v5894
    %7462 = vmatpush1.msra.mxu0 %v5893
    %7463 = vmatprep.subr.mxu0 %v5886
    %7464 = vmatpush1.msra.mxu0 %v5885
    %7465 = vmatprep.subr.mxu0 %v5878
    %7466 = vmatpush1.msra.mxu0 %v5877
    %7467 = vmatprep.subr.mxu0 %v5870
    %7468 = vmatpush1.msra.mxu0 %v5869
    %7469 = vmatprep.subr.mxu0 %v5862
    %7470 = vmatpush1.msra.mxu0 %v5861
    %7471 = vmatprep.subr.mxu0 %v5854
    %7472 = vmatpush1.msra.mxu0 %v5853
    %7473 = vmatprep.subr.mxu0 %v6102
    %7474 = vmatpush2.msra.mxu0 %v6101
    %7475 = vmatprep.subr.mxu0 %v6094
    %7476 = vmatpush2.msra.mxu0 %v6093
    %7477 = vmatprep.subr.mxu0 %v6086
    %7478 = vmatpush2.msra.mxu0 %v6085
    %7479 = vmatprep.subr.mxu0 %v6078
    %7480 = vmatpush2.msra.mxu0 %v6077
    %7481 = vmatprep.subr.mxu0 %v6070
    %7482 = vmatpush2.msra.mxu0 %v6069
    %7483 = vmatprep.subr.mxu0 %v6062
    %7484 = vmatpush2.msra.mxu0 %v6061
    %7485 = vmatprep.subr.mxu0 %v6054
    %7486 = vmatpush2.msra.mxu0 %v6053
    %7487 = vmatprep.subr.mxu0 %v6046
    %7488 = vmatpush2.msra.mxu0 %v6045
    %7489 = vmatprep.subr.mxu0 %v6038
    %7490 = vmatpush2.msra.mxu0 %v6037
    %7491 = vmatprep.subr.mxu0 %v6030
    %7492 = vmatpush2.msra.mxu0 %v6029
    %7493 = vmatprep.subr.mxu0 %v6022
    %7494 = vmatpush2.msra.mxu0 %v6021
    %7495 = vmatprep.subr.mxu0 %v6014
    %7496 = vmatpush2.msra.mxu0 %v6013
    %7497 = vmatprep.subr.mxu0 %v6006
    %7498 = vmatpush2.msra.mxu0 %v6005
    %7499 = vmatprep.subr.mxu0 %v5998
    %7500 = vmatpush2.msra.mxu0 %v5997
    %7501 = vmatprep.subr.mxu0 %v5990
    %7502 = vmatpush2.msra.mxu0 %v5989
    %7503 = vmatprep.subr.mxu0 %v5982
    %7504 = vmatpush2.msra.mxu0 %v5981
    %7505 = vmatprep.mubr.f32.mxu0 %v5836
    %7506 = vmatmul.mubr.f32.gmra.mxu0 %v5827
    %v7507 = vpop.f32.mrf.mxu0
    %v7508 = vadd.f32 0.0, %v7507
    %v7509 = vpop.f32.mrf.mxu0
    %v7510 = vadd.f32 0.0, %v7509
    %7511 = vdwg.mxu0
    %7512 = vmatprep.subr.mxu0 %v6230
    %7513 = vmatpush1.msra.mxu0 %v6229
    %7514 = vmatprep.subr.mxu0 %v6222
    %7515 = vmatpush1.msra.mxu0 %v6221
    %7516 = vmatprep.subr.mxu0 %v6214
    %7517 = vmatpush1.msra.mxu0 %v6213
    %7518 = vmatprep.subr.mxu0 %v6206
    %7519 = vmatpush1.msra.mxu0 %v6205
    %7520 = vmatprep.subr.mxu0 %v6198
    %7521 = vmatpush1.msra.mxu0 %v6197
    %7522 = vmatprep.subr.mxu0 %v6190
    %7523 = vmatpush1.msra.mxu0 %v6189
    %7524 = vmatprep.subr.mxu0 %v6182
    %7525 = vmatpush1.msra.mxu0 %v6181
    %7526 = vmatprep.subr.mxu0 %v6174
    %7527 = vmatpush1.msra.mxu0 %v6173
    %7528 = vmatprep.subr.mxu0 %v6166
    %7529 = vmatpush1.msra.mxu0 %v6165
    %7530 = vmatprep.subr.mxu0 %v6158
    %7531 = vmatpush1.msra.mxu0 %v6157
    %7532 = vmatprep.subr.mxu0 %v6150
    %7533 = vmatpush1.msra.mxu0 %v6149
    %7534 = vmatprep.subr.mxu0 %v6142
    %7535 = vmatpush1.msra.mxu0 %v6141
    %7536 = vmatprep.subr.mxu0 %v6134
    %7537 = vmatpush1.msra.mxu0 %v6133
    %7538 = vmatprep.subr.mxu0 %v6126
    %7539 = vmatpush1.msra.mxu0 %v6125
    %7540 = vmatprep.subr.mxu0 %v6118
    %7541 = vmatpush1.msra.mxu0 %v6117
    %7542 = vmatprep.subr.mxu0 %v6110
    %7543 = vmatpush1.msra.mxu0 %v6109
    %7544 = vmatprep.subr.mxu0 %v6358
    %7545 = vmatpush2.msra.mxu0 %v6357
    %7546 = vmatprep.subr.mxu0 %v6350
    %7547 = vmatpush2.msra.mxu0 %v6349
    %7548 = vmatprep.subr.mxu0 %v6342
    %7549 = vmatpush2.msra.mxu0 %v6341
    %7550 = vmatprep.subr.mxu0 %v6334
    %7551 = vmatpush2.msra.mxu0 %v6333
    %7552 = vmatprep.subr.mxu0 %v6326
    %7553 = vmatpush2.msra.mxu0 %v6325
    %7554 = vmatprep.subr.mxu0 %v6318
    %7555 = vmatpush2.msra.mxu0 %v6317
    %7556 = vmatprep.subr.mxu0 %v6310
    %7557 = vmatpush2.msra.mxu0 %v6309
    %7558 = vmatprep.subr.mxu0 %v6302
    %7559 = vmatpush2.msra.mxu0 %v6301
    %7560 = vmatprep.subr.mxu0 %v6294
    %7561 = vmatpush2.msra.mxu0 %v6293
    %7562 = vmatprep.subr.mxu0 %v6286
    %7563 = vmatpush2.msra.mxu0 %v6285
    %7564 = vmatprep.subr.mxu0 %v6278
    %7565 = vmatpush2.msra.mxu0 %v6277
    %7566 = vmatprep.subr.mxu0 %v6270
    %7567 = vmatpush2.msra.mxu0 %v6269
    %7568 = vmatprep.subr.mxu0 %v6262
    %7569 = vmatpush2.msra.mxu0 %v6261
    %7570 = vmatprep.subr.mxu0 %v6254
    %7571 = vmatpush2.msra.mxu0 %v6253
    %7572 = vmatprep.subr.mxu0 %v6246
    %7573 = vmatpush2.msra.mxu0 %v6245
    %7574 = vmatprep.subr.mxu0 %v6238
    %7575 = vmatpush2.msra.mxu0 %v6237
    %7576 = vmatprep.mubr.f32.mxu0 %v5840
    %7577 = vmatmul.mubr.f32.gmra.mxu0 %v5838
    %v7578 = vpop.f32.mrf.mxu0
    %v7579 = vadd.f32 %v7508, %v7578
    %v7580 = vpop.f32.mrf.mxu0
    %v7581 = vadd.f32 %v7510, %v7580
    %7582 = vdwg.mxu0
    %7583 = vmatprep.subr.mxu0 %v6486
    %7584 = vmatpush1.msra.mxu0 %v6485
    %7585 = vmatprep.subr.mxu0 %v6478
    %7586 = vmatpush1.msra.mxu0 %v6477
    %7587 = vmatprep.subr.mxu0 %v6470
    %7588 = vmatpush1.msra.mxu0 %v6469
    %7589 = vmatprep.subr.mxu0 %v6462
    %7590 = vmatpush1.msra.mxu0 %v6461
    %7591 = vmatprep.subr.mxu0 %v6454
    %7592 = vmatpush1.msra.mxu0 %v6453
    %7593 = vmatprep.subr.mxu0 %v6446
    %7594 = vmatpush1.msra.mxu0 %v6445
    %7595 = vmatprep.subr.mxu0 %v6438
    %7596 = vmatpush1.msra.mxu0 %v6437
    %7597 = vmatprep.subr.mxu0 %v6430
    %7598 = vmatpush1.msra.mxu0 %v6429
    %7599 = vmatprep.subr.mxu0 %v6422
    %7600 = vmatpush1.msra.mxu0 %v6421
    %7601 = vmatprep.subr.mxu0 %v6414
    %7602 = vmatpush1.msra.mxu0 %v6413
    %7603 = vmatprep.subr.mxu0 %v6406
    %7604 = vmatpush1.msra.mxu0 %v6405
    %7605 = vmatprep.subr.mxu0 %v6398
    %7606 = vmatpush1.msra.mxu0 %v6397
    %7607 = vmatprep.subr.mxu0 %v6390
    %7608 = vmatpush1.msra.mxu0 %v6389
    %7609 = vmatprep.subr.mxu0 %v6382
    %7610 = vmatpush1.msra.mxu0 %v6381
    %7611 = vmatprep.subr.mxu0 %v6374
    %7612 = vmatpush1.msra.mxu0 %v6373
    %7613 = vmatprep.subr.mxu0 %v6366
    %7614 = vmatpush1.msra.mxu0 %v6365
    %7615 = vmatprep.subr.mxu0 %v6614
    %7616 = vmatpush2.msra.mxu0 %v6613
    %7617 = vmatprep.subr.mxu0 %v6606
    %7618 = vmatpush2.msra.mxu0 %v6605
    %7619 = vmatprep.subr.mxu0 %v6598
    %7620 = vmatpush2.msra.mxu0 %v6597
    %7621 = vmatprep.subr.mxu0 %v6590
    %7622 = vmatpush2.msra.mxu0 %v6589
    %7623 = vmatprep.subr.mxu0 %v6582
    %7624 = vmatpush2.msra.mxu0 %v6581
    %7625 = vmatprep.subr.mxu0 %v6574
    %7626 = vmatpush2.msra.mxu0 %v6573
    %7627 = vmatprep.subr.mxu0 %v6566
    %7628 = vmatpush2.msra.mxu0 %v6565
    %7629 = vmatprep.subr.mxu0 %v6558
    %7630 = vmatpush2.msra.mxu0 %v6557
    %7631 = vmatprep.subr.mxu0 %v6550
    %7632 = vmatpush2.msra.mxu0 %v6549
    %7633 = vmatprep.subr.mxu0 %v6542
    %7634 = vmatpush2.msra.mxu0 %v6541
    %7635 = vmatprep.subr.mxu0 %v6534
    %7636 = vmatpush2.msra.mxu0 %v6533
    %7637 = vmatprep.subr.mxu0 %v6526
    %7638 = vmatpush2.msra.mxu0 %v6525
    %7639 = vmatprep.subr.mxu0 %v6518
    %7640 = vmatpush2.msra.mxu0 %v6517
    %7641 = vmatprep.subr.mxu0 %v6510
    %7642 = vmatpush2.msra.mxu0 %v6509
    %7643 = vmatprep.subr.mxu0 %v6502
    %7644 = vmatpush2.msra.mxu0 %v6501
    %7645 = vmatprep.subr.mxu0 %v6494
    %7646 = vmatpush2.msra.mxu0 %v6493
    %7647 = vmatprep.mubr.f32.mxu0 %v5843
    %7648 = vmatmul.mubr.f32.gmra.mxu0 %v5832
    %v7649 = vpop.f32.mrf.mxu0
    %v7650 = vadd.f32 %v7579, %v7649
    %v7651 = vpop.f32.mrf.mxu0
    %v7652 = vadd.f32 %v7581, %v7651
    %7653 = vdwg.mxu0
    %7654 = vmatprep.subr.mxu0 %v6742
    %7655 = vmatpush1.msra.mxu0 %v6741
    %7656 = vmatprep.subr.mxu0 %v6734
    %7657 = vmatpush1.msra.mxu0 %v6733
    %7658 = vmatprep.subr.mxu0 %v6726
    %7659 = vmatpush1.msra.mxu0 %v6725
    %7660 = vmatprep.subr.mxu0 %v6718
    %7661 = vmatpush1.msra.mxu0 %v6717
    %7662 = vmatprep.subr.mxu0 %v6710
    %7663 = vmatpush1.msra.mxu0 %v6709
    %7664 = vmatprep.subr.mxu0 %v6702
    %7665 = vmatpush1.msra.mxu0 %v6701
    %7666 = vmatprep.subr.mxu0 %v6694
    %7667 = vmatpush1.msra.mxu0 %v6693
    %7668 = vmatprep.subr.mxu0 %v6686
    %7669 = vmatpush1.msra.mxu0 %v6685
    %7670 = vmatprep.subr.mxu0 %v6678
    %7671 = vmatpush1.msra.mxu0 %v6677
    %7672 = vmatprep.subr.mxu0 %v6670
    %7673 = vmatpush1.msra.mxu0 %v6669
    %7674 = vmatprep.subr.mxu0 %v6662
    %7675 = vmatpush1.msra.mxu0 %v6661
    %7676 = vmatprep.subr.mxu0 %v6654
    %7677 = vmatpush1.msra.mxu0 %v6653
    %7678 = vmatprep.subr.mxu0 %v6646
    %7679 = vmatpush1.msra.mxu0 %v6645
    %7680 = vmatprep.subr.mxu0 %v6638
    %7681 = vmatpush1.msra.mxu0 %v6637
    %7682 = vmatprep.subr.mxu0 %v6630
    %7683 = vmatpush1.msra.mxu0 %v6629
    %7684 = vmatprep.subr.mxu0 %v6622
    %7685 = vmatpush1.msra.mxu0 %v6621
    %7686 = vmatprep.subr.mxu0 %v6870
    %7687 = vmatpush2.msra.mxu0 %v6869
    %7688 = vmatprep.subr.mxu0 %v6862
    %7689 = vmatpush2.msra.mxu0 %v6861
    %7690 = vmatprep.subr.mxu0 %v6854
    %7691 = vmatpush2.msra.mxu0 %v6853
    %7692 = vmatprep.subr.mxu0 %v6846
    %7693 = vmatpush2.msra.mxu0 %v6845
    %7694 = vmatprep.subr.mxu0 %v6838
    %7695 = vmatpush2.msra.mxu0 %v6837
    %7696 = vmatprep.subr.mxu0 %v6830
    %7697 = vmatpush2.msra.mxu0 %v6829
    %7698 = vmatprep.subr.mxu0 %v6822
    %7699 = vmatpush2.msra.mxu0 %v6821
    %7700 = vmatprep.subr.mxu0 %v6814
    %7701 = vmatpush2.msra.mxu0 %v6813
    %7702 = vmatprep.subr.mxu0 %v6806
    %7703 = vmatpush2.msra.mxu0 %v6805
    %7704 = vmatprep.subr.mxu0 %v6798
    %7705 = vmatpush2.msra.mxu0 %v6797
    %7706 = vmatprep.subr.mxu0 %v6790
    %7707 = vmatpush2.msra.mxu0 %v6789
    %7708 = vmatprep.subr.mxu0 %v6782
    %7709 = vmatpush2.msra.mxu0 %v6781
    %7710 = vmatprep.subr.mxu0 %v6774
    %7711 = vmatpush2.msra.mxu0 %v6773
    %7712 = vmatprep.subr.mxu0 %v6766
    %7713 = vmatpush2.msra.mxu0 %v6765
    %7714 = vmatprep.subr.mxu0 %v6758
    %7715 = vmatpush2.msra.mxu0 %v6757
    %7716 = vmatprep.subr.mxu0 %v6750
    %7717 = vmatpush2.msra.mxu0 %v6749
    %7718 = vmatprep.mubr.f32.mxu0 %v5847
    %7719 = vmatmul.mubr.f32.gmra.mxu0 %v5845
    %v7720 = vpop.f32.mrf.mxu0
    %v7721 = vadd.f32 %v7650, %v7720
    %v7722 = vpop.f32.mrf.mxu0
    %v7723 = vadd.f32 %v7652, %v7722
    %7724 = vdwg.mxu0
    %7725 = vmatprep.subr.mxu0 %v5976
    %7726 = vmatpush1.msra.mxu0 %v5975
    %7727 = vmatprep.subr.mxu0 %v5968
    %7728 = vmatpush1.msra.mxu0 %v5967
    %7729 = vmatprep.subr.mxu0 %v5960
    %7730 = vmatpush1.msra.mxu0 %v5959
    %7731 = vmatprep.subr.mxu0 %v5952
    %7732 = vmatpush1.msra.mxu0 %v5951
    %7733 = vmatprep.subr.mxu0 %v5944
    %7734 = vmatpush1.msra.mxu0 %v5943
    %7735 = vmatprep.subr.mxu0 %v5936
    %7736 = vmatpush1.msra.mxu0 %v5935
    %7737 = vmatprep.subr.mxu0 %v5928
    %7738 = vmatpush1.msra.mxu0 %v5927
    %7739 = vmatprep.subr.mxu0 %v5920
    %7740 = vmatpush1.msra.mxu0 %v5919
    %7741 = vmatprep.subr.mxu0 %v5912
    %7742 = vmatpush1.msra.mxu0 %v5911
    %7743 = vmatprep.subr.mxu0 %v5904
    %7744 = vmatpush1.msra.mxu0 %v5903
    %7745 = vmatprep.subr.mxu0 %v5896
    %7746 = vmatpush1.msra.mxu0 %v5895
    %7747 = vmatprep.subr.mxu0 %v5888
    %7748 = vmatpush1.msra.mxu0 %v5887
    %7749 = vmatprep.subr.mxu0 %v5880
    %7750 = vmatpush1.msra.mxu0 %v5879
    %7751 = vmatprep.subr.mxu0 %v5872
    %7752 = vmatpush1.msra.mxu0 %v5871
    %7753 = vmatprep.subr.mxu0 %v5864
    %7754 = vmatpush1.msra.mxu0 %v5863
    %7755 = vmatprep.subr.mxu0 %v5856
    %7756 = vmatpush1.msra.mxu0 %v5855
    %7757 = vmatprep.subr.mxu0 %v6104
    %7758 = vmatpush2.msra.mxu0 %v6103
    %7759 = vmatprep.subr.mxu0 %v6096
    %7760 = vmatpush2.msra.mxu0 %v6095
    %7761 = vmatprep.subr.mxu0 %v6088
    %7762 = vmatpush2.msra.mxu0 %v6087
    %7763 = vmatprep.subr.mxu0 %v6080
    %7764 = vmatpush2.msra.mxu0 %v6079
    %7765 = vmatprep.subr.mxu0 %v6072
    %7766 = vmatpush2.msra.mxu0 %v6071
    %7767 = vmatprep.subr.mxu0 %v6064
    %7768 = vmatpush2.msra.mxu0 %v6063
    %7769 = vmatprep.subr.mxu0 %v6056
    %7770 = vmatpush2.msra.mxu0 %v6055
    %7771 = vmatprep.subr.mxu0 %v6048
    %7772 = vmatpush2.msra.mxu0 %v6047
    %7773 = vmatprep.subr.mxu0 %v6040
    %7774 = vmatpush2.msra.mxu0 %v6039
    %7775 = vmatprep.subr.mxu0 %v6032
    %7776 = vmatpush2.msra.mxu0 %v6031
    %7777 = vmatprep.subr.mxu0 %v6024
    %7778 = vmatpush2.msra.mxu0 %v6023
    %7779 = vmatprep.subr.mxu0 %v6016
    %7780 = vmatpush2.msra.mxu0 %v6015
    %7781 = vmatprep.subr.mxu0 %v6008
    %7782 = vmatpush2.msra.mxu0 %v6007
    %7783 = vmatprep.subr.mxu0 %v6000
    %7784 = vmatpush2.msra.mxu0 %v5999
    %7785 = vmatprep.subr.mxu0 %v5992
    %7786 = vmatpush2.msra.mxu0 %v5991
    %7787 = vmatprep.subr.mxu0 %v5984
    %7788 = vmatpush2.msra.mxu0 %v5983
    %7789 = vmatprep.mubr.f32.mxu0 %v5836
    %7790 = vmatmul.mubr.f32.gmra.mxu0 %v5827
    %v7791 = vpop.f32.mrf.mxu0
    %v7792 = vadd.f32 0.0, %v7791
    %v7793 = vpop.f32.mrf.mxu0
    %v7794 = vadd.f32 0.0, %v7793
    %7795 = vdwg.mxu0
    %7796 = vmatprep.subr.mxu0 %v6232
    %7797 = vmatpush1.msra.mxu0 %v6231
    %7798 = vmatprep.subr.mxu0 %v6224
    %7799 = vmatpush1.msra.mxu0 %v6223
    %7800 = vmatprep.subr.mxu0 %v6216
    %7801 = vmatpush1.msra.mxu0 %v6215
    %7802 = vmatprep.subr.mxu0 %v6208
    %7803 = vmatpush1.msra.mxu0 %v6207
    %7804 = vmatprep.subr.mxu0 %v6200
    %7805 = vmatpush1.msra.mxu0 %v6199
    %7806 = vmatprep.subr.mxu0 %v6192
    %7807 = vmatpush1.msra.mxu0 %v6191
    %7808 = vmatprep.subr.mxu0 %v6184
    %7809 = vmatpush1.msra.mxu0 %v6183
    %7810 = vmatprep.subr.mxu0 %v6176
    %7811 = vmatpush1.msra.mxu0 %v6175
    %7812 = vmatprep.subr.mxu0 %v6168
    %7813 = vmatpush1.msra.mxu0 %v6167
    %7814 = vmatprep.subr.mxu0 %v6160
    %7815 = vmatpush1.msra.mxu0 %v6159
    %7816 = vmatprep.subr.mxu0 %v6152
    %7817 = vmatpush1.msra.mxu0 %v6151
    %7818 = vmatprep.subr.mxu0 %v6144
    %7819 = vmatpush1.msra.mxu0 %v6143
    %7820 = vmatprep.subr.mxu0 %v6136
    %7821 = vmatpush1.msra.mxu0 %v6135
    %7822 = vmatprep.subr.mxu0 %v6128
    %7823 = vmatpush1.msra.mxu0 %v6127
    %7824 = vmatprep.subr.mxu0 %v6120
    %7825 = vmatpush1.msra.mxu0 %v6119
    %7826 = vmatprep.subr.mxu0 %v6112
    %7827 = vmatpush1.msra.mxu0 %v6111
    %7828 = vmatprep.subr.mxu0 %v6360
    %7829 = vmatpush2.msra.mxu0 %v6359
    %7830 = vmatprep.subr.mxu0 %v6352
    %7831 = vmatpush2.msra.mxu0 %v6351
    %7832 = vmatprep.subr.mxu0 %v6344
    %7833 = vmatpush2.msra.mxu0 %v6343
    %7834 = vmatprep.subr.mxu0 %v6336
    %7835 = vmatpush2.msra.mxu0 %v6335
    %7836 = vmatprep.subr.mxu0 %v6328
    %7837 = vmatpush2.msra.mxu0 %v6327
    %7838 = vmatprep.subr.mxu0 %v6320
    %7839 = vmatpush2.msra.mxu0 %v6319
    %7840 = vmatprep.subr.mxu0 %v6312
    %7841 = vmatpush2.msra.mxu0 %v6311
    %7842 = vmatprep.subr.mxu0 %v6304
    %7843 = vmatpush2.msra.mxu0 %v6303
    %7844 = vmatprep.subr.mxu0 %v6296
    %7845 = vmatpush2.msra.mxu0 %v6295
    %7846 = vmatprep.subr.mxu0 %v6288
    %7847 = vmatpush2.msra.mxu0 %v6287
    %7848 = vmatprep.subr.mxu0 %v6280
    %7849 = vmatpush2.msra.mxu0 %v6279
    %7850 = vmatprep.subr.mxu0 %v6272
    %7851 = vmatpush2.msra.mxu0 %v6271
    %7852 = vmatprep.subr.mxu0 %v6264
    %7853 = vmatpush2.msra.mxu0 %v6263
    %7854 = vmatprep.subr.mxu0 %v6256
    %7855 = vmatpush2.msra.mxu0 %v6255
    %7856 = vmatprep.subr.mxu0 %v6248
    %7857 = vmatpush2.msra.mxu0 %v6247
    %7858 = vmatprep.subr.mxu0 %v6240
    %7859 = vmatpush2.msra.mxu0 %v6239
    %7860 = vmatprep.mubr.f32.mxu0 %v5840
    %7861 = vmatmul.mubr.f32.gmra.mxu0 %v5838
    %v7862 = vpop.f32.mrf.mxu0
    %v7863 = vadd.f32 %v7792, %v7862
    %v7864 = vpop.f32.mrf.mxu0
    %v7865 = vadd.f32 %v7794, %v7864
    %7866 = vdwg.mxu0
    %7867 = vmatprep.subr.mxu0 %v6488
    %7868 = vmatpush1.msra.mxu0 %v6487
    %7869 = vmatprep.subr.mxu0 %v6480
    %7870 = vmatpush1.msra.mxu0 %v6479
    %7871 = vmatprep.subr.mxu0 %v6472
    %7872 = vmatpush1.msra.mxu0 %v6471
    %7873 = vmatprep.subr.mxu0 %v6464
    %7874 = vmatpush1.msra.mxu0 %v6463
    %7875 = vmatprep.subr.mxu0 %v6456
    %7876 = vmatpush1.msra.mxu0 %v6455
    %7877 = vmatprep.subr.mxu0 %v6448
    %7878 = vmatpush1.msra.mxu0 %v6447
    %7879 = vmatprep.subr.mxu0 %v6440
    %7880 = vmatpush1.msra.mxu0 %v6439
    %7881 = vmatprep.subr.mxu0 %v6432
    %7882 = vmatpush1.msra.mxu0 %v6431
    %7883 = vmatprep.subr.mxu0 %v6424
    %7884 = vmatpush1.msra.mxu0 %v6423
    %7885 = vmatprep.subr.mxu0 %v6416
    %7886 = vmatpush1.msra.mxu0 %v6415
    %7887 = vmatprep.subr.mxu0 %v6408
    %7888 = vmatpush1.msra.mxu0 %v6407
    %7889 = vmatprep.subr.mxu0 %v6400
    %7890 = vmatpush1.msra.mxu0 %v6399
    %7891 = vmatprep.subr.mxu0 %v6392
    %7892 = vmatpush1.msra.mxu0 %v6391
    %7893 = vmatprep.subr.mxu0 %v6384
    %7894 = vmatpush1.msra.mxu0 %v6383
    %7895 = vmatprep.subr.mxu0 %v6376
    %7896 = vmatpush1.msra.mxu0 %v6375
    %7897 = vmatprep.subr.mxu0 %v6368
    %7898 = vmatpush1.msra.mxu0 %v6367
    %7899 = vmatprep.subr.mxu0 %v6616
    %7900 = vmatpush2.msra.mxu0 %v6615
    %7901 = vmatprep.subr.mxu0 %v6608
    %7902 = vmatpush2.msra.mxu0 %v6607
    %7903 = vmatprep.subr.mxu0 %v6600
    %7904 = vmatpush2.msra.mxu0 %v6599
    %7905 = vmatprep.subr.mxu0 %v6592
    %7906 = vmatpush2.msra.mxu0 %v6591
    %7907 = vmatprep.subr.mxu0 %v6584
    %7908 = vmatpush2.msra.mxu0 %v6583
    %7909 = vmatprep.subr.mxu0 %v6576
    %7910 = vmatpush2.msra.mxu0 %v6575
    %7911 = vmatprep.subr.mxu0 %v6568
    %7912 = vmatpush2.msra.mxu0 %v6567
    %7913 = vmatprep.subr.mxu0 %v6560
    %7914 = vmatpush2.msra.mxu0 %v6559
    %7915 = vmatprep.subr.mxu0 %v6552
    %7916 = vmatpush2.msra.mxu0 %v6551
    %7917 = vmatprep.subr.mxu0 %v6544
    %7918 = vmatpush2.msra.mxu0 %v6543
    %7919 = vmatprep.subr.mxu0 %v6536
    %7920 = vmatpush2.msra.mxu0 %v6535
    %7921 = vmatprep.subr.mxu0 %v6528
    %7922 = vmatpush2.msra.mxu0 %v6527
    %7923 = vmatprep.subr.mxu0 %v6520
    %7924 = vmatpush2.msra.mxu0 %v6519
    %7925 = vmatprep.subr.mxu0 %v6512
    %7926 = vmatpush2.msra.mxu0 %v6511
    %7927 = vmatprep.subr.mxu0 %v6504
    %7928 = vmatpush2.msra.mxu0 %v6503
    %7929 = vmatprep.subr.mxu0 %v6496
    %7930 = vmatpush2.msra.mxu0 %v6495
    %7931 = vmatprep.mubr.f32.mxu0 %v5843
    %7932 = vmatmul.mubr.f32.gmra.mxu0 %v5832
    %v7933 = vpop.f32.mrf.mxu0
    %v7934 = vadd.f32 %v7863, %v7933
    %v7935 = vpop.f32.mrf.mxu0
    %v7936 = vadd.f32 %v7865, %v7935
    %7937 = vdwg.mxu0
    %7938 = vmatprep.subr.mxu0 %v6744
    %7939 = vmatpush1.msra.mxu0 %v6743
    %7940 = vmatprep.subr.mxu0 %v6736
    %7941 = vmatpush1.msra.mxu0 %v6735
    %7942 = vmatprep.subr.mxu0 %v6728
    %7943 = vmatpush1.msra.mxu0 %v6727
    %7944 = vmatprep.subr.mxu0 %v6720
    %7945 = vmatpush1.msra.mxu0 %v6719
    %7946 = vmatprep.subr.mxu0 %v6712
    %7947 = vmatpush1.msra.mxu0 %v6711
    %7948 = vmatprep.subr.mxu0 %v6704
    %7949 = vmatpush1.msra.mxu0 %v6703
    %7950 = vmatprep.subr.mxu0 %v6696
    %7951 = vmatpush1.msra.mxu0 %v6695
    %7952 = vmatprep.subr.mxu0 %v6688
    %7953 = vmatpush1.msra.mxu0 %v6687
    %7954 = vmatprep.subr.mxu0 %v6680
    %7955 = vmatpush1.msra.mxu0 %v6679
    %7956 = vmatprep.subr.mxu0 %v6672
    %7957 = vmatpush1.msra.mxu0 %v6671
    %7958 = vmatprep.subr.mxu0 %v6664
    %7959 = vmatpush1.msra.mxu0 %v6663
    %7960 = vmatprep.subr.mxu0 %v6656
    %7961 = vmatpush1.msra.mxu0 %v6655
    %7962 = vmatprep.subr.mxu0 %v6648
    %7963 = vmatpush1.msra.mxu0 %v6647
    %7964 = vmatprep.subr.mxu0 %v6640
    %7965 = vmatpush1.msra.mxu0 %v6639
    %7966 = vmatprep.subr.mxu0 %v6632
    %7967 = vmatpush1.msra.mxu0 %v6631
    %7968 = vmatprep.subr.mxu0 %v6624
    %7969 = vmatpush1.msra.mxu0 %v6623
    %7970 = vmatprep.subr.mxu0 %v6872
    %7971 = vmatpush2.msra.mxu0 %v6871
    %7972 = vmatprep.subr.mxu0 %v6864
    %7973 = vmatpush2.msra.mxu0 %v6863
    %7974 = vmatprep.subr.mxu0 %v6856
    %7975 = vmatpush2.msra.mxu0 %v6855
    %7976 = vmatprep.subr.mxu0 %v6848
    %7977 = vmatpush2.msra.mxu0 %v6847
    %7978 = vmatprep.subr.mxu0 %v6840
    %7979 = vmatpush2.msra.mxu0 %v6839
    %7980 = vmatprep.subr.mxu0 %v6832
    %7981 = vmatpush2.msra.mxu0 %v6831
    %7982 = vmatprep.subr.mxu0 %v6824
    %7983 = vmatpush2.msra.mxu0 %v6823
    %7984 = vmatprep.subr.mxu0 %v6816
    %7985 = vmatpush2.msra.mxu0 %v6815
    %7986 = vmatprep.subr.mxu0 %v6808
    %7987 = vmatpush2.msra.mxu0 %v6807
    %7988 = vmatprep.subr.mxu0 %v6800
    %7989 = vmatpush2.msra.mxu0 %v6799
    %7990 = vmatprep.subr.mxu0 %v6792
    %7991 = vmatpush2.msra.mxu0 %v6791
    %7992 = vmatprep.subr.mxu0 %v6784
    %7993 = vmatpush2.msra.mxu0 %v6783
    %7994 = vmatprep.subr.mxu0 %v6776
    %7995 = vmatpush2.msra.mxu0 %v6775
    %7996 = vmatprep.subr.mxu0 %v6768
    %7997 = vmatpush2.msra.mxu0 %v6767
    %7998 = vmatprep.subr.mxu0 %v6760
    %7999 = vmatpush2.msra.mxu0 %v6759
    %8000 = vmatprep.subr.mxu0 %v6752
    %8001 = vmatpush2.msra.mxu0 %v6751
    %8002 = vmatprep.mubr.f32.mxu0 %v5847
    %8003 = vmatmul.mubr.f32.gmra.mxu0 %v5845
    %v8004 = vpop.f32.mrf.mxu0
    %v8005 = vadd.f32 %v7934, %v8004
    %v8006 = vpop.f32.mrf.mxu0
    %v8007 = vadd.f32 %v7936, %v8006
    %8008 = vdwg.mxu0
    %v8010 = vrot.slane %v7155, 6
    %v8013 = vrot.slane %v7437, 4
    %v8016 = vrot.slane %v7439, 2
    %v8019 = vrot.slane %v7723, 6
    %v8022 = vrot.slane %v8005, 4
    %v8025 = vrot.slane %v8007, 2
    %v8027 = vsel %vm448, %v7153, %v8010
    %v8028 = vsel %vm2976, %v8027, %v8013
    %v8029 = vsel %vm2978, %v8028, %v8016
    %v8030 = vsel %vm448, %v7721, %v8019
    %v8031 = vsel %vm2976, %v8030, %v8022
    %v8032 = vsel %vm2978, %v8031, %v8025
    %v8033 = vld [vmem:[#allocation35] sm:$0xff]
    %v8034 = vld [vmem:[#allocation35 + $0x8] sm:$0xff]
    %v8035 = vld [vmem:[#allocation35 + $0x10] sm:$0xff]
    %v8036 = vld [vmem:[#allocation35 + $0x18] sm:$0xff]
    %v8037 = vld [vmem:[#allocation35 + $0x20] sm:$0xff]
    %v8038 = vld [vmem:[#allocation35 + $0x28] sm:$0xff]
    %v8039 = vld [vmem:[#allocation35 + $0x30] sm:$0xff]
    %v8040 = vld [vmem:[#allocation35 + $0x38] sm:$0xff]
    %v8041 = vld [vmem:[#allocation35 + $0x40] sm:$0xff]
    %v8042 = vld [vmem:[#allocation35 + $0x48] sm:$0xff]
    %v8043 = vld [vmem:[#allocation35 + $0x50] sm:$0xff]
    %v8044 = vld [vmem:[#allocation35 + $0x58] sm:$0xff]
    %v8045 = vld [vmem:[#allocation35 + $0x60] sm:$0xff]
    %v8046 = vld [vmem:[#allocation35 + $0x68] sm:$0xff]
    %v8047 = vld [vmem:[#allocation35 + $0x70] sm:$0xff]
    %v8048 = vld [vmem:[#allocation35 + $0x78] sm:$0xff]
    %v8049 = vld [vmem:[#allocation36] sm:$0x1]
    %v8051 = vlaneseq
    %v8052 = vshrl.u32 %v8051, 7
    %v8053 = vsub.s32 0, %v8052
    %v8054 = vrot.slane %v8049, %v8053
    %8056 = vmatprep.subr.mxu0 0.0
    %8057 = vmatpush1.msra.mxu0 %v8048
    %8058 = vmatprep.subr.mxu0 0.0
    %8059 = vmatpush1.msra.mxu0 %v8047
    %8060 = vmatprep.subr.mxu0 0.0
    %8061 = vmatpush1.msra.mxu0 %v8046
    %8062 = vmatprep.subr.mxu0 0.0
    %8063 = vmatpush1.msra.mxu0 %v8045
    %8064 = vmatprep.subr.mxu0 0.0
    %8065 = vmatpush1.msra.mxu0 %v8044
    %8066 = vmatprep.subr.mxu0 0.0
    %8067 = vmatpush1.msra.mxu0 %v8043
    %8068 = vmatprep.subr.mxu0 0.0
    %8069 = vmatpush1.msra.mxu0 %v8042
    %8070 = vmatprep.subr.mxu0 0.0
    %8071 = vmatpush1.msra.mxu0 %v8041
    %8072 = vmatprep.subr.mxu0 0.0
    %8073 = vmatpush1.msra.mxu0 %v8040
    %8074 = vmatprep.subr.mxu0 0.0
    %8075 = vmatpush1.msra.mxu0 %v8039
    %8076 = vmatprep.subr.mxu0 0.0
    %8077 = vmatpush1.msra.mxu0 %v8038
    %8078 = vmatprep.subr.mxu0 0.0
    %8079 = vmatpush1.msra.mxu0 %v8037
    %8080 = vmatprep.subr.mxu0 0.0
    %8081 = vmatpush1.msra.mxu0 %v8036
    %8082 = vmatprep.subr.mxu0 0.0
    %8083 = vmatpush1.msra.mxu0 %v8035
    %8084 = vmatprep.subr.mxu0 0.0
    %8085 = vmatpush1.msra.mxu0 %v8034
    %8086 = vmatprep.subr.mxu0 0.0
    %8087 = vmatpush1.msra.mxu0 %v8033
    %8088 = vmatprep.subr.mxu0 0.0
    %8089 = vmatpush2.msra.mxu0 0.0
    %8090 = vmatprep.subr.mxu0 0.0
    %8091 = vmatpush2.msra.mxu0 0.0
    %8092 = vmatprep.subr.mxu0 0.0
    %8093 = vmatpush2.msra.mxu0 0.0
    %8094 = vmatprep.subr.mxu0 0.0
    %8095 = vmatpush2.msra.mxu0 0.0
    %8096 = vmatprep.subr.mxu0 0.0
    %8097 = vmatpush2.msra.mxu0 0.0
    %8098 = vmatprep.subr.mxu0 0.0
    %8099 = vmatpush2.msra.mxu0 0.0
    %8100 = vmatprep.subr.mxu0 0.0
    %8101 = vmatpush2.msra.mxu0 0.0
    %8102 = vmatprep.subr.mxu0 0.0
    %8103 = vmatpush2.msra.mxu0 0.0
    %8104 = vmatprep.subr.mxu0 0.0
    %8105 = vmatpush2.msra.mxu0 0.0
    %8106 = vmatprep.subr.mxu0 0.0
    %8107 = vmatpush2.msra.mxu0 0.0
    %8108 = vmatprep.subr.mxu0 0.0
    %8109 = vmatpush2.msra.mxu0 0.0
    %8110 = vmatprep.subr.mxu0 0.0
    %8111 = vmatpush2.msra.mxu0 0.0
    %8112 = vmatprep.subr.mxu0 0.0
    %8113 = vmatpush2.msra.mxu0 0.0
    %8114 = vmatprep.subr.mxu0 0.0
    %8115 = vmatpush2.msra.mxu0 0.0
    %8116 = vmatprep.subr.mxu0 0.0
    %8117 = vmatpush2.msra.mxu0 0.0
    %8118 = vmatprep.subr.mxu0 0.0
    %8119 = vmatpush2.msra.mxu0 0.0
    %8120 = vmatprep.mubr.f32.mxu0 0.0
    %8121 = vmatmul.mubr.f32.gmra.mxu0 %v5756
    %v8122 = vpop.f32.mrf.mxu0
    %v8123 = vadd.f32 %v8054, %v8122
    %v8124 = vpop.f32.mrf.mxu0
    %8125 = vmatprep.mubr.f32.mxu0 0.0
    %8126 = vmatmul.mubr.f32.gmra.mxu0 %v5757
    %v8127 = vpop.f32.mrf.mxu0
    %v8128 = vadd.f32 %v8054, %v8127
    %v8129 = vpop.f32.mrf.mxu0
    %8130 = vmatprep.mubr.f32.mxu0 0.0
    %8131 = vmatmul.mubr.f32.gmra.mxu0 %v5758
    %v8132 = vpop.f32.mrf.mxu0
    %v8133 = vadd.f32 %v8054, %v8132
    %v8134 = vpop.f32.mrf.mxu0
    %8135 = vmatprep.mubr.f32.mxu0 0.0
    %8136 = vmatmul.mubr.f32.gmra.mxu0 %v5759
    %v8137 = vpop.f32.mrf.mxu0
    %v8138 = vadd.f32 %v8054, %v8137
    %v8139 = vpop.f32.mrf.mxu0
    %8140 = vdwg.mxu0
    %8141 = vmatprep.subr.mxu0 0.0
    %8142 = vmatpush1.msra.mxu0 0.0
    %8143 = vmatprep.subr.mxu0 0.0
    %8144 = vmatpush1.msra.mxu0 0.0
    %8145 = vmatprep.subr.mxu0 0.0
    %8146 = vmatpush1.msra.mxu0 0.0
    %8147 = vmatprep.subr.mxu0 0.0
    %8148 = vmatpush1.msra.mxu0 0.0
    %8149 = vmatprep.subr.mxu0 0.0
    %8150 = vmatpush1.msra.mxu0 0.0
    %8151 = vmatprep.subr.mxu0 0.0
    %8152 = vmatpush1.msra.mxu0 0.0
    %8153 = vmatprep.subr.mxu0 0.0
    %8154 = vmatpush1.msra.mxu0 0.0
    %8155 = vmatprep.subr.mxu0 0.0
    %8156 = vmatpush1.msra.mxu0 0.0
    %8157 = vmatprep.subr.mxu0 0.0
    %8158 = vmatpush1.msra.mxu0 0.0
    %8159 = vmatprep.subr.mxu0 0.0
    %8160 = vmatpush1.msra.mxu0 0.0
    %8161 = vmatprep.subr.mxu0 0.0
    %8162 = vmatpush1.msra.mxu0 0.0
    %8163 = vmatprep.subr.mxu0 0.0
    %8164 = vmatpush1.msra.mxu0 0.0
    %8165 = vmatprep.subr.mxu0 0.0
    %8166 = vmatpush1.msra.mxu0 0.0
    %8167 = vmatprep.subr.mxu0 0.0
    %8168 = vmatpush1.msra.mxu0 0.0
    %8169 = vmatprep.subr.mxu0 0.0
    %8170 = vmatpush1.msra.mxu0 %v8032
    %8171 = vmatprep.subr.mxu0 0.0
    %8172 = vmatpush1.msra.mxu0 %v8029
    %8173 = vmatprep.subr.mxu0 0.0
    %8174 = vmatpush2.msra.mxu0 0.0
    %8175 = vmatprep.subr.mxu0 0.0
    %8176 = vmatpush2.msra.mxu0 0.0
    %8177 = vmatprep.subr.mxu0 0.0
    %8178 = vmatpush2.msra.mxu0 0.0
    %8179 = vmatprep.subr.mxu0 0.0
    %8180 = vmatpush2.msra.mxu0 0.0
    %8181 = vmatprep.subr.mxu0 0.0
    %8182 = vmatpush2.msra.mxu0 0.0
    %8183 = vmatprep.subr.mxu0 0.0
    %8184 = vmatpush2.msra.mxu0 0.0
    %8185 = vmatprep.subr.mxu0 0.0
    %8186 = vmatpush2.msra.mxu0 0.0
    %8187 = vmatprep.subr.mxu0 0.0
    %8188 = vmatpush2.msra.mxu0 0.0
    %8189 = vmatprep.subr.mxu0 0.0
    %8190 = vmatpush2.msra.mxu0 0.0
    %8191 = vmatprep.subr.mxu0 0.0
    %8192 = vmatpush2.msra.mxu0 0.0
    %8193 = vmatprep.subr.mxu0 0.0
    %8194 = vmatpush2.msra.mxu0 0.0
    %8195 = vmatprep.subr.mxu0 0.0
    %8196 = vmatpush2.msra.mxu0 0.0
    %8197 = vmatprep.subr.mxu0 0.0
    %8198 = vmatpush2.msra.mxu0 0.0
    %8199 = vmatprep.subr.mxu0 0.0
    %8200 = vmatpush2.msra.mxu0 0.0
    %8201 = vmatprep.subr.mxu0 0.0
    %8202 = vmatpush2.msra.mxu0 0.0
    %8203 = vmatprep.subr.mxu0 0.0
    %8204 = vmatpush2.msra.mxu0 0.0
    %8205 = vmatprep.mubr.f32.mxu0 0.0
    %8206 = vmatmul.mubr.f32.gmra.mxu0 %v3092
    %v8207 = vpop.f32.mrf.mxu0
    %v8208 = vadd.f32 %v8123, %v8207
    %v8209 = vpop.f32.mrf.mxu0
    %8210 = vmatprep.mubr.f32.mxu0 0.0
    %8211 = vmatmul.mubr.f32.gmra.mxu0 %v3095
    %v8212 = vpop.f32.mrf.mxu0
    %v8213 = vadd.f32 %v8128, %v8212
    %v8214 = vpop.f32.mrf.mxu0
    %8215 = vmatprep.mubr.f32.mxu0 0.0
    %8216 = vmatmul.mubr.f32.gmra.mxu0 %v3098
    %v8217 = vpop.f32.mrf.mxu0
    %v8218 = vadd.f32 %v8133, %v8217
    %v8219 = vpop.f32.mrf.mxu0
    %8220 = vmatprep.mubr.f32.mxu0 0.0
    %8221 = vmatmul.mubr.f32.gmra.mxu0 %v3101
    %v8222 = vpop.f32.mrf.mxu0
    %v8223 = vadd.f32 %v8138, %v8222
    %v8224 = vpop.f32.mrf.mxu0
    %8225 = vdwg.mxu0
    %v8226 = vadd.f32 %v8208, %v8213
    %v8227 = vadd.f32 %v8226, %v8218
    %v8228 = vadd.f32 %v8227, %v8223
    %v8229 = vrot.slane %v8228, 4
    %v8230 = vadd.f32 %v8228, %v8229
    %v8231 = vrot.slane %v8230, 2
    %v8232 = vadd.f32 %v8230, %v8231
    %v8233 = vrot.slane %v8232, 1
    %v8234 = vadd.f32 %v8232, %v8233
    %v8235 = vmul.f32 %v8234, 0.03125
    %v8236 = vmul.f32 %v8208, %v8208
    %v8237 = vmul.f32 %v8213, %v8213
    %v8238 = vmul.f32 %v8218, %v8218
    %v8239 = vmul.f32 %v8223, %v8223
    %v8240 = vadd.f32 %v8236, %v8237
    %v8241 = vadd.f32 %v8240, %v8238
    %v8242 = vadd.f32 %v8241, %v8239
    %v8243 = vrot.slane %v8242, 4
    %v8244 = vadd.f32 %v8242, %v8243
    %v8245 = vrot.slane %v8244, 2
    %v8246 = vadd.f32 %v8244, %v8245
    %v8247 = vrot.slane %v8246, 1
    %v8248 = vadd.f32 %v8246, %v8247
    %v8249 = vmul.f32 %v8248, 0.03125
    %v8250 = vmul.f32 %v8235, %v8235
    %v8251 = vsub.f32 %v8249, %v8250
    %v8252 = vadd.f32 %v8251, 1e-05
    %v8253 = vrsqrt.pop %v8252
    %v8254 = vsub.f32 %v8208, %v8235
    %v8255 = vsub.f32 %v8213, %v8235
    %v8256 = vsub.f32 %v8218, %v8235
    %v8257 = vsub.f32 %v8223, %v8235
    %v8258 = vld [vmem:[#allocation20] sm:$0x1]
    %v8259 = vmul.f32 %v8253, %v8258
    %v8260 = vlaneseq
    %v8261 = vshrl.u32 %v8260, 7
    %v8262 = vsub.s32 0, %v8261
    %v8263 = vrot.slane %v8259, %v8262
    %v8264 = vmul.f32 %v8254, %v8263
    %v8265 = vmul.f32 %v8255, %v8263
    %v8266 = vmul.f32 %v8256, %v8263
    %v8267 = vmul.f32 %v8257, %v8263
    %v8268 = vld [vmem:[#allocation21] sm:$0x1]
    %v8270 = vlaneseq
    %v8271 = vshrl.u32 %v8270, 7
    %v8272 = vsub.s32 0, %v8271
    %v8273 = vrot.slane %v8268, %v8272
    %v8275 = vadd.f32 %v8264, %v8273
    %v8276 = vadd.f32 %v8265, %v8273
    %v8277 = vadd.f32 %v8266, %v8273
    %v8278 = vadd.f32 %v8267, %v8273
    %v8279 = vld [vmem:[#allocation38] sm:$0xff]
    %v8280 = vld [vmem:[#allocation38 + $0x8] sm:$0xff]
    %v8281 = vld [vmem:[#allocation38 + $0x10] sm:$0xff]
    %v8282 = vld [vmem:[#allocation38 + $0x18] sm:$0xff]
    %v8283 = vld [vmem:[#allocation38 + $0x20] sm:$0xff]
    %v8284 = vld [vmem:[#allocation38 + $0x28] sm:$0xff]
    %v8285 = vld [vmem:[#allocation38 + $0x30] sm:$0xff]
    %v8286 = vld [vmem:[#allocation38 + $0x38] sm:$0xff]
    %v8287 = vld [vmem:[#allocation38 + $0x40] sm:$0xff]
    %v8288 = vld [vmem:[#allocation38 + $0x48] sm:$0xff]
    %v8289 = vld [vmem:[#allocation38 + $0x50] sm:$0xff]
    %v8290 = vld [vmem:[#allocation38 + $0x58] sm:$0xff]
    %v8291 = vld [vmem:[#allocation38 + $0x60] sm:$0xff]
    %v8292 = vld [vmem:[#allocation38 + $0x68] sm:$0xff]
    %v8293 = vld [vmem:[#allocation38 + $0x70] sm:$0xff]
    %v8294 = vld [vmem:[#allocation38 + $0x78] sm:$0xff]
    %v8295 = vld [vmem:[#allocation39] sm:$0x1]
    %v8297 = vlaneseq
    %v8298 = vshrl.u32 %v8297, 7
    %v8299 = vsub.s32 0, %v8298
    %v8300 = vrot.slane %v8295, %v8299
    %8302 = vmatprep.subr.mxu0 0.0
    %8303 = vmatpush1.msra.mxu0 %v8294
    %8304 = vmatprep.subr.mxu0 0.0
    %8305 = vmatpush1.msra.mxu0 %v8293
    %8306 = vmatprep.subr.mxu0 0.0
    %8307 = vmatpush1.msra.mxu0 %v8292
    %8308 = vmatprep.subr.mxu0 0.0
    %8309 = vmatpush1.msra.mxu0 %v8291
    %8310 = vmatprep.subr.mxu0 0.0
    %8311 = vmatpush1.msra.mxu0 %v8290
    %8312 = vmatprep.subr.mxu0 0.0
    %8313 = vmatpush1.msra.mxu0 %v8289
    %8314 = vmatprep.subr.mxu0 0.0
    %8315 = vmatpush1.msra.mxu0 %v8288
    %8316 = vmatprep.subr.mxu0 0.0
    %8317 = vmatpush1.msra.mxu0 %v8287
    %8318 = vmatprep.subr.mxu0 0.0
    %8319 = vmatpush1.msra.mxu0 %v8286
    %8320 = vmatprep.subr.mxu0 0.0
    %8321 = vmatpush1.msra.mxu0 %v8285
    %8322 = vmatprep.subr.mxu0 0.0
    %8323 = vmatpush1.msra.mxu0 %v8284
    %8324 = vmatprep.subr.mxu0 0.0
    %8325 = vmatpush1.msra.mxu0 %v8283
    %8326 = vmatprep.subr.mxu0 0.0
    %8327 = vmatpush1.msra.mxu0 %v8282
    %8328 = vmatprep.subr.mxu0 0.0
    %8329 = vmatpush1.msra.mxu0 %v8281
    %8330 = vmatprep.subr.mxu0 0.0
    %8331 = vmatpush1.msra.mxu0 %v8280
    %8332 = vmatprep.subr.mxu0 0.0
    %8333 = vmatpush1.msra.mxu0 %v8279
    %8334 = vmatprep.subr.mxu0 0.0
    %8335 = vmatpush2.msra.mxu0 0.0
    %8336 = vmatprep.subr.mxu0 0.0
    %8337 = vmatpush2.msra.mxu0 0.0
    %8338 = vmatprep.subr.mxu0 0.0
    %8339 = vmatpush2.msra.mxu0 0.0
    %8340 = vmatprep.subr.mxu0 0.0
    %8341 = vmatpush2.msra.mxu0 0.0
    %8342 = vmatprep.subr.mxu0 0.0
    %8343 = vmatpush2.msra.mxu0 0.0
    %8344 = vmatprep.subr.mxu0 0.0
    %8345 = vmatpush2.msra.mxu0 0.0
    %8346 = vmatprep.subr.mxu0 0.0
    %8347 = vmatpush2.msra.mxu0 0.0
    %8348 = vmatprep.subr.mxu0 0.0
    %8349 = vmatpush2.msra.mxu0 0.0
    %8350 = vmatprep.subr.mxu0 0.0
    %8351 = vmatpush2.msra.mxu0 0.0
    %8352 = vmatprep.subr.mxu0 0.0
    %8353 = vmatpush2.msra.mxu0 0.0
    %8354 = vmatprep.subr.mxu0 0.0
    %8355 = vmatpush2.msra.mxu0 0.0
    %8356 = vmatprep.subr.mxu0 0.0
    %8357 = vmatpush2.msra.mxu0 0.0
    %8358 = vmatprep.subr.mxu0 0.0
    %8359 = vmatpush2.msra.mxu0 0.0
    %8360 = vmatprep.subr.mxu0 0.0
    %8361 = vmatpush2.msra.mxu0 0.0
    %8362 = vmatprep.subr.mxu0 0.0
    %8363 = vmatpush2.msra.mxu0 0.0
    %8364 = vmatprep.subr.mxu0 0.0
    %8365 = vmatpush2.msra.mxu0 0.0
    %8366 = vmatprep.mubr.f32.mxu0 0.0
    %8367 = vmatmul.mubr.f32.gmra.mxu0 %v8275
    %v8368 = vpop.f32.mrf.mxu0
    %v8369 = vadd.f32 %v8300, %v8368
    %v8370 = vpop.f32.mrf.mxu0
    %8371 = vmatprep.mubr.f32.mxu0 0.0
    %8372 = vmatmul.mubr.f32.gmra.mxu0 %v8276
    %v8373 = vpop.f32.mrf.mxu0
    %v8374 = vadd.f32 %v8300, %v8373
    %v8375 = vpop.f32.mrf.mxu0
    %8376 = vmatprep.mubr.f32.mxu0 0.0
    %8377 = vmatmul.mubr.f32.gmra.mxu0 %v8277
    %v8378 = vpop.f32.mrf.mxu0
    %v8379 = vadd.f32 %v8300, %v8378
    %v8380 = vpop.f32.mrf.mxu0
    %8381 = vmatprep.mubr.f32.mxu0 0.0
    %8382 = vmatmul.mubr.f32.gmra.mxu0 %v8278
    %v8383 = vpop.f32.mrf.mxu0
    %v8384 = vadd.f32 %v8300, %v8383
    %v8385 = vpop.f32.mrf.mxu0
    %8386 = vdwg.mxu0
    %v8387 = vmax.f32 %v8369, 0.0
    %v8388 = vmax.f32 %v8374, 0.0
    %v8389 = vmax.f32 %v8379, 0.0
    %v8390 = vmax.f32 %v8384, 0.0
    %v8391 = vld [vmem:[%s55] sm:$0xff]
    %v8392 = vld [vmem:[%s55 + $0x8] sm:$0xff]
    %v8393 = vld [vmem:[%s55 + $0x10] sm:$0xff]
    %v8394 = vld [vmem:[%s55 + $0x18] sm:$0xff]
    %v8395 = vld [vmem:[%s55 + $0x20] sm:$0xff]
    %v8396 = vld [vmem:[%s55 + $0x28] sm:$0xff]
    %v8397 = vld [vmem:[%s55 + $0x30] sm:$0xff]
    %v8398 = vld [vmem:[%s55 + $0x38] sm:$0xff]
    %v8399 = vld [vmem:[%s55 + $0x40] sm:$0xff]
    %v8400 = vld [vmem:[%s55 + $0x48] sm:$0xff]
    %v8401 = vld [vmem:[%s55 + $0x50] sm:$0xff]
    %v8402 = vld [vmem:[%s55 + $0x58] sm:$0xff]
    %v8403 = vld [vmem:[%s55 + $0x60] sm:$0xff]
    %v8404 = vld [vmem:[%s55 + $0x68] sm:$0xff]
    %v8405 = vld [vmem:[%s55 + $0x70] sm:$0xff]
    %v8406 = vld [vmem:[%s55 + $0x78] sm:$0xff]
    %v8407 = vld [vmem:[#allocation2] sm:$0x1]
    %v8409 = vlaneseq
    %v8410 = vshrl.u32 %v8409, 7
    %v8411 = vsub.s32 0, %v8410
    %v8412 = vrot.slane %v8407, %v8411
    %8414 = vmatprep.subr.mxu0 0.0
    %8415 = vmatpush1.msra.mxu0 %v8406
    %8416 = vmatprep.subr.mxu0 0.0
    %8417 = vmatpush1.msra.mxu0 %v8405
    %8418 = vmatprep.subr.mxu0 0.0
    %8419 = vmatpush1.msra.mxu0 %v8404
    %8420 = vmatprep.subr.mxu0 0.0
    %8421 = vmatpush1.msra.mxu0 %v8403
    %8422 = vmatprep.subr.mxu0 0.0
    %8423 = vmatpush1.msra.mxu0 %v8402
    %8424 = vmatprep.subr.mxu0 0.0
    %8425 = vmatpush1.msra.mxu0 %v8401
    %8426 = vmatprep.subr.mxu0 0.0
    %8427 = vmatpush1.msra.mxu0 %v8400
    %8428 = vmatprep.subr.mxu0 0.0
    %8429 = vmatpush1.msra.mxu0 %v8399
    %8430 = vmatprep.subr.mxu0 0.0
    %8431 = vmatpush1.msra.mxu0 %v8398
    %8432 = vmatprep.subr.mxu0 0.0
    %8433 = vmatpush1.msra.mxu0 %v8397
    %8434 = vmatprep.subr.mxu0 0.0
    %8435 = vmatpush1.msra.mxu0 %v8396
    %8436 = vmatprep.subr.mxu0 0.0
    %8437 = vmatpush1.msra.mxu0 %v8395
    %8438 = vmatprep.subr.mxu0 0.0
    %8439 = vmatpush1.msra.mxu0 %v8394
    %8440 = vmatprep.subr.mxu0 0.0
    %8441 = vmatpush1.msra.mxu0 %v8393
    %8442 = vmatprep.subr.mxu0 0.0
    %8443 = vmatpush1.msra.mxu0 %v8392
    %8444 = vmatprep.subr.mxu0 0.0
    %8445 = vmatpush1.msra.mxu0 %v8391
    %8446 = vmatprep.subr.mxu0 0.0
    %8447 = vmatpush2.msra.mxu0 0.0
    %8448 = vmatprep.subr.mxu0 0.0
    %8449 = vmatpush2.msra.mxu0 0.0
    %8450 = vmatprep.subr.mxu0 0.0
    %8451 = vmatpush2.msra.mxu0 0.0
    %8452 = vmatprep.subr.mxu0 0.0
    %8453 = vmatpush2.msra.mxu0 0.0
    %8454 = vmatprep.subr.mxu0 0.0
    %8455 = vmatpush2.msra.mxu0 0.0
    %8456 = vmatprep.subr.mxu0 0.0
    %8457 = vmatpush2.msra.mxu0 0.0
    %8458 = vmatprep.subr.mxu0 0.0
    %8459 = vmatpush2.msra.mxu0 0.0
    %8460 = vmatprep.subr.mxu0 0.0
    %8461 = vmatpush2.msra.mxu0 0.0
    %8462 = vmatprep.subr.mxu0 0.0
    %8463 = vmatpush2.msra.mxu0 0.0
    %8464 = vmatprep.subr.mxu0 0.0
    %8465 = vmatpush2.msra.mxu0 0.0
    %8466 = vmatprep.subr.mxu0 0.0
    %8467 = vmatpush2.msra.mxu0 0.0
    %8468 = vmatprep.subr.mxu0 0.0
    %8469 = vmatpush2.msra.mxu0 0.0
    %8470 = vmatprep.subr.mxu0 0.0
    %8471 = vmatpush2.msra.mxu0 0.0
    %8472 = vmatprep.subr.mxu0 0.0
    %8473 = vmatpush2.msra.mxu0 0.0
    %8474 = vmatprep.subr.mxu0 0.0
    %8475 = vmatpush2.msra.mxu0 0.0
    %8476 = vmatprep.subr.mxu0 0.0
    %8477 = vmatpush2.msra.mxu0 0.0
    %8478 = vmatprep.mubr.f32.mxu0 0.0
    %8479 = vmatmul.mubr.f32.gmra.mxu0 %v8387
    %v8480 = vpop.f32.mrf.mxu0
    %v8481 = vadd.f32 %v8412, %v8480
    %v8482 = vpop.f32.mrf.mxu0
    %8483 = vmatprep.mubr.f32.mxu0 0.0
    %8484 = vmatmul.mubr.f32.gmra.mxu0 %v8388
    %v8485 = vpop.f32.mrf.mxu0
    %v8486 = vadd.f32 %v8412, %v8485
    %v8487 = vpop.f32.mrf.mxu0
    %8488 = vmatprep.mubr.f32.mxu0 0.0
    %8489 = vmatmul.mubr.f32.gmra.mxu0 %v8389
    %v8490 = vpop.f32.mrf.mxu0
    %v8491 = vadd.f32 %v8412, %v8490
    %v8492 = vpop.f32.mrf.mxu0
    %8493 = vmatprep.mubr.f32.mxu0 0.0
    %8494 = vmatmul.mubr.f32.gmra.mxu0 %v8390
    %v8495 = vpop.f32.mrf.mxu0
    %v8496 = vadd.f32 %v8412, %v8495
    %v8497 = vpop.f32.mrf.mxu0
    %8498 = vdwg.mxu0
    %v8499 = vld [vmem:[#allocation6] sm:$0x3]
    %8501 = vset.pattern.permute.xlu0 0
    %8502 = vperm.xlu0 %8501, %v8481
    %v8503 = vpop.permute.xlu0 %8502
    %8506 = vset.pattern.permute.xlu0 0
    %8507 = vperm.xlu0 %8506, %v8486
    %v8508 = vpop.permute.xlu0 %8507
    %8511 = vset.pattern.permute.xlu0 0
    %8512 = vperm.xlu0 %8511, %v8491
    %v8513 = vpop.permute.xlu0 %8512
    %8516 = vset.pattern.permute.xlu0 0
    %8517 = vperm.xlu0 %8516, %v8496
    %v8518 = vpop.permute.xlu0 %8517
    %v8520 = vmul.f32 %v8503, %v426
    %v8521 = vmul.f32 %v8508, %v427
    %v8522 = vmul.f32 %v8513, %v428
    %v8523 = vmul.f32 %v8518, %v429
    %v8525 = vsel %vm701, %v8499, 0
    %8527 = vmatprep.subr.mxu0 0.0
    %8528 = vmatpush1.msra.mxu0 0.0
    %8529 = vmatprep.subr.mxu0 0.0
    %8530 = vmatpush1.msra.mxu0 0.0
    %8531 = vmatprep.subr.mxu0 0.0
    %8532 = vmatpush1.msra.mxu0 0.0
    %8533 = vmatprep.subr.mxu0 0.0
    %8534 = vmatpush1.msra.mxu0 0.0
    %8535 = vmatprep.subr.mxu0 0.0
    %8536 = vmatpush1.msra.mxu0 0.0
    %8537 = vmatprep.subr.mxu0 0.0
    %8538 = vmatpush1.msra.mxu0 0.0
    %8539 = vmatprep.subr.mxu0 0.0
    %8540 = vmatpush1.msra.mxu0 0.0
    %8541 = vmatprep.subr.mxu0 0.0
    %8542 = vmatpush1.msra.mxu0 0.0
    %8543 = vmatprep.subr.mxu0 0.0
    %8544 = vmatpush1.msra.mxu0 0.0
    %8545 = vmatprep.subr.mxu0 0.0
    %8546 = vmatpush1.msra.mxu0 0.0
    %8547 = vmatprep.subr.mxu0 0.0
    %8548 = vmatpush1.msra.mxu0 0.0
    %8549 = vmatprep.subr.mxu0 0.0
    %8550 = vmatpush1.msra.mxu0 0.0
    %8551 = vmatprep.subr.mxu0 0.0
    %8552 = vmatpush1.msra.mxu0 %v8523
    %8553 = vmatprep.subr.mxu0 0.0
    %8554 = vmatpush1.msra.mxu0 %v8522
    %8555 = vmatprep.subr.mxu0 0.0
    %8556 = vmatpush1.msra.mxu0 %v8521
    %8557 = vmatprep.subr.mxu0 0.0
    %8558 = vmatpush1.msra.mxu0 %v8520
    %8559 = vmatprep.subr.mxu0 0.0
    %8560 = vmatpush2.msra.mxu0 0.0
    %8561 = vmatprep.subr.mxu0 0.0
    %8562 = vmatpush2.msra.mxu0 0.0
    %8563 = vmatprep.subr.mxu0 0.0
    %8564 = vmatpush2.msra.mxu0 0.0
    %8565 = vmatprep.subr.mxu0 0.0
    %8566 = vmatpush2.msra.mxu0 0.0
    %8567 = vmatprep.subr.mxu0 0.0
    %8568 = vmatpush2.msra.mxu0 0.0
    %8569 = vmatprep.subr.mxu0 0.0
    %8570 = vmatpush2.msra.mxu0 0.0
    %8571 = vmatprep.subr.mxu0 0.0
    %8572 = vmatpush2.msra.mxu0 0.0
    %8573 = vmatprep.subr.mxu0 0.0
    %8574 = vmatpush2.msra.mxu0 0.0
    %8575 = vmatprep.subr.mxu0 0.0
    %8576 = vmatpush2.msra.mxu0 0.0
    %8577 = vmatprep.subr.mxu0 0.0
    %8578 = vmatpush2.msra.mxu0 0.0
    %8579 = vmatprep.subr.mxu0 0.0
    %8580 = vmatpush2.msra.mxu0 0.0
    %8581 = vmatprep.subr.mxu0 0.0
    %8582 = vmatpush2.msra.mxu0 0.0
    %8583 = vmatprep.subr.mxu0 0.0
    %8584 = vmatpush2.msra.mxu0 0.0
    %8585 = vmatprep.subr.mxu0 0.0
    %8586 = vmatpush2.msra.mxu0 0.0
    %8587 = vmatprep.subr.mxu0 0.0
    %8588 = vmatpush2.msra.mxu0 0.0
    %8589 = vmatprep.subr.mxu0 0.0
    %8590 = vmatpush2.msra.mxu0 0.0
    %8591 = vmatprep.mubr.f32.mxu0 0.0
    %8592 = vmatmul.mubr.f32.gmra.mxu0 %v8525
    %v8593 = vpop.f32.mrf.mxu0
    %v8594 = vadd.f32 0.0, %v8593
    %v8595 = vpop.f32.mrf.mxu0
    %8596 = vdwg.mxu0
    %vm8597 = vcmask 123904
    %8598 = vst.msk [vmem:[#allocation41] sm:$0x3] %vm8597, %v8594
    // Predicated region
    $region214: #{tpu_custom_call.1} parent=1 // pred_check
      _
    $region215: #{tpu_custom_call.1} parent=1 // pred_check_branch
      %8600 = sbr.rel (0) target = $region217
    $region216: #{tpu_custom_call.1} parent=1 // pred_region
      %s8602 = ssub.s32 32, 32
      %8603 = vsyncadd [#allocation5], %s8602
      %s8605 = sshll.u32 [#allocation41], 4
      %s8606 = int_to_ptr.vmem [resolvable:$true] %s8605
      %8608 = dma.vmem_to_hbm [thread:$0]  %s8606, 32, %s59, [#allocation5]
    $region217: #{tpu_custom_call.1} parent=1 // pred_fallthru
      _
    // Predicated region
    $region218: #{tpu_custom_call.1} parent=1 // pred_check
      _
    $region219: #{tpu_custom_call.1} parent=1 // pred_check_branch
      %8610 = sbr.rel (0) target = $region221
    $region220: #{tpu_custom_call.1} parent=1 // pred_region
      %8611 = dma.done [#allocation5], 32
    $region221: #{tpu_custom_call.1} parent=1 // pred_fallthru
      _
    %8612 = vsyncpa [#allocation4], 1
    %8613 = vsyncpa [#allocation7], 1
    %8614 = vsyncpa [#allocation10], 1
    %8615 = vsyncpa [#allocation13], 1
    %8616 = vsyncpa [#allocation16], 1
    %8617 = vsyncpa [#allocation19], 1
    %8618 = vsyncpa [#allocation22], 1
    %8619 = vsyncpa [#allocation25], 1
    %8620 = vsyncpa [#allocation28], 1
    %8621 = vsyncpa [#allocation31], 1
    %8622 = vsyncpa [#allocation34], 1
    %8623 = vsyncpa [#allocation37], 1
    %8624 = vsyncpa [#allocation40], 1
    %8625 = vsyncpa [#allocation5], 1

</llo_original>
